<compile_context>
chip_gen: v7x
topology: tpu7x:2x2x1
jax: 0.10.0
libtpu: 0.0.40
codegen_flags: <defaults>
</compile_context>

<pallas_src>
import functools
import math

import jax
import jax.numpy as jnp
from jax.experimental import pallas as pl
from jax.experimental.pallas import tpu as pltpu

LN_EPS = 1e-5  # PyTorch nn.LayerNorm default


def _layer_norm(x, gamma, beta):
    mu = jnp.mean(x, axis=-1, keepdims=True)
    var = jnp.mean(jnp.square(x - mu), axis=-1, keepdims=True)
    return (x - mu) * jax.lax.rsqrt(var + LN_EPS) * gamma + beta


def _gelu_exact(x):
    # PyTorch activation='gelu' is the exact erf-based GELU (kept for parity).
    # TODO(synk): on v5e the erf polynomial is VALU-heavy; switch to tanh-approx
    # GELU there if bit parity with PyTorch is not required.
    return 0.5 * x * (1.0 + jax.lax.erf(x * (1.0 / math.sqrt(2.0))))


def _mini_transformer_kernel(
    x_ref,                     # (N, S, E)  f32
    in_w_ref, in_b_ref,        # (L, E, 3E) bf16 (1/sqrt(d) folded into q cols), (L, 1, 3E) f32
    op_w_ref, op_b_ref,        # (L, E, E)  bf16, (L, 1, E)  f32   MHA out_proj
    ln1_g_ref, ln1_b_ref,      # (L, 1, E)  f32                    norm1
    l1_w_ref, l1_b_ref,        # (L, E, 4E) bf16, (L, 1, 4E) f32   FFN linear1
    l2_w_ref, l2_b_ref,        # (L, 4E, E) bf16, (L, 1, E)  f32   FFN linear2
    ln2_g_ref, ln2_b_ref,      # (L, 1, E)  f32                    norm2
    wo_ref, bo_ref,            # (E, E) bf16, (1, E) f32           output_layer
    o_ref,                     # (S, E) f32
    *, num_heads, num_layers):
    N, S, E = x_ref.shape
    H = num_heads
    d = E // H
    T = N * S
    B = N * H

    x = x_ref[...].astype(jnp.float32)                       # (N, S, E)

    for l in range(num_layers):                               # static, unrolled (L = 2)
        # ---- fused QKV projection over all N*S tokens (bf16 in, f32 acc) ----
        xf = x.reshape(T, E)
        qkv = jnp.dot(xf.astype(jnp.bfloat16), in_w_ref[l],
                      preferred_element_type=jnp.float32) + in_b_ref[l]   # (T, 3E)

        # ---- multi-head attention, head-batched (no per-head loop) ----
        def split_heads(m):                                    # (T, E) -> (N*H, S, d)
            return m.reshape(N, S, H, d).transpose(0, 2, 1, 3).reshape(B, S, d)

        qh = split_heads(qkv[:, :E])          # scale already folded into W_q / b_q
        kh = split_heads(qkv[:, E:2 * E])
        vh = split_heads(qkv[:, 2 * E:])

        s = jnp.einsum('bsd,btd->bst', qh, kh,
                       preferred_element_type=jnp.float32)     # (B, S, S)
        s = s - jnp.max(s, axis=-1, keepdims=True)
        p = jnp.exp(s)
        p = p * pl.reciprocal(jnp.sum(p, axis=-1, keepdims=True), approx=True)
        oh = jnp.einsum('bst,btd->bsd', p, vh,
                        preferred_element_type=jnp.float32)    # (B, S, d)

        # merge heads -> one (T, E) @ (E, E) out-projection, bias in epilogue
        ah = oh.reshape(N, H, S, d).transpose(0, 2, 1, 3).reshape(T, E)
        attn = jnp.dot(ah.astype(jnp.bfloat16), op_w_ref[l],
                       preferred_element_type=jnp.float32) + op_b_ref[l]

        x = _layer_norm(x + attn.reshape(N, S, E), ln1_g_ref[l], ln1_b_ref[l])

        # ---- feed-forward: Linear -> GELU -> Linear over all tokens ----
        xf = x.reshape(T, E)
        h1 = _gelu_exact(jnp.dot(xf.astype(jnp.bfloat16), l1_w_ref[l],
                                 preferred_element_type=jnp.float32) + l1_b_ref[l])
        h2 = jnp.dot(h1.astype(jnp.bfloat16), l2_w_ref[l],
                     preferred_element_type=jnp.float32) + l2_b_ref[l]
        x = _layer_norm(x + h2.reshape(N, S, E), ln2_g_ref[l], ln2_b_ref[l])

    # ---- mean over batch axis (module's x.mean(dim=1) on (S, N, E)) + Linear ----
    pooled = jnp.mean(x, axis=0)                               # (S, E)
    o_ref[...] = (jnp.dot(pooled.astype(jnp.bfloat16), wo_ref[...],
                          preferred_element_type=jnp.float32) + bo_ref[...])


PARAM_ORDER = ("in_w", "in_b", "op_w", "op_b", "ln1_g", "ln1_b",
               "l1_w", "l1_b", "l2_w", "l2_b", "ln2_g", "ln2_b", "wo", "bo")


def init_params(key, embed_dim, num_layers):
    """Parameters in PyTorch layout (weight = (out_features, in_features)), f32."""
    E, L = embed_dim, num_layers
    ks = jax.random.split(key, 10)
    w = lambda k, shape: 0.02 * jax.random.normal(k, shape, jnp.float32)
    return dict(
        in_w=w(ks[0], (L, 3 * E, E)),
        in_b=w(ks[1], (L, 1, 3 * E)),
        op_w=w(ks[2], (L, E, E)),
        op_b=w(ks[3], (L, 1, E)),
        ln1_g=jnp.ones((L, 1, E), jnp.float32),
        ln1_b=jnp.zeros((L, 1, E), jnp.float32),
        l1_w=w(ks[4], (L, 4 * E, E)),
        l1_b=w(ks[5], (L, 1, 4 * E)),
        l2_w=w(ks[6], (L, E, 4 * E)),
        l2_b=w(ks[7], (L, 1, E)),
        ln2_g=jnp.ones((L, 1, E), jnp.float32),
        ln2_b=jnp.zeros((L, 1, E), jnp.float32),
        wo=w(ks[8], (E, E)),
        bo=w(ks[9], (1, E)),
    )


def prepare_params(params, *, num_heads):
    """Kernel layout: weights pre-transposed (x @ W) + bf16; attention scale folded into W_q/b_q."""
    bf = jnp.bfloat16
    L, threeE, E = params["in_w"].shape
    d = E // num_heads
    scale = 1.0 / math.sqrt(d)
    # Fold 1/sqrt(d) into the q slice (first E outputs) of the in_proj weight & bias.
    col_scale = jnp.concatenate(
        [jnp.full((E,), scale, jnp.float32), jnp.ones((2 * E,), jnp.float32)])
    in_w = params["in_w"] * col_scale[None, :, None]                # (L, 3E, E)
    in_b = params["in_b"] * col_scale[None, None, :]                # (L, 1, 3E)
    return dict(
        in_w=jnp.transpose(in_w, (0, 2, 1)).astype(bf),             # (L, E, 3E)
        in_b=in_b,
        op_w=jnp.transpose(params["op_w"], (0, 2, 1)).astype(bf),   # (L, E, E)
        op_b=params["op_b"],
        ln1_g=params["ln1_g"], ln1_b=params["ln1_b"],
        l1_w=jnp.transpose(params["l1_w"], (0, 2, 1)).astype(bf),   # (L, E, 4E)
        l1_b=params["l1_b"],
        l2_w=jnp.transpose(params["l2_w"], (0, 2, 1)).astype(bf),   # (L, 4E, E)
        l2_b=params["l2_b"],
        ln2_g=params["ln2_g"], ln2_b=params["ln2_b"],
        wo=params["wo"].T.astype(bf),                               # (E, E)
        bo=params["bo"],
    )


@functools.partial(jax.jit, static_argnames=("num_heads",))
def mini_transformer(x, kparams, *, num_heads):
    S, N, E = x.shape
    L = kparams["in_w"].shape[0]
    H = num_heads
    d = E // H

    # (S, N, E) -> (N, S, E): trailing (S, E) tiles are lane/sublane dense.
    x_nse = jnp.transpose(x, (1, 0, 2))
    args = (x_nse,) + tuple(kparams[k] for k in PARAM_ORDER)

    # Advisory cost estimate (projections + attention + final linear).
    tokens = N * S
    flops = (2 * L * tokens * E * (3 * E + E + 8 * E)          # QKV, out_proj, FFN
             + 2 * L * N * H * 2 * S * S * d                   # QK^T and PV
             + 2 * S * E * E)                                   # output_layer
    transcendentals = L * (N * H * S * S + tokens * 4 * E)     # exp + gelu(erf)
    bytes_accessed = sum(int(a.size) * a.dtype.itemsize for a in args) + S * E * 4

    # Everything (< 1 MiB) is VMEM-resident; no grid, single kernel invocation.
    vmem_spec = pl.BlockSpec(memory_space=pltpu.MemorySpace.VMEM)
    kernel = functools.partial(_mini_transformer_kernel, num_heads=H, num_layers=L)
    return pl.pallas_call(
        kernel,
        out_shape=jax.ShapeDtypeStruct((S, E), jnp.float32),
        in_specs=[vmem_spec] * len(args),
        out_specs=vmem_spec,
        cost_estimate=pl.CostEstimate(flops=flops,
                                      transcendentals=transcendentals,
                                      bytes_accessed=bytes_accessed),
    )(*args)


def mini_transformer_ref(x, params, *, num_heads):
    """Pure-JAX f32 reference mirroring PyTorch post-LN TransformerEncoder (eval)."""
    S, N, E = x.shape
    H = num_heads
    d = E // H
    scale = 1.0 / math.sqrt(d)
    L = params["in_w"].shape[0]
    x = x.astype(jnp.float32)
    for l in range(L):
        attn_cols = []
        for n in range(N):
            xn = x[:, n, :]
            qkv = xn @ params["in_w"][l].T + params["in_b"][l]
            q, k, v = qkv[:, :E], qkv[:, E:2 * E], qkv[:, 2 * E:]
            heads = []
            for h in range(H):
                sl = slice(h * d, (h + 1) * d)
                s_ = (q[:, sl] * scale) @ k[:, sl].T
                p = jax.nn.softmax(s_, axis=-1)
                heads.append(p @ v[:, sl])
            a = jnp.concatenate(heads, axis=-1) @ params["op_w"][l].T + params["op_b"][l]
            attn_cols.append(a)
        attn = jnp.stack(attn_cols, axis=1)
        x = _layer_norm(x + attn, params["ln1_g"][l], params["ln1_b"][l])
        xf = x.reshape(S * N, E)
        h1 = jax.nn.gelu(xf @ params["l1_w"][l].T + params["l1_b"][l], approximate=False)
        h2 = h1 @ params["l2_w"][l].T + params["l2_b"][l]
        x = _layer_norm(x + h2.reshape(S, N, E), params["ln2_g"][l], params["ln2_b"][l])
    pooled = jnp.mean(x, axis=1)
    return pooled @ params["wo"].T + params["bo"]


if __name__ == "__main__":
    E, H, L = 128, 4, 2        # embed_dim, num_heads, num_layers (small config)
    S, N = 8, 2                # num_patches (seq), batch
    key = jax.random.PRNGKey(0)
    pkey, xkey = jax.random.split(key)
    params = init_params(pkey, E, L)
    kparams = prepare_params(params, num_heads=H)   # pre-transposed bf16, scale-folded
    x = jax.random.normal(xkey, (S, N, E), jnp.float32)

    out = jax.block_until_ready(mini_transformer(x, kparams, num_heads=H))
    ref = mini_transformer_ref(x, params, num_heads=H)

    assert out.shape == (S, E), out.shape
    assert bool(jnp.all(jnp.isfinite(out)))
    assert bool(jnp.allclose(out, ref, atol=2e-2, rtol=2e-2)), \
        float(jnp.max(jnp.abs(out - ref)))
    print("KERNEL_OK")
</pallas_src>

<mosaic_0001>
module attributes {stable_mosaic.version = 11 : i64} {
  func.func @_mini_transformer_kernel(%arg0: memref<2x8x128xf32, #tpu.memory_space<vmem>>, %arg1: memref<2x128x384xbf16, #tpu.memory_space<vmem>>, %arg2: memref<2x1x384xf32, #tpu.memory_space<vmem>>, %arg3: memref<2x128x128xbf16, #tpu.memory_space<vmem>>, %arg4: memref<2x1x128xf32, #tpu.memory_space<vmem>>, %arg5: memref<2x1x128xf32, #tpu.memory_space<vmem>>, %arg6: memref<2x1x128xf32, #tpu.memory_space<vmem>>, %arg7: memref<2x128x512xbf16, #tpu.memory_space<vmem>>, %arg8: memref<2x1x512xf32, #tpu.memory_space<vmem>>, %arg9: memref<2x512x128xbf16, #tpu.memory_space<vmem>>, %arg10: memref<2x1x128xf32, #tpu.memory_space<vmem>>, %arg11: memref<2x1x128xf32, #tpu.memory_space<vmem>>, %arg12: memref<2x1x128xf32, #tpu.memory_space<vmem>>, %arg13: memref<128x128xbf16, #tpu.memory_space<vmem>>, %arg14: memref<1x128xf32, #tpu.memory_space<vmem>>, %arg15: memref<8x128xf32, #tpu.memory_space<vmem>>) attributes {dimension_semantics = [], scalar_prefetch = 0 : i64, scratch_operands = 0 : i64, tpu.core_type = #tpu.core_type<tc>} {
    %c0 = arith.constant 0 : index
    %c0_0 = arith.constant 0 : index
    %c0_1 = arith.constant 0 : index
    %0 = vector.load %arg0[%c0, %c0_0, %c0_1] : memref<2x8x128xf32, #tpu.memory_space<vmem>>, vector<2x8x128xf32>
    %1 = vector.shape_cast %0 : vector<2x8x128xf32> to vector<16x128xf32>
    %2 = arith.truncf %1 : vector<16x128xf32> to vector<16x128xbf16>
    %c0_2 = arith.constant 0 : index
    %c0_3 = arith.constant 0 : index
    %c0_4 = arith.constant 0 : index
    %3 = vector.load %arg1[%c0_2, %c0_3, %c0_4] : memref<2x128x384xbf16, #tpu.memory_space<vmem>>, vector<1x128x384xbf16>
    %4 = vector.shape_cast %3 : vector<1x128x384xbf16> to vector<128x384xbf16>
    %cst = arith.constant dense<0.000000e+00> : vector<16x384xf32>
    %5 = tpu.matmul %2, %4, %cst {dimension_numbers = #tpu.dot_dimension_numbers<[1], [0], [0], [1], [0, 0, 1, 1], [], []>} : vector<16x128xbf16>, vector<128x384xbf16>, vector<16x384xf32> -> vector<16x384xf32>
    %c0_5 = arith.constant 0 : index
    %c0_6 = arith.constant 0 : index
    %c0_7 = arith.constant 0 : index
    %6 = vector.load %arg2[%c0_5, %c0_6, %c0_7] : memref<2x1x384xf32, #tpu.memory_space<vmem>>, vector<1x1x384xf32>
    %7 = vector.shape_cast %6 : vector<1x1x384xf32> to vector<1x384xf32>
    %8 = vector.broadcast %7 : vector<1x384xf32> to vector<16x384xf32>
    %9 = arith.addf %5, %8 : vector<16x384xf32>
    %10 = vector.extract_strided_slice %9 {offsets = [0, 0], sizes = [16, 128], strides = [1, 1]} : vector<16x384xf32> to vector<16x128xf32>
    %11 = vector.shape_cast %10 : vector<16x128xf32> to vector<2x8x4x32xf32>
    %12 = tpu.transpose %11, [0, 2, 1, 3] : vector<2x8x4x32xf32> -> vector<2x4x8x32xf32>
    %13 = vector.shape_cast %12 : vector<2x4x8x32xf32> to vector<8x8x32xf32>
    %14 = vector.extract_strided_slice %9 {offsets = [0, 128], sizes = [16, 128], strides = [1, 1]} : vector<16x384xf32> to vector<16x128xf32>
    %15 = vector.shape_cast %14 : vector<16x128xf32> to vector<2x8x4x32xf32>
    %16 = tpu.transpose %15, [0, 2, 1, 3] : vector<2x8x4x32xf32> -> vector<2x4x8x32xf32>
    %17 = vector.shape_cast %16 : vector<2x4x8x32xf32> to vector<8x8x32xf32>
    %18 = vector.extract_strided_slice %9 {offsets = [0, 256], sizes = [16, 128], strides = [1, 1]} : vector<16x384xf32> to vector<16x128xf32>
    %19 = vector.shape_cast %18 : vector<16x128xf32> to vector<2x8x4x32xf32>
    %20 = tpu.transpose %19, [0, 2, 1, 3] : vector<2x8x4x32xf32> -> vector<2x4x8x32xf32>
    %21 = vector.shape_cast %20 : vector<2x4x8x32xf32> to vector<8x8x32xf32>
    "tpu.trace_start"() <{level = 10 : i32, message = "bsd,btd->bst"}> : () -> ()
    %cst_8 = arith.constant dense<0.000000e+00> : vector<8x8x8xf32>
    %22 = tpu.matmul %13, %17, %cst_8 {dimension_numbers = #tpu.dot_dimension_numbers<[2], [2], [1], [1], [0, 0, 0, 1, 1, 1], [0], [0]>} : vector<8x8x32xf32>, vector<8x8x32xf32>, vector<8x8x8xf32> -> vector<8x8x8xf32>
    "tpu.trace_stop"() : () -> ()
    %cst_9 = arith.constant dense<0xFF800000> : vector<8x8xf32>
    %23 = vector.multi_reduction <maximumf>, %22, %cst_9 [2] : vector<8x8x8xf32> to vector<8x8xf32>
    %24 = vector.shape_cast %23 : vector<8x8xf32> to vector<8x8x1xf32>
    %25 = vector.broadcast %24 : vector<8x8x1xf32> to vector<8x8x8xf32>
    %26 = arith.subf %22, %25 : vector<8x8x8xf32>
    %27 = math.exp %26 : vector<8x8x8xf32>
    %cst_10 = arith.constant dense<0.000000e+00> : vector<8x8xf32>
    %28 = vector.multi_reduction <add>, %27, %cst_10 [2] : vector<8x8x8xf32> to vector<8x8xf32>
    %29 = vector.shape_cast %28 : vector<8x8xf32> to vector<8x8x1xf32>
    %30 = tpu.reciprocal %29 {approx = true} : vector<8x8x1xf32> -> vector<8x8x1xf32>
    %31 = vector.broadcast %30 : vector<8x8x1xf32> to vector<8x8x8xf32>
    %32 = arith.mulf %27, %31 : vector<8x8x8xf32>
    "tpu.trace_start"() <{level = 10 : i32, message = "bst,btd->bsd"}> : () -> ()
    %cst_11 = arith.constant dense<0.000000e+00> : vector<8x8x32xf32>
    %33 = tpu.matmul %32, %21, %cst_11 {dimension_numbers = #tpu.dot_dimension_numbers<[2], [1], [1], [2], [0, 0, 0, 1, 1, 2], [0], [0]>} : vector<8x8x8xf32>, vector<8x8x32xf32>, vector<8x8x32xf32> -> vector<8x8x32xf32>
    "tpu.trace_stop"() : () -> ()
    %34 = vector.shape_cast %33 : vector<8x8x32xf32> to vector<2x4x8x32xf32>
    %35 = tpu.transpose %34, [0, 2, 1, 3] : vector<2x4x8x32xf32> -> vector<2x8x4x32xf32>
    %36 = vector.shape_cast %35 : vector<2x8x4x32xf32> to vector<16x128xf32>
    %37 = arith.truncf %36 : vector<16x128xf32> to vector<16x128xbf16>
    %c0_12 = arith.constant 0 : index
    %c0_13 = arith.constant 0 : index
    %c0_14 = arith.constant 0 : index
    %38 = vector.load %arg3[%c0_12, %c0_13, %c0_14] : memref<2x128x128xbf16, #tpu.memory_space<vmem>>, vector<1x128x128xbf16>
    %39 = vector.shape_cast %38 : vector<1x128x128xbf16> to vector<128x128xbf16>
    %cst_15 = arith.constant dense<0.000000e+00> : vector<16x128xf32>
    %40 = tpu.matmul %37, %39, %cst_15 {dimension_numbers = #tpu.dot_dimension_numbers<[1], [0], [0], [1], [0, 0, 1, 1], [], []>} : vector<16x128xbf16>, vector<128x128xbf16>, vector<16x128xf32> -> vector<16x128xf32>
    %c0_16 = arith.constant 0 : index
    %c0_17 = arith.constant 0 : index
    %c0_18 = arith.constant 0 : index
    %41 = vector.load %arg4[%c0_16, %c0_17, %c0_18] : memref<2x1x128xf32, #tpu.memory_space<vmem>>, vector<1x1x128xf32>
    %42 = vector.shape_cast %41 : vector<1x1x128xf32> to vector<1x128xf32>
    %43 = vector.broadcast %42 : vector<1x128xf32> to vector<16x128xf32>
    %44 = arith.addf %40, %43 : vector<16x128xf32>
    %45 = vector.shape_cast %44 : vector<16x128xf32> to vector<2x8x128xf32>
    %46 = arith.addf %0, %45 : vector<2x8x128xf32>
    %c0_19 = arith.constant 0 : index
    %c0_20 = arith.constant 0 : index
    %c0_21 = arith.constant 0 : index
    %47 = vector.load %arg5[%c0_19, %c0_20, %c0_21] : memref<2x1x128xf32, #tpu.memory_space<vmem>>, vector<1x1x128xf32>
    %48 = vector.shape_cast %47 : vector<1x1x128xf32> to vector<1x128xf32>
    %c0_22 = arith.constant 0 : index
    %c0_23 = arith.constant 0 : index
    %c0_24 = arith.constant 0 : index
    %49 = vector.load %arg6[%c0_22, %c0_23, %c0_24] : memref<2x1x128xf32, #tpu.memory_space<vmem>>, vector<1x1x128xf32>
    %50 = vector.shape_cast %49 : vector<1x1x128xf32> to vector<1x128xf32>
    %cst_25 = arith.constant dense<0.000000e+00> : vector<2x8xf32>
    %51 = vector.multi_reduction <add>, %46, %cst_25 [2] : vector<2x8x128xf32> to vector<2x8xf32>
    %52 = vector.shape_cast %51 : vector<2x8xf32> to vector<2x8x1xf32>
    %cst_26 = arith.constant 1.280000e+02 : f32
    %53 = vector.broadcast %cst_26 : f32 to vector<2x8x1xf32>
    %54 = arith.divf %52, %53 : vector<2x8x1xf32>
    %55 = vector.broadcast %54 : vector<2x8x1xf32> to vector<2x8x128xf32>
    %56 = arith.subf %46, %55 : vector<2x8x128xf32>
    %57 = arith.mulf %56, %56 : vector<2x8x128xf32>
    %cst_27 = arith.constant dense<0.000000e+00> : vector<2x8xf32>
    %58 = vector.multi_reduction <add>, %57, %cst_27 [2] : vector<2x8x128xf32> to vector<2x8xf32>
    %59 = vector.shape_cast %58 : vector<2x8xf32> to vector<2x8x1xf32>
    %cst_28 = arith.constant 1.280000e+02 : f32
    %60 = vector.broadcast %cst_28 : f32 to vector<2x8x1xf32>
    %61 = arith.divf %59, %60 : vector<2x8x1xf32>
    %62 = vector.broadcast %54 : vector<2x8x1xf32> to vector<2x8x128xf32>
    %63 = arith.subf %46, %62 : vector<2x8x128xf32>
    %cst_29 = arith.constant 9.99999974E-6 : f32
    %64 = vector.broadcast %cst_29 : f32 to vector<2x8x1xf32>
    %65 = arith.addf %61, %64 : vector<2x8x1xf32>
    %66 = math.rsqrt %65 : vector<2x8x1xf32>
    %67 = vector.broadcast %66 : vector<2x8x1xf32> to vector<2x8x128xf32>
    %68 = arith.mulf %63, %67 : vector<2x8x128xf32>
    %69 = vector.shape_cast %48 : vector<1x128xf32> to vector<1x1x128xf32>
    %70 = vector.broadcast %69 : vector<1x1x128xf32> to vector<2x8x128xf32>
    %71 = arith.mulf %68, %70 : vector<2x8x128xf32>
    %72 = vector.shape_cast %50 : vector<1x128xf32> to vector<1x1x128xf32>
    %73 = vector.broadcast %72 : vector<1x1x128xf32> to vector<2x8x128xf32>
    %74 = arith.addf %71, %73 : vector<2x8x128xf32>
    %75 = vector.shape_cast %74 : vector<2x8x128xf32> to vector<16x128xf32>
    %76 = arith.truncf %75 : vector<16x128xf32> to vector<16x128xbf16>
    %c0_30 = arith.constant 0 : index
    %c0_31 = arith.constant 0 : index
    %c0_32 = arith.constant 0 : index
    %77 = vector.load %arg7[%c0_30, %c0_31, %c0_32] : memref<2x128x512xbf16, #tpu.memory_space<vmem>>, vector<1x128x512xbf16>
    %78 = vector.shape_cast %77 : vector<1x128x512xbf16> to vector<128x512xbf16>
    %cst_33 = arith.constant dense<0.000000e+00> : vector<16x512xf32>
    %79 = tpu.matmul %76, %78, %cst_33 {dimension_numbers = #tpu.dot_dimension_numbers<[1], [0], [0], [1], [0, 0, 1, 1], [], []>} : vector<16x128xbf16>, vector<128x512xbf16>, vector<16x512xf32> -> vector<16x512xf32>
    %c0_34 = arith.constant 0 : index
    %c0_35 = arith.constant 0 : index
    %c0_36 = arith.constant 0 : index
    %80 = vector.load %arg8[%c0_34, %c0_35, %c0_36] : memref<2x1x512xf32, #tpu.memory_space<vmem>>, vector<1x1x512xf32>
    %81 = vector.shape_cast %80 : vector<1x1x512xf32> to vector<1x512xf32>
    %82 = vector.broadcast %81 : vector<1x512xf32> to vector<16x512xf32>
    %83 = arith.addf %79, %82 : vector<16x512xf32>
    %cst_37 = arith.constant 5.000000e-01 : f32
    %84 = vector.broadcast %cst_37 : f32 to vector<16x512xf32>
    %85 = arith.mulf %84, %83 : vector<16x512xf32>
    %cst_38 = arith.constant 0.707106769 : f32
    %86 = vector.broadcast %cst_38 : f32 to vector<16x512xf32>
    %87 = arith.mulf %83, %86 : vector<16x512xf32>
    %88 = math.erf %87 : vector<16x512xf32>
    %cst_39 = arith.constant 1.000000e+00 : f32
    %89 = vector.broadcast %cst_39 : f32 to vector<16x512xf32>
    %90 = arith.addf %89, %88 : vector<16x512xf32>
    %91 = arith.mulf %85, %90 : vector<16x512xf32>
    %92 = arith.truncf %91 : vector<16x512xf32> to vector<16x512xbf16>
    %c0_40 = arith.constant 0 : index
    %c0_41 = arith.constant 0 : index
    %c0_42 = arith.constant 0 : index
    %93 = vector.load %arg9[%c0_40, %c0_41, %c0_42] : memref<2x512x128xbf16, #tpu.memory_space<vmem>>, vector<1x512x128xbf16>
    %94 = vector.shape_cast %93 : vector<1x512x128xbf16> to vector<512x128xbf16>
    %cst_43 = arith.constant dense<0.000000e+00> : vector<16x128xf32>
    %95 = tpu.matmul %92, %94, %cst_43 {dimension_numbers = #tpu.dot_dimension_numbers<[1], [0], [0], [1], [0, 0, 1, 1], [], []>} : vector<16x512xbf16>, vector<512x128xbf16>, vector<16x128xf32> -> vector<16x128xf32>
    %c0_44 = arith.constant 0 : index
    %c0_45 = arith.constant 0 : index
    %c0_46 = arith.constant 0 : index
    %96 = vector.load %arg10[%c0_44, %c0_45, %c0_46] : memref<2x1x128xf32, #tpu.memory_space<vmem>>, vector<1x1x128xf32>
    %97 = vector.shape_cast %96 : vector<1x1x128xf32> to vector<1x128xf32>
    %98 = vector.broadcast %97 : vector<1x128xf32> to vector<16x128xf32>
    %99 = arith.addf %95, %98 : vector<16x128xf32>
    %100 = vector.shape_cast %99 : vector<16x128xf32> to vector<2x8x128xf32>
    %101 = arith.addf %74, %100 : vector<2x8x128xf32>
    %c0_47 = arith.constant 0 : index
    %c0_48 = arith.constant 0 : index
    %c0_49 = arith.constant 0 : index
    %102 = vector.load %arg11[%c0_47, %c0_48, %c0_49] : memref<2x1x128xf32, #tpu.memory_space<vmem>>, vector<1x1x128xf32>
    %103 = vector.shape_cast %102 : vector<1x1x128xf32> to vector<1x128xf32>
    %c0_50 = arith.constant 0 : index
    %c0_51 = arith.constant 0 : index
    %c0_52 = arith.constant 0 : index
    %104 = vector.load %arg12[%c0_50, %c0_51, %c0_52] : memref<2x1x128xf32, #tpu.memory_space<vmem>>, vector<1x1x128xf32>
    %105 = vector.shape_cast %104 : vector<1x1x128xf32> to vector<1x128xf32>
    %cst_53 = arith.constant dense<0.000000e+00> : vector<2x8xf32>
    %106 = vector.multi_reduction <add>, %101, %cst_53 [2] : vector<2x8x128xf32> to vector<2x8xf32>
    %107 = vector.shape_cast %106 : vector<2x8xf32> to vector<2x8x1xf32>
    %cst_54 = arith.constant 1.280000e+02 : f32
    %108 = vector.broadcast %cst_54 : f32 to vector<2x8x1xf32>
    %109 = arith.divf %107, %108 : vector<2x8x1xf32>
    %110 = vector.broadcast %109 : vector<2x8x1xf32> to vector<2x8x128xf32>
    %111 = arith.subf %101, %110 : vector<2x8x128xf32>
    %112 = arith.mulf %111, %111 : vector<2x8x128xf32>
    %cst_55 = arith.constant dense<0.000000e+00> : vector<2x8xf32>
    %113 = vector.multi_reduction <add>, %112, %cst_55 [2] : vector<2x8x128xf32> to vector<2x8xf32>
    %114 = vector.shape_cast %113 : vector<2x8xf32> to vector<2x8x1xf32>
    %cst_56 = arith.constant 1.280000e+02 : f32
    %115 = vector.broadcast %cst_56 : f32 to vector<2x8x1xf32>
    %116 = arith.divf %114, %115 : vector<2x8x1xf32>
    %117 = vector.broadcast %109 : vector<2x8x1xf32> to vector<2x8x128xf32>
    %118 = arith.subf %101, %117 : vector<2x8x128xf32>
    %cst_57 = arith.constant 9.99999974E-6 : f32
    %119 = vector.broadcast %cst_57 : f32 to vector<2x8x1xf32>
    %120 = arith.addf %116, %119 : vector<2x8x1xf32>
    %121 = math.rsqrt %120 : vector<2x8x1xf32>
    %122 = vector.broadcast %121 : vector<2x8x1xf32> to vector<2x8x128xf32>
    %123 = arith.mulf %118, %122 : vector<2x8x128xf32>
    %124 = vector.shape_cast %103 : vector<1x128xf32> to vector<1x1x128xf32>
    %125 = vector.broadcast %124 : vector<1x1x128xf32> to vector<2x8x128xf32>
    %126 = arith.mulf %123, %125 : vector<2x8x128xf32>
    %127 = vector.shape_cast %105 : vector<1x128xf32> to vector<1x1x128xf32>
    %128 = vector.broadcast %127 : vector<1x1x128xf32> to vector<2x8x128xf32>
    %129 = arith.addf %126, %128 : vector<2x8x128xf32>
    %130 = vector.shape_cast %129 : vector<2x8x128xf32> to vector<16x128xf32>
    %131 = arith.truncf %130 : vector<16x128xf32> to vector<16x128xbf16>
    %c1 = arith.constant 1 : index
    %c0_58 = arith.constant 0 : index
    %c0_59 = arith.constant 0 : index
    %132 = vector.load %arg1[%c1, %c0_58, %c0_59] : memref<2x128x384xbf16, #tpu.memory_space<vmem>>, vector<1x128x384xbf16>
    %133 = vector.shape_cast %132 : vector<1x128x384xbf16> to vector<128x384xbf16>
    %cst_60 = arith.constant dense<0.000000e+00> : vector<16x384xf32>
    %134 = tpu.matmul %131, %133, %cst_60 {dimension_numbers = #tpu.dot_dimension_numbers<[1], [0], [0], [1], [0, 0, 1, 1], [], []>} : vector<16x128xbf16>, vector<128x384xbf16>, vector<16x384xf32> -> vector<16x384xf32>
    %c1_61 = arith.constant 1 : index
    %c0_62 = arith.constant 0 : index
    %c0_63 = arith.constant 0 : index
    %135 = vector.load %arg2[%c1_61, %c0_62, %c0_63] : memref<2x1x384xf32, #tpu.memory_space<vmem>>, vector<1x1x384xf32>
    %136 = vector.shape_cast %135 : vector<1x1x384xf32> to vector<1x384xf32>
    %137 = vector.broadcast %136 : vector<1x384xf32> to vector<16x384xf32>
    %138 = arith.addf %134, %137 : vector<16x384xf32>
    %139 = vector.extract_strided_slice %138 {offsets = [0, 0], sizes = [16, 128], strides = [1, 1]} : vector<16x384xf32> to vector<16x128xf32>
    %140 = vector.shape_cast %139 : vector<16x128xf32> to vector<2x8x4x32xf32>
    %141 = tpu.transpose %140, [0, 2, 1, 3] : vector<2x8x4x32xf32> -> vector<2x4x8x32xf32>
    %142 = vector.shape_cast %141 : vector<2x4x8x32xf32> to vector<8x8x32xf32>
    %143 = vector.extract_strided_slice %138 {offsets = [0, 128], sizes = [16, 128], strides = [1, 1]} : vector<16x384xf32> to vector<16x128xf32>
    %144 = vector.shape_cast %143 : vector<16x128xf32> to vector<2x8x4x32xf32>
    %145 = tpu.transpose %144, [0, 2, 1, 3] : vector<2x8x4x32xf32> -> vector<2x4x8x32xf32>
    %146 = vector.shape_cast %145 : vector<2x4x8x32xf32> to vector<8x8x32xf32>
    %147 = vector.extract_strided_slice %138 {offsets = [0, 256], sizes = [16, 128], strides = [1, 1]} : vector<16x384xf32> to vector<16x128xf32>
    %148 = vector.shape_cast %147 : vector<16x128xf32> to vector<2x8x4x32xf32>
    %149 = tpu.transpose %148, [0, 2, 1, 3] : vector<2x8x4x32xf32> -> vector<2x4x8x32xf32>
    %150 = vector.shape_cast %149 : vector<2x4x8x32xf32> to vector<8x8x32xf32>
    "tpu.trace_start"() <{level = 10 : i32, message = "bsd,btd->bst"}> : () -> ()
    %cst_64 = arith.constant dense<0.000000e+00> : vector<8x8x8xf32>
    %151 = tpu.matmul %142, %146, %cst_64 {dimension_numbers = #tpu.dot_dimension_numbers<[2], [2], [1], [1], [0, 0, 0, 1, 1, 1], [0], [0]>} : vector<8x8x32xf32>, vector<8x8x32xf32>, vector<8x8x8xf32> -> vector<8x8x8xf32>
    "tpu.trace_stop"() : () -> ()
    %cst_65 = arith.constant dense<0xFF800000> : vector<8x8xf32>
    %152 = vector.multi_reduction <maximumf>, %151, %cst_65 [2] : vector<8x8x8xf32> to vector<8x8xf32>
    %153 = vector.shape_cast %152 : vector<8x8xf32> to vector<8x8x1xf32>
    %154 = vector.broadcast %153 : vector<8x8x1xf32> to vector<8x8x8xf32>
    %155 = arith.subf %151, %154 : vector<8x8x8xf32>
    %156 = math.exp %155 : vector<8x8x8xf32>
    %cst_66 = arith.constant dense<0.000000e+00> : vector<8x8xf32>
    %157 = vector.multi_reduction <add>, %156, %cst_66 [2] : vector<8x8x8xf32> to vector<8x8xf32>
    %158 = vector.shape_cast %157 : vector<8x8xf32> to vector<8x8x1xf32>
    %159 = tpu.reciprocal %158 {approx = true} : vector<8x8x1xf32> -> vector<8x8x1xf32>
    %160 = vector.broadcast %159 : vector<8x8x1xf32> to vector<8x8x8xf32>
    %161 = arith.mulf %156, %160 : vector<8x8x8xf32>
    "tpu.trace_start"() <{level = 10 : i32, message = "bst,btd->bsd"}> : () -> ()
    %cst_67 = arith.constant dense<0.000000e+00> : vector<8x8x32xf32>
    %162 = tpu.matmul %161, %150, %cst_67 {dimension_numbers = #tpu.dot_dimension_numbers<[2], [1], [1], [2], [0, 0, 0, 1, 1, 2], [0], [0]>} : vector<8x8x8xf32>, vector<8x8x32xf32>, vector<8x8x32xf32> -> vector<8x8x32xf32>
    "tpu.trace_stop"() : () -> ()
    %163 = vector.shape_cast %162 : vector<8x8x32xf32> to vector<2x4x8x32xf32>
    %164 = tpu.transpose %163, [0, 2, 1, 3] : vector<2x4x8x32xf32> -> vector<2x8x4x32xf32>
    %165 = vector.shape_cast %164 : vector<2x8x4x32xf32> to vector<16x128xf32>
    %166 = arith.truncf %165 : vector<16x128xf32> to vector<16x128xbf16>
    %c1_68 = arith.constant 1 : index
    %c0_69 = arith.constant 0 : index
    %c0_70 = arith.constant 0 : index
    %167 = vector.load %arg3[%c1_68, %c0_69, %c0_70] : memref<2x128x128xbf16, #tpu.memory_space<vmem>>, vector<1x128x128xbf16>
    %168 = vector.shape_cast %167 : vector<1x128x128xbf16> to vector<128x128xbf16>
    %cst_71 = arith.constant dense<0.000000e+00> : vector<16x128xf32>
    %169 = tpu.matmul %166, %168, %cst_71 {dimension_numbers = #tpu.dot_dimension_numbers<[1], [0], [0], [1], [0, 0, 1, 1], [], []>} : vector<16x128xbf16>, vector<128x128xbf16>, vector<16x128xf32> -> vector<16x128xf32>
    %c1_72 = arith.constant 1 : index
    %c0_73 = arith.constant 0 : index
    %c0_74 = arith.constant 0 : index
    %170 = vector.load %arg4[%c1_72, %c0_73, %c0_74] : memref<2x1x128xf32, #tpu.memory_space<vmem>>, vector<1x1x128xf32>
    %171 = vector.shape_cast %170 : vector<1x1x128xf32> to vector<1x128xf32>
    %172 = vector.broadcast %171 : vector<1x128xf32> to vector<16x128xf32>
    %173 = arith.addf %169, %172 : vector<16x128xf32>
    %174 = vector.shape_cast %173 : vector<16x128xf32> to vector<2x8x128xf32>
    %175 = arith.addf %129, %174 : vector<2x8x128xf32>
    %c1_75 = arith.constant 1 : index
    %c0_76 = arith.constant 0 : index
    %c0_77 = arith.constant 0 : index
    %176 = vector.load %arg5[%c1_75, %c0_76, %c0_77] : memref<2x1x128xf32, #tpu.memory_space<vmem>>, vector<1x1x128xf32>
    %177 = vector.shape_cast %176 : vector<1x1x128xf32> to vector<1x128xf32>
    %c1_78 = arith.constant 1 : index
    %c0_79 = arith.constant 0 : index
    %c0_80 = arith.constant 0 : index
    %178 = vector.load %arg6[%c1_78, %c0_79, %c0_80] : memref<2x1x128xf32, #tpu.memory_space<vmem>>, vector<1x1x128xf32>
    %179 = vector.shape_cast %178 : vector<1x1x128xf32> to vector<1x128xf32>
    %cst_81 = arith.constant dense<0.000000e+00> : vector<2x8xf32>
    %180 = vector.multi_reduction <add>, %175, %cst_81 [2] : vector<2x8x128xf32> to vector<2x8xf32>
    %181 = vector.shape_cast %180 : vector<2x8xf32> to vector<2x8x1xf32>
    %cst_82 = arith.constant 1.280000e+02 : f32
    %182 = vector.broadcast %cst_82 : f32 to vector<2x8x1xf32>
    %183 = arith.divf %181, %182 : vector<2x8x1xf32>
    %184 = vector.broadcast %183 : vector<2x8x1xf32> to vector<2x8x128xf32>
    %185 = arith.subf %175, %184 : vector<2x8x128xf32>
    %186 = arith.mulf %185, %185 : vector<2x8x128xf32>
    %cst_83 = arith.constant dense<0.000000e+00> : vector<2x8xf32>
    %187 = vector.multi_reduction <add>, %186, %cst_83 [2] : vector<2x8x128xf32> to vector<2x8xf32>
    %188 = vector.shape_cast %187 : vector<2x8xf32> to vector<2x8x1xf32>
    %cst_84 = arith.constant 1.280000e+02 : f32
    %189 = vector.broadcast %cst_84 : f32 to vector<2x8x1xf32>
    %190 = arith.divf %188, %189 : vector<2x8x1xf32>
    %191 = vector.broadcast %183 : vector<2x8x1xf32> to vector<2x8x128xf32>
    %192 = arith.subf %175, %191 : vector<2x8x128xf32>
    %cst_85 = arith.constant 9.99999974E-6 : f32
    %193 = vector.broadcast %cst_85 : f32 to vector<2x8x1xf32>
    %194 = arith.addf %190, %193 : vector<2x8x1xf32>
    %195 = math.rsqrt %194 : vector<2x8x1xf32>
    %196 = vector.broadcast %195 : vector<2x8x1xf32> to vector<2x8x128xf32>
    %197 = arith.mulf %192, %196 : vector<2x8x128xf32>
    %198 = vector.shape_cast %177 : vector<1x128xf32> to vector<1x1x128xf32>
    %199 = vector.broadcast %198 : vector<1x1x128xf32> to vector<2x8x128xf32>
    %200 = arith.mulf %197, %199 : vector<2x8x128xf32>
    %201 = vector.shape_cast %179 : vector<1x128xf32> to vector<1x1x128xf32>
    %202 = vector.broadcast %201 : vector<1x1x128xf32> to vector<2x8x128xf32>
    %203 = arith.addf %200, %202 : vector<2x8x128xf32>
    %204 = vector.shape_cast %203 : vector<2x8x128xf32> to vector<16x128xf32>
    %205 = arith.truncf %204 : vector<16x128xf32> to vector<16x128xbf16>
    %c1_86 = arith.constant 1 : index
    %c0_87 = arith.constant 0 : index
    %c0_88 = arith.constant 0 : index
    %206 = vector.load %arg7[%c1_86, %c0_87, %c0_88] : memref<2x128x512xbf16, #tpu.memory_space<vmem>>, vector<1x128x512xbf16>
    %207 = vector.shape_cast %206 : vector<1x128x512xbf16> to vector<128x512xbf16>
    %cst_89 = arith.constant dense<0.000000e+00> : vector<16x512xf32>
    %208 = tpu.matmul %205, %207, %cst_89 {dimension_numbers = #tpu.dot_dimension_numbers<[1], [0], [0], [1], [0, 0, 1, 1], [], []>} : vector<16x128xbf16>, vector<128x512xbf16>, vector<16x512xf32> -> vector<16x512xf32>
    %c1_90 = arith.constant 1 : index
    %c0_91 = arith.constant 0 : index
    %c0_92 = arith.constant 0 : index
    %209 = vector.load %arg8[%c1_90, %c0_91, %c0_92] : memref<2x1x512xf32, #tpu.memory_space<vmem>>, vector<1x1x512xf32>
    %210 = vector.shape_cast %209 : vector<1x1x512xf32> to vector<1x512xf32>
    %211 = vector.broadcast %210 : vector<1x512xf32> to vector<16x512xf32>
    %212 = arith.addf %208, %211 : vector<16x512xf32>
    %cst_93 = arith.constant 5.000000e-01 : f32
    %213 = vector.broadcast %cst_93 : f32 to vector<16x512xf32>
    %214 = arith.mulf %213, %212 : vector<16x512xf32>
    %cst_94 = arith.constant 0.707106769 : f32
    %215 = vector.broadcast %cst_94 : f32 to vector<16x512xf32>
    %216 = arith.mulf %212, %215 : vector<16x512xf32>
    %217 = math.erf %216 : vector<16x512xf32>
    %cst_95 = arith.constant 1.000000e+00 : f32
    %218 = vector.broadcast %cst_95 : f32 to vector<16x512xf32>
    %219 = arith.addf %218, %217 : vector<16x512xf32>
    %220 = arith.mulf %214, %219 : vector<16x512xf32>
    %221 = arith.truncf %220 : vector<16x512xf32> to vector<16x512xbf16>
    %c1_96 = arith.constant 1 : index
    %c0_97 = arith.constant 0 : index
    %c0_98 = arith.constant 0 : index
    %222 = vector.load %arg9[%c1_96, %c0_97, %c0_98] : memref<2x512x128xbf16, #tpu.memory_space<vmem>>, vector<1x512x128xbf16>
    %223 = vector.shape_cast %222 : vector<1x512x128xbf16> to vector<512x128xbf16>
    %cst_99 = arith.constant dense<0.000000e+00> : vector<16x128xf32>
    %224 = tpu.matmul %221, %223, %cst_99 {dimension_numbers = #tpu.dot_dimension_numbers<[1], [0], [0], [1], [0, 0, 1, 1], [], []>} : vector<16x512xbf16>, vector<512x128xbf16>, vector<16x128xf32> -> vector<16x128xf32>
    %c1_100 = arith.constant 1 : index
    %c0_101 = arith.constant 0 : index
    %c0_102 = arith.constant 0 : index
    %225 = vector.load %arg10[%c1_100, %c0_101, %c0_102] : memref<2x1x128xf32, #tpu.memory_space<vmem>>, vector<1x1x128xf32>
    %226 = vector.shape_cast %225 : vector<1x1x128xf32> to vector<1x128xf32>
    %227 = vector.broadcast %226 : vector<1x128xf32> to vector<16x128xf32>
    %228 = arith.addf %224, %227 : vector<16x128xf32>
    %229 = vector.shape_cast %228 : vector<16x128xf32> to vector<2x8x128xf32>
    %230 = arith.addf %203, %229 : vector<2x8x128xf32>
    %c1_103 = arith.constant 1 : index
    %c0_104 = arith.constant 0 : index
    %c0_105 = arith.constant 0 : index
    %231 = vector.load %arg11[%c1_103, %c0_104, %c0_105] : memref<2x1x128xf32, #tpu.memory_space<vmem>>, vector<1x1x128xf32>
    %232 = vector.shape_cast %231 : vector<1x1x128xf32> to vector<1x128xf32>
    %c1_106 = arith.constant 1 : index
    %c0_107 = arith.constant 0 : index
    %c0_108 = arith.constant 0 : index
    %233 = vector.load %arg12[%c1_106, %c0_107, %c0_108] : memref<2x1x128xf32, #tpu.memory_space<vmem>>, vector<1x1x128xf32>
    %234 = vector.shape_cast %233 : vector<1x1x128xf32> to vector<1x128xf32>
    %cst_109 = arith.constant dense<0.000000e+00> : vector<2x8xf32>
    %235 = vector.multi_reduction <add>, %230, %cst_109 [2] : vector<2x8x128xf32> to vector<2x8xf32>
    %236 = vector.shape_cast %235 : vector<2x8xf32> to vector<2x8x1xf32>
    %cst_110 = arith.constant 1.280000e+02 : f32
    %237 = vector.broadcast %cst_110 : f32 to vector<2x8x1xf32>
    %238 = arith.divf %236, %237 : vector<2x8x1xf32>
    %239 = vector.broadcast %238 : vector<2x8x1xf32> to vector<2x8x128xf32>
    %240 = arith.subf %230, %239 : vector<2x8x128xf32>
    %241 = arith.mulf %240, %240 : vector<2x8x128xf32>
    %cst_111 = arith.constant dense<0.000000e+00> : vector<2x8xf32>
    %242 = vector.multi_reduction <add>, %241, %cst_111 [2] : vector<2x8x128xf32> to vector<2x8xf32>
    %243 = vector.shape_cast %242 : vector<2x8xf32> to vector<2x8x1xf32>
    %cst_112 = arith.constant 1.280000e+02 : f32
    %244 = vector.broadcast %cst_112 : f32 to vector<2x8x1xf32>
    %245 = arith.divf %243, %244 : vector<2x8x1xf32>
    %246 = vector.broadcast %238 : vector<2x8x1xf32> to vector<2x8x128xf32>
    %247 = arith.subf %230, %246 : vector<2x8x128xf32>
    %cst_113 = arith.constant 9.99999974E-6 : f32
    %248 = vector.broadcast %cst_113 : f32 to vector<2x8x1xf32>
    %249 = arith.addf %245, %248 : vector<2x8x1xf32>
    %250 = math.rsqrt %249 : vector<2x8x1xf32>
    %251 = vector.broadcast %250 : vector<2x8x1xf32> to vector<2x8x128xf32>
    %252 = arith.mulf %247, %251 : vector<2x8x128xf32>
    %253 = vector.shape_cast %232 : vector<1x128xf32> to vector<1x1x128xf32>
    %254 = vector.broadcast %253 : vector<1x1x128xf32> to vector<2x8x128xf32>
    %255 = arith.mulf %252, %254 : vector<2x8x128xf32>
    %256 = vector.shape_cast %234 : vector<1x128xf32> to vector<1x1x128xf32>
    %257 = vector.broadcast %256 : vector<1x1x128xf32> to vector<2x8x128xf32>
    %258 = arith.addf %255, %257 : vector<2x8x128xf32>
    %cst_114 = arith.constant dense<0.000000e+00> : vector<8x128xf32>
    %259 = vector.multi_reduction <add>, %258, %cst_114 [0] : vector<2x8x128xf32> to vector<8x128xf32>
    %cst_115 = arith.constant 2.000000e+00 : f32
    %260 = vector.broadcast %cst_115 : f32 to vector<8x128xf32>
    %261 = arith.divf %259, %260 : vector<8x128xf32>
    %262 = arith.truncf %261 : vector<8x128xf32> to vector<8x128xbf16>
    %c0_116 = arith.constant 0 : index
    %c0_117 = arith.constant 0 : index
    %263 = vector.load %arg13[%c0_116, %c0_117] : memref<128x128xbf16, #tpu.memory_space<vmem>>, vector<128x128xbf16>
    %cst_118 = arith.constant dense<0.000000e+00> : vector<8x128xf32>
    %264 = tpu.matmul %262, %263, %cst_118 {dimension_numbers = #tpu.dot_dimension_numbers<[1], [0], [0], [1], [0, 0, 1, 1], [], []>} : vector<8x128xbf16>, vector<128x128xbf16>, vector<8x128xf32> -> vector<8x128xf32>
    %c0_119 = arith.constant 0 : index
    %c0_120 = arith.constant 0 : index
    %265 = vector.load %arg14[%c0_119, %c0_120] : memref<1x128xf32, #tpu.memory_space<vmem>>, vector<1x128xf32>
    %266 = vector.broadcast %265 : vector<1x128xf32> to vector<8x128xf32>
    %267 = arith.addf %264, %266 : vector<8x128xf32>
    %c0_121 = arith.constant 0 : index
    %c0_122 = arith.constant 0 : index
    %268 = vector.load %arg15[%c0_121, %c0_122] : memref<8x128xf32, #tpu.memory_space<vmem>>, vector<8x128xf32>
    tpu.vector_store %arg15[%c0_121, %c0_122], %267 {strides = array<i32>} : memref<8x128xf32, #tpu.memory_space<vmem>>, vector<8x128xf32>,
    return
  }
}

</mosaic_0001>

<llo_original>
// kernel: mini_transformer.1
$region0: #{mini_transformer.1}
  #allocation0 [shape = 'u32[]', space=smem, size = 0x4, offset = 0x4, fixed_abs, tag = 'smem constant byte address 0x4 - core index']
  #allocation1 [shape = 'u32[144,128]{1,0:T(1,128)}', space=vmem, size = 0x12000, scoped, tag = 'internal scratch']
  %s0 = inlined_call_operand.vmem [shape: f32[2,8,128], index: 0, kind: input, shape index: {}]
  %s1 = inlined_call_operand.hbm [shape: bf16[2,128,384], index: 1, kind: input, shape index: {}]
  %s2 = inlined_call_operand.vmem [shape: f32[2,1,384], index: 2, kind: input, shape index: {}]
  %s3 = inlined_call_operand.hbm [shape: bf16[2,128,128], index: 3, kind: input, shape index: {}]
  %s4 = inlined_call_operand.vmem [shape: f32[2,1,128], index: 4, kind: input, shape index: {}]
  %s5 = inlined_call_operand.vmem [shape: f32[2,1,128], index: 5, kind: input, shape index: {}]
  %s6 = inlined_call_operand.vmem [shape: f32[2,1,128], index: 6, kind: input, shape index: {}]
  %s7 = inlined_call_operand.hbm [shape: bf16[2,128,512], index: 7, kind: input, shape index: {}]
  %s8 = inlined_call_operand.vmem [shape: f32[2,1,512], index: 8, kind: input, shape index: {}]
  %s9 = inlined_call_operand.hbm [shape: bf16[2,512,128], index: 9, kind: input, shape index: {}]
  %s10 = inlined_call_operand.hbm [shape: f32[2,1,128], index: 10, kind: input, shape index: {}]
  %s11 = inlined_call_operand.hbm [shape: f32[2,1,128], index: 11, kind: input, shape index: {}]
  %s12 = inlined_call_operand.hbm [shape: f32[2,1,128], index: 12, kind: input, shape index: {}]
  %s13 = inlined_call_operand.vmem [shape: bf16[128,128], index: 13, kind: input, shape index: {}]
  %s14 = inlined_call_operand.vmem [shape: f32[1,128], index: 14, kind: input, shape index: {}]
  %s15 = inlined_call_operand.hbm [shape: f32[8,128], index: 15, kind: output, shape index: {}]
  %s16 = sld [smem:[#allocation0]]
  $region98: #{mini_transformer.1} parent=0
    _
  %s18 = ssub.s32 1, %s16
  %s19 = scalar_select 0, %s18, %s16
  $region1: #{mini_transformer.1} parent=0
    #allocation2 [shape = 'u8[196608]{0}', space=vmem, size = 0x30000, scoped, tag = 'input window, operand 1, single buffered']
    #allocation3 [shape = 's32[1]{0}', space=sflag, size = 0x4, scoped, tag = 'scoped memory for mini_transformer.1']
    #allocation4 [shape = 's32[1]{0}', space=sflag, size = 0x4, scoped, tag = 'scoped memory for mini_transformer.1']
    #allocation5 [shape = 'u8[65536]{0}', space=vmem, size = 0x10000, scoped, tag = 'input window, operand 3, single buffered']
    #allocation6 [shape = 's32[1]{0}', space=sflag, size = 0x4, scoped, tag = 'scoped memory for mini_transformer.1']
    #allocation7 [shape = 'u8[262144]{0}', space=vmem, size = 0x40000, scoped, tag = 'input window, operand 7, single buffered']
    #allocation8 [shape = 'u8[262144]{0}', space=vmem, size = 0x40000, scoped, tag = 'input window, operand 9, single buffered']
    #allocation9 [shape = 's32[1]{0}', space=sflag, size = 0x4, scoped, tag = 'scoped memory for mini_transformer.1']
    #allocation10 [shape = 'u8[1024]{0}', space=vmem, size = 0x400, scoped, tag = 'input window, operand 10, single buffered']
    #allocation11 [shape = 'u8[1024]{0}', space=vmem, size = 0x400, scoped, tag = 'input window, operand 11, single buffered']
    #allocation12 [shape = 's32[1]{0}', space=sflag, size = 0x4, scoped, tag = 'scoped memory for mini_transformer.1']
    #allocation13 [shape = 'u8[1024]{0}', space=vmem, size = 0x400, scoped, tag = 'input window, operand 12, single buffered']
    #allocation14 [shape = 'u8[4096]{0}', space=vmem, size = 0x1000, scoped, tag = 'output window, operand 0, single buffered']
    %20 = vsyncpa [#allocation3], 0
    %21 = vsyncpa [#allocation6], 0
    %22 = vsyncpa [#allocation9], 0
    %23 = vsyncpa [#allocation12], 0
    %24 = vsyncpa [#allocation4], 0
    // Predicated region
    $region2: #{mini_transformer.1} parent=1 // pred_check
      _
    $region3: #{mini_transformer.1} parent=1 // pred_check_branch
      %26 = sbr.rel (0) target = $region5
    $region4: #{mini_transformer.1} parent=1 // pred_region
      _
    $region5: #{mini_transformer.1} parent=1 // pred_fallthru
      _
    // Predicated region
    $region6: #{mini_transformer.1} parent=1 // pred_check
      _
    $region7: #{mini_transformer.1} parent=1 // pred_check_branch
      %28 = sbr.rel (0) target = $region9
    $region8: #{mini_transformer.1} parent=1 // pred_region
      %s30 = ssub.s32 6144, 6144
      %31 = vsyncadd [#allocation3], %s30
      %s32 = sshll.u32 [#allocation2], 4
      %s33 = int_to_ptr.vmem [resolvable:$true] %s32
      %38 = dma.hbm_to_vmem [thread:$0]  %s1, 6144, %s33, [#allocation3], 192, 192, 12
    $region9: #{mini_transformer.1} parent=1 // pred_fallthru
      _
    // Predicated region
    $region10: #{mini_transformer.1} parent=1 // pred_check
      _
    $region11: #{mini_transformer.1} parent=1 // pred_check_branch
      %40 = sbr.rel (0) target = $region13
    $region12: #{mini_transformer.1} parent=1 // pred_region
      _
    $region13: #{mini_transformer.1} parent=1 // pred_fallthru
      _
    // Predicated region
    $region14: #{mini_transformer.1} parent=1 // pred_check
      _
    $region15: #{mini_transformer.1} parent=1 // pred_check_branch
      %42 = sbr.rel (0) target = $region17
    $region16: #{mini_transformer.1} parent=1 // pred_region
      %s44 = ssub.s32 2048, 2048
      %45 = vsyncadd [#allocation6], %s44
      %s46 = sshll.u32 [#allocation5], 4
      %s47 = int_to_ptr.vmem [resolvable:$true] %s46
      %52 = dma.hbm_to_vmem [thread:$0]  %s3, 2048, %s47, [#allocation6], 64, 64, 4
    $region17: #{mini_transformer.1} parent=1 // pred_fallthru
      _
    // Predicated region
    $region18: #{mini_transformer.1} parent=1 // pred_check
      _
    $region19: #{mini_transformer.1} parent=1 // pred_check_branch
      %54 = sbr.rel (0) target = $region21
    $region20: #{mini_transformer.1} parent=1 // pred_region
      _
    $region21: #{mini_transformer.1} parent=1 // pred_fallthru
      _
    // Predicated region
    $region22: #{mini_transformer.1} parent=1 // pred_check
      _
    $region23: #{mini_transformer.1} parent=1 // pred_check_branch
      %56 = sbr.rel (0) target = $region25
    $region24: #{mini_transformer.1} parent=1 // pred_region
      _
    $region25: #{mini_transformer.1} parent=1 // pred_fallthru
      _
    // Predicated region
    $region26: #{mini_transformer.1} parent=1 // pred_check
      _
    $region27: #{mini_transformer.1} parent=1 // pred_check_branch
      %58 = sbr.rel (0) target = $region29
    $region28: #{mini_transformer.1} parent=1 // pred_region
      _
    $region29: #{mini_transformer.1} parent=1 // pred_fallthru
      _
    // Predicated region
    $region30: #{mini_transformer.1} parent=1 // pred_check
      _
    $region31: #{mini_transformer.1} parent=1 // pred_check_branch
      %60 = sbr.rel (0) target = $region33
    $region32: #{mini_transformer.1} parent=1 // pred_region
      %s62 = ssub.s32 8192, 8192
      %63 = vsyncadd [#allocation6], %s62
      %s64 = sshll.u32 [#allocation7], 4
      %s65 = int_to_ptr.vmem [resolvable:$true] %s64
      %70 = dma.hbm_to_vmem [thread:$0]  %s7, 8192, %s65, [#allocation6], 256, 256, 16
    $region33: #{mini_transformer.1} parent=1 // pred_fallthru
      _
    // Predicated region
    $region34: #{mini_transformer.1} parent=1 // pred_check
      _
    $region35: #{mini_transformer.1} parent=1 // pred_check_branch
      %72 = sbr.rel (0) target = $region37
    $region36: #{mini_transformer.1} parent=1 // pred_region
      _
    $region37: #{mini_transformer.1} parent=1 // pred_fallthru
      _
    // Predicated region
    $region38: #{mini_transformer.1} parent=1 // pred_check
      _
    $region39: #{mini_transformer.1} parent=1 // pred_check_branch
      %74 = sbr.rel (0) target = $region41
    $region40: #{mini_transformer.1} parent=1 // pred_region
      %s76 = ssub.s32 8192, 8192
      %77 = vsyncadd [#allocation9], %s76
      %s78 = sshll.u32 [#allocation8], 4
      %s79 = int_to_ptr.vmem [resolvable:$true] %s78
      %84 = dma.hbm_to_vmem [thread:$0]  %s9, 8192, %s79, [#allocation9], 64, 64, 4
    $region41: #{mini_transformer.1} parent=1 // pred_fallthru
      _
    // Predicated region
    $region42: #{mini_transformer.1} parent=1 // pred_check
      _
    $region43: #{mini_transformer.1} parent=1 // pred_check_branch
      %86 = sbr.rel (0) target = $region45
    $region44: #{mini_transformer.1} parent=1 // pred_region
      %s88 = ssub.s32 32, 32
      %89 = vsyncadd [#allocation9], %s88
      %s90 = sshll.u32 [#allocation10], 4
      %s91 = int_to_ptr.vmem [resolvable:$true] %s90
      %96 = dma.hbm_to_vmem [thread:$0]  %s10, 32, %s91, [#allocation9], 16, 16, 1
    $region45: #{mini_transformer.1} parent=1 // pred_fallthru
      _
    // Predicated region
    $region46: #{mini_transformer.1} parent=1 // pred_check
      _
    $region47: #{mini_transformer.1} parent=1 // pred_check_branch
      %98 = sbr.rel (0) target = $region49
    $region48: #{mini_transformer.1} parent=1 // pred_region
      %s100 = ssub.s32 32, 32
      %101 = vsyncadd [#allocation12], %s100
      %s102 = sshll.u32 [#allocation11], 4
      %s103 = int_to_ptr.vmem [resolvable:$true] %s102
      %108 = dma.hbm_to_vmem [thread:$0]  %s11, 32, %s103, [#allocation12], 16, 16, 1
    $region49: #{mini_transformer.1} parent=1 // pred_fallthru
      _
    // Predicated region
    $region50: #{mini_transformer.1} parent=1 // pred_check
      _
    $region51: #{mini_transformer.1} parent=1 // pred_check_branch
      %110 = sbr.rel (0) target = $region53
    $region52: #{mini_transformer.1} parent=1 // pred_region
      %s112 = ssub.s32 32, 32
      %113 = vsyncadd [#allocation12], %s112
      %s114 = sshll.u32 [#allocation13], 4
      %s115 = int_to_ptr.vmem [resolvable:$true] %s114
      %120 = dma.hbm_to_vmem [thread:$0]  %s12, 32, %s115, [#allocation12], 16, 16, 1
    $region53: #{mini_transformer.1} parent=1 // pred_fallthru
      _
    // Predicated region
    $region54: #{mini_transformer.1} parent=1 // pred_check
      _
    $region55: #{mini_transformer.1} parent=1 // pred_check_branch
      %122 = sbr.rel (0) target = $region57
    $region56: #{mini_transformer.1} parent=1 // pred_region
      _
    $region57: #{mini_transformer.1} parent=1 // pred_fallthru
      _
    // Predicated region
    $region58: #{mini_transformer.1} parent=1 // pred_check
      _
    $region59: #{mini_transformer.1} parent=1 // pred_check_branch
      %124 = sbr.rel (0) target = $region61
    $region60: #{mini_transformer.1} parent=1 // pred_region
      _
    $region61: #{mini_transformer.1} parent=1 // pred_fallthru
      _
    // Predicated region
    $region62: #{mini_transformer.1} parent=1 // pred_check
      _
    $region63: #{mini_transformer.1} parent=1 // pred_check_branch
      %126 = sbr.rel (0) target = $region65
    $region64: #{mini_transformer.1} parent=1 // pred_region
      %127 = dma.done [#allocation3], 6144
    $region65: #{mini_transformer.1} parent=1 // pred_fallthru
      _
    // Predicated region
    $region66: #{mini_transformer.1} parent=1 // pred_check
      _
    $region67: #{mini_transformer.1} parent=1 // pred_check_branch
      %129 = sbr.rel (0) target = $region69
    $region68: #{mini_transformer.1} parent=1 // pred_region
      %130 = dma.done [#allocation6], 2048
    $region69: #{mini_transformer.1} parent=1 // pred_fallthru
      _
    // Predicated region
    $region70: #{mini_transformer.1} parent=1 // pred_check
      _
    $region71: #{mini_transformer.1} parent=1 // pred_check_branch
      %132 = sbr.rel (0) target = $region73
    $region72: #{mini_transformer.1} parent=1 // pred_region
      %133 = dma.done [#allocation6], 8192
    $region73: #{mini_transformer.1} parent=1 // pred_fallthru
      _
    // Predicated region
    $region74: #{mini_transformer.1} parent=1 // pred_check
      _
    $region75: #{mini_transformer.1} parent=1 // pred_check_branch
      %135 = sbr.rel (0) target = $region77
    $region76: #{mini_transformer.1} parent=1 // pred_region
      %136 = dma.done [#allocation9], 8192
    $region77: #{mini_transformer.1} parent=1 // pred_fallthru
      _
    // Predicated region
    $region78: #{mini_transformer.1} parent=1 // pred_check
      _
    $region79: #{mini_transformer.1} parent=1 // pred_check_branch
      %138 = sbr.rel (0) target = $region81
    $region80: #{mini_transformer.1} parent=1 // pred_region
      %139 = dma.done [#allocation9], 32
    $region81: #{mini_transformer.1} parent=1 // pred_fallthru
      _
    // Predicated region
    $region82: #{mini_transformer.1} parent=1 // pred_check
      _
    $region83: #{mini_transformer.1} parent=1 // pred_check_branch
      %141 = sbr.rel (0) target = $region85
    $region84: #{mini_transformer.1} parent=1 // pred_region
      %142 = dma.done [#allocation12], 32
    $region85: #{mini_transformer.1} parent=1 // pred_fallthru
      _
    // Predicated region
    $region86: #{mini_transformer.1} parent=1 // pred_check
      _
    $region87: #{mini_transformer.1} parent=1 // pred_check_branch
      %144 = sbr.rel (0) target = $region89
    $region88: #{mini_transformer.1} parent=1 // pred_region
      %145 = dma.done [#allocation12], 32
    $region89: #{mini_transformer.1} parent=1 // pred_fallthru
      _
    %v147 = vld [vmem:[%s0] sm:$0xff]
    %v148 = vld [vmem:[%s0 + $0x8] sm:$0xff]
    %v149 = vpack.c.bf16 %v148, %v147
    %v150 = vld [vmem:[#allocation2] sm:$0xff]
    %v151 = vld [vmem:[#allocation2 + $0x8] sm:$0xf]
    %v152 = vld [vmem:[#allocation2 + $0xc] sm:$0xff]
    %v153 = vld [vmem:[#allocation2 + $0x14] sm:$0xf]
    %v154 = vld [vmem:[#allocation2 + $0x18] sm:$0xff]
    %v155 = vld [vmem:[#allocation2 + $0x20] sm:$0xf]
    %v156 = vld [vmem:[#allocation2 + $0x24] sm:$0xff]
    %v157 = vld [vmem:[#allocation2 + $0x2c] sm:$0xf]
    %v158 = vld [vmem:[#allocation2 + $0x30] sm:$0xff]
    %v159 = vld [vmem:[#allocation2 + $0x38] sm:$0xf]
    %v160 = vld [vmem:[#allocation2 + $0x3c] sm:$0xff]
    %v161 = vld [vmem:[#allocation2 + $0x44] sm:$0xf]
    %v162 = vld [vmem:[#allocation2 + $0x48] sm:$0xff]
    %v163 = vld [vmem:[#allocation2 + $0x50] sm:$0xf]
    %v164 = vld [vmem:[#allocation2 + $0x54] sm:$0xff]
    %v165 = vld [vmem:[#allocation2 + $0x5c] sm:$0xf]
    %v166 = vld [vmem:[#allocation2 + $0x60] sm:$0xff]
    %v167 = vld [vmem:[#allocation2 + $0x68] sm:$0xf]
    %v168 = vld [vmem:[#allocation2 + $0x6c] sm:$0xff]
    %v169 = vld [vmem:[#allocation2 + $0x74] sm:$0xf]
    %v170 = vld [vmem:[#allocation2 + $0x78] sm:$0xff]
    %v171 = vld [vmem:[#allocation2 + $0x80] sm:$0xf]
    %v172 = vld [vmem:[#allocation2 + $0x84] sm:$0xff]
    %v173 = vld [vmem:[#allocation2 + $0x8c] sm:$0xf]
    %v174 = vld [vmem:[#allocation2 + $0x90] sm:$0xff]
    %v175 = vld [vmem:[#allocation2 + $0x98] sm:$0xf]
    %v176 = vld [vmem:[#allocation2 + $0x9c] sm:$0xff]
    %v177 = vld [vmem:[#allocation2 + $0xa4] sm:$0xf]
    %v178 = vld [vmem:[#allocation2 + $0xa8] sm:$0xff]
    %v179 = vld [vmem:[#allocation2 + $0xb0] sm:$0xf]
    %v180 = vld [vmem:[#allocation2 + $0xb4] sm:$0xff]
    %v181 = vld [vmem:[#allocation2 + $0xbc] sm:$0xf]
    %v182 = vld [vmem:[%s2] sm:$0x7]
    %v184 = vlaneseq
    %v185 = vshrl.u32 %v184, 7
    %v186 = vsub.s32 0, %v185
    %v187 = vrot.slane %v182, %v186
    %v188 = vlaneseq
    %v189 = vshrl.u32 %v188, 7
    %v190 = vsub.s32 1, %v189
    %v191 = vrot.slane %v182, %v190
    %v192 = vlaneseq
    %v193 = vshrl.u32 %v192, 7
    %v194 = vsub.s32 2, %v193
    %v195 = vrot.slane %v182, %v194
    %v231 = vunpack.c.l.b16 %v150
    %v232 = vunpack.c.h.b16 %v150
    %v233 = vunpack.c.l.b16 %v151
    %v234 = vunpack.c.l.b16 %v152
    %v235 = vunpack.c.h.b16 %v152
    %v236 = vunpack.c.l.b16 %v153
    %v237 = vunpack.c.l.b16 %v154
    %v238 = vunpack.c.h.b16 %v154
    %v239 = vunpack.c.l.b16 %v155
    %v240 = vunpack.c.l.b16 %v156
    %v241 = vunpack.c.h.b16 %v156
    %v242 = vunpack.c.l.b16 %v157
    %v243 = vunpack.c.l.b16 %v158
    %v244 = vunpack.c.h.b16 %v158
    %v245 = vunpack.c.l.b16 %v159
    %v246 = vunpack.c.l.b16 %v160
    %v247 = vunpack.c.h.b16 %v160
    %v248 = vunpack.c.l.b16 %v161
    %v249 = vunpack.c.l.b16 %v162
    %v250 = vunpack.c.h.b16 %v162
    %v251 = vunpack.c.l.b16 %v163
    %v252 = vunpack.c.l.b16 %v164
    %v253 = vunpack.c.h.b16 %v164
    %v254 = vunpack.c.l.b16 %v165
    %v255 = vunpack.c.l.b16 %v166
    %v256 = vunpack.c.h.b16 %v166
    %v257 = vunpack.c.l.b16 %v167
    %v258 = vunpack.c.l.b16 %v168
    %v259 = vunpack.c.h.b16 %v168
    %v260 = vunpack.c.l.b16 %v169
    %v261 = vunpack.c.l.b16 %v170
    %v262 = vunpack.c.h.b16 %v170
    %v263 = vunpack.c.l.b16 %v171
    %v264 = vunpack.c.l.b16 %v172
    %v265 = vunpack.c.h.b16 %v172
    %v266 = vunpack.c.l.b16 %v173
    %v267 = vunpack.c.l.b16 %v174
    %v268 = vunpack.c.h.b16 %v174
    %v269 = vunpack.c.l.b16 %v175
    %v270 = vunpack.c.l.b16 %v176
    %v271 = vunpack.c.h.b16 %v176
    %v272 = vunpack.c.l.b16 %v177
    %v273 = vunpack.c.l.b16 %v178
    %v274 = vunpack.c.h.b16 %v178
    %v275 = vunpack.c.l.b16 %v179
    %v276 = vunpack.c.l.b16 %v180
    %v277 = vunpack.c.h.b16 %v180
    %v278 = vunpack.c.l.b16 %v181
    %v279 = vpack.c.b16 %v234, %v231
    %v280 = vpack.c.b16 %v235, %v232
    %v281 = vpack.c.b16 %v236, %v233
    %v282 = vpack.c.b16 %v240, %v237
    %v283 = vpack.c.b16 %v241, %v238
    %v284 = vpack.c.b16 %v242, %v239
    %v285 = vpack.c.b16 %v246, %v243
    %v286 = vpack.c.b16 %v247, %v244
    %v287 = vpack.c.b16 %v248, %v245
    %v288 = vpack.c.b16 %v252, %v249
    %v289 = vpack.c.b16 %v253, %v250
    %v290 = vpack.c.b16 %v254, %v251
    %v291 = vpack.c.b16 %v258, %v255
    %v292 = vpack.c.b16 %v259, %v256
    %v293 = vpack.c.b16 %v260, %v257
    %v294 = vpack.c.b16 %v264, %v261
    %v295 = vpack.c.b16 %v265, %v262
    %v296 = vpack.c.b16 %v266, %v263
    %v297 = vpack.c.b16 %v270, %v267
    %v298 = vpack.c.b16 %v271, %v268
    %v299 = vpack.c.b16 %v272, %v269
    %v300 = vpack.c.b16 %v276, %v273
    %v301 = vpack.c.b16 %v277, %v274
    %v302 = vpack.c.b16 %v278, %v275
    %327 = vmatprep.subr.bf16.mxu0 %v280
    %328 = vmatpush1.bf16.msra.mxu0 %v279
    %329 = vmatprep.subr.bf16.mxu0 %v283
    %330 = vmatpush1.bf16.msra.mxu0 %v282
    %331 = vmatprep.subr.bf16.mxu0 %v286
    %332 = vmatpush1.bf16.msra.mxu0 %v285
    %333 = vmatprep.subr.bf16.mxu0 %v289
    %334 = vmatpush1.bf16.msra.mxu0 %v288
    %335 = vmatprep.subr.bf16.mxu0 %v292
    %336 = vmatpush1.bf16.msra.mxu0 %v291
    %337 = vmatprep.subr.bf16.mxu0 %v295
    %338 = vmatpush1.bf16.msra.mxu0 %v294
    %339 = vmatprep.subr.bf16.mxu0 %v298
    %340 = vmatpush1.bf16.msra.mxu0 %v297
    %341 = vmatprep.subr.bf16.mxu0 %v301
    %342 = vmatpush1.bf16.msra.mxu0 %v300
    %343 = vmatprep.subr.bf16.mxu0 0
    %344 = vmatpush1.bf16.msra.mxu0 0
    %345 = vmatprep.subr.bf16.mxu0 0
    %346 = vmatpush1.bf16.msra.mxu0 0
    %347 = vmatprep.subr.bf16.mxu0 0
    %348 = vmatpush1.bf16.msra.mxu0 0
    %349 = vmatprep.subr.bf16.mxu0 0
    %350 = vmatpush1.bf16.msra.mxu0 0
    %351 = vmatprep.subr.bf16.mxu0 0
    %352 = vmatpush1.bf16.msra.mxu0 0
    %353 = vmatprep.subr.bf16.mxu0 0
    %354 = vmatpush1.bf16.msra.mxu0 0
    %355 = vmatprep.subr.bf16.mxu0 0
    %356 = vmatpush1.bf16.msra.mxu0 0
    %357 = vmatprep.subr.bf16.mxu0 0
    %358 = vmatpush1.bf16.msra.mxu0 0
    %359 = vmatprep.mubr.bf16.mxu0 0
    %360 = vmatmul.mubr.bf16.gmra.mrb[0].mxu0 %v149
    %v361 = vpop.f32.mrb[0].mxu0
    %v362 = vadd.f32 %v187, %v361
    %v363 = vpop.f32.mrb[0].mxu0
    %v364 = vadd.f32 %v191, %v363
    %v365 = vpop.f32.mrb[0].mxu0
    %v366 = vadd.f32 %v187, %v365
    %v367 = vpop.f32.mrb[0].mxu0
    %v368 = vadd.f32 %v191, %v367
    %369 = vdwg.mxu0
    %370 = vmatprep.subr.bf16.mxu0 0
    %371 = vmatpush1.bf16.msra.mxu0 %v281
    %372 = vmatprep.subr.bf16.mxu0 0
    %373 = vmatpush1.bf16.msra.mxu0 %v284
    %374 = vmatprep.subr.bf16.mxu0 0
    %375 = vmatpush1.bf16.msra.mxu0 %v287
    %376 = vmatprep.subr.bf16.mxu0 0
    %377 = vmatpush1.bf16.msra.mxu0 %v290
    %378 = vmatprep.subr.bf16.mxu0 0
    %379 = vmatpush1.bf16.msra.mxu0 %v293
    %380 = vmatprep.subr.bf16.mxu0 0
    %381 = vmatpush1.bf16.msra.mxu0 %v296
    %382 = vmatprep.subr.bf16.mxu0 0
    %383 = vmatpush1.bf16.msra.mxu0 %v299
    %384 = vmatprep.subr.bf16.mxu0 0
    %385 = vmatpush1.bf16.msra.mxu0 %v302
    %386 = vmatprep.subr.bf16.mxu0 0
    %387 = vmatpush1.bf16.msra.mxu0 0
    %388 = vmatprep.subr.bf16.mxu0 0
    %389 = vmatpush1.bf16.msra.mxu0 0
    %390 = vmatprep.subr.bf16.mxu0 0
    %391 = vmatpush1.bf16.msra.mxu0 0
    %392 = vmatprep.subr.bf16.mxu0 0
    %393 = vmatpush1.bf16.msra.mxu0 0
    %394 = vmatprep.subr.bf16.mxu0 0
    %395 = vmatpush1.bf16.msra.mxu0 0
    %396 = vmatprep.subr.bf16.mxu0 0
    %397 = vmatpush1.bf16.msra.mxu0 0
    %398 = vmatprep.subr.bf16.mxu0 0
    %399 = vmatpush1.bf16.msra.mxu0 0
    %400 = vmatprep.subr.bf16.mxu0 0
    %401 = vmatpush1.bf16.msra.mxu0 0
    %402 = vmatprep.mubr.bf16.mxu0 0
    %403 = vmatmul.mubr.bf16.gmra.mrb[0].mxu0 %v149
    %v404 = vpop.f32.mrb[0].mxu0
    %v405 = vadd.f32 %v195, %v404
    %v406 = vpop.f32.mrb[0].mxu0
    %v407 = vpop.f32.mrb[0].mxu0
    %v408 = vadd.f32 %v195, %v407
    %v409 = vpop.f32.mrb[0].mxu0
    %410 = vdwg.mxu0
    %413 = vrot.lane.b32.xlu0 %v362, 96
    %v414 = vpop.permute.xlu0 %413
    %415 = vrot.lane.b32.xlu0 %v366, 96
    %v416 = vpop.permute.xlu0 %415
    %419 = vrot.lane.b32.xlu0 %v362, 64
    %v420 = vpop.permute.xlu0 %419
    %421 = vrot.lane.b32.xlu0 %v366, 64
    %v422 = vpop.permute.xlu0 %421
    %425 = vrot.lane.b32.xlu0 %v362, 32
    %v426 = vpop.permute.xlu0 %425
    %427 = vrot.lane.b32.xlu0 %v366, 32
    %v428 = vpop.permute.xlu0 %427
    %v431 = vcombine.low %v362, %v420
    %v432 = vcombine.high %v362, %v420
    %v434 = vunpack.c.l.s4 1983009808
    %v435 = vunpack.c.0.s8 %v434
    %v436 = vlaneseq
    %v437 = vshrl.u32 %v436, 7
    %v438 = vsub.s32 %v435, %v437
    %v439 = vrot.slane %v431, %v438
    %v441 = vunpack.c.l.s4 1983009808
    %v442 = vunpack.c.0.s8 %v441
    %v443 = vlaneseq
    %v444 = vshrl.u32 %v443, 7
    %v445 = vsub.s32 %v442, %v444
    %v446 = vrot.slane %v432, %v445
    %v447 = vcombine.low %v414, %v426
    %v448 = vcombine.high %v414, %v426
    %v450 = vunpack.c.l.s4 1983009808
    %v451 = vunpack.c.0.s8 %v450
    %v452 = vlaneseq
    %v453 = vshrl.u32 %v452, 7
    %v454 = vsub.s32 %v451, %v453
    %v455 = vrot.slane %v447, %v454
    %v457 = vunpack.c.l.s4 1983009808
    %v458 = vunpack.c.0.s8 %v457
    %v459 = vlaneseq
    %v460 = vshrl.u32 %v459, 7
    %v461 = vsub.s32 %v458, %v460
    %v462 = vrot.slane %v448, %v461
    %v463 = vcombine.low %v439, %v455
    %v464 = vcombine.high %v439, %v455
    %v466 = vunpack.c.l.s4 1934713408
    %v467 = vunpack.c.0.s8 %v466
    %v468 = vlaneseq
    %v469 = vshrl.u32 %v468, 7
    %v470 = vsub.s32 %v467, %v469
    %v471 = vrot.slane %v463, %v470
    %v473 = vunpack.c.l.s4 1934713408
    %v474 = vunpack.c.0.s8 %v473
    %v475 = vlaneseq
    %v476 = vshrl.u32 %v475, 7
    %v477 = vsub.s32 %v474, %v476
    %v478 = vrot.slane %v464, %v477
    %v479 = vcombine.low %v446, %v462
    %v480 = vcombine.high %v446, %v462
    %v482 = vunpack.c.l.s4 1934713408
    %v483 = vunpack.c.0.s8 %v482
    %v484 = vlaneseq
    %v485 = vshrl.u32 %v484, 7
    %v486 = vsub.s32 %v483, %v485
    %v487 = vrot.slane %v479, %v486
    %v489 = vunpack.c.l.s4 1934713408
    %v490 = vunpack.c.0.s8 %v489
    %v491 = vlaneseq
    %v492 = vshrl.u32 %v491, 7
    %v493 = vsub.s32 %v490, %v492
    %v494 = vrot.slane %v480, %v493
    %v495 = vcombine.high %v471, 0.0
    %v496 = vcombine.high %v478, 0.0
    %v497 = vcombine.high %v487, 0.0
    %v498 = vcombine.high %v494, 0.0
    %v499 = vcombine.low %v366, %v422
    %v500 = vcombine.high %v366, %v422
    %v502 = vunpack.c.l.s4 1983009808
    %v503 = vunpack.c.0.s8 %v502
    %v504 = vlaneseq
    %v505 = vshrl.u32 %v504, 7
    %v506 = vsub.s32 %v503, %v505
    %v507 = vrot.slane %v499, %v506
    %v509 = vunpack.c.l.s4 1983009808
    %v510 = vunpack.c.0.s8 %v509
    %v511 = vlaneseq
    %v512 = vshrl.u32 %v511, 7
    %v513 = vsub.s32 %v510, %v512
    %v514 = vrot.slane %v500, %v513
    %v515 = vcombine.low %v416, %v428
    %v516 = vcombine.high %v416, %v428
    %v518 = vunpack.c.l.s4 1983009808
    %v519 = vunpack.c.0.s8 %v518
    %v520 = vlaneseq
    %v521 = vshrl.u32 %v520, 7
    %v522 = vsub.s32 %v519, %v521
    %v523 = vrot.slane %v515, %v522
    %v525 = vunpack.c.l.s4 1983009808
    %v526 = vunpack.c.0.s8 %v525
    %v527 = vlaneseq
    %v528 = vshrl.u32 %v527, 7
    %v529 = vsub.s32 %v526, %v528
    %v530 = vrot.slane %v516, %v529
    %v531 = vcombine.low %v507, %v523
    %v532 = vcombine.high %v507, %v523
    %v534 = vunpack.c.l.s4 1934713408
    %v535 = vunpack.c.0.s8 %v534
    %v536 = vlaneseq
    %v537 = vshrl.u32 %v536, 7
    %v538 = vsub.s32 %v535, %v537
    %v539 = vrot.slane %v531, %v538
    %v541 = vunpack.c.l.s4 1934713408
    %v542 = vunpack.c.0.s8 %v541
    %v543 = vlaneseq
    %v544 = vshrl.u32 %v543, 7
    %v545 = vsub.s32 %v542, %v544
    %v546 = vrot.slane %v532, %v545
    %v547 = vcombine.low %v514, %v530
    %v548 = vcombine.high %v514, %v530
    %v550 = vunpack.c.l.s4 1934713408
    %v551 = vunpack.c.0.s8 %v550
    %v552 = vlaneseq
    %v553 = vshrl.u32 %v552, 7
    %v554 = vsub.s32 %v551, %v553
    %v555 = vrot.slane %v547, %v554
    %v557 = vunpack.c.l.s4 1934713408
    %v558 = vunpack.c.0.s8 %v557
    %v559 = vlaneseq
    %v560 = vshrl.u32 %v559, 7
    %v561 = vsub.s32 %v558, %v560
    %v562 = vrot.slane %v548, %v561
    %v563 = vcombine.high %v539, 0.0
    %v564 = vcombine.high %v546, 0.0
    %v565 = vcombine.high %v555, 0.0
    %v566 = vcombine.high %v562, 0.0
    %v567 = vcombine.low %v471, %v478
    %v569 = vunpack.c.l.s4 1983009808
    %v570 = vunpack.c.0.s8 %v569
    %v571 = vlaneseq
    %v572 = vshrl.u32 %v571, 7
    %v573 = vsub.s32 %v570, %v572
    %v574 = vrot.slane %v567, %v573
    %v575 = vcombine.low %v495, %v496
    %v577 = vunpack.c.l.s4 1983009808
    %v578 = vunpack.c.0.s8 %v577
    %v579 = vlaneseq
    %v580 = vshrl.u32 %v579, 7
    %v581 = vsub.s32 %v578, %v580
    %v582 = vrot.slane %v575, %v581
    %v583 = vcombine.low %v487, %v494
    %v585 = vunpack.c.l.s4 1983009808
    %v586 = vunpack.c.0.s8 %v585
    %v587 = vlaneseq
    %v588 = vshrl.u32 %v587, 7
    %v589 = vsub.s32 %v586, %v588
    %v590 = vrot.slane %v583, %v589
    %v591 = vcombine.low %v497, %v498
    %v593 = vunpack.c.l.s4 1983009808
    %v594 = vunpack.c.0.s8 %v593
    %v595 = vlaneseq
    %v596 = vshrl.u32 %v595, 7
    %v597 = vsub.s32 %v594, %v596
    %v598 = vrot.slane %v591, %v597
    %v599 = vcombine.low %v574, %v582
    %v600 = vcombine.high %v574, %v582
    %v602 = vunpack.c.l.s4 1934713408
    %v603 = vunpack.c.0.s8 %v602
    %v604 = vlaneseq
    %v605 = vshrl.u32 %v604, 7
    %v606 = vsub.s32 %v603, %v605
    %v607 = vrot.slane %v599, %v606
    %v609 = vunpack.c.l.s4 1934713408
    %v610 = vunpack.c.0.s8 %v609
    %v611 = vlaneseq
    %v612 = vshrl.u32 %v611, 7
    %v613 = vsub.s32 %v610, %v612
    %v614 = vrot.slane %v600, %v613
    %v615 = vcombine.low %v590, %v598
    %v616 = vcombine.high %v590, %v598
    %v618 = vunpack.c.l.s4 1934713408
    %v619 = vunpack.c.0.s8 %v618
    %v620 = vlaneseq
    %v621 = vshrl.u32 %v620, 7
    %v622 = vsub.s32 %v619, %v621
    %v623 = vrot.slane %v615, %v622
    %v625 = vunpack.c.l.s4 1934713408
    %v626 = vunpack.c.0.s8 %v625
    %v627 = vlaneseq
    %v628 = vshrl.u32 %v627, 7
    %v629 = vsub.s32 %v626, %v628
    %v630 = vrot.slane %v616, %v629
    %v631 = vcombine.low %v607, %v623
    %v632 = vcombine.high %v607, %v623
    %v633 = vcombine.low %v614, %v630
    %v634 = vcombine.high %v614, %v630
    %v635 = vcombine.low %v539, %v546
    %v637 = vunpack.c.l.s4 1983009808
    %v638 = vunpack.c.0.s8 %v637
    %v639 = vlaneseq
    %v640 = vshrl.u32 %v639, 7
    %v641 = vsub.s32 %v638, %v640
    %v642 = vrot.slane %v635, %v641
    %v643 = vcombine.low %v563, %v564
    %v645 = vunpack.c.l.s4 1983009808
    %v646 = vunpack.c.0.s8 %v645
    %v647 = vlaneseq
    %v648 = vshrl.u32 %v647, 7
    %v649 = vsub.s32 %v646, %v648
    %v650 = vrot.slane %v643, %v649
    %v651 = vcombine.low %v555, %v562
    %v653 = vunpack.c.l.s4 1983009808
    %v654 = vunpack.c.0.s8 %v653
    %v655 = vlaneseq
    %v656 = vshrl.u32 %v655, 7
    %v657 = vsub.s32 %v654, %v656
    %v658 = vrot.slane %v651, %v657
    %v659 = vcombine.low %v565, %v566
    %v661 = vunpack.c.l.s4 1983009808
    %v662 = vunpack.c.0.s8 %v661
    %v663 = vlaneseq
    %v664 = vshrl.u32 %v663, 7
    %v665 = vsub.s32 %v662, %v664
    %v666 = vrot.slane %v659, %v665
    %v667 = vcombine.low %v642, %v650
    %v668 = vcombine.high %v642, %v650
    %v670 = vunpack.c.l.s4 1934713408
    %v671 = vunpack.c.0.s8 %v670
    %v672 = vlaneseq
    %v673 = vshrl.u32 %v672, 7
    %v674 = vsub.s32 %v671, %v673
    %v675 = vrot.slane %v667, %v674
    %v677 = vunpack.c.l.s4 1934713408
    %v678 = vunpack.c.0.s8 %v677
    %v679 = vlaneseq
    %v680 = vshrl.u32 %v679, 7
    %v681 = vsub.s32 %v678, %v680
    %v682 = vrot.slane %v668, %v681
    %v683 = vcombine.low %v658, %v666
    %v684 = vcombine.high %v658, %v666
    %v686 = vunpack.c.l.s4 1934713408
    %v687 = vunpack.c.0.s8 %v686
    %v688 = vlaneseq
    %v689 = vshrl.u32 %v688, 7
    %v690 = vsub.s32 %v687, %v689
    %v691 = vrot.slane %v683, %v690
    %v693 = vunpack.c.l.s4 1934713408
    %v694 = vunpack.c.0.s8 %v693
    %v695 = vlaneseq
    %v696 = vshrl.u32 %v695, 7
    %v697 = vsub.s32 %v694, %v696
    %v698 = vrot.slane %v684, %v697
    %v699 = vcombine.low %v675, %v691
    %v700 = vcombine.high %v675, %v691
    %v701 = vcombine.low %v682, %v698
    %v702 = vcombine.high %v682, %v698
    %705 = vrot.lane.b32.xlu0 %v364, 96
    %v706 = vpop.permute.xlu0 %705
    %707 = vrot.lane.b32.xlu0 %v368, 96
    %v708 = vpop.permute.xlu0 %707
    %711 = vrot.lane.b32.xlu0 %v364, 64
    %v712 = vpop.permute.xlu0 %711
    %713 = vrot.lane.b32.xlu0 %v368, 64
    %v714 = vpop.permute.xlu0 %713
    %717 = vrot.lane.b32.xlu0 %v364, 32
    %v718 = vpop.permute.xlu0 %717
    %719 = vrot.lane.b32.xlu0 %v368, 32
    %v720 = vpop.permute.xlu0 %719
    %v723 = vcombine.low %v364, %v712
    %v724 = vcombine.high %v364, %v712
    %v726 = vunpack.c.l.s4 1983009808
    %v727 = vunpack.c.0.s8 %v726
    %v728 = vlaneseq
    %v729 = vshrl.u32 %v728, 7
    %v730 = vsub.s32 %v727, %v729
    %v731 = vrot.slane %v723, %v730
    %v733 = vunpack.c.l.s4 1983009808
    %v734 = vunpack.c.0.s8 %v733
    %v735 = vlaneseq
    %v736 = vshrl.u32 %v735, 7
    %v737 = vsub.s32 %v734, %v736
    %v738 = vrot.slane %v724, %v737
    %v739 = vcombine.low %v706, %v718
    %v740 = vcombine.high %v706, %v718
    %v742 = vunpack.c.l.s4 1983009808
    %v743 = vunpack.c.0.s8 %v742
    %v744 = vlaneseq
    %v745 = vshrl.u32 %v744, 7
    %v746 = vsub.s32 %v743, %v745
    %v747 = vrot.slane %v739, %v746
    %v749 = vunpack.c.l.s4 1983009808
    %v750 = vunpack.c.0.s8 %v749
    %v751 = vlaneseq
    %v752 = vshrl.u32 %v751, 7
    %v753 = vsub.s32 %v750, %v752
    %v754 = vrot.slane %v740, %v753
    %v755 = vcombine.low %v731, %v747
    %v756 = vcombine.high %v731, %v747
    %v758 = vunpack.c.l.s4 1934713408
    %v759 = vunpack.c.0.s8 %v758
    %v760 = vlaneseq
    %v761 = vshrl.u32 %v760, 7
    %v762 = vsub.s32 %v759, %v761
    %v763 = vrot.slane %v755, %v762
    %v765 = vunpack.c.l.s4 1934713408
    %v766 = vunpack.c.0.s8 %v765
    %v767 = vlaneseq
    %v768 = vshrl.u32 %v767, 7
    %v769 = vsub.s32 %v766, %v768
    %v770 = vrot.slane %v756, %v769
    %v771 = vcombine.low %v738, %v754
    %v772 = vcombine.high %v738, %v754
    %v774 = vunpack.c.l.s4 1934713408
    %v775 = vunpack.c.0.s8 %v774
    %v776 = vlaneseq
    %v777 = vshrl.u32 %v776, 7
    %v778 = vsub.s32 %v775, %v777
    %v779 = vrot.slane %v771, %v778
    %v781 = vunpack.c.l.s4 1934713408
    %v782 = vunpack.c.0.s8 %v781
    %v783 = vlaneseq
    %v784 = vshrl.u32 %v783, 7
    %v785 = vsub.s32 %v782, %v784
    %v786 = vrot.slane %v772, %v785
    %v787 = vcombine.high %v763, 0.0
    %v788 = vcombine.high %v770, 0.0
    %v789 = vcombine.high %v779, 0.0
    %v790 = vcombine.high %v786, 0.0
    %v791 = vcombine.low %v368, %v714
    %v792 = vcombine.high %v368, %v714
    %v794 = vunpack.c.l.s4 1983009808
    %v795 = vunpack.c.0.s8 %v794
    %v796 = vlaneseq
    %v797 = vshrl.u32 %v796, 7
    %v798 = vsub.s32 %v795, %v797
    %v799 = vrot.slane %v791, %v798
    %v801 = vunpack.c.l.s4 1983009808
    %v802 = vunpack.c.0.s8 %v801
    %v803 = vlaneseq
    %v804 = vshrl.u32 %v803, 7
    %v805 = vsub.s32 %v802, %v804
    %v806 = vrot.slane %v792, %v805
    %v807 = vcombine.low %v708, %v720
    %v808 = vcombine.high %v708, %v720
    %v810 = vunpack.c.l.s4 1983009808
    %v811 = vunpack.c.0.s8 %v810
    %v812 = vlaneseq
    %v813 = vshrl.u32 %v812, 7
    %v814 = vsub.s32 %v811, %v813
    %v815 = vrot.slane %v807, %v814
    %v817 = vunpack.c.l.s4 1983009808
    %v818 = vunpack.c.0.s8 %v817
    %v819 = vlaneseq
    %v820 = vshrl.u32 %v819, 7
    %v821 = vsub.s32 %v818, %v820
    %v822 = vrot.slane %v808, %v821
    %v823 = vcombine.low %v799, %v815
    %v824 = vcombine.high %v799, %v815
    %v826 = vunpack.c.l.s4 1934713408
    %v827 = vunpack.c.0.s8 %v826
    %v828 = vlaneseq
    %v829 = vshrl.u32 %v828, 7
    %v830 = vsub.s32 %v827, %v829
    %v831 = vrot.slane %v823, %v830
    %v833 = vunpack.c.l.s4 1934713408
    %v834 = vunpack.c.0.s8 %v833
    %v835 = vlaneseq
    %v836 = vshrl.u32 %v835, 7
    %v837 = vsub.s32 %v834, %v836
    %v838 = vrot.slane %v824, %v837
    %v839 = vcombine.low %v806, %v822
    %v840 = vcombine.high %v806, %v822
    %v842 = vunpack.c.l.s4 1934713408
    %v843 = vunpack.c.0.s8 %v842
    %v844 = vlaneseq
    %v845 = vshrl.u32 %v844, 7
    %v846 = vsub.s32 %v843, %v845
    %v847 = vrot.slane %v839, %v846
    %v849 = vunpack.c.l.s4 1934713408
    %v850 = vunpack.c.0.s8 %v849
    %v851 = vlaneseq
    %v852 = vshrl.u32 %v851, 7
    %v853 = vsub.s32 %v850, %v852
    %v854 = vrot.slane %v840, %v853
    %v855 = vcombine.high %v831, 0.0
    %v856 = vcombine.high %v838, 0.0
    %v857 = vcombine.high %v847, 0.0
    %v858 = vcombine.high %v854, 0.0
    %v859 = vcombine.low %v763, %v770
    %v861 = vunpack.c.l.s4 1983009808
    %v862 = vunpack.c.0.s8 %v861
    %v863 = vlaneseq
    %v864 = vshrl.u32 %v863, 7
    %v865 = vsub.s32 %v862, %v864
    %v866 = vrot.slane %v859, %v865
    %v867 = vcombine.low %v787, %v788
    %v869 = vunpack.c.l.s4 1983009808
    %v870 = vunpack.c.0.s8 %v869
    %v871 = vlaneseq
    %v872 = vshrl.u32 %v871, 7
    %v873 = vsub.s32 %v870, %v872
    %v874 = vrot.slane %v867, %v873
    %v875 = vcombine.low %v779, %v786
    %v877 = vunpack.c.l.s4 1983009808
    %v878 = vunpack.c.0.s8 %v877
    %v879 = vlaneseq
    %v880 = vshrl.u32 %v879, 7
    %v881 = vsub.s32 %v878, %v880
    %v882 = vrot.slane %v875, %v881
    %v883 = vcombine.low %v789, %v790
    %v885 = vunpack.c.l.s4 1983009808
    %v886 = vunpack.c.0.s8 %v885
    %v887 = vlaneseq
    %v888 = vshrl.u32 %v887, 7
    %v889 = vsub.s32 %v886, %v888
    %v890 = vrot.slane %v883, %v889
    %v891 = vcombine.low %v866, %v874
    %v892 = vcombine.high %v866, %v874
    %v894 = vunpack.c.l.s4 1934713408
    %v895 = vunpack.c.0.s8 %v894
    %v896 = vlaneseq
    %v897 = vshrl.u32 %v896, 7
    %v898 = vsub.s32 %v895, %v897
    %v899 = vrot.slane %v891, %v898
    %v901 = vunpack.c.l.s4 1934713408
    %v902 = vunpack.c.0.s8 %v901
    %v903 = vlaneseq
    %v904 = vshrl.u32 %v903, 7
    %v905 = vsub.s32 %v902, %v904
    %v906 = vrot.slane %v892, %v905
    %v907 = vcombine.low %v882, %v890
    %v908 = vcombine.high %v882, %v890
    %v910 = vunpack.c.l.s4 1934713408
    %v911 = vunpack.c.0.s8 %v910
    %v912 = vlaneseq
    %v913 = vshrl.u32 %v912, 7
    %v914 = vsub.s32 %v911, %v913
    %v915 = vrot.slane %v907, %v914
    %v917 = vunpack.c.l.s4 1934713408
    %v918 = vunpack.c.0.s8 %v917
    %v919 = vlaneseq
    %v920 = vshrl.u32 %v919, 7
    %v921 = vsub.s32 %v918, %v920
    %v922 = vrot.slane %v908, %v921
    %v923 = vcombine.low %v899, %v915
    %v924 = vcombine.high %v899, %v915
    %v925 = vcombine.low %v906, %v922
    %v926 = vcombine.high %v906, %v922
    %v927 = vcombine.low %v831, %v838
    %v929 = vunpack.c.l.s4 1983009808
    %v930 = vunpack.c.0.s8 %v929
    %v931 = vlaneseq
    %v932 = vshrl.u32 %v931, 7
    %v933 = vsub.s32 %v930, %v932
    %v934 = vrot.slane %v927, %v933
    %v935 = vcombine.low %v855, %v856
    %v937 = vunpack.c.l.s4 1983009808
    %v938 = vunpack.c.0.s8 %v937
    %v939 = vlaneseq
    %v940 = vshrl.u32 %v939, 7
    %v941 = vsub.s32 %v938, %v940
    %v942 = vrot.slane %v935, %v941
    %v943 = vcombine.low %v847, %v854
    %v945 = vunpack.c.l.s4 1983009808
    %v946 = vunpack.c.0.s8 %v945
    %v947 = vlaneseq
    %v948 = vshrl.u32 %v947, 7
    %v949 = vsub.s32 %v946, %v948
    %v950 = vrot.slane %v943, %v949
    %v951 = vcombine.low %v857, %v858
    %v953 = vunpack.c.l.s4 1983009808
    %v954 = vunpack.c.0.s8 %v953
    %v955 = vlaneseq
    %v956 = vshrl.u32 %v955, 7
    %v957 = vsub.s32 %v954, %v956
    %v958 = vrot.slane %v951, %v957
    %v959 = vcombine.low %v934, %v942
    %v960 = vcombine.high %v934, %v942
    %v962 = vunpack.c.l.s4 1934713408
    %v963 = vunpack.c.0.s8 %v962
    %v964 = vlaneseq
    %v965 = vshrl.u32 %v964, 7
    %v966 = vsub.s32 %v963, %v965
    %v967 = vrot.slane %v959, %v966
    %v969 = vunpack.c.l.s4 1934713408
    %v970 = vunpack.c.0.s8 %v969
    %v971 = vlaneseq
    %v972 = vshrl.u32 %v971, 7
    %v973 = vsub.s32 %v970, %v972
    %v974 = vrot.slane %v960, %v973
    %v975 = vcombine.low %v950, %v958
    %v976 = vcombine.high %v950, %v958
    %v978 = vunpack.c.l.s4 1934713408
    %v979 = vunpack.c.0.s8 %v978
    %v980 = vlaneseq
    %v981 = vshrl.u32 %v980, 7
    %v982 = vsub.s32 %v979, %v981
    %v983 = vrot.slane %v975, %v982
    %v985 = vunpack.c.l.s4 1934713408
    %v986 = vunpack.c.0.s8 %v985
    %v987 = vlaneseq
    %v988 = vshrl.u32 %v987, 7
    %v989 = vsub.s32 %v986, %v988
    %v990 = vrot.slane %v976, %v989
    %v991 = vcombine.low %v967, %v983
    %v992 = vcombine.high %v967, %v983
    %v993 = vcombine.low %v974, %v990
    %v994 = vcombine.high %v974, %v990
    %997 = vrot.lane.b32.xlu0 %v405, 96
    %v998 = vpop.permute.xlu0 %997
    %999 = vrot.lane.b32.xlu0 %v408, 96
    %v1000 = vpop.permute.xlu0 %999
    %1003 = vrot.lane.b32.xlu0 %v405, 64
    %v1004 = vpop.permute.xlu0 %1003
    %1005 = vrot.lane.b32.xlu0 %v408, 64
    %v1006 = vpop.permute.xlu0 %1005
    %1009 = vrot.lane.b32.xlu0 %v405, 32
    %v1010 = vpop.permute.xlu0 %1009
    %1011 = vrot.lane.b32.xlu0 %v408, 32
    %v1012 = vpop.permute.xlu0 %1011
    %v1015 = vcombine.low %v405, %v1004
    %v1016 = vcombine.high %v405, %v1004
    %v1018 = vunpack.c.l.s4 1983009808
    %v1019 = vunpack.c.0.s8 %v1018
    %v1020 = vlaneseq
    %v1021 = vshrl.u32 %v1020, 7
    %v1022 = vsub.s32 %v1019, %v1021
    %v1023 = vrot.slane %v1015, %v1022
    %v1025 = vunpack.c.l.s4 1983009808
    %v1026 = vunpack.c.0.s8 %v1025
    %v1027 = vlaneseq
    %v1028 = vshrl.u32 %v1027, 7
    %v1029 = vsub.s32 %v1026, %v1028
    %v1030 = vrot.slane %v1016, %v1029
    %v1031 = vcombine.low %v998, %v1010
    %v1032 = vcombine.high %v998, %v1010
    %v1034 = vunpack.c.l.s4 1983009808
    %v1035 = vunpack.c.0.s8 %v1034
    %v1036 = vlaneseq
    %v1037 = vshrl.u32 %v1036, 7
    %v1038 = vsub.s32 %v1035, %v1037
    %v1039 = vrot.slane %v1031, %v1038
    %v1041 = vunpack.c.l.s4 1983009808
    %v1042 = vunpack.c.0.s8 %v1041
    %v1043 = vlaneseq
    %v1044 = vshrl.u32 %v1043, 7
    %v1045 = vsub.s32 %v1042, %v1044
    %v1046 = vrot.slane %v1032, %v1045
    %v1047 = vcombine.low %v1023, %v1039
    %v1048 = vcombine.high %v1023, %v1039
    %v1050 = vunpack.c.l.s4 1934713408
    %v1051 = vunpack.c.0.s8 %v1050
    %v1052 = vlaneseq
    %v1053 = vshrl.u32 %v1052, 7
    %v1054 = vsub.s32 %v1051, %v1053
    %v1055 = vrot.slane %v1047, %v1054
    %v1057 = vunpack.c.l.s4 1934713408
    %v1058 = vunpack.c.0.s8 %v1057
    %v1059 = vlaneseq
    %v1060 = vshrl.u32 %v1059, 7
    %v1061 = vsub.s32 %v1058, %v1060
    %v1062 = vrot.slane %v1048, %v1061
    %v1063 = vcombine.low %v1030, %v1046
    %v1064 = vcombine.high %v1030, %v1046
    %v1066 = vunpack.c.l.s4 1934713408
    %v1067 = vunpack.c.0.s8 %v1066
    %v1068 = vlaneseq
    %v1069 = vshrl.u32 %v1068, 7
    %v1070 = vsub.s32 %v1067, %v1069
    %v1071 = vrot.slane %v1063, %v1070
    %v1073 = vunpack.c.l.s4 1934713408
    %v1074 = vunpack.c.0.s8 %v1073
    %v1075 = vlaneseq
    %v1076 = vshrl.u32 %v1075, 7
    %v1077 = vsub.s32 %v1074, %v1076
    %v1078 = vrot.slane %v1064, %v1077
    %v1079 = vcombine.high %v1055, 0.0
    %v1080 = vcombine.high %v1062, 0.0
    %v1081 = vcombine.high %v1071, 0.0
    %v1082 = vcombine.high %v1078, 0.0
    %v1083 = vcombine.low %v408, %v1006
    %v1084 = vcombine.high %v408, %v1006
    %v1086 = vunpack.c.l.s4 1983009808
    %v1087 = vunpack.c.0.s8 %v1086
    %v1088 = vlaneseq
    %v1089 = vshrl.u32 %v1088, 7
    %v1090 = vsub.s32 %v1087, %v1089
    %v1091 = vrot.slane %v1083, %v1090
    %v1093 = vunpack.c.l.s4 1983009808
    %v1094 = vunpack.c.0.s8 %v1093
    %v1095 = vlaneseq
    %v1096 = vshrl.u32 %v1095, 7
    %v1097 = vsub.s32 %v1094, %v1096
    %v1098 = vrot.slane %v1084, %v1097
    %v1099 = vcombine.low %v1000, %v1012
    %v1100 = vcombine.high %v1000, %v1012
    %v1102 = vunpack.c.l.s4 1983009808
    %v1103 = vunpack.c.0.s8 %v1102
    %v1104 = vlaneseq
    %v1105 = vshrl.u32 %v1104, 7
    %v1106 = vsub.s32 %v1103, %v1105
    %v1107 = vrot.slane %v1099, %v1106
    %v1109 = vunpack.c.l.s4 1983009808
    %v1110 = vunpack.c.0.s8 %v1109
    %v1111 = vlaneseq
    %v1112 = vshrl.u32 %v1111, 7
    %v1113 = vsub.s32 %v1110, %v1112
    %v1114 = vrot.slane %v1100, %v1113
    %v1115 = vcombine.low %v1091, %v1107
    %v1116 = vcombine.high %v1091, %v1107
    %v1118 = vunpack.c.l.s4 1934713408
    %v1119 = vunpack.c.0.s8 %v1118
    %v1120 = vlaneseq
    %v1121 = vshrl.u32 %v1120, 7
    %v1122 = vsub.s32 %v1119, %v1121
    %v1123 = vrot.slane %v1115, %v1122
    %v1125 = vunpack.c.l.s4 1934713408
    %v1126 = vunpack.c.0.s8 %v1125
    %v1127 = vlaneseq
    %v1128 = vshrl.u32 %v1127, 7
    %v1129 = vsub.s32 %v1126, %v1128
    %v1130 = vrot.slane %v1116, %v1129
    %v1131 = vcombine.low %v1098, %v1114
    %v1132 = vcombine.high %v1098, %v1114
    %v1134 = vunpack.c.l.s4 1934713408
    %v1135 = vunpack.c.0.s8 %v1134
    %v1136 = vlaneseq
    %v1137 = vshrl.u32 %v1136, 7
    %v1138 = vsub.s32 %v1135, %v1137
    %v1139 = vrot.slane %v1131, %v1138
    %v1141 = vunpack.c.l.s4 1934713408
    %v1142 = vunpack.c.0.s8 %v1141
    %v1143 = vlaneseq
    %v1144 = vshrl.u32 %v1143, 7
    %v1145 = vsub.s32 %v1142, %v1144
    %v1146 = vrot.slane %v1132, %v1145
    %v1147 = vcombine.high %v1123, 0.0
    %v1148 = vcombine.high %v1130, 0.0
    %v1149 = vcombine.high %v1139, 0.0
    %v1150 = vcombine.high %v1146, 0.0
    %v1151 = vcombine.low %v1055, %v1062
    %v1153 = vunpack.c.l.s4 1983009808
    %v1154 = vunpack.c.0.s8 %v1153
    %v1155 = vlaneseq
    %v1156 = vshrl.u32 %v1155, 7
    %v1157 = vsub.s32 %v1154, %v1156
    %v1158 = vrot.slane %v1151, %v1157
    %v1159 = vcombine.low %v1079, %v1080
    %v1161 = vunpack.c.l.s4 1983009808
    %v1162 = vunpack.c.0.s8 %v1161
    %v1163 = vlaneseq
    %v1164 = vshrl.u32 %v1163, 7
    %v1165 = vsub.s32 %v1162, %v1164
    %v1166 = vrot.slane %v1159, %v1165
    %v1167 = vcombine.low %v1071, %v1078
    %v1169 = vunpack.c.l.s4 1983009808
    %v1170 = vunpack.c.0.s8 %v1169
    %v1171 = vlaneseq
    %v1172 = vshrl.u32 %v1171, 7
    %v1173 = vsub.s32 %v1170, %v1172
    %v1174 = vrot.slane %v1167, %v1173
    %v1175 = vcombine.low %v1081, %v1082
    %v1177 = vunpack.c.l.s4 1983009808
    %v1178 = vunpack.c.0.s8 %v1177
    %v1179 = vlaneseq
    %v1180 = vshrl.u32 %v1179, 7
    %v1181 = vsub.s32 %v1178, %v1180
    %v1182 = vrot.slane %v1175, %v1181
    %v1183 = vcombine.low %v1158, %v1166
    %v1184 = vcombine.high %v1158, %v1166
    %v1186 = vunpack.c.l.s4 1934713408
    %v1187 = vunpack.c.0.s8 %v1186
    %v1188 = vlaneseq
    %v1189 = vshrl.u32 %v1188, 7
    %v1190 = vsub.s32 %v1187, %v1189
    %v1191 = vrot.slane %v1183, %v1190
    %v1193 = vunpack.c.l.s4 1934713408
    %v1194 = vunpack.c.0.s8 %v1193
    %v1195 = vlaneseq
    %v1196 = vshrl.u32 %v1195, 7
    %v1197 = vsub.s32 %v1194, %v1196
    %v1198 = vrot.slane %v1184, %v1197
    %v1199 = vcombine.low %v1174, %v1182
    %v1200 = vcombine.high %v1174, %v1182
    %v1202 = vunpack.c.l.s4 1934713408
    %v1203 = vunpack.c.0.s8 %v1202
    %v1204 = vlaneseq
    %v1205 = vshrl.u32 %v1204, 7
    %v1206 = vsub.s32 %v1203, %v1205
    %v1207 = vrot.slane %v1199, %v1206
    %v1209 = vunpack.c.l.s4 1934713408
    %v1210 = vunpack.c.0.s8 %v1209
    %v1211 = vlaneseq
    %v1212 = vshrl.u32 %v1211, 7
    %v1213 = vsub.s32 %v1210, %v1212
    %v1214 = vrot.slane %v1200, %v1213
    %v1215 = vcombine.low %v1191, %v1207
    %v1216 = vcombine.high %v1191, %v1207
    %v1217 = vcombine.low %v1198, %v1214
    %v1218 = vcombine.high %v1198, %v1214
    %v1219 = vcombine.low %v1123, %v1130
    %v1221 = vunpack.c.l.s4 1983009808
    %v1222 = vunpack.c.0.s8 %v1221
    %v1223 = vlaneseq
    %v1224 = vshrl.u32 %v1223, 7
    %v1225 = vsub.s32 %v1222, %v1224
    %v1226 = vrot.slane %v1219, %v1225
    %v1227 = vcombine.low %v1147, %v1148
    %v1229 = vunpack.c.l.s4 1983009808
    %v1230 = vunpack.c.0.s8 %v1229
    %v1231 = vlaneseq
    %v1232 = vshrl.u32 %v1231, 7
    %v1233 = vsub.s32 %v1230, %v1232
    %v1234 = vrot.slane %v1227, %v1233
    %v1235 = vcombine.low %v1139, %v1146
    %v1237 = vunpack.c.l.s4 1983009808
    %v1238 = vunpack.c.0.s8 %v1237
    %v1239 = vlaneseq
    %v1240 = vshrl.u32 %v1239, 7
    %v1241 = vsub.s32 %v1238, %v1240
    %v1242 = vrot.slane %v1235, %v1241
    %v1243 = vcombine.low %v1149, %v1150
    %v1245 = vunpack.c.l.s4 1983009808
    %v1246 = vunpack.c.0.s8 %v1245
    %v1247 = vlaneseq
    %v1248 = vshrl.u32 %v1247, 7
    %v1249 = vsub.s32 %v1246, %v1248
    %v1250 = vrot.slane %v1243, %v1249
    %v1251 = vcombine.low %v1226, %v1234
    %v1252 = vcombine.high %v1226, %v1234
    %v1254 = vunpack.c.l.s4 1934713408
    %v1255 = vunpack.c.0.s8 %v1254
    %v1256 = vlaneseq
    %v1257 = vshrl.u32 %v1256, 7
    %v1258 = vsub.s32 %v1255, %v1257
    %v1259 = vrot.slane %v1251, %v1258
    %v1261 = vunpack.c.l.s4 1934713408
    %v1262 = vunpack.c.0.s8 %v1261
    %v1263 = vlaneseq
    %v1264 = vshrl.u32 %v1263, 7
    %v1265 = vsub.s32 %v1262, %v1264
    %v1266 = vrot.slane %v1252, %v1265
    %v1267 = vcombine.low %v1242, %v1250
    %v1268 = vcombine.high %v1242, %v1250
    %v1270 = vunpack.c.l.s4 1934713408
    %v1271 = vunpack.c.0.s8 %v1270
    %v1272 = vlaneseq
    %v1273 = vshrl.u32 %v1272, 7
    %v1274 = vsub.s32 %v1271, %v1273
    %v1275 = vrot.slane %v1267, %v1274
    %v1277 = vunpack.c.l.s4 1934713408
    %v1278 = vunpack.c.0.s8 %v1277
    %v1279 = vlaneseq
    %v1280 = vshrl.u32 %v1279, 7
    %v1281 = vsub.s32 %v1278, %v1280
    %v1282 = vrot.slane %v1268, %v1281
    %v1283 = vcombine.low %v1259, %v1275
    %v1284 = vcombine.high %v1259, %v1275
    %v1285 = vcombine.low %v1266, %v1282
    %v1286 = vcombine.high %v1266, %v1282
    %vm1287 = vcmask 261120
    %v1289 = vsel %vm1287, %v631, 0
    %v1292 = vsel %vm1287, %v923, 0
    %1294 = vmatprep.subr.mxu0 0.0
    %1295 = vmatpush1.xpose.msra.mxu0 %v1292
    %1296 = vmatprep.subr.mxu0 0.0
    %1297 = vmatpush1.xpose.msra.mxu0 0.0
    %1298 = vmatprep.subr.mxu0 0.0
    %1299 = vmatpush1.xpose.msra.mxu0 0.0
    %1300 = vmatprep.subr.mxu0 0.0
    %1301 = vmatpush1.xpose.msra.mxu0 0.0
    %1302 = vmatprep.subr.mxu0 0.0
    %1303 = vmatpush1.xpose.msra.mxu0 0.0
    %1304 = vmatprep.subr.mxu0 0.0
    %1305 = vmatpush1.xpose.msra.mxu0 0.0
    %1306 = vmatprep.subr.mxu0 0.0
    %1307 = vmatpush1.xpose.msra.mxu0 0.0
    %1308 = vmatprep.subr.mxu0 0.0
    %1309 = vmatpush1.xpose.msra.mxu0 0.0
    %1310 = vmatprep.subr.mxu0 0.0
    %1311 = vmatpush1.xpose.msra.mxu0 0.0
    %1312 = vmatprep.subr.mxu0 0.0
    %1313 = vmatpush1.xpose.msra.mxu0 0.0
    %1314 = vmatprep.subr.mxu0 0.0
    %1315 = vmatpush1.xpose.msra.mxu0 0.0
    %1316 = vmatprep.subr.mxu0 0.0
    %1317 = vmatpush1.xpose.msra.mxu0 0.0
    %1318 = vmatprep.subr.mxu0 0.0
    %1319 = vmatpush1.xpose.msra.mxu0 0.0
    %1320 = vmatprep.subr.mxu0 0.0
    %1321 = vmatpush1.xpose.msra.mxu0 0.0
    %1322 = vmatprep.subr.mxu0 0.0
    %1323 = vmatpush1.xpose.msra.mxu0 0.0
    %1324 = vmatprep.subr.mxu0 0.0
    %1325 = vmatpush1.xpose.msra.mxu0 0.0
    %1326 = vmatprep.subr.mxu0 0.0
    %1327 = vmatpush1.xpose.msra.mxu0 0.0
    %1328 = vmatprep.subr.mxu0 0.0
    %1329 = vmatpush1.xpose.msra.mxu0 0.0
    %1330 = vmatprep.subr.mxu0 0.0
    %1331 = vmatpush1.xpose.msra.mxu0 0.0
    %1332 = vmatprep.subr.mxu0 0.0
    %1333 = vmatpush1.xpose.msra.mxu0 0.0
    %1334 = vmatprep.subr.mxu0 0.0
    %1335 = vmatpush1.xpose.msra.mxu0 0.0
    %1336 = vmatprep.subr.mxu0 0.0
    %1337 = vmatpush1.xpose.msra.mxu0 0.0
    %1338 = vmatprep.subr.mxu0 0.0
    %1339 = vmatpush1.xpose.msra.mxu0 0.0
    %1340 = vmatprep.subr.mxu0 0.0
    %1341 = vmatpush1.xpose.msra.mxu0 0.0
    %1342 = vmatprep.subr.mxu0 0.0
    %1343 = vmatpush1.xpose.msra.mxu0 0.0
    %1344 = vmatprep.subr.mxu0 0.0
    %1345 = vmatpush1.xpose.msra.mxu0 0.0
    %1346 = vmatprep.subr.mxu0 0.0
    %1347 = vmatpush1.xpose.msra.mxu0 0.0
    %1348 = vmatprep.subr.mxu0 0.0
    %1349 = vmatpush1.xpose.msra.mxu0 0.0
    %1350 = vmatprep.subr.mxu0 0.0
    %1351 = vmatpush1.xpose.msra.mxu0 0.0
    %1352 = vmatprep.subr.mxu0 0.0
    %1353 = vmatpush1.xpose.msra.mxu0 0.0
    %1354 = vmatprep.subr.mxu0 0.0
    %1355 = vmatpush1.xpose.msra.mxu0 0.0
    %1356 = vmatprep.subr.mxu0 0.0
    %1357 = vmatpush1.xpose.msra.mxu0 0.0
    %1358 = vmatprep.mubr.f32.mxu0 0.0
    %1359 = vmatmul.mubr.f32.gmra.mrb[0].mxu0 %v1289
    %v1360 = vpop.f32.mrb[0].mxu0
    %v1361 = vadd.f32 0.0, %v1360
    %v1362 = vpop.f32.mrb[0].mxu0
    %1363 = vdwg.mxu0
    %v1365 = vsel %vm1287, %v632, 0
    %v1368 = vsel %vm1287, %v924, 0
    %1370 = vmatprep.subr.mxu0 0.0
    %1371 = vmatpush1.xpose.msra.mxu0 %v1368
    %1372 = vmatprep.subr.mxu0 0.0
    %1373 = vmatpush1.xpose.msra.mxu0 0.0
    %1374 = vmatprep.subr.mxu0 0.0
    %1375 = vmatpush1.xpose.msra.mxu0 0.0
    %1376 = vmatprep.subr.mxu0 0.0
    %1377 = vmatpush1.xpose.msra.mxu0 0.0
    %1378 = vmatprep.subr.mxu0 0.0
    %1379 = vmatpush1.xpose.msra.mxu0 0.0
    %1380 = vmatprep.subr.mxu0 0.0
    %1381 = vmatpush1.xpose.msra.mxu0 0.0
    %1382 = vmatprep.subr.mxu0 0.0
    %1383 = vmatpush1.xpose.msra.mxu0 0.0
    %1384 = vmatprep.subr.mxu0 0.0
    %1385 = vmatpush1.xpose.msra.mxu0 0.0
    %1386 = vmatprep.subr.mxu0 0.0
    %1387 = vmatpush1.xpose.msra.mxu0 0.0
    %1388 = vmatprep.subr.mxu0 0.0
    %1389 = vmatpush1.xpose.msra.mxu0 0.0
    %1390 = vmatprep.subr.mxu0 0.0
    %1391 = vmatpush1.xpose.msra.mxu0 0.0
    %1392 = vmatprep.subr.mxu0 0.0
    %1393 = vmatpush1.xpose.msra.mxu0 0.0
    %1394 = vmatprep.subr.mxu0 0.0
    %1395 = vmatpush1.xpose.msra.mxu0 0.0
    %1396 = vmatprep.subr.mxu0 0.0
    %1397 = vmatpush1.xpose.msra.mxu0 0.0
    %1398 = vmatprep.subr.mxu0 0.0
    %1399 = vmatpush1.xpose.msra.mxu0 0.0
    %1400 = vmatprep.subr.mxu0 0.0
    %1401 = vmatpush1.xpose.msra.mxu0 0.0
    %1402 = vmatprep.subr.mxu0 0.0
    %1403 = vmatpush1.xpose.msra.mxu0 0.0
    %1404 = vmatprep.subr.mxu0 0.0
    %1405 = vmatpush1.xpose.msra.mxu0 0.0
    %1406 = vmatprep.subr.mxu0 0.0
    %1407 = vmatpush1.xpose.msra.mxu0 0.0
    %1408 = vmatprep.subr.mxu0 0.0
    %1409 = vmatpush1.xpose.msra.mxu0 0.0
    %1410 = vmatprep.subr.mxu0 0.0
    %1411 = vmatpush1.xpose.msra.mxu0 0.0
    %1412 = vmatprep.subr.mxu0 0.0
    %1413 = vmatpush1.xpose.msra.mxu0 0.0
    %1414 = vmatprep.subr.mxu0 0.0
    %1415 = vmatpush1.xpose.msra.mxu0 0.0
    %1416 = vmatprep.subr.mxu0 0.0
    %1417 = vmatpush1.xpose.msra.mxu0 0.0
    %1418 = vmatprep.subr.mxu0 0.0
    %1419 = vmatpush1.xpose.msra.mxu0 0.0
    %1420 = vmatprep.subr.mxu0 0.0
    %1421 = vmatpush1.xpose.msra.mxu0 0.0
    %1422 = vmatprep.subr.mxu0 0.0
    %1423 = vmatpush1.xpose.msra.mxu0 0.0
    %1424 = vmatprep.subr.mxu0 0.0
    %1425 = vmatpush1.xpose.msra.mxu0 0.0
    %1426 = vmatprep.subr.mxu0 0.0
    %1427 = vmatpush1.xpose.msra.mxu0 0.0
    %1428 = vmatprep.subr.mxu0 0.0
    %1429 = vmatpush1.xpose.msra.mxu0 0.0
    %1430 = vmatprep.subr.mxu0 0.0
    %1431 = vmatpush1.xpose.msra.mxu0 0.0
    %1432 = vmatprep.subr.mxu0 0.0
    %1433 = vmatpush1.xpose.msra.mxu0 0.0
    %1434 = vmatprep.mubr.f32.mxu0 0.0
    %1435 = vmatmul.mubr.f32.gmra.mrb[0].mxu0 %v1365
    %v1436 = vpop.f32.mrb[0].mxu0
    %v1437 = vadd.f32 0.0, %v1436
    %v1438 = vpop.f32.mrb[0].mxu0
    %1439 = vdwg.mxu0
    %v1441 = vsel %vm1287, %v633, 0
    %v1444 = vsel %vm1287, %v925, 0
    %1446 = vmatprep.subr.mxu0 0.0
    %1447 = vmatpush1.xpose.msra.mxu0 %v1444
    %1448 = vmatprep.subr.mxu0 0.0
    %1449 = vmatpush1.xpose.msra.mxu0 0.0
    %1450 = vmatprep.subr.mxu0 0.0
    %1451 = vmatpush1.xpose.msra.mxu0 0.0
    %1452 = vmatprep.subr.mxu0 0.0
    %1453 = vmatpush1.xpose.msra.mxu0 0.0
    %1454 = vmatprep.subr.mxu0 0.0
    %1455 = vmatpush1.xpose.msra.mxu0 0.0
    %1456 = vmatprep.subr.mxu0 0.0
    %1457 = vmatpush1.xpose.msra.mxu0 0.0
    %1458 = vmatprep.subr.mxu0 0.0
    %1459 = vmatpush1.xpose.msra.mxu0 0.0
    %1460 = vmatprep.subr.mxu0 0.0
    %1461 = vmatpush1.xpose.msra.mxu0 0.0
    %1462 = vmatprep.subr.mxu0 0.0
    %1463 = vmatpush1.xpose.msra.mxu0 0.0
    %1464 = vmatprep.subr.mxu0 0.0
    %1465 = vmatpush1.xpose.msra.mxu0 0.0
    %1466 = vmatprep.subr.mxu0 0.0
    %1467 = vmatpush1.xpose.msra.mxu0 0.0
    %1468 = vmatprep.subr.mxu0 0.0
    %1469 = vmatpush1.xpose.msra.mxu0 0.0
    %1470 = vmatprep.subr.mxu0 0.0
    %1471 = vmatpush1.xpose.msra.mxu0 0.0
    %1472 = vmatprep.subr.mxu0 0.0
    %1473 = vmatpush1.xpose.msra.mxu0 0.0
    %1474 = vmatprep.subr.mxu0 0.0
    %1475 = vmatpush1.xpose.msra.mxu0 0.0
    %1476 = vmatprep.subr.mxu0 0.0
    %1477 = vmatpush1.xpose.msra.mxu0 0.0
    %1478 = vmatprep.subr.mxu0 0.0
    %1479 = vmatpush1.xpose.msra.mxu0 0.0
    %1480 = vmatprep.subr.mxu0 0.0
    %1481 = vmatpush1.xpose.msra.mxu0 0.0
    %1482 = vmatprep.subr.mxu0 0.0
    %1483 = vmatpush1.xpose.msra.mxu0 0.0
    %1484 = vmatprep.subr.mxu0 0.0
    %1485 = vmatpush1.xpose.msra.mxu0 0.0
    %1486 = vmatprep.subr.mxu0 0.0
    %1487 = vmatpush1.xpose.msra.mxu0 0.0
    %1488 = vmatprep.subr.mxu0 0.0
    %1489 = vmatpush1.xpose.msra.mxu0 0.0
    %1490 = vmatprep.subr.mxu0 0.0
    %1491 = vmatpush1.xpose.msra.mxu0 0.0
    %1492 = vmatprep.subr.mxu0 0.0
    %1493 = vmatpush1.xpose.msra.mxu0 0.0
    %1494 = vmatprep.subr.mxu0 0.0
    %1495 = vmatpush1.xpose.msra.mxu0 0.0
    %1496 = vmatprep.subr.mxu0 0.0
    %1497 = vmatpush1.xpose.msra.mxu0 0.0
    %1498 = vmatprep.subr.mxu0 0.0
    %1499 = vmatpush1.xpose.msra.mxu0 0.0
    %1500 = vmatprep.subr.mxu0 0.0
    %1501 = vmatpush1.xpose.msra.mxu0 0.0
    %1502 = vmatprep.subr.mxu0 0.0
    %1503 = vmatpush1.xpose.msra.mxu0 0.0
    %1504 = vmatprep.subr.mxu0 0.0
    %1505 = vmatpush1.xpose.msra.mxu0 0.0
    %1506 = vmatprep.subr.mxu0 0.0
    %1507 = vmatpush1.xpose.msra.mxu0 0.0
    %1508 = vmatprep.subr.mxu0 0.0
    %1509 = vmatpush1.xpose.msra.mxu0 0.0
    %1510 = vmatprep.mubr.f32.mxu0 0.0
    %1511 = vmatmul.mubr.f32.gmra.mrb[0].mxu0 %v1441
    %v1512 = vpop.f32.mrb[0].mxu0
    %v1513 = vadd.f32 0.0, %v1512
    %v1514 = vpop.f32.mrb[0].mxu0
    %1515 = vdwg.mxu0
    %v1517 = vsel %vm1287, %v634, 0
    %v1520 = vsel %vm1287, %v926, 0
    %1522 = vmatprep.subr.mxu0 0.0
    %1523 = vmatpush1.xpose.msra.mxu0 %v1520
    %1524 = vmatprep.subr.mxu0 0.0
    %1525 = vmatpush1.xpose.msra.mxu0 0.0
    %1526 = vmatprep.subr.mxu0 0.0
    %1527 = vmatpush1.xpose.msra.mxu0 0.0
    %1528 = vmatprep.subr.mxu0 0.0
    %1529 = vmatpush1.xpose.msra.mxu0 0.0
    %1530 = vmatprep.subr.mxu0 0.0
    %1531 = vmatpush1.xpose.msra.mxu0 0.0
    %1532 = vmatprep.subr.mxu0 0.0
    %1533 = vmatpush1.xpose.msra.mxu0 0.0
    %1534 = vmatprep.subr.mxu0 0.0
    %1535 = vmatpush1.xpose.msra.mxu0 0.0
    %1536 = vmatprep.subr.mxu0 0.0
    %1537 = vmatpush1.xpose.msra.mxu0 0.0
    %1538 = vmatprep.subr.mxu0 0.0
    %1539 = vmatpush1.xpose.msra.mxu0 0.0
    %1540 = vmatprep.subr.mxu0 0.0
    %1541 = vmatpush1.xpose.msra.mxu0 0.0
    %1542 = vmatprep.subr.mxu0 0.0
    %1543 = vmatpush1.xpose.msra.mxu0 0.0
    %1544 = vmatprep.subr.mxu0 0.0
    %1545 = vmatpush1.xpose.msra.mxu0 0.0
    %1546 = vmatprep.subr.mxu0 0.0
    %1547 = vmatpush1.xpose.msra.mxu0 0.0
    %1548 = vmatprep.subr.mxu0 0.0
    %1549 = vmatpush1.xpose.msra.mxu0 0.0
    %1550 = vmatprep.subr.mxu0 0.0
    %1551 = vmatpush1.xpose.msra.mxu0 0.0
    %1552 = vmatprep.subr.mxu0 0.0
    %1553 = vmatpush1.xpose.msra.mxu0 0.0
    %1554 = vmatprep.subr.mxu0 0.0
    %1555 = vmatpush1.xpose.msra.mxu0 0.0
    %1556 = vmatprep.subr.mxu0 0.0
    %1557 = vmatpush1.xpose.msra.mxu0 0.0
    %1558 = vmatprep.subr.mxu0 0.0
    %1559 = vmatpush1.xpose.msra.mxu0 0.0
    %1560 = vmatprep.subr.mxu0 0.0
    %1561 = vmatpush1.xpose.msra.mxu0 0.0
    %1562 = vmatprep.subr.mxu0 0.0
    %1563 = vmatpush1.xpose.msra.mxu0 0.0
    %1564 = vmatprep.subr.mxu0 0.0
    %1565 = vmatpush1.xpose.msra.mxu0 0.0
    %1566 = vmatprep.subr.mxu0 0.0
    %1567 = vmatpush1.xpose.msra.mxu0 0.0
    %1568 = vmatprep.subr.mxu0 0.0
    %1569 = vmatpush1.xpose.msra.mxu0 0.0
    %1570 = vmatprep.subr.mxu0 0.0
    %1571 = vmatpush1.xpose.msra.mxu0 0.0
    %1572 = vmatprep.subr.mxu0 0.0
    %1573 = vmatpush1.xpose.msra.mxu0 0.0
    %1574 = vmatprep.subr.mxu0 0.0
    %1575 = vmatpush1.xpose.msra.mxu0 0.0
    %1576 = vmatprep.subr.mxu0 0.0
    %1577 = vmatpush1.xpose.msra.mxu0 0.0
    %1578 = vmatprep.subr.mxu0 0.0
    %1579 = vmatpush1.xpose.msra.mxu0 0.0
    %1580 = vmatprep.subr.mxu0 0.0
    %1581 = vmatpush1.xpose.msra.mxu0 0.0
    %1582 = vmatprep.subr.mxu0 0.0
    %1583 = vmatpush1.xpose.msra.mxu0 0.0
    %1584 = vmatprep.subr.mxu0 0.0
    %1585 = vmatpush1.xpose.msra.mxu0 0.0
    %1586 = vmatprep.mubr.f32.mxu0 0.0
    %1587 = vmatmul.mubr.f32.gmra.mrb[0].mxu0 %v1517
    %v1588 = vpop.f32.mrb[0].mxu0
    %v1589 = vadd.f32 0.0, %v1588
    %v1590 = vpop.f32.mrb[0].mxu0
    %1591 = vdwg.mxu0
    %v1593 = vsel %vm1287, %v699, 0
    %v1596 = vsel %vm1287, %v991, 0
    %1598 = vmatprep.subr.mxu0 0.0
    %1599 = vmatpush1.xpose.msra.mxu0 %v1596
    %1600 = vmatprep.subr.mxu0 0.0
    %1601 = vmatpush1.xpose.msra.mxu0 0.0
    %1602 = vmatprep.subr.mxu0 0.0
    %1603 = vmatpush1.xpose.msra.mxu0 0.0
    %1604 = vmatprep.subr.mxu0 0.0
    %1605 = vmatpush1.xpose.msra.mxu0 0.0
    %1606 = vmatprep.subr.mxu0 0.0
    %1607 = vmatpush1.xpose.msra.mxu0 0.0
    %1608 = vmatprep.subr.mxu0 0.0
    %1609 = vmatpush1.xpose.msra.mxu0 0.0
    %1610 = vmatprep.subr.mxu0 0.0
    %1611 = vmatpush1.xpose.msra.mxu0 0.0
    %1612 = vmatprep.subr.mxu0 0.0
    %1613 = vmatpush1.xpose.msra.mxu0 0.0
    %1614 = vmatprep.subr.mxu0 0.0
    %1615 = vmatpush1.xpose.msra.mxu0 0.0
    %1616 = vmatprep.subr.mxu0 0.0
    %1617 = vmatpush1.xpose.msra.mxu0 0.0
    %1618 = vmatprep.subr.mxu0 0.0
    %1619 = vmatpush1.xpose.msra.mxu0 0.0
    %1620 = vmatprep.subr.mxu0 0.0
    %1621 = vmatpush1.xpose.msra.mxu0 0.0
    %1622 = vmatprep.subr.mxu0 0.0
    %1623 = vmatpush1.xpose.msra.mxu0 0.0
    %1624 = vmatprep.subr.mxu0 0.0
    %1625 = vmatpush1.xpose.msra.mxu0 0.0
    %1626 = vmatprep.subr.mxu0 0.0
    %1627 = vmatpush1.xpose.msra.mxu0 0.0
    %1628 = vmatprep.subr.mxu0 0.0
    %1629 = vmatpush1.xpose.msra.mxu0 0.0
    %1630 = vmatprep.subr.mxu0 0.0
    %1631 = vmatpush1.xpose.msra.mxu0 0.0
    %1632 = vmatprep.subr.mxu0 0.0
    %1633 = vmatpush1.xpose.msra.mxu0 0.0
    %1634 = vmatprep.subr.mxu0 0.0
    %1635 = vmatpush1.xpose.msra.mxu0 0.0
    %1636 = vmatprep.subr.mxu0 0.0
    %1637 = vmatpush1.xpose.msra.mxu0 0.0
    %1638 = vmatprep.subr.mxu0 0.0
    %1639 = vmatpush1.xpose.msra.mxu0 0.0
    %1640 = vmatprep.subr.mxu0 0.0
    %1641 = vmatpush1.xpose.msra.mxu0 0.0
    %1642 = vmatprep.subr.mxu0 0.0
    %1643 = vmatpush1.xpose.msra.mxu0 0.0
    %1644 = vmatprep.subr.mxu0 0.0
    %1645 = vmatpush1.xpose.msra.mxu0 0.0
    %1646 = vmatprep.subr.mxu0 0.0
    %1647 = vmatpush1.xpose.msra.mxu0 0.0
    %1648 = vmatprep.subr.mxu0 0.0
    %1649 = vmatpush1.xpose.msra.mxu0 0.0
    %1650 = vmatprep.subr.mxu0 0.0
    %1651 = vmatpush1.xpose.msra.mxu0 0.0
    %1652 = vmatprep.subr.mxu0 0.0
    %1653 = vmatpush1.xpose.msra.mxu0 0.0
    %1654 = vmatprep.subr.mxu0 0.0
    %1655 = vmatpush1.xpose.msra.mxu0 0.0
    %1656 = vmatprep.subr.mxu0 0.0
    %1657 = vmatpush1.xpose.msra.mxu0 0.0
    %1658 = vmatprep.subr.mxu0 0.0
    %1659 = vmatpush1.xpose.msra.mxu0 0.0
    %1660 = vmatprep.subr.mxu0 0.0
    %1661 = vmatpush1.xpose.msra.mxu0 0.0
    %1662 = vmatprep.mubr.f32.mxu0 0.0
    %1663 = vmatmul.mubr.f32.gmra.mrb[0].mxu0 %v1593
    %v1664 = vpop.f32.mrb[0].mxu0
    %v1665 = vadd.f32 0.0, %v1664
    %v1666 = vpop.f32.mrb[0].mxu0
    %1667 = vdwg.mxu0
    %v1669 = vsel %vm1287, %v700, 0
    %v1672 = vsel %vm1287, %v992, 0
    %1674 = vmatprep.subr.mxu0 0.0
    %1675 = vmatpush1.xpose.msra.mxu0 %v1672
    %1676 = vmatprep.subr.mxu0 0.0
    %1677 = vmatpush1.xpose.msra.mxu0 0.0
    %1678 = vmatprep.subr.mxu0 0.0
    %1679 = vmatpush1.xpose.msra.mxu0 0.0
    %1680 = vmatprep.subr.mxu0 0.0
    %1681 = vmatpush1.xpose.msra.mxu0 0.0
    %1682 = vmatprep.subr.mxu0 0.0
    %1683 = vmatpush1.xpose.msra.mxu0 0.0
    %1684 = vmatprep.subr.mxu0 0.0
    %1685 = vmatpush1.xpose.msra.mxu0 0.0
    %1686 = vmatprep.subr.mxu0 0.0
    %1687 = vmatpush1.xpose.msra.mxu0 0.0
    %1688 = vmatprep.subr.mxu0 0.0
    %1689 = vmatpush1.xpose.msra.mxu0 0.0
    %1690 = vmatprep.subr.mxu0 0.0
    %1691 = vmatpush1.xpose.msra.mxu0 0.0
    %1692 = vmatprep.subr.mxu0 0.0
    %1693 = vmatpush1.xpose.msra.mxu0 0.0
    %1694 = vmatprep.subr.mxu0 0.0
    %1695 = vmatpush1.xpose.msra.mxu0 0.0
    %1696 = vmatprep.subr.mxu0 0.0
    %1697 = vmatpush1.xpose.msra.mxu0 0.0
    %1698 = vmatprep.subr.mxu0 0.0
    %1699 = vmatpush1.xpose.msra.mxu0 0.0
    %1700 = vmatprep.subr.mxu0 0.0
    %1701 = vmatpush1.xpose.msra.mxu0 0.0
    %1702 = vmatprep.subr.mxu0 0.0
    %1703 = vmatpush1.xpose.msra.mxu0 0.0
    %1704 = vmatprep.subr.mxu0 0.0
    %1705 = vmatpush1.xpose.msra.mxu0 0.0
    %1706 = vmatprep.subr.mxu0 0.0
    %1707 = vmatpush1.xpose.msra.mxu0 0.0
    %1708 = vmatprep.subr.mxu0 0.0
    %1709 = vmatpush1.xpose.msra.mxu0 0.0
    %1710 = vmatprep.subr.mxu0 0.0
    %1711 = vmatpush1.xpose.msra.mxu0 0.0
    %1712 = vmatprep.subr.mxu0 0.0
    %1713 = vmatpush1.xpose.msra.mxu0 0.0
    %1714 = vmatprep.subr.mxu0 0.0
    %1715 = vmatpush1.xpose.msra.mxu0 0.0
    %1716 = vmatprep.subr.mxu0 0.0
    %1717 = vmatpush1.xpose.msra.mxu0 0.0
    %1718 = vmatprep.subr.mxu0 0.0
    %1719 = vmatpush1.xpose.msra.mxu0 0.0
    %1720 = vmatprep.subr.mxu0 0.0
    %1721 = vmatpush1.xpose.msra.mxu0 0.0
    %1722 = vmatprep.subr.mxu0 0.0
    %1723 = vmatpush1.xpose.msra.mxu0 0.0
    %1724 = vmatprep.subr.mxu0 0.0
    %1725 = vmatpush1.xpose.msra.mxu0 0.0
    %1726 = vmatprep.subr.mxu0 0.0
    %1727 = vmatpush1.xpose.msra.mxu0 0.0
    %1728 = vmatprep.subr.mxu0 0.0
    %1729 = vmatpush1.xpose.msra.mxu0 0.0
    %1730 = vmatprep.subr.mxu0 0.0
    %1731 = vmatpush1.xpose.msra.mxu0 0.0
    %1732 = vmatprep.subr.mxu0 0.0
    %1733 = vmatpush1.xpose.msra.mxu0 0.0
    %1734 = vmatprep.subr.mxu0 0.0
    %1735 = vmatpush1.xpose.msra.mxu0 0.0
    %1736 = vmatprep.subr.mxu0 0.0
    %1737 = vmatpush1.xpose.msra.mxu0 0.0
    %1738 = vmatprep.mubr.f32.mxu0 0.0
    %1739 = vmatmul.mubr.f32.gmra.mrb[0].mxu0 %v1669
    %v1740 = vpop.f32.mrb[0].mxu0
    %v1741 = vadd.f32 0.0, %v1740
    %v1742 = vpop.f32.mrb[0].mxu0
    %1743 = vdwg.mxu0
    %v1745 = vsel %vm1287, %v701, 0
    %v1748 = vsel %vm1287, %v993, 0
    %1750 = vmatprep.subr.mxu0 0.0
    %1751 = vmatpush1.xpose.msra.mxu0 %v1748
    %1752 = vmatprep.subr.mxu0 0.0
    %1753 = vmatpush1.xpose.msra.mxu0 0.0
    %1754 = vmatprep.subr.mxu0 0.0
    %1755 = vmatpush1.xpose.msra.mxu0 0.0
    %1756 = vmatprep.subr.mxu0 0.0
    %1757 = vmatpush1.xpose.msra.mxu0 0.0
    %1758 = vmatprep.subr.mxu0 0.0
    %1759 = vmatpush1.xpose.msra.mxu0 0.0
    %1760 = vmatprep.subr.mxu0 0.0
    %1761 = vmatpush1.xpose.msra.mxu0 0.0
    %1762 = vmatprep.subr.mxu0 0.0
    %1763 = vmatpush1.xpose.msra.mxu0 0.0
    %1764 = vmatprep.subr.mxu0 0.0
    %1765 = vmatpush1.xpose.msra.mxu0 0.0
    %1766 = vmatprep.subr.mxu0 0.0
    %1767 = vmatpush1.xpose.msra.mxu0 0.0
    %1768 = vmatprep.subr.mxu0 0.0
    %1769 = vmatpush1.xpose.msra.mxu0 0.0
    %1770 = vmatprep.subr.mxu0 0.0
    %1771 = vmatpush1.xpose.msra.mxu0 0.0
    %1772 = vmatprep.subr.mxu0 0.0
    %1773 = vmatpush1.xpose.msra.mxu0 0.0
    %1774 = vmatprep.subr.mxu0 0.0
    %1775 = vmatpush1.xpose.msra.mxu0 0.0
    %1776 = vmatprep.subr.mxu0 0.0
    %1777 = vmatpush1.xpose.msra.mxu0 0.0
    %1778 = vmatprep.subr.mxu0 0.0
    %1779 = vmatpush1.xpose.msra.mxu0 0.0
    %1780 = vmatprep.subr.mxu0 0.0
    %1781 = vmatpush1.xpose.msra.mxu0 0.0
    %1782 = vmatprep.subr.mxu0 0.0
    %1783 = vmatpush1.xpose.msra.mxu0 0.0
    %1784 = vmatprep.subr.mxu0 0.0
    %1785 = vmatpush1.xpose.msra.mxu0 0.0
    %1786 = vmatprep.subr.mxu0 0.0
    %1787 = vmatpush1.xpose.msra.mxu0 0.0
    %1788 = vmatprep.subr.mxu0 0.0
    %1789 = vmatpush1.xpose.msra.mxu0 0.0
    %1790 = vmatprep.subr.mxu0 0.0
    %1791 = vmatpush1.xpose.msra.mxu0 0.0
    %1792 = vmatprep.subr.mxu0 0.0
    %1793 = vmatpush1.xpose.msra.mxu0 0.0
    %1794 = vmatprep.subr.mxu0 0.0
    %1795 = vmatpush1.xpose.msra.mxu0 0.0
    %1796 = vmatprep.subr.mxu0 0.0
    %1797 = vmatpush1.xpose.msra.mxu0 0.0
    %1798 = vmatprep.subr.mxu0 0.0
    %1799 = vmatpush1.xpose.msra.mxu0 0.0
    %1800 = vmatprep.subr.mxu0 0.0
    %1801 = vmatpush1.xpose.msra.mxu0 0.0
    %1802 = vmatprep.subr.mxu0 0.0
    %1803 = vmatpush1.xpose.msra.mxu0 0.0
    %1804 = vmatprep.subr.mxu0 0.0
    %1805 = vmatpush1.xpose.msra.mxu0 0.0
    %1806 = vmatprep.subr.mxu0 0.0
    %1807 = vmatpush1.xpose.msra.mxu0 0.0
    %1808 = vmatprep.subr.mxu0 0.0
    %1809 = vmatpush1.xpose.msra.mxu0 0.0
    %1810 = vmatprep.subr.mxu0 0.0
    %1811 = vmatpush1.xpose.msra.mxu0 0.0
    %1812 = vmatprep.subr.mxu0 0.0
    %1813 = vmatpush1.xpose.msra.mxu0 0.0
    %1814 = vmatprep.mubr.f32.mxu0 0.0
    %1815 = vmatmul.mubr.f32.gmra.mrb[0].mxu0 %v1745
    %v1816 = vpop.f32.mrb[0].mxu0
    %v1817 = vadd.f32 0.0, %v1816
    %v1818 = vpop.f32.mrb[0].mxu0
    %1819 = vdwg.mxu0
    %v1821 = vsel %vm1287, %v702, 0
    %v1824 = vsel %vm1287, %v994, 0
    %1826 = vmatprep.subr.mxu0 0.0
    %1827 = vmatpush1.xpose.msra.mxu0 %v1824
    %1828 = vmatprep.subr.mxu0 0.0
    %1829 = vmatpush1.xpose.msra.mxu0 0.0
    %1830 = vmatprep.subr.mxu0 0.0
    %1831 = vmatpush1.xpose.msra.mxu0 0.0
    %1832 = vmatprep.subr.mxu0 0.0
    %1833 = vmatpush1.xpose.msra.mxu0 0.0
    %1834 = vmatprep.subr.mxu0 0.0
    %1835 = vmatpush1.xpose.msra.mxu0 0.0
    %1836 = vmatprep.subr.mxu0 0.0
    %1837 = vmatpush1.xpose.msra.mxu0 0.0
    %1838 = vmatprep.subr.mxu0 0.0
    %1839 = vmatpush1.xpose.msra.mxu0 0.0
    %1840 = vmatprep.subr.mxu0 0.0
    %1841 = vmatpush1.xpose.msra.mxu0 0.0
    %1842 = vmatprep.subr.mxu0 0.0
    %1843 = vmatpush1.xpose.msra.mxu0 0.0
    %1844 = vmatprep.subr.mxu0 0.0
    %1845 = vmatpush1.xpose.msra.mxu0 0.0
    %1846 = vmatprep.subr.mxu0 0.0
    %1847 = vmatpush1.xpose.msra.mxu0 0.0
    %1848 = vmatprep.subr.mxu0 0.0
    %1849 = vmatpush1.xpose.msra.mxu0 0.0
    %1850 = vmatprep.subr.mxu0 0.0
    %1851 = vmatpush1.xpose.msra.mxu0 0.0
    %1852 = vmatprep.subr.mxu0 0.0
    %1853 = vmatpush1.xpose.msra.mxu0 0.0
    %1854 = vmatprep.subr.mxu0 0.0
    %1855 = vmatpush1.xpose.msra.mxu0 0.0
    %1856 = vmatprep.subr.mxu0 0.0
    %1857 = vmatpush1.xpose.msra.mxu0 0.0
    %1858 = vmatprep.subr.mxu0 0.0
    %1859 = vmatpush1.xpose.msra.mxu0 0.0
    %1860 = vmatprep.subr.mxu0 0.0
    %1861 = vmatpush1.xpose.msra.mxu0 0.0
    %1862 = vmatprep.subr.mxu0 0.0
    %1863 = vmatpush1.xpose.msra.mxu0 0.0
    %1864 = vmatprep.subr.mxu0 0.0
    %1865 = vmatpush1.xpose.msra.mxu0 0.0
    %1866 = vmatprep.subr.mxu0 0.0
    %1867 = vmatpush1.xpose.msra.mxu0 0.0
    %1868 = vmatprep.subr.mxu0 0.0
    %1869 = vmatpush1.xpose.msra.mxu0 0.0
    %1870 = vmatprep.subr.mxu0 0.0
    %1871 = vmatpush1.xpose.msra.mxu0 0.0
    %1872 = vmatprep.subr.mxu0 0.0
    %1873 = vmatpush1.xpose.msra.mxu0 0.0
    %1874 = vmatprep.subr.mxu0 0.0
    %1875 = vmatpush1.xpose.msra.mxu0 0.0
    %1876 = vmatprep.subr.mxu0 0.0
    %1877 = vmatpush1.xpose.msra.mxu0 0.0
    %1878 = vmatprep.subr.mxu0 0.0
    %1879 = vmatpush1.xpose.msra.mxu0 0.0
    %1880 = vmatprep.subr.mxu0 0.0
    %1881 = vmatpush1.xpose.msra.mxu0 0.0
    %1882 = vmatprep.subr.mxu0 0.0
    %1883 = vmatpush1.xpose.msra.mxu0 0.0
    %1884 = vmatprep.subr.mxu0 0.0
    %1885 = vmatpush1.xpose.msra.mxu0 0.0
    %1886 = vmatprep.subr.mxu0 0.0
    %1887 = vmatpush1.xpose.msra.mxu0 0.0
    %1888 = vmatprep.subr.mxu0 0.0
    %1889 = vmatpush1.xpose.msra.mxu0 0.0
    %1890 = vmatprep.mubr.f32.mxu0 0.0
    %1891 = vmatmul.mubr.f32.gmra.mrb[0].mxu0 %v1821
    %v1892 = vpop.f32.mrb[0].mxu0
    %v1893 = vadd.f32 0.0, %v1892
    %v1894 = vpop.f32.mrb[0].mxu0
    %1895 = vdwg.mxu0
    %vm1896 = vcmask 64512
    %v1897 = vsel %vm1896, %v1361, -inf
    %1898 = vmax.xlane.f32.xlu0 %v1897
    %v1899 = vpop.xlane.xlu0 %1898
    %v1900 = vsel %vm1896, %v1437, -inf
    %1901 = vmax.xlane.f32.xlu0 %v1900
    %v1902 = vpop.xlane.xlu0 %1901
    %v1903 = vsel %vm1896, %v1513, -inf
    %1904 = vmax.xlane.f32.xlu0 %v1903
    %v1905 = vpop.xlane.xlu0 %1904
    %v1906 = vsel %vm1896, %v1589, -inf
    %1907 = vmax.xlane.f32.xlu0 %v1906
    %v1908 = vpop.xlane.xlu0 %1907
    %v1909 = vsel %vm1896, %v1665, -inf
    %1910 = vmax.xlane.f32.xlu0 %v1909
    %v1911 = vpop.xlane.xlu0 %1910
    %v1912 = vsel %vm1896, %v1741, -inf
    %1913 = vmax.xlane.f32.xlu0 %v1912
    %v1914 = vpop.xlane.xlu0 %1913
    %v1915 = vsel %vm1896, %v1817, -inf
    %1916 = vmax.xlane.f32.xlu0 %v1915
    %v1917 = vpop.xlane.xlu0 %1916
    %v1918 = vsel %vm1896, %v1893, -inf
    %1919 = vmax.xlane.f32.xlu0 %v1918
    %v1920 = vpop.xlane.xlu0 %1919
    %v1921 = vsub.f32 %v1361, %v1899
    %v1922 = vsub.f32 %v1437, %v1902
    %v1923 = vsub.f32 %v1513, %v1905
    %v1924 = vsub.f32 %v1589, %v1908
    %v1925 = vsub.f32 %v1665, %v1911
    %v1926 = vsub.f32 %v1741, %v1914
    %v1927 = vsub.f32 %v1817, %v1917
    %v1928 = vsub.f32 %v1893, %v1920
    %v1929 = vmul.f32 %v1921, 1.442695
    %v1930 = vpow.pop %v1929
    %v1931 = vmul.f32 %v1922, 1.442695
    %v1932 = vpow.pop %v1931
    %v1933 = vmul.f32 %v1923, 1.442695
    %v1934 = vpow.pop %v1933
    %v1935 = vmul.f32 %v1924, 1.442695
    %v1936 = vpow.pop %v1935
    %v1937 = vmul.f32 %v1925, 1.442695
    %v1938 = vpow.pop %v1937
    %v1939 = vmul.f32 %v1926, 1.442695
    %v1940 = vpow.pop %v1939
    %v1941 = vmul.f32 %v1927, 1.442695
    %v1942 = vpow.pop %v1941
    %v1943 = vmul.f32 %v1928, 1.442695
    %v1944 = vpow.pop %v1943
    %v1945 = vsel %vm1896, %v1930, 0.0
    %1946 = vadd.xlane.f32.xlu0 %v1945
    %v1947 = vpop.xlane.xlu0 %1946
    %v1948 = vsel %vm1896, %v1932, 0.0
    %1949 = vadd.xlane.f32.xlu0 %v1948
    %v1950 = vpop.xlane.xlu0 %1949
    %v1951 = vsel %vm1896, %v1934, 0.0
    %1952 = vadd.xlane.f32.xlu0 %v1951
    %v1953 = vpop.xlane.xlu0 %1952
    %v1954 = vsel %vm1896, %v1936, 0.0
    %1955 = vadd.xlane.f32.xlu0 %v1954
    %v1956 = vpop.xlane.xlu0 %1955
    %v1957 = vsel %vm1896, %v1938, 0.0
    %1958 = vadd.xlane.f32.xlu0 %v1957
    %v1959 = vpop.xlane.xlu0 %1958
    %v1960 = vsel %vm1896, %v1940, 0.0
    %1961 = vadd.xlane.f32.xlu0 %v1960
    %v1962 = vpop.xlane.xlu0 %1961
    %v1963 = vsel %vm1896, %v1942, 0.0
    %1964 = vadd.xlane.f32.xlu0 %v1963
    %v1965 = vpop.xlane.xlu0 %1964
    %v1966 = vsel %vm1896, %v1944, 0.0
    %1967 = vadd.xlane.f32.xlu0 %v1966
    %v1968 = vpop.xlane.xlu0 %1967
    %v1969 = vrcp.pop %v1947
    %v1970 = vrcp.pop %v1950
    %v1971 = vrcp.pop %v1953
    %v1972 = vrcp.pop %v1956
    %v1973 = vrcp.pop %v1959
    %v1974 = vrcp.pop %v1962
    %v1975 = vrcp.pop %v1965
    %v1976 = vrcp.pop %v1968
    %v1977 = vmul.f32 %v1930, %v1969
    %v1978 = vmul.f32 %v1932, %v1970
    %v1979 = vmul.f32 %v1934, %v1971
    %v1980 = vmul.f32 %v1936, %v1972
    %v1981 = vmul.f32 %v1938, %v1973
    %v1982 = vmul.f32 %v1940, %v1974
    %v1983 = vmul.f32 %v1942, %v1975
    %v1984 = vmul.f32 %v1944, %v1976
    %v1986 = vsel %vm1896, %v1977, 0
    %1988 = vmatprep.subr.mxu0 0.0
    %1989 = vmatpush1.msra.mxu0 %v1215
    %1990 = vmatprep.subr.mxu0 0.0
    %1991 = vmatpush1.msra.mxu0 0.0
    %1992 = vmatprep.subr.mxu0 0.0
    %1993 = vmatpush1.msra.mxu0 0.0
    %1994 = vmatprep.subr.mxu0 0.0
    %1995 = vmatpush1.msra.mxu0 0.0
    %1996 = vmatprep.subr.mxu0 0.0
    %1997 = vmatpush1.msra.mxu0 0.0
    %1998 = vmatprep.subr.mxu0 0.0
    %1999 = vmatpush1.msra.mxu0 0.0
    %2000 = vmatprep.subr.mxu0 0.0
    %2001 = vmatpush1.msra.mxu0 0.0
    %2002 = vmatprep.subr.mxu0 0.0
    %2003 = vmatpush1.msra.mxu0 0.0
    %2004 = vmatprep.subr.mxu0 0.0
    %2005 = vmatpush1.msra.mxu0 0.0
    %2006 = vmatprep.subr.mxu0 0.0
    %2007 = vmatpush1.msra.mxu0 0.0
    %2008 = vmatprep.subr.mxu0 0.0
    %2009 = vmatpush1.msra.mxu0 0.0
    %2010 = vmatprep.subr.mxu0 0.0
    %2011 = vmatpush1.msra.mxu0 0.0
    %2012 = vmatprep.subr.mxu0 0.0
    %2013 = vmatpush1.msra.mxu0 0.0
    %2014 = vmatprep.subr.mxu0 0.0
    %2015 = vmatpush1.msra.mxu0 0.0
    %2016 = vmatprep.subr.mxu0 0.0
    %2017 = vmatpush1.msra.mxu0 0.0
    %2018 = vmatprep.subr.mxu0 0.0
    %2019 = vmatpush1.msra.mxu0 0.0
    %2020 = vmatprep.subr.mxu0 0.0
    %2021 = vmatpush1.msra.mxu0 0.0
    %2022 = vmatprep.subr.mxu0 0.0
    %2023 = vmatpush1.msra.mxu0 0.0
    %2024 = vmatprep.subr.mxu0 0.0
    %2025 = vmatpush1.msra.mxu0 0.0
    %2026 = vmatprep.subr.mxu0 0.0
    %2027 = vmatpush1.msra.mxu0 0.0
    %2028 = vmatprep.subr.mxu0 0.0
    %2029 = vmatpush1.msra.mxu0 0.0
    %2030 = vmatprep.subr.mxu0 0.0
    %2031 = vmatpush1.msra.mxu0 0.0
    %2032 = vmatprep.subr.mxu0 0.0
    %2033 = vmatpush1.msra.mxu0 0.0
    %2034 = vmatprep.subr.mxu0 0.0
    %2035 = vmatpush1.msra.mxu0 0.0
    %2036 = vmatprep.subr.mxu0 0.0
    %2037 = vmatpush1.msra.mxu0 0.0
    %2038 = vmatprep.subr.mxu0 0.0
    %2039 = vmatpush1.msra.mxu0 0.0
    %2040 = vmatprep.subr.mxu0 0.0
    %2041 = vmatpush1.msra.mxu0 0.0
    %2042 = vmatprep.subr.mxu0 0.0
    %2043 = vmatpush1.msra.mxu0 0.0
    %2044 = vmatprep.subr.mxu0 0.0
    %2045 = vmatpush1.msra.mxu0 0.0
    %2046 = vmatprep.subr.mxu0 0.0
    %2047 = vmatpush1.msra.mxu0 0.0
    %2048 = vmatprep.subr.mxu0 0.0
    %2049 = vmatpush1.msra.mxu0 0.0
    %2050 = vmatprep.subr.mxu0 0.0
    %2051 = vmatpush1.msra.mxu0 0.0
    %2052 = vmatprep.mubr.f32.mxu0 0.0
    %2053 = vmatmul.mubr.f32.gmra.mrb[0].mxu0 %v1986
    %v2054 = vpop.f32.mrb[0].mxu0
    %v2055 = vadd.f32 0.0, %v2054
    %v2056 = vpop.f32.mrb[0].mxu0
    %2057 = vdwg.mxu0
    %v2059 = vsel %vm1896, %v1978, 0
    %2061 = vmatprep.subr.mxu0 0.0
    %2062 = vmatpush1.msra.mxu0 %v1216
    %2063 = vmatprep.subr.mxu0 0.0
    %2064 = vmatpush1.msra.mxu0 0.0
    %2065 = vmatprep.subr.mxu0 0.0
    %2066 = vmatpush1.msra.mxu0 0.0
    %2067 = vmatprep.subr.mxu0 0.0
    %2068 = vmatpush1.msra.mxu0 0.0
    %2069 = vmatprep.subr.mxu0 0.0
    %2070 = vmatpush1.msra.mxu0 0.0
    %2071 = vmatprep.subr.mxu0 0.0
    %2072 = vmatpush1.msra.mxu0 0.0
    %2073 = vmatprep.subr.mxu0 0.0
    %2074 = vmatpush1.msra.mxu0 0.0
    %2075 = vmatprep.subr.mxu0 0.0
    %2076 = vmatpush1.msra.mxu0 0.0
    %2077 = vmatprep.subr.mxu0 0.0
    %2078 = vmatpush1.msra.mxu0 0.0
    %2079 = vmatprep.subr.mxu0 0.0
    %2080 = vmatpush1.msra.mxu0 0.0
    %2081 = vmatprep.subr.mxu0 0.0
    %2082 = vmatpush1.msra.mxu0 0.0
    %2083 = vmatprep.subr.mxu0 0.0
    %2084 = vmatpush1.msra.mxu0 0.0
    %2085 = vmatprep.subr.mxu0 0.0
    %2086 = vmatpush1.msra.mxu0 0.0
    %2087 = vmatprep.subr.mxu0 0.0
    %2088 = vmatpush1.msra.mxu0 0.0
    %2089 = vmatprep.subr.mxu0 0.0
    %2090 = vmatpush1.msra.mxu0 0.0
    %2091 = vmatprep.subr.mxu0 0.0
    %2092 = vmatpush1.msra.mxu0 0.0
    %2093 = vmatprep.subr.mxu0 0.0
    %2094 = vmatpush1.msra.mxu0 0.0
    %2095 = vmatprep.subr.mxu0 0.0
    %2096 = vmatpush1.msra.mxu0 0.0
    %2097 = vmatprep.subr.mxu0 0.0
    %2098 = vmatpush1.msra.mxu0 0.0
    %2099 = vmatprep.subr.mxu0 0.0
    %2100 = vmatpush1.msra.mxu0 0.0
    %2101 = vmatprep.subr.mxu0 0.0
    %2102 = vmatpush1.msra.mxu0 0.0
    %2103 = vmatprep.subr.mxu0 0.0
    %2104 = vmatpush1.msra.mxu0 0.0
    %2105 = vmatprep.subr.mxu0 0.0
    %2106 = vmatpush1.msra.mxu0 0.0
    %2107 = vmatprep.subr.mxu0 0.0
    %2108 = vmatpush1.msra.mxu0 0.0
    %2109 = vmatprep.subr.mxu0 0.0
    %2110 = vmatpush1.msra.mxu0 0.0
    %2111 = vmatprep.subr.mxu0 0.0
    %2112 = vmatpush1.msra.mxu0 0.0
    %2113 = vmatprep.subr.mxu0 0.0
    %2114 = vmatpush1.msra.mxu0 0.0
    %2115 = vmatprep.subr.mxu0 0.0
    %2116 = vmatpush1.msra.mxu0 0.0
    %2117 = vmatprep.subr.mxu0 0.0
    %2118 = vmatpush1.msra.mxu0 0.0
    %2119 = vmatprep.subr.mxu0 0.0
    %2120 = vmatpush1.msra.mxu0 0.0
    %2121 = vmatprep.subr.mxu0 0.0
    %2122 = vmatpush1.msra.mxu0 0.0
    %2123 = vmatprep.subr.mxu0 0.0
    %2124 = vmatpush1.msra.mxu0 0.0
    %2125 = vmatprep.mubr.f32.mxu0 0.0
    %2126 = vmatmul.mubr.f32.gmra.mrb[0].mxu0 %v2059
    %v2127 = vpop.f32.mrb[0].mxu0
    %v2128 = vadd.f32 0.0, %v2127
    %v2129 = vpop.f32.mrb[0].mxu0
    %2130 = vdwg.mxu0
    %v2132 = vsel %vm1896, %v1979, 0
    %2134 = vmatprep.subr.mxu0 0.0
    %2135 = vmatpush1.msra.mxu0 %v1217
    %2136 = vmatprep.subr.mxu0 0.0
    %2137 = vmatpush1.msra.mxu0 0.0
    %2138 = vmatprep.subr.mxu0 0.0
    %2139 = vmatpush1.msra.mxu0 0.0
    %2140 = vmatprep.subr.mxu0 0.0
    %2141 = vmatpush1.msra.mxu0 0.0
    %2142 = vmatprep.subr.mxu0 0.0
    %2143 = vmatpush1.msra.mxu0 0.0
    %2144 = vmatprep.subr.mxu0 0.0
    %2145 = vmatpush1.msra.mxu0 0.0
    %2146 = vmatprep.subr.mxu0 0.0
    %2147 = vmatpush1.msra.mxu0 0.0
    %2148 = vmatprep.subr.mxu0 0.0
    %2149 = vmatpush1.msra.mxu0 0.0
    %2150 = vmatprep.subr.mxu0 0.0
    %2151 = vmatpush1.msra.mxu0 0.0
    %2152 = vmatprep.subr.mxu0 0.0
    %2153 = vmatpush1.msra.mxu0 0.0
    %2154 = vmatprep.subr.mxu0 0.0
    %2155 = vmatpush1.msra.mxu0 0.0
    %2156 = vmatprep.subr.mxu0 0.0
    %2157 = vmatpush1.msra.mxu0 0.0
    %2158 = vmatprep.subr.mxu0 0.0
    %2159 = vmatpush1.msra.mxu0 0.0
    %2160 = vmatprep.subr.mxu0 0.0
    %2161 = vmatpush1.msra.mxu0 0.0
    %2162 = vmatprep.subr.mxu0 0.0
    %2163 = vmatpush1.msra.mxu0 0.0
    %2164 = vmatprep.subr.mxu0 0.0
    %2165 = vmatpush1.msra.mxu0 0.0
    %2166 = vmatprep.subr.mxu0 0.0
    %2167 = vmatpush1.msra.mxu0 0.0
    %2168 = vmatprep.subr.mxu0 0.0
    %2169 = vmatpush1.msra.mxu0 0.0
    %2170 = vmatprep.subr.mxu0 0.0
    %2171 = vmatpush1.msra.mxu0 0.0
    %2172 = vmatprep.subr.mxu0 0.0
    %2173 = vmatpush1.msra.mxu0 0.0
    %2174 = vmatprep.subr.mxu0 0.0
    %2175 = vmatpush1.msra.mxu0 0.0
    %2176 = vmatprep.subr.mxu0 0.0
    %2177 = vmatpush1.msra.mxu0 0.0
    %2178 = vmatprep.subr.mxu0 0.0
    %2179 = vmatpush1.msra.mxu0 0.0
    %2180 = vmatprep.subr.mxu0 0.0
    %2181 = vmatpush1.msra.mxu0 0.0
    %2182 = vmatprep.subr.mxu0 0.0
    %2183 = vmatpush1.msra.mxu0 0.0
    %2184 = vmatprep.subr.mxu0 0.0
    %2185 = vmatpush1.msra.mxu0 0.0
    %2186 = vmatprep.subr.mxu0 0.0
    %2187 = vmatpush1.msra.mxu0 0.0
    %2188 = vmatprep.subr.mxu0 0.0
    %2189 = vmatpush1.msra.mxu0 0.0
    %2190 = vmatprep.subr.mxu0 0.0
    %2191 = vmatpush1.msra.mxu0 0.0
    %2192 = vmatprep.subr.mxu0 0.0
    %2193 = vmatpush1.msra.mxu0 0.0
    %2194 = vmatprep.subr.mxu0 0.0
    %2195 = vmatpush1.msra.mxu0 0.0
    %2196 = vmatprep.subr.mxu0 0.0
    %2197 = vmatpush1.msra.mxu0 0.0
    %2198 = vmatprep.mubr.f32.mxu0 0.0
    %2199 = vmatmul.mubr.f32.gmra.mrb[0].mxu0 %v2132
    %v2200 = vpop.f32.mrb[0].mxu0
    %v2201 = vadd.f32 0.0, %v2200
    %v2202 = vpop.f32.mrb[0].mxu0
    %2203 = vdwg.mxu0
    %v2205 = vsel %vm1896, %v1980, 0
    %2207 = vmatprep.subr.mxu0 0.0
    %2208 = vmatpush1.msra.mxu0 %v1218
    %2209 = vmatprep.subr.mxu0 0.0
    %2210 = vmatpush1.msra.mxu0 0.0
    %2211 = vmatprep.subr.mxu0 0.0
    %2212 = vmatpush1.msra.mxu0 0.0
    %2213 = vmatprep.subr.mxu0 0.0
    %2214 = vmatpush1.msra.mxu0 0.0
    %2215 = vmatprep.subr.mxu0 0.0
    %2216 = vmatpush1.msra.mxu0 0.0
    %2217 = vmatprep.subr.mxu0 0.0
    %2218 = vmatpush1.msra.mxu0 0.0
    %2219 = vmatprep.subr.mxu0 0.0
    %2220 = vmatpush1.msra.mxu0 0.0
    %2221 = vmatprep.subr.mxu0 0.0
    %2222 = vmatpush1.msra.mxu0 0.0
    %2223 = vmatprep.subr.mxu0 0.0
    %2224 = vmatpush1.msra.mxu0 0.0
    %2225 = vmatprep.subr.mxu0 0.0
    %2226 = vmatpush1.msra.mxu0 0.0
    %2227 = vmatprep.subr.mxu0 0.0
    %2228 = vmatpush1.msra.mxu0 0.0
    %2229 = vmatprep.subr.mxu0 0.0
    %2230 = vmatpush1.msra.mxu0 0.0
    %2231 = vmatprep.subr.mxu0 0.0
    %2232 = vmatpush1.msra.mxu0 0.0
    %2233 = vmatprep.subr.mxu0 0.0
    %2234 = vmatpush1.msra.mxu0 0.0
    %2235 = vmatprep.subr.mxu0 0.0
    %2236 = vmatpush1.msra.mxu0 0.0
    %2237 = vmatprep.subr.mxu0 0.0
    %2238 = vmatpush1.msra.mxu0 0.0
    %2239 = vmatprep.subr.mxu0 0.0
    %2240 = vmatpush1.msra.mxu0 0.0
    %2241 = vmatprep.subr.mxu0 0.0
    %2242 = vmatpush1.msra.mxu0 0.0
    %2243 = vmatprep.subr.mxu0 0.0
    %2244 = vmatpush1.msra.mxu0 0.0
    %2245 = vmatprep.subr.mxu0 0.0
    %2246 = vmatpush1.msra.mxu0 0.0
    %2247 = vmatprep.subr.mxu0 0.0
    %2248 = vmatpush1.msra.mxu0 0.0
    %2249 = vmatprep.subr.mxu0 0.0
    %2250 = vmatpush1.msra.mxu0 0.0
    %2251 = vmatprep.subr.mxu0 0.0
    %2252 = vmatpush1.msra.mxu0 0.0
    %2253 = vmatprep.subr.mxu0 0.0
    %2254 = vmatpush1.msra.mxu0 0.0
    %2255 = vmatprep.subr.mxu0 0.0
    %2256 = vmatpush1.msra.mxu0 0.0
    %2257 = vmatprep.subr.mxu0 0.0
    %2258 = vmatpush1.msra.mxu0 0.0
    %2259 = vmatprep.subr.mxu0 0.0
    %2260 = vmatpush1.msra.mxu0 0.0
    %2261 = vmatprep.subr.mxu0 0.0
    %2262 = vmatpush1.msra.mxu0 0.0
    %2263 = vmatprep.subr.mxu0 0.0
    %2264 = vmatpush1.msra.mxu0 0.0
    %2265 = vmatprep.subr.mxu0 0.0
    %2266 = vmatpush1.msra.mxu0 0.0
    %2267 = vmatprep.subr.mxu0 0.0
    %2268 = vmatpush1.msra.mxu0 0.0
    %2269 = vmatprep.subr.mxu0 0.0
    %2270 = vmatpush1.msra.mxu0 0.0
    %2271 = vmatprep.mubr.f32.mxu0 0.0
    %2272 = vmatmul.mubr.f32.gmra.mrb[0].mxu0 %v2205
    %v2273 = vpop.f32.mrb[0].mxu0
    %v2274 = vadd.f32 0.0, %v2273
    %v2275 = vpop.f32.mrb[0].mxu0
    %2276 = vdwg.mxu0
    %v2278 = vsel %vm1896, %v1981, 0
    %2280 = vmatprep.subr.mxu0 0.0
    %2281 = vmatpush1.msra.mxu0 %v1283
    %2282 = vmatprep.subr.mxu0 0.0
    %2283 = vmatpush1.msra.mxu0 0.0
    %2284 = vmatprep.subr.mxu0 0.0
    %2285 = vmatpush1.msra.mxu0 0.0
    %2286 = vmatprep.subr.mxu0 0.0
    %2287 = vmatpush1.msra.mxu0 0.0
    %2288 = vmatprep.subr.mxu0 0.0
    %2289 = vmatpush1.msra.mxu0 0.0
    %2290 = vmatprep.subr.mxu0 0.0
    %2291 = vmatpush1.msra.mxu0 0.0
    %2292 = vmatprep.subr.mxu0 0.0
    %2293 = vmatpush1.msra.mxu0 0.0
    %2294 = vmatprep.subr.mxu0 0.0
    %2295 = vmatpush1.msra.mxu0 0.0
    %2296 = vmatprep.subr.mxu0 0.0
    %2297 = vmatpush1.msra.mxu0 0.0
    %2298 = vmatprep.subr.mxu0 0.0
    %2299 = vmatpush1.msra.mxu0 0.0
    %2300 = vmatprep.subr.mxu0 0.0
    %2301 = vmatpush1.msra.mxu0 0.0
    %2302 = vmatprep.subr.mxu0 0.0
    %2303 = vmatpush1.msra.mxu0 0.0
    %2304 = vmatprep.subr.mxu0 0.0
    %2305 = vmatpush1.msra.mxu0 0.0
    %2306 = vmatprep.subr.mxu0 0.0
    %2307 = vmatpush1.msra.mxu0 0.0
    %2308 = vmatprep.subr.mxu0 0.0
    %2309 = vmatpush1.msra.mxu0 0.0
    %2310 = vmatprep.subr.mxu0 0.0
    %2311 = vmatpush1.msra.mxu0 0.0
    %2312 = vmatprep.subr.mxu0 0.0
    %2313 = vmatpush1.msra.mxu0 0.0
    %2314 = vmatprep.subr.mxu0 0.0
    %2315 = vmatpush1.msra.mxu0 0.0
    %2316 = vmatprep.subr.mxu0 0.0
    %2317 = vmatpush1.msra.mxu0 0.0
    %2318 = vmatprep.subr.mxu0 0.0
    %2319 = vmatpush1.msra.mxu0 0.0
    %2320 = vmatprep.subr.mxu0 0.0
    %2321 = vmatpush1.msra.mxu0 0.0
    %2322 = vmatprep.subr.mxu0 0.0
    %2323 = vmatpush1.msra.mxu0 0.0
    %2324 = vmatprep.subr.mxu0 0.0
    %2325 = vmatpush1.msra.mxu0 0.0
    %2326 = vmatprep.subr.mxu0 0.0
    %2327 = vmatpush1.msra.mxu0 0.0
    %2328 = vmatprep.subr.mxu0 0.0
    %2329 = vmatpush1.msra.mxu0 0.0
    %2330 = vmatprep.subr.mxu0 0.0
    %2331 = vmatpush1.msra.mxu0 0.0
    %2332 = vmatprep.subr.mxu0 0.0
    %2333 = vmatpush1.msra.mxu0 0.0
    %2334 = vmatprep.subr.mxu0 0.0
    %2335 = vmatpush1.msra.mxu0 0.0
    %2336 = vmatprep.subr.mxu0 0.0
    %2337 = vmatpush1.msra.mxu0 0.0
    %2338 = vmatprep.subr.mxu0 0.0
    %2339 = vmatpush1.msra.mxu0 0.0
    %2340 = vmatprep.subr.mxu0 0.0
    %2341 = vmatpush1.msra.mxu0 0.0
    %2342 = vmatprep.subr.mxu0 0.0
    %2343 = vmatpush1.msra.mxu0 0.0
    %2344 = vmatprep.mubr.f32.mxu0 0.0
    %2345 = vmatmul.mubr.f32.gmra.mrb[0].mxu0 %v2278
    %v2346 = vpop.f32.mrb[0].mxu0
    %v2347 = vadd.f32 0.0, %v2346
    %v2348 = vpop.f32.mrb[0].mxu0
    %2349 = vdwg.mxu0
    %v2351 = vsel %vm1896, %v1982, 0
    %2353 = vmatprep.subr.mxu0 0.0
    %2354 = vmatpush1.msra.mxu0 %v1284
    %2355 = vmatprep.subr.mxu0 0.0
    %2356 = vmatpush1.msra.mxu0 0.0
    %2357 = vmatprep.subr.mxu0 0.0
    %2358 = vmatpush1.msra.mxu0 0.0
    %2359 = vmatprep.subr.mxu0 0.0
    %2360 = vmatpush1.msra.mxu0 0.0
    %2361 = vmatprep.subr.mxu0 0.0
    %2362 = vmatpush1.msra.mxu0 0.0
    %2363 = vmatprep.subr.mxu0 0.0
    %2364 = vmatpush1.msra.mxu0 0.0
    %2365 = vmatprep.subr.mxu0 0.0
    %2366 = vmatpush1.msra.mxu0 0.0
    %2367 = vmatprep.subr.mxu0 0.0
    %2368 = vmatpush1.msra.mxu0 0.0
    %2369 = vmatprep.subr.mxu0 0.0
    %2370 = vmatpush1.msra.mxu0 0.0
    %2371 = vmatprep.subr.mxu0 0.0
    %2372 = vmatpush1.msra.mxu0 0.0
    %2373 = vmatprep.subr.mxu0 0.0
    %2374 = vmatpush1.msra.mxu0 0.0
    %2375 = vmatprep.subr.mxu0 0.0
    %2376 = vmatpush1.msra.mxu0 0.0
    %2377 = vmatprep.subr.mxu0 0.0
    %2378 = vmatpush1.msra.mxu0 0.0
    %2379 = vmatprep.subr.mxu0 0.0
    %2380 = vmatpush1.msra.mxu0 0.0
    %2381 = vmatprep.subr.mxu0 0.0
    %2382 = vmatpush1.msra.mxu0 0.0
    %2383 = vmatprep.subr.mxu0 0.0
    %2384 = vmatpush1.msra.mxu0 0.0
    %2385 = vmatprep.subr.mxu0 0.0
    %2386 = vmatpush1.msra.mxu0 0.0
    %2387 = vmatprep.subr.mxu0 0.0
    %2388 = vmatpush1.msra.mxu0 0.0
    %2389 = vmatprep.subr.mxu0 0.0
    %2390 = vmatpush1.msra.mxu0 0.0
    %2391 = vmatprep.subr.mxu0 0.0
    %2392 = vmatpush1.msra.mxu0 0.0
    %2393 = vmatprep.subr.mxu0 0.0
    %2394 = vmatpush1.msra.mxu0 0.0
    %2395 = vmatprep.subr.mxu0 0.0
    %2396 = vmatpush1.msra.mxu0 0.0
    %2397 = vmatprep.subr.mxu0 0.0
    %2398 = vmatpush1.msra.mxu0 0.0
    %2399 = vmatprep.subr.mxu0 0.0
    %2400 = vmatpush1.msra.mxu0 0.0
    %2401 = vmatprep.subr.mxu0 0.0
    %2402 = vmatpush1.msra.mxu0 0.0
    %2403 = vmatprep.subr.mxu0 0.0
    %2404 = vmatpush1.msra.mxu0 0.0
    %2405 = vmatprep.subr.mxu0 0.0
    %2406 = vmatpush1.msra.mxu0 0.0
    %2407 = vmatprep.subr.mxu0 0.0
    %2408 = vmatpush1.msra.mxu0 0.0
    %2409 = vmatprep.subr.mxu0 0.0
    %2410 = vmatpush1.msra.mxu0 0.0
    %2411 = vmatprep.subr.mxu0 0.0
    %2412 = vmatpush1.msra.mxu0 0.0
    %2413 = vmatprep.subr.mxu0 0.0
    %2414 = vmatpush1.msra.mxu0 0.0
    %2415 = vmatprep.subr.mxu0 0.0
    %2416 = vmatpush1.msra.mxu0 0.0
    %2417 = vmatprep.mubr.f32.mxu0 0.0
    %2418 = vmatmul.mubr.f32.gmra.mrb[0].mxu0 %v2351
    %v2419 = vpop.f32.mrb[0].mxu0
    %v2420 = vadd.f32 0.0, %v2419
    %v2421 = vpop.f32.mrb[0].mxu0
    %2422 = vdwg.mxu0
    %v2424 = vsel %vm1896, %v1983, 0
    %2426 = vmatprep.subr.mxu0 0.0
    %2427 = vmatpush1.msra.mxu0 %v1285
    %2428 = vmatprep.subr.mxu0 0.0
    %2429 = vmatpush1.msra.mxu0 0.0
    %2430 = vmatprep.subr.mxu0 0.0
    %2431 = vmatpush1.msra.mxu0 0.0
    %2432 = vmatprep.subr.mxu0 0.0
    %2433 = vmatpush1.msra.mxu0 0.0
    %2434 = vmatprep.subr.mxu0 0.0
    %2435 = vmatpush1.msra.mxu0 0.0
    %2436 = vmatprep.subr.mxu0 0.0
    %2437 = vmatpush1.msra.mxu0 0.0
    %2438 = vmatprep.subr.mxu0 0.0
    %2439 = vmatpush1.msra.mxu0 0.0
    %2440 = vmatprep.subr.mxu0 0.0
    %2441 = vmatpush1.msra.mxu0 0.0
    %2442 = vmatprep.subr.mxu0 0.0
    %2443 = vmatpush1.msra.mxu0 0.0
    %2444 = vmatprep.subr.mxu0 0.0
    %2445 = vmatpush1.msra.mxu0 0.0
    %2446 = vmatprep.subr.mxu0 0.0
    %2447 = vmatpush1.msra.mxu0 0.0
    %2448 = vmatprep.subr.mxu0 0.0
    %2449 = vmatpush1.msra.mxu0 0.0
    %2450 = vmatprep.subr.mxu0 0.0
    %2451 = vmatpush1.msra.mxu0 0.0
    %2452 = vmatprep.subr.mxu0 0.0
    %2453 = vmatpush1.msra.mxu0 0.0
    %2454 = vmatprep.subr.mxu0 0.0
    %2455 = vmatpush1.msra.mxu0 0.0
    %2456 = vmatprep.subr.mxu0 0.0
    %2457 = vmatpush1.msra.mxu0 0.0
    %2458 = vmatprep.subr.mxu0 0.0
    %2459 = vmatpush1.msra.mxu0 0.0
    %2460 = vmatprep.subr.mxu0 0.0
    %2461 = vmatpush1.msra.mxu0 0.0
    %2462 = vmatprep.subr.mxu0 0.0
    %2463 = vmatpush1.msra.mxu0 0.0
    %2464 = vmatprep.subr.mxu0 0.0
    %2465 = vmatpush1.msra.mxu0 0.0
    %2466 = vmatprep.subr.mxu0 0.0
    %2467 = vmatpush1.msra.mxu0 0.0
    %2468 = vmatprep.subr.mxu0 0.0
    %2469 = vmatpush1.msra.mxu0 0.0
    %2470 = vmatprep.subr.mxu0 0.0
    %2471 = vmatpush1.msra.mxu0 0.0
    %2472 = vmatprep.subr.mxu0 0.0
    %2473 = vmatpush1.msra.mxu0 0.0
    %2474 = vmatprep.subr.mxu0 0.0
    %2475 = vmatpush1.msra.mxu0 0.0
    %2476 = vmatprep.subr.mxu0 0.0
    %2477 = vmatpush1.msra.mxu0 0.0
    %2478 = vmatprep.subr.mxu0 0.0
    %2479 = vmatpush1.msra.mxu0 0.0
    %2480 = vmatprep.subr.mxu0 0.0
    %2481 = vmatpush1.msra.mxu0 0.0
    %2482 = vmatprep.subr.mxu0 0.0
    %2483 = vmatpush1.msra.mxu0 0.0
    %2484 = vmatprep.subr.mxu0 0.0
    %2485 = vmatpush1.msra.mxu0 0.0
    %2486 = vmatprep.subr.mxu0 0.0
    %2487 = vmatpush1.msra.mxu0 0.0
    %2488 = vmatprep.subr.mxu0 0.0
    %2489 = vmatpush1.msra.mxu0 0.0
    %2490 = vmatprep.mubr.f32.mxu0 0.0
    %2491 = vmatmul.mubr.f32.gmra.mrb[0].mxu0 %v2424
    %v2492 = vpop.f32.mrb[0].mxu0
    %v2493 = vadd.f32 0.0, %v2492
    %v2494 = vpop.f32.mrb[0].mxu0
    %2495 = vdwg.mxu0
    %v2497 = vsel %vm1896, %v1984, 0
    %2499 = vmatprep.subr.mxu0 0.0
    %2500 = vmatpush1.msra.mxu0 %v1286
    %2501 = vmatprep.subr.mxu0 0.0
    %2502 = vmatpush1.msra.mxu0 0.0
    %2503 = vmatprep.subr.mxu0 0.0
    %2504 = vmatpush1.msra.mxu0 0.0
    %2505 = vmatprep.subr.mxu0 0.0
    %2506 = vmatpush1.msra.mxu0 0.0
    %2507 = vmatprep.subr.mxu0 0.0
    %2508 = vmatpush1.msra.mxu0 0.0
    %2509 = vmatprep.subr.mxu0 0.0
    %2510 = vmatpush1.msra.mxu0 0.0
    %2511 = vmatprep.subr.mxu0 0.0
    %2512 = vmatpush1.msra.mxu0 0.0
    %2513 = vmatprep.subr.mxu0 0.0
    %2514 = vmatpush1.msra.mxu0 0.0
    %2515 = vmatprep.subr.mxu0 0.0
    %2516 = vmatpush1.msra.mxu0 0.0
    %2517 = vmatprep.subr.mxu0 0.0
    %2518 = vmatpush1.msra.mxu0 0.0
    %2519 = vmatprep.subr.mxu0 0.0
    %2520 = vmatpush1.msra.mxu0 0.0
    %2521 = vmatprep.subr.mxu0 0.0
    %2522 = vmatpush1.msra.mxu0 0.0
    %2523 = vmatprep.subr.mxu0 0.0
    %2524 = vmatpush1.msra.mxu0 0.0
    %2525 = vmatprep.subr.mxu0 0.0
    %2526 = vmatpush1.msra.mxu0 0.0
    %2527 = vmatprep.subr.mxu0 0.0
    %2528 = vmatpush1.msra.mxu0 0.0
    %2529 = vmatprep.subr.mxu0 0.0
    %2530 = vmatpush1.msra.mxu0 0.0
    %2531 = vmatprep.subr.mxu0 0.0
    %2532 = vmatpush1.msra.mxu0 0.0
    %2533 = vmatprep.subr.mxu0 0.0
    %2534 = vmatpush1.msra.mxu0 0.0
    %2535 = vmatprep.subr.mxu0 0.0
    %2536 = vmatpush1.msra.mxu0 0.0
    %2537 = vmatprep.subr.mxu0 0.0
    %2538 = vmatpush1.msra.mxu0 0.0
    %2539 = vmatprep.subr.mxu0 0.0
    %2540 = vmatpush1.msra.mxu0 0.0
    %2541 = vmatprep.subr.mxu0 0.0
    %2542 = vmatpush1.msra.mxu0 0.0
    %2543 = vmatprep.subr.mxu0 0.0
    %2544 = vmatpush1.msra.mxu0 0.0
    %2545 = vmatprep.subr.mxu0 0.0
    %2546 = vmatpush1.msra.mxu0 0.0
    %2547 = vmatprep.subr.mxu0 0.0
    %2548 = vmatpush1.msra.mxu0 0.0
    %2549 = vmatprep.subr.mxu0 0.0
    %2550 = vmatpush1.msra.mxu0 0.0
    %2551 = vmatprep.subr.mxu0 0.0
    %2552 = vmatpush1.msra.mxu0 0.0
    %2553 = vmatprep.subr.mxu0 0.0
    %2554 = vmatpush1.msra.mxu0 0.0
    %2555 = vmatprep.subr.mxu0 0.0
    %2556 = vmatpush1.msra.mxu0 0.0
    %2557 = vmatprep.subr.mxu0 0.0
    %2558 = vmatpush1.msra.mxu0 0.0
    %2559 = vmatprep.subr.mxu0 0.0
    %2560 = vmatpush1.msra.mxu0 0.0
    %2561 = vmatprep.subr.mxu0 0.0
    %2562 = vmatpush1.msra.mxu0 0.0
    %2563 = vmatprep.mubr.f32.mxu0 0.0
    %2564 = vmatmul.mubr.f32.gmra.mrb[0].mxu0 %v2497
    %v2565 = vpop.f32.mrb[0].mxu0
    %v2566 = vadd.f32 0.0, %v2565
    %v2567 = vpop.f32.mrb[0].mxu0
    %2568 = vdwg.mxu0
    %v2569 = vcombine.low %v2055, %v2201
    %v2570 = vcombine.high %v2055, %v2201
    %v2572 = vunpack.c.l.s4 1983009808
    %v2573 = vunpack.c.0.s8 %v2572
    %v2574 = vlaneseq
    %v2575 = vshrl.u32 %v2574, 7
    %v2576 = vsub.s32 %v2573, %v2575
    %v2577 = vrot.slane %v2569, %v2576
    %v2579 = vunpack.c.l.s4 1983009808
    %v2580 = vunpack.c.0.s8 %v2579
    %v2581 = vlaneseq
    %v2582 = vshrl.u32 %v2581, 7
    %v2583 = vsub.s32 %v2580, %v2582
    %v2584 = vrot.slane %v2570, %v2583
    %v2585 = vcombine.low %v2128, %v2274
    %v2586 = vcombine.high %v2128, %v2274
    %v2588 = vunpack.c.l.s4 1983009808
    %v2589 = vunpack.c.0.s8 %v2588
    %v2590 = vlaneseq
    %v2591 = vshrl.u32 %v2590, 7
    %v2592 = vsub.s32 %v2589, %v2591
    %v2593 = vrot.slane %v2585, %v2592
    %v2595 = vunpack.c.l.s4 1983009808
    %v2596 = vunpack.c.0.s8 %v2595
    %v2597 = vlaneseq
    %v2598 = vshrl.u32 %v2597, 7
    %v2599 = vsub.s32 %v2596, %v2598
    %v2600 = vrot.slane %v2586, %v2599
    %v2601 = vcombine.low %v2577, %v2593
    %v2602 = vcombine.high %v2577, %v2593
    %v2604 = vunpack.c.l.s4 1934713408
    %v2605 = vunpack.c.0.s8 %v2604
    %v2606 = vlaneseq
    %v2607 = vshrl.u32 %v2606, 7
    %v2608 = vsub.s32 %v2605, %v2607
    %v2609 = vrot.slane %v2601, %v2608
    %v2611 = vunpack.c.l.s4 1934713408
    %v2612 = vunpack.c.0.s8 %v2611
    %v2613 = vlaneseq
    %v2614 = vshrl.u32 %v2613, 7
    %v2615 = vsub.s32 %v2612, %v2614
    %v2616 = vrot.slane %v2602, %v2615
    %v2617 = vcombine.low %v2584, %v2600
    %v2618 = vcombine.high %v2584, %v2600
    %v2620 = vunpack.c.l.s4 1934713408
    %v2621 = vunpack.c.0.s8 %v2620
    %v2622 = vlaneseq
    %v2623 = vshrl.u32 %v2622, 7
    %v2624 = vsub.s32 %v2621, %v2623
    %v2625 = vrot.slane %v2617, %v2624
    %v2627 = vunpack.c.l.s4 1934713408
    %v2628 = vunpack.c.0.s8 %v2627
    %v2629 = vlaneseq
    %v2630 = vshrl.u32 %v2629, 7
    %v2631 = vsub.s32 %v2628, %v2630
    %v2632 = vrot.slane %v2618, %v2631
    %v2633 = vcombine.high %v2609, 0.0
    %v2634 = vcombine.high %v2616, 0.0
    %v2635 = vcombine.high %v2625, 0.0
    %v2636 = vcombine.high %v2632, 0.0
    %v2637 = vcombine.low %v2347, %v2493
    %v2638 = vcombine.high %v2347, %v2493
    %v2640 = vunpack.c.l.s4 1983009808
    %v2641 = vunpack.c.0.s8 %v2640
    %v2642 = vlaneseq
    %v2643 = vshrl.u32 %v2642, 7
    %v2644 = vsub.s32 %v2641, %v2643
    %v2645 = vrot.slane %v2637, %v2644
    %v2647 = vunpack.c.l.s4 1983009808
    %v2648 = vunpack.c.0.s8 %v2647
    %v2649 = vlaneseq
    %v2650 = vshrl.u32 %v2649, 7
    %v2651 = vsub.s32 %v2648, %v2650
    %v2652 = vrot.slane %v2638, %v2651
    %v2653 = vcombine.low %v2420, %v2566
    %v2654 = vcombine.high %v2420, %v2566
    %v2656 = vunpack.c.l.s4 1983009808
    %v2657 = vunpack.c.0.s8 %v2656
    %v2658 = vlaneseq
    %v2659 = vshrl.u32 %v2658, 7
    %v2660 = vsub.s32 %v2657, %v2659
    %v2661 = vrot.slane %v2653, %v2660
    %v2663 = vunpack.c.l.s4 1983009808
    %v2664 = vunpack.c.0.s8 %v2663
    %v2665 = vlaneseq
    %v2666 = vshrl.u32 %v2665, 7
    %v2667 = vsub.s32 %v2664, %v2666
    %v2668 = vrot.slane %v2654, %v2667
    %v2669 = vcombine.low %v2645, %v2661
    %v2670 = vcombine.high %v2645, %v2661
    %v2672 = vunpack.c.l.s4 1934713408
    %v2673 = vunpack.c.0.s8 %v2672
    %v2674 = vlaneseq
    %v2675 = vshrl.u32 %v2674, 7
    %v2676 = vsub.s32 %v2673, %v2675
    %v2677 = vrot.slane %v2669, %v2676
    %v2679 = vunpack.c.l.s4 1934713408
    %v2680 = vunpack.c.0.s8 %v2679
    %v2681 = vlaneseq
    %v2682 = vshrl.u32 %v2681, 7
    %v2683 = vsub.s32 %v2680, %v2682
    %v2684 = vrot.slane %v2670, %v2683
    %v2685 = vcombine.low %v2652, %v2668
    %v2686 = vcombine.high %v2652, %v2668
    %v2688 = vunpack.c.l.s4 1934713408
    %v2689 = vunpack.c.0.s8 %v2688
    %v2690 = vlaneseq
    %v2691 = vshrl.u32 %v2690, 7
    %v2692 = vsub.s32 %v2689, %v2691
    %v2693 = vrot.slane %v2685, %v2692
    %v2695 = vunpack.c.l.s4 1934713408
    %v2696 = vunpack.c.0.s8 %v2695
    %v2697 = vlaneseq
    %v2698 = vshrl.u32 %v2697, 7
    %v2699 = vsub.s32 %v2696, %v2698
    %v2700 = vrot.slane %v2686, %v2699
    %v2701 = vcombine.high %v2677, 0.0
    %v2702 = vcombine.high %v2684, 0.0
    %v2703 = vcombine.high %v2693, 0.0
    %v2704 = vcombine.high %v2700, 0.0
    %v2705 = vcombine.low %v2609, %v2616
    %v2707 = vunpack.c.l.s4 1983009808
    %v2708 = vunpack.c.0.s8 %v2707
    %v2709 = vlaneseq
    %v2710 = vshrl.u32 %v2709, 7
    %v2711 = vsub.s32 %v2708, %v2710
    %v2712 = vrot.slane %v2705, %v2711
    %v2713 = vcombine.low %v2633, %v2634
    %v2715 = vunpack.c.l.s4 1983009808
    %v2716 = vunpack.c.0.s8 %v2715
    %v2717 = vlaneseq
    %v2718 = vshrl.u32 %v2717, 7
    %v2719 = vsub.s32 %v2716, %v2718
    %v2720 = vrot.slane %v2713, %v2719
    %v2721 = vcombine.low %v2625, %v2632
    %v2723 = vunpack.c.l.s4 1983009808
    %v2724 = vunpack.c.0.s8 %v2723
    %v2725 = vlaneseq
    %v2726 = vshrl.u32 %v2725, 7
    %v2727 = vsub.s32 %v2724, %v2726
    %v2728 = vrot.slane %v2721, %v2727
    %v2729 = vcombine.low %v2635, %v2636
    %v2731 = vunpack.c.l.s4 1983009808
    %v2732 = vunpack.c.0.s8 %v2731
    %v2733 = vlaneseq
    %v2734 = vshrl.u32 %v2733, 7
    %v2735 = vsub.s32 %v2732, %v2734
    %v2736 = vrot.slane %v2729, %v2735
    %v2737 = vcombine.low %v2712, %v2720
    %v2738 = vcombine.high %v2712, %v2720
    %v2740 = vunpack.c.l.s4 1934713408
    %v2741 = vunpack.c.0.s8 %v2740
    %v2742 = vlaneseq
    %v2743 = vshrl.u32 %v2742, 7
    %v2744 = vsub.s32 %v2741, %v2743
    %v2745 = vrot.slane %v2737, %v2744
    %v2747 = vunpack.c.l.s4 1934713408
    %v2748 = vunpack.c.0.s8 %v2747
    %v2749 = vlaneseq
    %v2750 = vshrl.u32 %v2749, 7
    %v2751 = vsub.s32 %v2748, %v2750
    %v2752 = vrot.slane %v2738, %v2751
    %v2753 = vcombine.low %v2728, %v2736
    %v2754 = vcombine.high %v2728, %v2736
    %v2756 = vunpack.c.l.s4 1934713408
    %v2757 = vunpack.c.0.s8 %v2756
    %v2758 = vlaneseq
    %v2759 = vshrl.u32 %v2758, 7
    %v2760 = vsub.s32 %v2757, %v2759
    %v2761 = vrot.slane %v2753, %v2760
    %v2763 = vunpack.c.l.s4 1934713408
    %v2764 = vunpack.c.0.s8 %v2763
    %v2765 = vlaneseq
    %v2766 = vshrl.u32 %v2765, 7
    %v2767 = vsub.s32 %v2764, %v2766
    %v2768 = vrot.slane %v2754, %v2767
    %v2769 = vcombine.low %v2745, %v2761
    %v2770 = vcombine.high %v2745, %v2761
    %v2771 = vcombine.low %v2752, %v2768
    %v2772 = vcombine.high %v2752, %v2768
    %v2773 = vcombine.low %v2677, %v2684
    %v2775 = vunpack.c.l.s4 1983009808
    %v2776 = vunpack.c.0.s8 %v2775
    %v2777 = vlaneseq
    %v2778 = vshrl.u32 %v2777, 7
    %v2779 = vsub.s32 %v2776, %v2778
    %v2780 = vrot.slane %v2773, %v2779
    %v2781 = vcombine.low %v2701, %v2702
    %v2783 = vunpack.c.l.s4 1983009808
    %v2784 = vunpack.c.0.s8 %v2783
    %v2785 = vlaneseq
    %v2786 = vshrl.u32 %v2785, 7
    %v2787 = vsub.s32 %v2784, %v2786
    %v2788 = vrot.slane %v2781, %v2787
    %v2789 = vcombine.low %v2693, %v2700
    %v2791 = vunpack.c.l.s4 1983009808
    %v2792 = vunpack.c.0.s8 %v2791
    %v2793 = vlaneseq
    %v2794 = vshrl.u32 %v2793, 7
    %v2795 = vsub.s32 %v2792, %v2794
    %v2796 = vrot.slane %v2789, %v2795
    %v2797 = vcombine.low %v2703, %v2704
    %v2799 = vunpack.c.l.s4 1983009808
    %v2800 = vunpack.c.0.s8 %v2799
    %v2801 = vlaneseq
    %v2802 = vshrl.u32 %v2801, 7
    %v2803 = vsub.s32 %v2800, %v2802
    %v2804 = vrot.slane %v2797, %v2803
    %v2805 = vcombine.low %v2780, %v2788
    %v2806 = vcombine.high %v2780, %v2788
    %v2808 = vunpack.c.l.s4 1934713408
    %v2809 = vunpack.c.0.s8 %v2808
    %v2810 = vlaneseq
    %v2811 = vshrl.u32 %v2810, 7
    %v2812 = vsub.s32 %v2809, %v2811
    %v2813 = vrot.slane %v2805, %v2812
    %v2815 = vunpack.c.l.s4 1934713408
    %v2816 = vunpack.c.0.s8 %v2815
    %v2817 = vlaneseq
    %v2818 = vshrl.u32 %v2817, 7
    %v2819 = vsub.s32 %v2816, %v2818
    %v2820 = vrot.slane %v2806, %v2819
    %v2821 = vcombine.low %v2796, %v2804
    %v2822 = vcombine.high %v2796, %v2804
    %v2824 = vunpack.c.l.s4 1934713408
    %v2825 = vunpack.c.0.s8 %v2824
    %v2826 = vlaneseq
    %v2827 = vshrl.u32 %v2826, 7
    %v2828 = vsub.s32 %v2825, %v2827
    %v2829 = vrot.slane %v2821, %v2828
    %v2831 = vunpack.c.l.s4 1934713408
    %v2832 = vunpack.c.0.s8 %v2831
    %v2833 = vlaneseq
    %v2834 = vshrl.u32 %v2833, 7
    %v2835 = vsub.s32 %v2832, %v2834
    %v2836 = vrot.slane %v2822, %v2835
    %v2837 = vcombine.low %v2813, %v2829
    %v2838 = vcombine.high %v2813, %v2829
    %v2839 = vcombine.low %v2820, %v2836
    %v2840 = vcombine.high %v2820, %v2836
    %2843 = vrot.lane.b32.xlu0 %v2770, 32
    %v2844 = vpop.permute.xlu0 %2843
    %2845 = vrot.lane.b32.xlu0 %v2838, 32
    %v2846 = vpop.permute.xlu0 %2845
    %2851 = vrot.lane.b32.xlu0 %v2771, 64
    %v2852 = vpop.permute.xlu0 %2851
    %2853 = vrot.lane.b32.xlu0 %v2839, 64
    %v2854 = vpop.permute.xlu0 %2853
    %2859 = vrot.lane.b32.xlu0 %v2772, 96
    %v2860 = vpop.permute.xlu0 %2859
    %2861 = vrot.lane.b32.xlu0 %v2840, 96
    %v2862 = vpop.permute.xlu0 %2861
    %v2865 = vsel %vm1287, %v2769, %v2844
    %v2866 = vsel %vm1287, %v2837, %v2846
    %vm2867 = vcmask 523264
    %v2868 = vsel %vm2867, %v2865, %v2852
    %v2869 = vsel %vm2867, %v2866, %v2854
    %vm2870 = vcmask 785408
    %v2871 = vsel %vm2870, %v2868, %v2860
    %v2872 = vsel %vm2870, %v2869, %v2862
    %v2873 = vpack.c.bf16 %v2872, %v2871
    %v2874 = vld [vmem:[#allocation5] sm:$0xf]
    %v2875 = vld [vmem:[#allocation5 + $0x4] sm:$0xf]
    %v2876 = vld [vmem:[#allocation5 + $0x8] sm:$0xf]
    %v2877 = vld [vmem:[#allocation5 + $0xc] sm:$0xf]
    %v2878 = vld [vmem:[#allocation5 + $0x10] sm:$0xf]
    %v2879 = vld [vmem:[#allocation5 + $0x14] sm:$0xf]
    %v2880 = vld [vmem:[#allocation5 + $0x18] sm:$0xf]
    %v2881 = vld [vmem:[#allocation5 + $0x1c] sm:$0xf]
    %v2882 = vld [vmem:[#allocation5 + $0x20] sm:$0xf]
    %v2883 = vld [vmem:[#allocation5 + $0x24] sm:$0xf]
    %v2884 = vld [vmem:[#allocation5 + $0x28] sm:$0xf]
    %v2885 = vld [vmem:[#allocation5 + $0x2c] sm:$0xf]
    %v2886 = vld [vmem:[#allocation5 + $0x30] sm:$0xf]
    %v2887 = vld [vmem:[#allocation5 + $0x34] sm:$0xf]
    %v2888 = vld [vmem:[#allocation5 + $0x38] sm:$0xf]
    %v2889 = vld [vmem:[#allocation5 + $0x3c] sm:$0xf]
    %v2890 = vld [vmem:[%s4] sm:$0x1]
    %v2892 = vlaneseq
    %v2893 = vshrl.u32 %v2892, 7
    %v2894 = vsub.s32 0, %v2893
    %v2895 = vrot.slane %v2890, %v2894
    %v2913 = vunpack.c.l.b16 %v2874
    %v2914 = vunpack.c.l.b16 %v2875
    %v2915 = vunpack.c.l.b16 %v2876
    %v2916 = vunpack.c.l.b16 %v2877
    %v2917 = vunpack.c.l.b16 %v2878
    %v2918 = vunpack.c.l.b16 %v2879
    %v2919 = vunpack.c.l.b16 %v2880
    %v2920 = vunpack.c.l.b16 %v2881
    %v2921 = vunpack.c.l.b16 %v2882
    %v2922 = vunpack.c.l.b16 %v2883
    %v2923 = vunpack.c.l.b16 %v2884
    %v2924 = vunpack.c.l.b16 %v2885
    %v2925 = vunpack.c.l.b16 %v2886
    %v2926 = vunpack.c.l.b16 %v2887
    %v2927 = vunpack.c.l.b16 %v2888
    %v2928 = vunpack.c.l.b16 %v2889
    %v2929 = vpack.c.b16 %v2914, %v2913
    %v2930 = vpack.c.b16 %v2916, %v2915
    %v2931 = vpack.c.b16 %v2918, %v2917
    %v2932 = vpack.c.b16 %v2920, %v2919
    %v2933 = vpack.c.b16 %v2922, %v2921
    %v2934 = vpack.c.b16 %v2924, %v2923
    %v2935 = vpack.c.b16 %v2926, %v2925
    %v2936 = vpack.c.b16 %v2928, %v2927
    %2945 = vmatprep.subr.bf16.mxu0 0
    %2946 = vmatpush1.bf16.msra.mxu0 %v2929
    %2947 = vmatprep.subr.bf16.mxu0 0
    %2948 = vmatpush1.bf16.msra.mxu0 %v2930
    %2949 = vmatprep.subr.bf16.mxu0 0
    %2950 = vmatpush1.bf16.msra.mxu0 %v2931
    %2951 = vmatprep.subr.bf16.mxu0 0
    %2952 = vmatpush1.bf16.msra.mxu0 %v2932
    %2953 = vmatprep.subr.bf16.mxu0 0
    %2954 = vmatpush1.bf16.msra.mxu0 %v2933
    %2955 = vmatprep.subr.bf16.mxu0 0
    %2956 = vmatpush1.bf16.msra.mxu0 %v2934
    %2957 = vmatprep.subr.bf16.mxu0 0
    %2958 = vmatpush1.bf16.msra.mxu0 %v2935
    %2959 = vmatprep.subr.bf16.mxu0 0
    %2960 = vmatpush1.bf16.msra.mxu0 %v2936
    %2961 = vmatprep.subr.bf16.mxu0 0
    %2962 = vmatpush1.bf16.msra.mxu0 0
    %2963 = vmatprep.subr.bf16.mxu0 0
    %2964 = vmatpush1.bf16.msra.mxu0 0
    %2965 = vmatprep.subr.bf16.mxu0 0
    %2966 = vmatpush1.bf16.msra.mxu0 0
    %2967 = vmatprep.subr.bf16.mxu0 0
    %2968 = vmatpush1.bf16.msra.mxu0 0
    %2969 = vmatprep.subr.bf16.mxu0 0
    %2970 = vmatpush1.bf16.msra.mxu0 0
    %2971 = vmatprep.subr.bf16.mxu0 0
    %2972 = vmatpush1.bf16.msra.mxu0 0
    %2973 = vmatprep.subr.bf16.mxu0 0
    %2974 = vmatpush1.bf16.msra.mxu0 0
    %2975 = vmatprep.subr.bf16.mxu0 0
    %2976 = vmatpush1.bf16.msra.mxu0 0
    %2977 = vmatprep.mubr.bf16.mxu0 0
    %2978 = vmatmul.mubr.bf16.gmra.mrb[0].mxu0 %v2873
    %v2979 = vpop.f32.mrb[0].mxu0
    %v2980 = vadd.f32 %v2895, %v2979
    %v2981 = vpop.f32.mrb[0].mxu0
    %v2982 = vpop.f32.mrb[0].mxu0
    %v2983 = vadd.f32 %v2895, %v2982
    %v2984 = vpop.f32.mrb[0].mxu0
    %2985 = vdwg.mxu0
    %v2986 = vadd.f32 %v147, %v2980
    %v2987 = vadd.f32 %v148, %v2983
    %v2988 = vld [vmem:[%s5] sm:$0x1]
    %v2989 = vld [vmem:[%s6] sm:$0x1]
    %2990 = vadd.xlane.f32.xlu0 %v2986
    %v2991 = vpop.xlane.xlu0 %2990
    %2992 = vadd.xlane.f32.xlu0 %v2987
    %v2993 = vpop.xlane.xlu0 %2992
    %v2994 = vrcp.pop 128.0
    %v2995 = vmul.f32 %v2991, %v2994
    %v2996 = vmul.f32 %v2993, %v2994
    %v2997 = vsub.f32 %v2986, %v2995
    %v2998 = vsub.f32 %v2987, %v2996
    %v2999 = vmul.f32 %v2997, %v2997
    %v3000 = vmul.f32 %v2998, %v2998
    %3001 = vadd.xlane.f32.xlu0 %v2999
    %v3002 = vpop.xlane.xlu0 %3001
    %3003 = vadd.xlane.f32.xlu0 %v3000
    %v3004 = vpop.xlane.xlu0 %3003
    %v3005 = vmul.f32 %v3002, %v2994
    %v3006 = vmul.f32 %v3004, %v2994
    %v3007 = vadd.f32 %v3005, 1e-05
    %v3008 = vadd.f32 %v3006, 1e-05
    %v3009 = vrsqrt.pop %v3007
    %v3010 = vrsqrt.pop %v3008
    %v3011 = vmul.f32 %v2997, %v3009
    %v3012 = vmul.f32 %v2998, %v3010
    %v3014 = vlaneseq
    %v3015 = vshrl.u32 %v3014, 7
    %v3016 = vsub.s32 0, %v3015
    %v3017 = vrot.slane %v2988, %v3016
    %v3019 = vmul.f32 %v3011, %v3017
    %v3020 = vmul.f32 %v3012, %v3017
    %v3022 = vlaneseq
    %v3023 = vshrl.u32 %v3022, 7
    %v3024 = vsub.s32 0, %v3023
    %v3025 = vrot.slane %v2989, %v3024
    %v3027 = vadd.f32 %v3019, %v3025
    %v3028 = vadd.f32 %v3020, %v3025
    %v3029 = vpack.c.bf16 %v3028, %v3027
    %v3030 = vld [vmem:[#allocation7] sm:$0xff]
    %v3031 = vld [vmem:[#allocation7 + $0x8] sm:$0xff]
    %v3032 = vld [vmem:[#allocation7 + $0x10] sm:$0xff]
    %v3033 = vld [vmem:[#allocation7 + $0x18] sm:$0xff]
    %v3034 = vld [vmem:[#allocation7 + $0x20] sm:$0xff]
    %v3035 = vld [vmem:[#allocation7 + $0x28] sm:$0xff]
    %v3036 = vld [vmem:[#allocation7 + $0x30] sm:$0xff]
    %v3037 = vld [vmem:[#allocation7 + $0x38] sm:$0xff]
    %v3038 = vld [vmem:[#allocation7 + $0x40] sm:$0xff]
    %v3039 = vld [vmem:[#allocation7 + $0x48] sm:$0xff]
    %v3040 = vld [vmem:[#allocation7 + $0x50] sm:$0xff]
    %v3041 = vld [vmem:[#allocation7 + $0x58] sm:$0xff]
    %v3042 = vld [vmem:[#allocation7 + $0x60] sm:$0xff]
    %v3043 = vld [vmem:[#allocation7 + $0x68] sm:$0xff]
    %v3044 = vld [vmem:[#allocation7 + $0x70] sm:$0xff]
    %v3045 = vld [vmem:[#allocation7 + $0x78] sm:$0xff]
    %v3046 = vld [vmem:[#allocation7 + $0x80] sm:$0xff]
    %v3047 = vld [vmem:[#allocation7 + $0x88] sm:$0xff]
    %v3048 = vld [vmem:[#allocation7 + $0x90] sm:$0xff]
    %v3049 = vld [vmem:[#allocation7 + $0x98] sm:$0xff]
    %v3050 = vld [vmem:[#allocation7 + $0xa0] sm:$0xff]
    %v3051 = vld [vmem:[#allocation7 + $0xa8] sm:$0xff]
    %v3052 = vld [vmem:[#allocation7 + $0xb0] sm:$0xff]
    %v3053 = vld [vmem:[#allocation7 + $0xb8] sm:$0xff]
    %v3054 = vld [vmem:[#allocation7 + $0xc0] sm:$0xff]
    %v3055 = vld [vmem:[#allocation7 + $0xc8] sm:$0xff]
    %v3056 = vld [vmem:[#allocation7 + $0xd0] sm:$0xff]
    %v3057 = vld [vmem:[#allocation7 + $0xd8] sm:$0xff]
    %v3058 = vld [vmem:[#allocation7 + $0xe0] sm:$0xff]
    %v3059 = vld [vmem:[#allocation7 + $0xe8] sm:$0xff]
    %v3060 = vld [vmem:[#allocation7 + $0xf0] sm:$0xff]
    %v3061 = vld [vmem:[#allocation7 + $0xf8] sm:$0xff]
    %v3062 = vld [vmem:[%s8] sm:$0xf]
    %v3064 = vlaneseq
    %v3065 = vshrl.u32 %v3064, 7
    %v3066 = vsub.s32 0, %v3065
    %v3067 = vrot.slane %v3062, %v3066
    %v3068 = vlaneseq
    %v3069 = vshrl.u32 %v3068, 7
    %v3070 = vsub.s32 1, %v3069
    %v3071 = vrot.slane %v3062, %v3070
    %v3072 = vlaneseq
    %v3073 = vshrl.u32 %v3072, 7
    %v3074 = vsub.s32 2, %v3073
    %v3075 = vrot.slane %v3062, %v3074
    %v3076 = vlaneseq
    %v3077 = vshrl.u32 %v3076, 7
    %v3078 = vsub.s32 3, %v3077
    %v3079 = vrot.slane %v3062, %v3078
    %v3116 = vunpack.c.l.b16 %v3030
    %v3117 = vunpack.c.h.b16 %v3030
    %v3118 = vunpack.c.l.b16 %v3031
    %v3119 = vunpack.c.h.b16 %v3031
    %v3120 = vunpack.c.l.b16 %v3032
    %v3121 = vunpack.c.h.b16 %v3032
    %v3122 = vunpack.c.l.b16 %v3033
    %v3123 = vunpack.c.h.b16 %v3033
    %v3124 = vunpack.c.l.b16 %v3034
    %v3125 = vunpack.c.h.b16 %v3034
    %v3126 = vunpack.c.l.b16 %v3035
    %v3127 = vunpack.c.h.b16 %v3035
    %v3128 = vunpack.c.l.b16 %v3036
    %v3129 = vunpack.c.h.b16 %v3036
    %v3130 = vunpack.c.l.b16 %v3037
    %v3131 = vunpack.c.h.b16 %v3037
    %v3132 = vunpack.c.l.b16 %v3038
    %v3133 = vunpack.c.h.b16 %v3038
    %v3134 = vunpack.c.l.b16 %v3039
    %v3135 = vunpack.c.h.b16 %v3039
    %v3136 = vunpack.c.l.b16 %v3040
    %v3137 = vunpack.c.h.b16 %v3040
    %v3138 = vunpack.c.l.b16 %v3041
    %v3139 = vunpack.c.h.b16 %v3041
    %v3140 = vunpack.c.l.b16 %v3042
    %v3141 = vunpack.c.h.b16 %v3042
    %v3142 = vunpack.c.l.b16 %v3043
    %v3143 = vunpack.c.h.b16 %v3043
    %v3144 = vunpack.c.l.b16 %v3044
    %v3145 = vunpack.c.h.b16 %v3044
    %v3146 = vunpack.c.l.b16 %v3045
    %v3147 = vunpack.c.h.b16 %v3045
    %v3148 = vunpack.c.l.b16 %v3046
    %v3149 = vunpack.c.h.b16 %v3046
    %v3150 = vunpack.c.l.b16 %v3047
    %v3151 = vunpack.c.h.b16 %v3047
    %v3152 = vunpack.c.l.b16 %v3048
    %v3153 = vunpack.c.h.b16 %v3048
    %v3154 = vunpack.c.l.b16 %v3049
    %v3155 = vunpack.c.h.b16 %v3049
    %v3156 = vunpack.c.l.b16 %v3050
    %v3157 = vunpack.c.h.b16 %v3050
    %v3158 = vunpack.c.l.b16 %v3051
    %v3159 = vunpack.c.h.b16 %v3051
    %v3160 = vunpack.c.l.b16 %v3052
    %v3161 = vunpack.c.h.b16 %v3052
    %v3162 = vunpack.c.l.b16 %v3053
    %v3163 = vunpack.c.h.b16 %v3053
    %v3164 = vunpack.c.l.b16 %v3054
    %v3165 = vunpack.c.h.b16 %v3054
    %v3166 = vunpack.c.l.b16 %v3055
    %v3167 = vunpack.c.h.b16 %v3055
    %v3168 = vunpack.c.l.b16 %v3056
    %v3169 = vunpack.c.h.b16 %v3056
    %v3170 = vunpack.c.l.b16 %v3057
    %v3171 = vunpack.c.h.b16 %v3057
    %v3172 = vunpack.c.l.b16 %v3058
    %v3173 = vunpack.c.h.b16 %v3058
    %v3174 = vunpack.c.l.b16 %v3059
    %v3175 = vunpack.c.h.b16 %v3059
    %v3176 = vunpack.c.l.b16 %v3060
    %v3177 = vunpack.c.h.b16 %v3060
    %v3178 = vunpack.c.l.b16 %v3061
    %v3179 = vunpack.c.h.b16 %v3061
    %v3180 = vpack.c.b16 %v3120, %v3116
    %v3181 = vpack.c.b16 %v3121, %v3117
    %v3182 = vpack.c.b16 %v3122, %v3118
    %v3183 = vpack.c.b16 %v3123, %v3119
    %v3184 = vpack.c.b16 %v3128, %v3124
    %v3185 = vpack.c.b16 %v3129, %v3125
    %v3186 = vpack.c.b16 %v3130, %v3126
    %v3187 = vpack.c.b16 %v3131, %v3127
    %v3188 = vpack.c.b16 %v3136, %v3132
    %v3189 = vpack.c.b16 %v3137, %v3133
    %v3190 = vpack.c.b16 %v3138, %v3134
    %v3191 = vpack.c.b16 %v3139, %v3135
    %v3192 = vpack.c.b16 %v3144, %v3140
    %v3193 = vpack.c.b16 %v3145, %v3141
    %v3194 = vpack.c.b16 %v3146, %v3142
    %v3195 = vpack.c.b16 %v3147, %v3143
    %v3196 = vpack.c.b16 %v3152, %v3148
    %v3197 = vpack.c.b16 %v3153, %v3149
    %v3198 = vpack.c.b16 %v3154, %v3150
    %v3199 = vpack.c.b16 %v3155, %v3151
    %v3200 = vpack.c.b16 %v3160, %v3156
    %v3201 = vpack.c.b16 %v3161, %v3157
    %v3202 = vpack.c.b16 %v3162, %v3158
    %v3203 = vpack.c.b16 %v3163, %v3159
    %v3204 = vpack.c.b16 %v3168, %v3164
    %v3205 = vpack.c.b16 %v3169, %v3165
    %v3206 = vpack.c.b16 %v3170, %v3166
    %v3207 = vpack.c.b16 %v3171, %v3167
    %v3208 = vpack.c.b16 %v3176, %v3172
    %v3209 = vpack.c.b16 %v3177, %v3173
    %v3210 = vpack.c.b16 %v3178, %v3174
    %v3211 = vpack.c.b16 %v3179, %v3175
    %3244 = vmatprep.subr.bf16.mxu0 %v3181
    %3245 = vmatpush1.bf16.msra.mxu0 %v3180
    %3246 = vmatprep.subr.bf16.mxu0 %v3185
    %3247 = vmatpush1.bf16.msra.mxu0 %v3184
    %3248 = vmatprep.subr.bf16.mxu0 %v3189
    %3249 = vmatpush1.bf16.msra.mxu0 %v3188
    %3250 = vmatprep.subr.bf16.mxu0 %v3193
    %3251 = vmatpush1.bf16.msra.mxu0 %v3192
    %3252 = vmatprep.subr.bf16.mxu0 %v3197
    %3253 = vmatpush1.bf16.msra.mxu0 %v3196
    %3254 = vmatprep.subr.bf16.mxu0 %v3201
    %3255 = vmatpush1.bf16.msra.mxu0 %v3200
    %3256 = vmatprep.subr.bf16.mxu0 %v3205
    %3257 = vmatpush1.bf16.msra.mxu0 %v3204
    %3258 = vmatprep.subr.bf16.mxu0 %v3209
    %3259 = vmatpush1.bf16.msra.mxu0 %v3208
    %3260 = vmatprep.subr.bf16.mxu0 0
    %3261 = vmatpush1.bf16.msra.mxu0 0
    %3262 = vmatprep.subr.bf16.mxu0 0
    %3263 = vmatpush1.bf16.msra.mxu0 0
    %3264 = vmatprep.subr.bf16.mxu0 0
    %3265 = vmatpush1.bf16.msra.mxu0 0
    %3266 = vmatprep.subr.bf16.mxu0 0
    %3267 = vmatpush1.bf16.msra.mxu0 0
    %3268 = vmatprep.subr.bf16.mxu0 0
    %3269 = vmatpush1.bf16.msra.mxu0 0
    %3270 = vmatprep.subr.bf16.mxu0 0
    %3271 = vmatpush1.bf16.msra.mxu0 0
    %3272 = vmatprep.subr.bf16.mxu0 0
    %3273 = vmatpush1.bf16.msra.mxu0 0
    %3274 = vmatprep.subr.bf16.mxu0 0
    %3275 = vmatpush1.bf16.msra.mxu0 0
    %3276 = vmatprep.mubr.bf16.mxu0 0
    %3277 = vmatmul.mubr.bf16.gmra.mrb[0].mxu0 %v3029
    %v3278 = vpop.f32.mrb[0].mxu0
    %v3279 = vadd.f32 %v3067, %v3278
    %v3280 = vpop.f32.mrb[0].mxu0
    %v3281 = vadd.f32 %v3071, %v3280
    %v3282 = vpop.f32.mrb[0].mxu0
    %v3283 = vadd.f32 %v3067, %v3282
    %v3284 = vpop.f32.mrb[0].mxu0
    %v3285 = vadd.f32 %v3071, %v3284
    %3286 = vdwg.mxu0
    %3287 = vmatprep.subr.bf16.mxu0 %v3183
    %3288 = vmatpush1.bf16.msra.mxu0 %v3182
    %3289 = vmatprep.subr.bf16.mxu0 %v3187
    %3290 = vmatpush1.bf16.msra.mxu0 %v3186
    %3291 = vmatprep.subr.bf16.mxu0 %v3191
    %3292 = vmatpush1.bf16.msra.mxu0 %v3190
    %3293 = vmatprep.subr.bf16.mxu0 %v3195
    %3294 = vmatpush1.bf16.msra.mxu0 %v3194
    %3295 = vmatprep.subr.bf16.mxu0 %v3199
    %3296 = vmatpush1.bf16.msra.mxu0 %v3198
    %3297 = vmatprep.subr.bf16.mxu0 %v3203
    %3298 = vmatpush1.bf16.msra.mxu0 %v3202
    %3299 = vmatprep.subr.bf16.mxu0 %v3207
    %3300 = vmatpush1.bf16.msra.mxu0 %v3206
    %3301 = vmatprep.subr.bf16.mxu0 %v3211
    %3302 = vmatpush1.bf16.msra.mxu0 %v3210
    %3303 = vmatprep.subr.bf16.mxu0 0
    %3304 = vmatpush1.bf16.msra.mxu0 0
    %3305 = vmatprep.subr.bf16.mxu0 0
    %3306 = vmatpush1.bf16.msra.mxu0 0
    %3307 = vmatprep.subr.bf16.mxu0 0
    %3308 = vmatpush1.bf16.msra.mxu0 0
    %3309 = vmatprep.subr.bf16.mxu0 0
    %3310 = vmatpush1.bf16.msra.mxu0 0
    %3311 = vmatprep.subr.bf16.mxu0 0
    %3312 = vmatpush1.bf16.msra.mxu0 0
    %3313 = vmatprep.subr.bf16.mxu0 0
    %3314 = vmatpush1.bf16.msra.mxu0 0
    %3315 = vmatprep.subr.bf16.mxu0 0
    %3316 = vmatpush1.bf16.msra.mxu0 0
    %3317 = vmatprep.subr.bf16.mxu0 0
    %3318 = vmatpush1.bf16.msra.mxu0 0
    %3319 = vmatprep.mubr.bf16.mxu0 0
    %3320 = vmatmul.mubr.bf16.gmra.mrb[0].mxu0 %v3029
    %v3321 = vpop.f32.mrb[0].mxu0
    %v3322 = vadd.f32 %v3075, %v3321
    %v3323 = vpop.f32.mrb[0].mxu0
    %v3324 = vadd.f32 %v3079, %v3323
    %v3325 = vpop.f32.mrb[0].mxu0
    %v3326 = vadd.f32 %v3075, %v3325
    %v3327 = vpop.f32.mrb[0].mxu0
    %v3328 = vadd.f32 %v3079, %v3327
    %3329 = vdwg.mxu0
    %v3330 = vmul.f32 %v3279, 0.5
    %v3331 = vmul.f32 %v3281, 0.5
    %v3332 = vmul.f32 %v3322, 0.5
    %v3333 = vmul.f32 %v3324, 0.5
    %v3334 = vmul.f32 %v3283, 0.5
    %v3335 = vmul.f32 %v3285, 0.5
    %v3336 = vmul.f32 %v3326, 0.5
    %v3337 = vmul.f32 %v3328, 0.5
    %v3338 = vmul.f32 %v3279, 0.70710677
    %v3339 = vmul.f32 %v3281, 0.70710677
    %v3340 = vmul.f32 %v3322, 0.70710677
    %v3341 = vmul.f32 %v3324, 0.70710677
    %v3342 = vmul.f32 %v3283, 0.70710677
    %v3343 = vmul.f32 %v3285, 0.70710677
    %v3344 = vmul.f32 %v3326, 0.70710677
    %v3345 = vmul.f32 %v3328, 0.70710677
    %v3346 = verf.f32.pop %v3338
    %v3347 = verf.f32.pop %v3339
    %v3348 = verf.f32.pop %v3340
    %v3349 = verf.f32.pop %v3341
    %v3350 = verf.f32.pop %v3342
    %v3351 = verf.f32.pop %v3343
    %v3352 = verf.f32.pop %v3344
    %v3353 = verf.f32.pop %v3345
    %v3354 = vadd.f32 %v3346, 1.0
    %v3355 = vadd.f32 %v3347, 1.0
    %v3356 = vadd.f32 %v3348, 1.0
    %v3357 = vadd.f32 %v3349, 1.0
    %v3358 = vadd.f32 %v3350, 1.0
    %v3359 = vadd.f32 %v3351, 1.0
    %v3360 = vadd.f32 %v3352, 1.0
    %v3361 = vadd.f32 %v3353, 1.0
    %v3362 = vmul.f32 %v3330, %v3354
    %v3363 = vmul.f32 %v3331, %v3355
    %v3364 = vmul.f32 %v3332, %v3356
    %v3365 = vmul.f32 %v3333, %v3357
    %v3366 = vmul.f32 %v3334, %v3358
    %v3367 = vmul.f32 %v3335, %v3359
    %v3368 = vmul.f32 %v3336, %v3360
    %v3369 = vmul.f32 %v3337, %v3361
    %v3370 = vpack.c.bf16 %v3366, %v3362
    %v3371 = vpack.c.bf16 %v3367, %v3363
    %v3372 = vpack.c.bf16 %v3368, %v3364
    %v3373 = vpack.c.bf16 %v3369, %v3365
    %v3374 = vld [vmem:[#allocation8] sm:$0xf]
    %v3375 = vld [vmem:[#allocation8 + $0x4] sm:$0xf]
    %v3376 = vld [vmem:[#allocation8 + $0x8] sm:$0xf]
    %v3377 = vld [vmem:[#allocation8 + $0xc] sm:$0xf]
    %v3378 = vld [vmem:[#allocation8 + $0x10] sm:$0xf]
    %v3379 = vld [vmem:[#allocation8 + $0x14] sm:$0xf]
    %v3380 = vld [vmem:[#allocation8 + $0x18] sm:$0xf]
    %v3381 = vld [vmem:[#allocation8 + $0x1c] sm:$0xf]
    %v3382 = vld [vmem:[#allocation8 + $0x20] sm:$0xf]
    %v3383 = vld [vmem:[#allocation8 + $0x24] sm:$0xf]
    %v3384 = vld [vmem:[#allocation8 + $0x28] sm:$0xf]
    %v3385 = vld [vmem:[#allocation8 + $0x2c] sm:$0xf]
    %v3386 = vld [vmem:[#allocation8 + $0x30] sm:$0xf]
    %v3387 = vld [vmem:[#allocation8 + $0x34] sm:$0xf]
    %v3388 = vld [vmem:[#allocation8 + $0x38] sm:$0xf]
    %v3389 = vld [vmem:[#allocation8 + $0x3c] sm:$0xf]
    %v3390 = vld [vmem:[#allocation8 + $0x40] sm:$0xf]
    %v3391 = vld [vmem:[#allocation8 + $0x44] sm:$0xf]
    %v3392 = vld [vmem:[#allocation8 + $0x48] sm:$0xf]
    %v3393 = vld [vmem:[#allocation8 + $0x4c] sm:$0xf]
    %v3394 = vld [vmem:[#allocation8 + $0x50] sm:$0xf]
    %v3395 = vld [vmem:[#allocation8 + $0x54] sm:$0xf]
    %v3396 = vld [vmem:[#allocation8 + $0x58] sm:$0xf]
    %v3397 = vld [vmem:[#allocation8 + $0x5c] sm:$0xf]
    %v3398 = vld [vmem:[#allocation8 + $0x60] sm:$0xf]
    %v3399 = vld [vmem:[#allocation8 + $0x64] sm:$0xf]
    %v3400 = vld [vmem:[#allocation8 + $0x68] sm:$0xf]
    %v3401 = vld [vmem:[#allocation8 + $0x6c] sm:$0xf]
    %v3402 = vld [vmem:[#allocation8 + $0x70] sm:$0xf]
    %v3403 = vld [vmem:[#allocation8 + $0x74] sm:$0xf]
    %v3404 = vld [vmem:[#allocation8 + $0x78] sm:$0xf]
    %v3405 = vld [vmem:[#allocation8 + $0x7c] sm:$0xf]
    %v3406 = vld [vmem:[#allocation8 + $0x80] sm:$0xf]
    %v3407 = vld [vmem:[#allocation8 + $0x84] sm:$0xf]
    %v3408 = vld [vmem:[#allocation8 + $0x88] sm:$0xf]
    %v3409 = vld [vmem:[#allocation8 + $0x8c] sm:$0xf]
    %v3410 = vld [vmem:[#allocation8 + $0x90] sm:$0xf]
    %v3411 = vld [vmem:[#allocation8 + $0x94] sm:$0xf]
    %v3412 = vld [vmem:[#allocation8 + $0x98] sm:$0xf]
    %v3413 = vld [vmem:[#allocation8 + $0x9c] sm:$0xf]
    %v3414 = vld [vmem:[#allocation8 + $0xa0] sm:$0xf]
    %v3415 = vld [vmem:[#allocation8 + $0xa4] sm:$0xf]
    %v3416 = vld [vmem:[#allocation8 + $0xa8] sm:$0xf]
    %v3417 = vld [vmem:[#allocation8 + $0xac] sm:$0xf]
    %v3418 = vld [vmem:[#allocation8 + $0xb0] sm:$0xf]
    %v3419 = vld [vmem:[#allocation8 + $0xb4] sm:$0xf]
    %v3420 = vld [vmem:[#allocation8 + $0xb8] sm:$0xf]
    %v3421 = vld [vmem:[#allocation8 + $0xbc] sm:$0xf]
    %v3422 = vld [vmem:[#allocation8 + $0xc0] sm:$0xf]
    %v3423 = vld [vmem:[#allocation8 + $0xc4] sm:$0xf]
    %v3424 = vld [vmem:[#allocation8 + $0xc8] sm:$0xf]
    %v3425 = vld [vmem:[#allocation8 + $0xcc] sm:$0xf]
    %v3426 = vld [vmem:[#allocation8 + $0xd0] sm:$0xf]
    %v3427 = vld [vmem:[#allocation8 + $0xd4] sm:$0xf]
    %v3428 = vld [vmem:[#allocation8 + $0xd8] sm:$0xf]
    %v3429 = vld [vmem:[#allocation8 + $0xdc] sm:$0xf]
    %v3430 = vld [vmem:[#allocation8 + $0xe0] sm:$0xf]
    %v3431 = vld [vmem:[#allocation8 + $0xe4] sm:$0xf]
    %v3432 = vld [vmem:[#allocation8 + $0xe8] sm:$0xf]
    %v3433 = vld [vmem:[#allocation8 + $0xec] sm:$0xf]
    %v3434 = vld [vmem:[#allocation8 + $0xf0] sm:$0xf]
    %v3435 = vld [vmem:[#allocation8 + $0xf4] sm:$0xf]
    %v3436 = vld [vmem:[#allocation8 + $0xf8] sm:$0xf]
    %v3437 = vld [vmem:[#allocation8 + $0xfc] sm:$0xf]
    %v3438 = vld [vmem:[#allocation10] sm:$0x1]
    %v3440 = vlaneseq
    %v3441 = vshrl.u32 %v3440, 7
    %v3442 = vsub.s32 0, %v3441
    %v3443 = vrot.slane %v3438, %v3442
    %v3509 = vunpack.c.l.b16 %v3374
    %v3510 = vunpack.c.l.b16 %v3375
    %v3511 = vunpack.c.l.b16 %v3376
    %v3512 = vunpack.c.l.b16 %v3377
    %v3513 = vunpack.c.l.b16 %v3378
    %v3514 = vunpack.c.l.b16 %v3379
    %v3515 = vunpack.c.l.b16 %v3380
    %v3516 = vunpack.c.l.b16 %v3381
    %v3517 = vunpack.c.l.b16 %v3382
    %v3518 = vunpack.c.l.b16 %v3383
    %v3519 = vunpack.c.l.b16 %v3384
    %v3520 = vunpack.c.l.b16 %v3385
    %v3521 = vunpack.c.l.b16 %v3386
    %v3522 = vunpack.c.l.b16 %v3387
    %v3523 = vunpack.c.l.b16 %v3388
    %v3524 = vunpack.c.l.b16 %v3389
    %v3525 = vunpack.c.l.b16 %v3390
    %v3526 = vunpack.c.l.b16 %v3391
    %v3527 = vunpack.c.l.b16 %v3392
    %v3528 = vunpack.c.l.b16 %v3393
    %v3529 = vunpack.c.l.b16 %v3394
    %v3530 = vunpack.c.l.b16 %v3395
    %v3531 = vunpack.c.l.b16 %v3396
    %v3532 = vunpack.c.l.b16 %v3397
    %v3533 = vunpack.c.l.b16 %v3398
    %v3534 = vunpack.c.l.b16 %v3399
    %v3535 = vunpack.c.l.b16 %v3400
    %v3536 = vunpack.c.l.b16 %v3401
    %v3537 = vunpack.c.l.b16 %v3402
    %v3538 = vunpack.c.l.b16 %v3403
    %v3539 = vunpack.c.l.b16 %v3404
    %v3540 = vunpack.c.l.b16 %v3405
    %v3541 = vunpack.c.l.b16 %v3406
    %v3542 = vunpack.c.l.b16 %v3407
    %v3543 = vunpack.c.l.b16 %v3408
    %v3544 = vunpack.c.l.b16 %v3409
    %v3545 = vunpack.c.l.b16 %v3410
    %v3546 = vunpack.c.l.b16 %v3411
    %v3547 = vunpack.c.l.b16 %v3412
    %v3548 = vunpack.c.l.b16 %v3413
    %v3549 = vunpack.c.l.b16 %v3414
    %v3550 = vunpack.c.l.b16 %v3415
    %v3551 = vunpack.c.l.b16 %v3416
    %v3552 = vunpack.c.l.b16 %v3417
    %v3553 = vunpack.c.l.b16 %v3418
    %v3554 = vunpack.c.l.b16 %v3419
    %v3555 = vunpack.c.l.b16 %v3420
    %v3556 = vunpack.c.l.b16 %v3421
    %v3557 = vunpack.c.l.b16 %v3422
    %v3558 = vunpack.c.l.b16 %v3423
    %v3559 = vunpack.c.l.b16 %v3424
    %v3560 = vunpack.c.l.b16 %v3425
    %v3561 = vunpack.c.l.b16 %v3426
    %v3562 = vunpack.c.l.b16 %v3427
    %v3563 = vunpack.c.l.b16 %v3428
    %v3564 = vunpack.c.l.b16 %v3429
    %v3565 = vunpack.c.l.b16 %v3430
    %v3566 = vunpack.c.l.b16 %v3431
    %v3567 = vunpack.c.l.b16 %v3432
    %v3568 = vunpack.c.l.b16 %v3433
    %v3569 = vunpack.c.l.b16 %v3434
    %v3570 = vunpack.c.l.b16 %v3435
    %v3571 = vunpack.c.l.b16 %v3436
    %v3572 = vunpack.c.l.b16 %v3437
    %v3573 = vpack.c.b16 %v3510, %v3509
    %v3574 = vpack.c.b16 %v3512, %v3511
    %v3575 = vpack.c.b16 %v3514, %v3513
    %v3576 = vpack.c.b16 %v3516, %v3515
    %v3577 = vpack.c.b16 %v3518, %v3517
    %v3578 = vpack.c.b16 %v3520, %v3519
    %v3579 = vpack.c.b16 %v3522, %v3521
    %v3580 = vpack.c.b16 %v3524, %v3523
    %v3581 = vpack.c.b16 %v3526, %v3525
    %v3582 = vpack.c.b16 %v3528, %v3527
    %v3583 = vpack.c.b16 %v3530, %v3529
    %v3584 = vpack.c.b16 %v3532, %v3531
    %v3585 = vpack.c.b16 %v3534, %v3533
    %v3586 = vpack.c.b16 %v3536, %v3535
    %v3587 = vpack.c.b16 %v3538, %v3537
    %v3588 = vpack.c.b16 %v3540, %v3539
    %v3589 = vpack.c.b16 %v3542, %v3541
    %v3590 = vpack.c.b16 %v3544, %v3543
    %v3591 = vpack.c.b16 %v3546, %v3545
    %v3592 = vpack.c.b16 %v3548, %v3547
    %v3593 = vpack.c.b16 %v3550, %v3549
    %v3594 = vpack.c.b16 %v3552, %v3551
    %v3595 = vpack.c.b16 %v3554, %v3553
    %v3596 = vpack.c.b16 %v3556, %v3555
    %v3597 = vpack.c.b16 %v3558, %v3557
    %v3598 = vpack.c.b16 %v3560, %v3559
    %v3599 = vpack.c.b16 %v3562, %v3561
    %v3600 = vpack.c.b16 %v3564, %v3563
    %v3601 = vpack.c.b16 %v3566, %v3565
    %v3602 = vpack.c.b16 %v3568, %v3567
    %v3603 = vpack.c.b16 %v3570, %v3569
    %v3604 = vpack.c.b16 %v3572, %v3571
    %3637 = vmatprep.subr.bf16.mxu0 0
    %3638 = vmatpush1.bf16.msra.mxu0 %v3573
    %3639 = vmatprep.subr.bf16.mxu0 0
    %3640 = vmatpush1.bf16.msra.mxu0 %v3574
    %3641 = vmatprep.subr.bf16.mxu0 0
    %3642 = vmatpush1.bf16.msra.mxu0 %v3575
    %3643 = vmatprep.subr.bf16.mxu0 0
    %3644 = vmatpush1.bf16.msra.mxu0 %v3576
    %3645 = vmatprep.subr.bf16.mxu0 0
    %3646 = vmatpush1.bf16.msra.mxu0 %v3577
    %3647 = vmatprep.subr.bf16.mxu0 0
    %3648 = vmatpush1.bf16.msra.mxu0 %v3578
    %3649 = vmatprep.subr.bf16.mxu0 0
    %3650 = vmatpush1.bf16.msra.mxu0 %v3579
    %3651 = vmatprep.subr.bf16.mxu0 0
    %3652 = vmatpush1.bf16.msra.mxu0 %v3580
    %3653 = vmatprep.subr.bf16.mxu0 0
    %3654 = vmatpush1.bf16.msra.mxu0 %v3581
    %3655 = vmatprep.subr.bf16.mxu0 0
    %3656 = vmatpush1.bf16.msra.mxu0 %v3582
    %3657 = vmatprep.subr.bf16.mxu0 0
    %3658 = vmatpush1.bf16.msra.mxu0 %v3583
    %3659 = vmatprep.subr.bf16.mxu0 0
    %3660 = vmatpush1.bf16.msra.mxu0 %v3584
    %3661 = vmatprep.subr.bf16.mxu0 0
    %3662 = vmatpush1.bf16.msra.mxu0 %v3585
    %3663 = vmatprep.subr.bf16.mxu0 0
    %3664 = vmatpush1.bf16.msra.mxu0 %v3586
    %3665 = vmatprep.subr.bf16.mxu0 0
    %3666 = vmatpush1.bf16.msra.mxu0 %v3587
    %3667 = vmatprep.subr.bf16.mxu0 0
    %3668 = vmatpush1.bf16.msra.mxu0 %v3588
    %3669 = vmatprep.mubr.bf16.mxu0 %v3371
    %3670 = vmatmul.mubr.bf16.gmra.mrb[0].mxu0 %v3370
    %v3671 = vpop.f32.mrb[0].mxu0
    %v3672 = vadd.f32 %v3443, %v3671
    %v3673 = vpop.f32.mrb[0].mxu0
    %v3674 = vpop.f32.mrb[0].mxu0
    %v3675 = vadd.f32 %v3443, %v3674
    %v3676 = vpop.f32.mrb[0].mxu0
    %3677 = vdwg.mxu0
    %3678 = vmatprep.subr.bf16.mxu0 0
    %3679 = vmatpush1.bf16.msra.mxu0 %v3589
    %3680 = vmatprep.subr.bf16.mxu0 0
    %3681 = vmatpush1.bf16.msra.mxu0 %v3590
    %3682 = vmatprep.subr.bf16.mxu0 0
    %3683 = vmatpush1.bf16.msra.mxu0 %v3591
    %3684 = vmatprep.subr.bf16.mxu0 0
    %3685 = vmatpush1.bf16.msra.mxu0 %v3592
    %3686 = vmatprep.subr.bf16.mxu0 0
    %3687 = vmatpush1.bf16.msra.mxu0 %v3593
    %3688 = vmatprep.subr.bf16.mxu0 0
    %3689 = vmatpush1.bf16.msra.mxu0 %v3594
    %3690 = vmatprep.subr.bf16.mxu0 0
    %3691 = vmatpush1.bf16.msra.mxu0 %v3595
    %3692 = vmatprep.subr.bf16.mxu0 0
    %3693 = vmatpush1.bf16.msra.mxu0 %v3596
    %3694 = vmatprep.subr.bf16.mxu0 0
    %3695 = vmatpush1.bf16.msra.mxu0 %v3597
    %3696 = vmatprep.subr.bf16.mxu0 0
    %3697 = vmatpush1.bf16.msra.mxu0 %v3598
    %3698 = vmatprep.subr.bf16.mxu0 0
    %3699 = vmatpush1.bf16.msra.mxu0 %v3599
    %3700 = vmatprep.subr.bf16.mxu0 0
    %3701 = vmatpush1.bf16.msra.mxu0 %v3600
    %3702 = vmatprep.subr.bf16.mxu0 0
    %3703 = vmatpush1.bf16.msra.mxu0 %v3601
    %3704 = vmatprep.subr.bf16.mxu0 0
    %3705 = vmatpush1.bf16.msra.mxu0 %v3602
    %3706 = vmatprep.subr.bf16.mxu0 0
    %3707 = vmatpush1.bf16.msra.mxu0 %v3603
    %3708 = vmatprep.subr.bf16.mxu0 0
    %3709 = vmatpush1.bf16.msra.mxu0 %v3604
    %3710 = vmatprep.mubr.bf16.mxu0 %v3373
    %3711 = vmatmul.mubr.bf16.gmra.mrb[0].mxu0 %v3372
    %v3712 = vpop.f32.mrb[0].mxu0
    %v3713 = vadd.f32 %v3672, %v3712
    %v3714 = vpop.f32.mrb[0].mxu0
    %v3715 = vpop.f32.mrb[0].mxu0
    %v3716 = vadd.f32 %v3675, %v3715
    %v3717 = vpop.f32.mrb[0].mxu0
    %3718 = vdwg.mxu0
    %v3719 = vadd.f32 %v3027, %v3713
    %v3720 = vadd.f32 %v3028, %v3716
    %v3721 = vld [vmem:[#allocation11] sm:$0x1]
    %v3722 = vld [vmem:[#allocation13] sm:$0x1]
    %3723 = vadd.xlane.f32.xlu0 %v3719
    %v3724 = vpop.xlane.xlu0 %3723
    %3725 = vadd.xlane.f32.xlu0 %v3720
    %v3726 = vpop.xlane.xlu0 %3725
    %v3727 = vmul.f32 %v3724, %v2994
    %v3728 = vmul.f32 %v3726, %v2994
    %v3729 = vsub.f32 %v3719, %v3727
    %v3730 = vsub.f32 %v3720, %v3728
    %v3731 = vmul.f32 %v3729, %v3729
    %v3732 = vmul.f32 %v3730, %v3730
    %3733 = vadd.xlane.f32.xlu0 %v3731
    %v3734 = vpop.xlane.xlu0 %3733
    %3735 = vadd.xlane.f32.xlu0 %v3732
    %v3736 = vpop.xlane.xlu0 %3735
    %v3737 = vmul.f32 %v3734, %v2994
    %v3738 = vmul.f32 %v3736, %v2994
    %v3739 = vadd.f32 %v3737, 1e-05
    %v3740 = vadd.f32 %v3738, 1e-05
    %v3741 = vrsqrt.pop %v3739
    %v3742 = vrsqrt.pop %v3740
    %v3743 = vmul.f32 %v3729, %v3741
    %v3744 = vmul.f32 %v3730, %v3742
    %v3746 = vlaneseq
    %v3747 = vshrl.u32 %v3746, 7
    %v3748 = vsub.s32 0, %v3747
    %v3749 = vrot.slane %v3721, %v3748
    %v3751 = vmul.f32 %v3743, %v3749
    %v3752 = vmul.f32 %v3744, %v3749
    %v3754 = vlaneseq
    %v3755 = vshrl.u32 %v3754, 7
    %v3756 = vsub.s32 0, %v3755
    %v3757 = vrot.slane %v3722, %v3756
    %v3759 = vadd.f32 %v3751, %v3757
    %v3760 = vadd.f32 %v3752, %v3757
    %v3761 = vpack.c.bf16 %v3760, %v3759
    %s3762 = scalar_lea.vmem [#allocation2], 192
    %v3763 = vld [vmem:[%s3762] sm:$0xff]
    %v3764 = vld [vmem:[%s3762 + $0x8] sm:$0xf]
    %v3765 = vld [vmem:[%s3762 + $0xc] sm:$0xff]
    %v3766 = vld [vmem:[%s3762 + $0x14] sm:$0xf]
    %v3767 = vld [vmem:[%s3762 + $0x18] sm:$0xff]
    %v3768 = vld [vmem:[%s3762 + $0x20] sm:$0xf]
    %v3769 = vld [vmem:[%s3762 + $0x24] sm:$0xff]
    %v3770 = vld [vmem:[%s3762 + $0x2c] sm:$0xf]
    %v3771 = vld [vmem:[%s3762 + $0x30] sm:$0xff]
    %v3772 = vld [vmem:[%s3762 + $0x38] sm:$0xf]
    %v3773 = vld [vmem:[%s3762 + $0x3c] sm:$0xff]
    %v3774 = vld [vmem:[%s3762 + $0x44] sm:$0xf]
    %v3775 = vld [vmem:[%s3762 + $0x48] sm:$0xff]
    %v3776 = vld [vmem:[%s3762 + $0x50] sm:$0xf]
    %v3777 = vld [vmem:[%s3762 + $0x54] sm:$0xff]
    %v3778 = vld [vmem:[%s3762 + $0x5c] sm:$0xf]
    %v3779 = vld [vmem:[%s3762 + $0x60] sm:$0xff]
    %v3780 = vld [vmem:[%s3762 + $0x68] sm:$0xf]
    %v3781 = vld [vmem:[%s3762 + $0x6c] sm:$0xff]
    %v3782 = vld [vmem:[%s3762 + $0x74] sm:$0xf]
    %v3783 = vld [vmem:[%s3762 + $0x78] sm:$0xff]
    %v3784 = vld [vmem:[%s3762 + $0x80] sm:$0xf]
    %v3785 = vld [vmem:[%s3762 + $0x84] sm:$0xff]
    %v3786 = vld [vmem:[%s3762 + $0x8c] sm:$0xf]
    %v3787 = vld [vmem:[%s3762 + $0x90] sm:$0xff]
    %v3788 = vld [vmem:[%s3762 + $0x98] sm:$0xf]
    %v3789 = vld [vmem:[%s3762 + $0x9c] sm:$0xff]
    %v3790 = vld [vmem:[%s3762 + $0xa4] sm:$0xf]
    %v3791 = vld [vmem:[%s3762 + $0xa8] sm:$0xff]
    %v3792 = vld [vmem:[%s3762 + $0xb0] sm:$0xf]
    %v3793 = vld [vmem:[%s3762 + $0xb4] sm:$0xff]
    %v3794 = vld [vmem:[%s3762 + $0xbc] sm:$0xf]
    %s3795 = scalar_lea.vmem %s2, 3
    %v3796 = vld [vmem:[%s3795] sm:$0x7]
    %v3798 = vlaneseq
    %v3799 = vshrl.u32 %v3798, 7
    %v3800 = vsub.s32 0, %v3799
    %v3801 = vrot.slane %v3796, %v3800
    %v3802 = vlaneseq
    %v3803 = vshrl.u32 %v3802, 7
    %v3804 = vsub.s32 1, %v3803
    %v3805 = vrot.slane %v3796, %v3804
    %v3806 = vlaneseq
    %v3807 = vshrl.u32 %v3806, 7
    %v3808 = vsub.s32 2, %v3807
    %v3809 = vrot.slane %v3796, %v3808
    %v3845 = vunpack.c.l.b16 %v3763
    %v3846 = vunpack.c.h.b16 %v3763
    %v3847 = vunpack.c.l.b16 %v3764
    %v3848 = vunpack.c.l.b16 %v3765
    %v3849 = vunpack.c.h.b16 %v3765
    %v3850 = vunpack.c.l.b16 %v3766
    %v3851 = vunpack.c.l.b16 %v3767
    %v3852 = vunpack.c.h.b16 %v3767
    %v3853 = vunpack.c.l.b16 %v3768
    %v3854 = vunpack.c.l.b16 %v3769
    %v3855 = vunpack.c.h.b16 %v3769
    %v3856 = vunpack.c.l.b16 %v3770
    %v3857 = vunpack.c.l.b16 %v3771
    %v3858 = vunpack.c.h.b16 %v3771
    %v3859 = vunpack.c.l.b16 %v3772
    %v3860 = vunpack.c.l.b16 %v3773
    %v3861 = vunpack.c.h.b16 %v3773
    %v3862 = vunpack.c.l.b16 %v3774
    %v3863 = vunpack.c.l.b16 %v3775
    %v3864 = vunpack.c.h.b16 %v3775
    %v3865 = vunpack.c.l.b16 %v3776
    %v3866 = vunpack.c.l.b16 %v3777
    %v3867 = vunpack.c.h.b16 %v3777
    %v3868 = vunpack.c.l.b16 %v3778
    %v3869 = vunpack.c.l.b16 %v3779
    %v3870 = vunpack.c.h.b16 %v3779
    %v3871 = vunpack.c.l.b16 %v3780
    %v3872 = vunpack.c.l.b16 %v3781
    %v3873 = vunpack.c.h.b16 %v3781
    %v3874 = vunpack.c.l.b16 %v3782
    %v3875 = vunpack.c.l.b16 %v3783
    %v3876 = vunpack.c.h.b16 %v3783
    %v3877 = vunpack.c.l.b16 %v3784
    %v3878 = vunpack.c.l.b16 %v3785
    %v3879 = vunpack.c.h.b16 %v3785
    %v3880 = vunpack.c.l.b16 %v3786
    %v3881 = vunpack.c.l.b16 %v3787
    %v3882 = vunpack.c.h.b16 %v3787
    %v3883 = vunpack.c.l.b16 %v3788
    %v3884 = vunpack.c.l.b16 %v3789
    %v3885 = vunpack.c.h.b16 %v3789
    %v3886 = vunpack.c.l.b16 %v3790
    %v3887 = vunpack.c.l.b16 %v3791
    %v3888 = vunpack.c.h.b16 %v3791
    %v3889 = vunpack.c.l.b16 %v3792
    %v3890 = vunpack.c.l.b16 %v3793
    %v3891 = vunpack.c.h.b16 %v3793
    %v3892 = vunpack.c.l.b16 %v3794
    %v3893 = vpack.c.b16 %v3848, %v3845
    %v3894 = vpack.c.b16 %v3849, %v3846
    %v3895 = vpack.c.b16 %v3850, %v3847
    %v3896 = vpack.c.b16 %v3854, %v3851
    %v3897 = vpack.c.b16 %v3855, %v3852
    %v3898 = vpack.c.b16 %v3856, %v3853
    %v3899 = vpack.c.b16 %v3860, %v3857
    %v3900 = vpack.c.b16 %v3861, %v3858
    %v3901 = vpack.c.b16 %v3862, %v3859
    %v3902 = vpack.c.b16 %v3866, %v3863
    %v3903 = vpack.c.b16 %v3867, %v3864
    %v3904 = vpack.c.b16 %v3868, %v3865
    %v3905 = vpack.c.b16 %v3872, %v3869
    %v3906 = vpack.c.b16 %v3873, %v3870
    %v3907 = vpack.c.b16 %v3874, %v3871
    %v3908 = vpack.c.b16 %v3878, %v3875
    %v3909 = vpack.c.b16 %v3879, %v3876
    %v3910 = vpack.c.b16 %v3880, %v3877
    %v3911 = vpack.c.b16 %v3884, %v3881
    %v3912 = vpack.c.b16 %v3885, %v3882
    %v3913 = vpack.c.b16 %v3886, %v3883
    %v3914 = vpack.c.b16 %v3890, %v3887
    %v3915 = vpack.c.b16 %v3891, %v3888
    %v3916 = vpack.c.b16 %v3892, %v3889
    %3941 = vmatprep.subr.bf16.mxu0 %v3894
    %3942 = vmatpush1.bf16.msra.mxu0 %v3893
    %3943 = vmatprep.subr.bf16.mxu0 %v3897
    %3944 = vmatpush1.bf16.msra.mxu0 %v3896
    %3945 = vmatprep.subr.bf16.mxu0 %v3900
    %3946 = vmatpush1.bf16.msra.mxu0 %v3899
    %3947 = vmatprep.subr.bf16.mxu0 %v3903
    %3948 = vmatpush1.bf16.msra.mxu0 %v3902
    %3949 = vmatprep.subr.bf16.mxu0 %v3906
    %3950 = vmatpush1.bf16.msra.mxu0 %v3905
    %3951 = vmatprep.subr.bf16.mxu0 %v3909
    %3952 = vmatpush1.bf16.msra.mxu0 %v3908
    %3953 = vmatprep.subr.bf16.mxu0 %v3912
    %3954 = vmatpush1.bf16.msra.mxu0 %v3911
    %3955 = vmatprep.subr.bf16.mxu0 %v3915
    %3956 = vmatpush1.bf16.msra.mxu0 %v3914
    %3957 = vmatprep.subr.bf16.mxu0 0
    %3958 = vmatpush1.bf16.msra.mxu0 0
    %3959 = vmatprep.subr.bf16.mxu0 0
    %3960 = vmatpush1.bf16.msra.mxu0 0
    %3961 = vmatprep.subr.bf16.mxu0 0
    %3962 = vmatpush1.bf16.msra.mxu0 0
    %3963 = vmatprep.subr.bf16.mxu0 0
    %3964 = vmatpush1.bf16.msra.mxu0 0
    %3965 = vmatprep.subr.bf16.mxu0 0
    %3966 = vmatpush1.bf16.msra.mxu0 0
    %3967 = vmatprep.subr.bf16.mxu0 0
    %3968 = vmatpush1.bf16.msra.mxu0 0
    %3969 = vmatprep.subr.bf16.mxu0 0
    %3970 = vmatpush1.bf16.msra.mxu0 0
    %3971 = vmatprep.subr.bf16.mxu0 0
    %3972 = vmatpush1.bf16.msra.mxu0 0
    %3973 = vmatprep.mubr.bf16.mxu0 0
    %3974 = vmatmul.mubr.bf16.gmra.mrb[0].mxu0 %v3761
    %v3975 = vpop.f32.mrb[0].mxu0
    %v3976 = vadd.f32 %v3801, %v3975
    %v3977 = vpop.f32.mrb[0].mxu0
    %v3978 = vadd.f32 %v3805, %v3977
    %v3979 = vpop.f32.mrb[0].mxu0
    %v3980 = vadd.f32 %v3801, %v3979
    %v3981 = vpop.f32.mrb[0].mxu0
    %v3982 = vadd.f32 %v3805, %v3981
    %3983 = vdwg.mxu0
    %3984 = vmatprep.subr.bf16.mxu0 0
    %3985 = vmatpush1.bf16.msra.mxu0 %v3895
    %3986 = vmatprep.subr.bf16.mxu0 0
    %3987 = vmatpush1.bf16.msra.mxu0 %v3898
    %3988 = vmatprep.subr.bf16.mxu0 0
    %3989 = vmatpush1.bf16.msra.mxu0 %v3901
    %3990 = vmatprep.subr.bf16.mxu0 0
    %3991 = vmatpush1.bf16.msra.mxu0 %v3904
    %3992 = vmatprep.subr.bf16.mxu0 0
    %3993 = vmatpush1.bf16.msra.mxu0 %v3907
    %3994 = vmatprep.subr.bf16.mxu0 0
    %3995 = vmatpush1.bf16.msra.mxu0 %v3910
    %3996 = vmatprep.subr.bf16.mxu0 0
    %3997 = vmatpush1.bf16.msra.mxu0 %v3913
    %3998 = vmatprep.subr.bf16.mxu0 0
    %3999 = vmatpush1.bf16.msra.mxu0 %v3916
    %4000 = vmatprep.subr.bf16.mxu0 0
    %4001 = vmatpush1.bf16.msra.mxu0 0
    %4002 = vmatprep.subr.bf16.mxu0 0
    %4003 = vmatpush1.bf16.msra.mxu0 0
    %4004 = vmatprep.subr.bf16.mxu0 0
    %4005 = vmatpush1.bf16.msra.mxu0 0
    %4006 = vmatprep.subr.bf16.mxu0 0
    %4007 = vmatpush1.bf16.msra.mxu0 0
    %4008 = vmatprep.subr.bf16.mxu0 0
    %4009 = vmatpush1.bf16.msra.mxu0 0
    %4010 = vmatprep.subr.bf16.mxu0 0
    %4011 = vmatpush1.bf16.msra.mxu0 0
    %4012 = vmatprep.subr.bf16.mxu0 0
    %4013 = vmatpush1.bf16.msra.mxu0 0
    %4014 = vmatprep.subr.bf16.mxu0 0
    %4015 = vmatpush1.bf16.msra.mxu0 0
    %4016 = vmatprep.mubr.bf16.mxu0 0
    %4017 = vmatmul.mubr.bf16.gmra.mrb[0].mxu0 %v3761
    %v4018 = vpop.f32.mrb[0].mxu0
    %v4019 = vadd.f32 %v3809, %v4018
    %v4020 = vpop.f32.mrb[0].mxu0
    %v4021 = vpop.f32.mrb[0].mxu0
    %v4022 = vadd.f32 %v3809, %v4021
    %v4023 = vpop.f32.mrb[0].mxu0
    %4024 = vdwg.mxu0
    %4027 = vrot.lane.b32.xlu0 %v3976, 96
    %v4028 = vpop.permute.xlu0 %4027
    %4029 = vrot.lane.b32.xlu0 %v3980, 96
    %v4030 = vpop.permute.xlu0 %4029
    %4033 = vrot.lane.b32.xlu0 %v3976, 64
    %v4034 = vpop.permute.xlu0 %4033
    %4035 = vrot.lane.b32.xlu0 %v3980, 64
    %v4036 = vpop.permute.xlu0 %4035
    %4039 = vrot.lane.b32.xlu0 %v3976, 32
    %v4040 = vpop.permute.xlu0 %4039
    %4041 = vrot.lane.b32.xlu0 %v3980, 32
    %v4042 = vpop.permute.xlu0 %4041
    %v4045 = vcombine.low %v3976, %v4034
    %v4046 = vcombine.high %v3976, %v4034
    %v4048 = vunpack.c.l.s4 1983009808
    %v4049 = vunpack.c.0.s8 %v4048
    %v4050 = vlaneseq
    %v4051 = vshrl.u32 %v4050, 7
    %v4052 = vsub.s32 %v4049, %v4051
    %v4053 = vrot.slane %v4045, %v4052
    %v4055 = vunpack.c.l.s4 1983009808
    %v4056 = vunpack.c.0.s8 %v4055
    %v4057 = vlaneseq
    %v4058 = vshrl.u32 %v4057, 7
    %v4059 = vsub.s32 %v4056, %v4058
    %v4060 = vrot.slane %v4046, %v4059
    %v4061 = vcombine.low %v4028, %v4040
    %v4062 = vcombine.high %v4028, %v4040
    %v4064 = vunpack.c.l.s4 1983009808
    %v4065 = vunpack.c.0.s8 %v4064
    %v4066 = vlaneseq
    %v4067 = vshrl.u32 %v4066, 7
    %v4068 = vsub.s32 %v4065, %v4067
    %v4069 = vrot.slane %v4061, %v4068
    %v4071 = vunpack.c.l.s4 1983009808
    %v4072 = vunpack.c.0.s8 %v4071
    %v4073 = vlaneseq
    %v4074 = vshrl.u32 %v4073, 7
    %v4075 = vsub.s32 %v4072, %v4074
    %v4076 = vrot.slane %v4062, %v4075
    %v4077 = vcombine.low %v4053, %v4069
    %v4078 = vcombine.high %v4053, %v4069
    %v4080 = vunpack.c.l.s4 1934713408
    %v4081 = vunpack.c.0.s8 %v4080
    %v4082 = vlaneseq
    %v4083 = vshrl.u32 %v4082, 7
    %v4084 = vsub.s32 %v4081, %v4083
    %v4085 = vrot.slane %v4077, %v4084
    %v4087 = vunpack.c.l.s4 1934713408
    %v4088 = vunpack.c.0.s8 %v4087
    %v4089 = vlaneseq
    %v4090 = vshrl.u32 %v4089, 7
    %v4091 = vsub.s32 %v4088, %v4090
    %v4092 = vrot.slane %v4078, %v4091
    %v4093 = vcombine.low %v4060, %v4076
    %v4094 = vcombine.high %v4060, %v4076
    %v4096 = vunpack.c.l.s4 1934713408
    %v4097 = vunpack.c.0.s8 %v4096
    %v4098 = vlaneseq
    %v4099 = vshrl.u32 %v4098, 7
    %v4100 = vsub.s32 %v4097, %v4099
    %v4101 = vrot.slane %v4093, %v4100
    %v4103 = vunpack.c.l.s4 1934713408
    %v4104 = vunpack.c.0.s8 %v4103
    %v4105 = vlaneseq
    %v4106 = vshrl.u32 %v4105, 7
    %v4107 = vsub.s32 %v4104, %v4106
    %v4108 = vrot.slane %v4094, %v4107
    %v4109 = vcombine.high %v4085, 0.0
    %v4110 = vcombine.high %v4092, 0.0
    %v4111 = vcombine.high %v4101, 0.0
    %v4112 = vcombine.high %v4108, 0.0
    %v4113 = vcombine.low %v3980, %v4036
    %v4114 = vcombine.high %v3980, %v4036
    %v4116 = vunpack.c.l.s4 1983009808
    %v4117 = vunpack.c.0.s8 %v4116
    %v4118 = vlaneseq
    %v4119 = vshrl.u32 %v4118, 7
    %v4120 = vsub.s32 %v4117, %v4119
    %v4121 = vrot.slane %v4113, %v4120
    %v4123 = vunpack.c.l.s4 1983009808
    %v4124 = vunpack.c.0.s8 %v4123
    %v4125 = vlaneseq
    %v4126 = vshrl.u32 %v4125, 7
    %v4127 = vsub.s32 %v4124, %v4126
    %v4128 = vrot.slane %v4114, %v4127
    %v4129 = vcombine.low %v4030, %v4042
    %v4130 = vcombine.high %v4030, %v4042
    %v4132 = vunpack.c.l.s4 1983009808
    %v4133 = vunpack.c.0.s8 %v4132
    %v4134 = vlaneseq
    %v4135 = vshrl.u32 %v4134, 7
    %v4136 = vsub.s32 %v4133, %v4135
    %v4137 = vrot.slane %v4129, %v4136
    %v4139 = vunpack.c.l.s4 1983009808
    %v4140 = vunpack.c.0.s8 %v4139
    %v4141 = vlaneseq
    %v4142 = vshrl.u32 %v4141, 7
    %v4143 = vsub.s32 %v4140, %v4142
    %v4144 = vrot.slane %v4130, %v4143
    %v4145 = vcombine.low %v4121, %v4137
    %v4146 = vcombine.high %v4121, %v4137
    %v4148 = vunpack.c.l.s4 1934713408
    %v4149 = vunpack.c.0.s8 %v4148
    %v4150 = vlaneseq
    %v4151 = vshrl.u32 %v4150, 7
    %v4152 = vsub.s32 %v4149, %v4151
    %v4153 = vrot.slane %v4145, %v4152
    %v4155 = vunpack.c.l.s4 1934713408
    %v4156 = vunpack.c.0.s8 %v4155
    %v4157 = vlaneseq
    %v4158 = vshrl.u32 %v4157, 7
    %v4159 = vsub.s32 %v4156, %v4158
    %v4160 = vrot.slane %v4146, %v4159
    %v4161 = vcombine.low %v4128, %v4144
    %v4162 = vcombine.high %v4128, %v4144
    %v4164 = vunpack.c.l.s4 1934713408
    %v4165 = vunpack.c.0.s8 %v4164
    %v4166 = vlaneseq
    %v4167 = vshrl.u32 %v4166, 7
    %v4168 = vsub.s32 %v4165, %v4167
    %v4169 = vrot.slane %v4161, %v4168
    %v4171 = vunpack.c.l.s4 1934713408
    %v4172 = vunpack.c.0.s8 %v4171
    %v4173 = vlaneseq
    %v4174 = vshrl.u32 %v4173, 7
    %v4175 = vsub.s32 %v4172, %v4174
    %v4176 = vrot.slane %v4162, %v4175
    %v4177 = vcombine.high %v4153, 0.0
    %v4178 = vcombine.high %v4160, 0.0
    %v4179 = vcombine.high %v4169, 0.0
    %v4180 = vcombine.high %v4176, 0.0
    %v4181 = vcombine.low %v4085, %v4092
    %v4183 = vunpack.c.l.s4 1983009808
    %v4184 = vunpack.c.0.s8 %v4183
    %v4185 = vlaneseq
    %v4186 = vshrl.u32 %v4185, 7
    %v4187 = vsub.s32 %v4184, %v4186
    %v4188 = vrot.slane %v4181, %v4187
    %v4189 = vcombine.low %v4109, %v4110
    %v4191 = vunpack.c.l.s4 1983009808
    %v4192 = vunpack.c.0.s8 %v4191
    %v4193 = vlaneseq
    %v4194 = vshrl.u32 %v4193, 7
    %v4195 = vsub.s32 %v4192, %v4194
    %v4196 = vrot.slane %v4189, %v4195
    %v4197 = vcombine.low %v4101, %v4108
    %v4199 = vunpack.c.l.s4 1983009808
    %v4200 = vunpack.c.0.s8 %v4199
    %v4201 = vlaneseq
    %v4202 = vshrl.u32 %v4201, 7
    %v4203 = vsub.s32 %v4200, %v4202
    %v4204 = vrot.slane %v4197, %v4203
    %v4205 = vcombine.low %v4111, %v4112
    %v4207 = vunpack.c.l.s4 1983009808
    %v4208 = vunpack.c.0.s8 %v4207
    %v4209 = vlaneseq
    %v4210 = vshrl.u32 %v4209, 7
    %v4211 = vsub.s32 %v4208, %v4210
    %v4212 = vrot.slane %v4205, %v4211
    %v4213 = vcombine.low %v4188, %v4196
    %v4214 = vcombine.high %v4188, %v4196
    %v4216 = vunpack.c.l.s4 1934713408
    %v4217 = vunpack.c.0.s8 %v4216
    %v4218 = vlaneseq
    %v4219 = vshrl.u32 %v4218, 7
    %v4220 = vsub.s32 %v4217, %v4219
    %v4221 = vrot.slane %v4213, %v4220
    %v4223 = vunpack.c.l.s4 1934713408
    %v4224 = vunpack.c.0.s8 %v4223
    %v4225 = vlaneseq
    %v4226 = vshrl.u32 %v4225, 7
    %v4227 = vsub.s32 %v4224, %v4226
    %v4228 = vrot.slane %v4214, %v4227
    %v4229 = vcombine.low %v4204, %v4212
    %v4230 = vcombine.high %v4204, %v4212
    %v4232 = vunpack.c.l.s4 1934713408
    %v4233 = vunpack.c.0.s8 %v4232
    %v4234 = vlaneseq
    %v4235 = vshrl.u32 %v4234, 7
    %v4236 = vsub.s32 %v4233, %v4235
    %v4237 = vrot.slane %v4229, %v4236
    %v4239 = vunpack.c.l.s4 1934713408
    %v4240 = vunpack.c.0.s8 %v4239
    %v4241 = vlaneseq
    %v4242 = vshrl.u32 %v4241, 7
    %v4243 = vsub.s32 %v4240, %v4242
    %v4244 = vrot.slane %v4230, %v4243
    %v4245 = vcombine.low %v4221, %v4237
    %v4246 = vcombine.high %v4221, %v4237
    %v4247 = vcombine.low %v4228, %v4244
    %v4248 = vcombine.high %v4228, %v4244
    %v4249 = vcombine.low %v4153, %v4160
    %v4251 = vunpack.c.l.s4 1983009808
    %v4252 = vunpack.c.0.s8 %v4251
    %v4253 = vlaneseq
    %v4254 = vshrl.u32 %v4253, 7
    %v4255 = vsub.s32 %v4252, %v4254
    %v4256 = vrot.slane %v4249, %v4255
    %v4257 = vcombine.low %v4177, %v4178
    %v4259 = vunpack.c.l.s4 1983009808
    %v4260 = vunpack.c.0.s8 %v4259
    %v4261 = vlaneseq
    %v4262 = vshrl.u32 %v4261, 7
    %v4263 = vsub.s32 %v4260, %v4262
    %v4264 = vrot.slane %v4257, %v4263
    %v4265 = vcombine.low %v4169, %v4176
    %v4267 = vunpack.c.l.s4 1983009808
    %v4268 = vunpack.c.0.s8 %v4267
    %v4269 = vlaneseq
    %v4270 = vshrl.u32 %v4269, 7
    %v4271 = vsub.s32 %v4268, %v4270
    %v4272 = vrot.slane %v4265, %v4271
    %v4273 = vcombine.low %v4179, %v4180
    %v4275 = vunpack.c.l.s4 1983009808
    %v4276 = vunpack.c.0.s8 %v4275
    %v4277 = vlaneseq
    %v4278 = vshrl.u32 %v4277, 7
    %v4279 = vsub.s32 %v4276, %v4278
    %v4280 = vrot.slane %v4273, %v4279
    %v4281 = vcombine.low %v4256, %v4264
    %v4282 = vcombine.high %v4256, %v4264
    %v4284 = vunpack.c.l.s4 1934713408
    %v4285 = vunpack.c.0.s8 %v4284
    %v4286 = vlaneseq
    %v4287 = vshrl.u32 %v4286, 7
    %v4288 = vsub.s32 %v4285, %v4287
    %v4289 = vrot.slane %v4281, %v4288
    %v4291 = vunpack.c.l.s4 1934713408
    %v4292 = vunpack.c.0.s8 %v4291
    %v4293 = vlaneseq
    %v4294 = vshrl.u32 %v4293, 7
    %v4295 = vsub.s32 %v4292, %v4294
    %v4296 = vrot.slane %v4282, %v4295
    %v4297 = vcombine.low %v4272, %v4280
    %v4298 = vcombine.high %v4272, %v4280
    %v4300 = vunpack.c.l.s4 1934713408
    %v4301 = vunpack.c.0.s8 %v4300
    %v4302 = vlaneseq
    %v4303 = vshrl.u32 %v4302, 7
    %v4304 = vsub.s32 %v4301, %v4303
    %v4305 = vrot.slane %v4297, %v4304
    %v4307 = vunpack.c.l.s4 1934713408
    %v4308 = vunpack.c.0.s8 %v4307
    %v4309 = vlaneseq
    %v4310 = vshrl.u32 %v4309, 7
    %v4311 = vsub.s32 %v4308, %v4310
    %v4312 = vrot.slane %v4298, %v4311
    %v4313 = vcombine.low %v4289, %v4305
    %v4314 = vcombine.high %v4289, %v4305
    %v4315 = vcombine.low %v4296, %v4312
    %v4316 = vcombine.high %v4296, %v4312
    %4319 = vrot.lane.b32.xlu0 %v3978, 96
    %v4320 = vpop.permute.xlu0 %4319
    %4321 = vrot.lane.b32.xlu0 %v3982, 96
    %v4322 = vpop.permute.xlu0 %4321
    %4325 = vrot.lane.b32.xlu0 %v3978, 64
    %v4326 = vpop.permute.xlu0 %4325
    %4327 = vrot.lane.b32.xlu0 %v3982, 64
    %v4328 = vpop.permute.xlu0 %4327
    %4331 = vrot.lane.b32.xlu0 %v3978, 32
    %v4332 = vpop.permute.xlu0 %4331
    %4333 = vrot.lane.b32.xlu0 %v3982, 32
    %v4334 = vpop.permute.xlu0 %4333
    %v4337 = vcombine.low %v3978, %v4326
    %v4338 = vcombine.high %v3978, %v4326
    %v4340 = vunpack.c.l.s4 1983009808
    %v4341 = vunpack.c.0.s8 %v4340
    %v4342 = vlaneseq
    %v4343 = vshrl.u32 %v4342, 7
    %v4344 = vsub.s32 %v4341, %v4343
    %v4345 = vrot.slane %v4337, %v4344
    %v4347 = vunpack.c.l.s4 1983009808
    %v4348 = vunpack.c.0.s8 %v4347
    %v4349 = vlaneseq
    %v4350 = vshrl.u32 %v4349, 7
    %v4351 = vsub.s32 %v4348, %v4350
    %v4352 = vrot.slane %v4338, %v4351
    %v4353 = vcombine.low %v4320, %v4332
    %v4354 = vcombine.high %v4320, %v4332
    %v4356 = vunpack.c.l.s4 1983009808
    %v4357 = vunpack.c.0.s8 %v4356
    %v4358 = vlaneseq
    %v4359 = vshrl.u32 %v4358, 7
    %v4360 = vsub.s32 %v4357, %v4359
    %v4361 = vrot.slane %v4353, %v4360
    %v4363 = vunpack.c.l.s4 1983009808
    %v4364 = vunpack.c.0.s8 %v4363
    %v4365 = vlaneseq
    %v4366 = vshrl.u32 %v4365, 7
    %v4367 = vsub.s32 %v4364, %v4366
    %v4368 = vrot.slane %v4354, %v4367
    %v4369 = vcombine.low %v4345, %v4361
    %v4370 = vcombine.high %v4345, %v4361
    %v4372 = vunpack.c.l.s4 1934713408
    %v4373 = vunpack.c.0.s8 %v4372
    %v4374 = vlaneseq
    %v4375 = vshrl.u32 %v4374, 7
    %v4376 = vsub.s32 %v4373, %v4375
    %v4377 = vrot.slane %v4369, %v4376
    %v4379 = vunpack.c.l.s4 1934713408
    %v4380 = vunpack.c.0.s8 %v4379
    %v4381 = vlaneseq
    %v4382 = vshrl.u32 %v4381, 7
    %v4383 = vsub.s32 %v4380, %v4382
    %v4384 = vrot.slane %v4370, %v4383
    %v4385 = vcombine.low %v4352, %v4368
    %v4386 = vcombine.high %v4352, %v4368
    %v4388 = vunpack.c.l.s4 1934713408
    %v4389 = vunpack.c.0.s8 %v4388
    %v4390 = vlaneseq
    %v4391 = vshrl.u32 %v4390, 7
    %v4392 = vsub.s32 %v4389, %v4391
    %v4393 = vrot.slane %v4385, %v4392
    %v4395 = vunpack.c.l.s4 1934713408
    %v4396 = vunpack.c.0.s8 %v4395
    %v4397 = vlaneseq
    %v4398 = vshrl.u32 %v4397, 7
    %v4399 = vsub.s32 %v4396, %v4398
    %v4400 = vrot.slane %v4386, %v4399
    %v4401 = vcombine.high %v4377, 0.0
    %v4402 = vcombine.high %v4384, 0.0
    %v4403 = vcombine.high %v4393, 0.0
    %v4404 = vcombine.high %v4400, 0.0
    %v4405 = vcombine.low %v3982, %v4328
    %v4406 = vcombine.high %v3982, %v4328
    %v4408 = vunpack.c.l.s4 1983009808
    %v4409 = vunpack.c.0.s8 %v4408
    %v4410 = vlaneseq
    %v4411 = vshrl.u32 %v4410, 7
    %v4412 = vsub.s32 %v4409, %v4411
    %v4413 = vrot.slane %v4405, %v4412
    %v4415 = vunpack.c.l.s4 1983009808
    %v4416 = vunpack.c.0.s8 %v4415
    %v4417 = vlaneseq
    %v4418 = vshrl.u32 %v4417, 7
    %v4419 = vsub.s32 %v4416, %v4418
    %v4420 = vrot.slane %v4406, %v4419
    %v4421 = vcombine.low %v4322, %v4334
    %v4422 = vcombine.high %v4322, %v4334
    %v4424 = vunpack.c.l.s4 1983009808
    %v4425 = vunpack.c.0.s8 %v4424
    %v4426 = vlaneseq
    %v4427 = vshrl.u32 %v4426, 7
    %v4428 = vsub.s32 %v4425, %v4427
    %v4429 = vrot.slane %v4421, %v4428
    %v4431 = vunpack.c.l.s4 1983009808
    %v4432 = vunpack.c.0.s8 %v4431
    %v4433 = vlaneseq
    %v4434 = vshrl.u32 %v4433, 7
    %v4435 = vsub.s32 %v4432, %v4434
    %v4436 = vrot.slane %v4422, %v4435
    %v4437 = vcombine.low %v4413, %v4429
    %v4438 = vcombine.high %v4413, %v4429
    %v4440 = vunpack.c.l.s4 1934713408
    %v4441 = vunpack.c.0.s8 %v4440
    %v4442 = vlaneseq
    %v4443 = vshrl.u32 %v4442, 7
    %v4444 = vsub.s32 %v4441, %v4443
    %v4445 = vrot.slane %v4437, %v4444
    %v4447 = vunpack.c.l.s4 1934713408
    %v4448 = vunpack.c.0.s8 %v4447
    %v4449 = vlaneseq
    %v4450 = vshrl.u32 %v4449, 7
    %v4451 = vsub.s32 %v4448, %v4450
    %v4452 = vrot.slane %v4438, %v4451
    %v4453 = vcombine.low %v4420, %v4436
    %v4454 = vcombine.high %v4420, %v4436
    %v4456 = vunpack.c.l.s4 1934713408
    %v4457 = vunpack.c.0.s8 %v4456
    %v4458 = vlaneseq
    %v4459 = vshrl.u32 %v4458, 7
    %v4460 = vsub.s32 %v4457, %v4459
    %v4461 = vrot.slane %v4453, %v4460
    %v4463 = vunpack.c.l.s4 1934713408
    %v4464 = vunpack.c.0.s8 %v4463
    %v4465 = vlaneseq
    %v4466 = vshrl.u32 %v4465, 7
    %v4467 = vsub.s32 %v4464, %v4466
    %v4468 = vrot.slane %v4454, %v4467
    %v4469 = vcombine.high %v4445, 0.0
    %v4470 = vcombine.high %v4452, 0.0
    %v4471 = vcombine.high %v4461, 0.0
    %v4472 = vcombine.high %v4468, 0.0
    %v4473 = vcombine.low %v4377, %v4384
    %v4475 = vunpack.c.l.s4 1983009808
    %v4476 = vunpack.c.0.s8 %v4475
    %v4477 = vlaneseq
    %v4478 = vshrl.u32 %v4477, 7
    %v4479 = vsub.s32 %v4476, %v4478
    %v4480 = vrot.slane %v4473, %v4479
    %v4481 = vcombine.low %v4401, %v4402
    %v4483 = vunpack.c.l.s4 1983009808
    %v4484 = vunpack.c.0.s8 %v4483
    %v4485 = vlaneseq
    %v4486 = vshrl.u32 %v4485, 7
    %v4487 = vsub.s32 %v4484, %v4486
    %v4488 = vrot.slane %v4481, %v4487
    %v4489 = vcombine.low %v4393, %v4400
    %v4491 = vunpack.c.l.s4 1983009808
    %v4492 = vunpack.c.0.s8 %v4491
    %v4493 = vlaneseq
    %v4494 = vshrl.u32 %v4493, 7
    %v4495 = vsub.s32 %v4492, %v4494
    %v4496 = vrot.slane %v4489, %v4495
    %v4497 = vcombine.low %v4403, %v4404
    %v4499 = vunpack.c.l.s4 1983009808
    %v4500 = vunpack.c.0.s8 %v4499
    %v4501 = vlaneseq
    %v4502 = vshrl.u32 %v4501, 7
    %v4503 = vsub.s32 %v4500, %v4502
    %v4504 = vrot.slane %v4497, %v4503
    %v4505 = vcombine.low %v4480, %v4488
    %v4506 = vcombine.high %v4480, %v4488
    %v4508 = vunpack.c.l.s4 1934713408
    %v4509 = vunpack.c.0.s8 %v4508
    %v4510 = vlaneseq
    %v4511 = vshrl.u32 %v4510, 7
    %v4512 = vsub.s32 %v4509, %v4511
    %v4513 = vrot.slane %v4505, %v4512
    %v4515 = vunpack.c.l.s4 1934713408
    %v4516 = vunpack.c.0.s8 %v4515
    %v4517 = vlaneseq
    %v4518 = vshrl.u32 %v4517, 7
    %v4519 = vsub.s32 %v4516, %v4518
    %v4520 = vrot.slane %v4506, %v4519
    %v4521 = vcombine.low %v4496, %v4504
    %v4522 = vcombine.high %v4496, %v4504
    %v4524 = vunpack.c.l.s4 1934713408
    %v4525 = vunpack.c.0.s8 %v4524
    %v4526 = vlaneseq
    %v4527 = vshrl.u32 %v4526, 7
    %v4528 = vsub.s32 %v4525, %v4527
    %v4529 = vrot.slane %v4521, %v4528
    %v4531 = vunpack.c.l.s4 1934713408
    %v4532 = vunpack.c.0.s8 %v4531
    %v4533 = vlaneseq
    %v4534 = vshrl.u32 %v4533, 7
    %v4535 = vsub.s32 %v4532, %v4534
    %v4536 = vrot.slane %v4522, %v4535
    %v4537 = vcombine.low %v4513, %v4529
    %v4538 = vcombine.high %v4513, %v4529
    %v4539 = vcombine.low %v4520, %v4536
    %v4540 = vcombine.high %v4520, %v4536
    %v4541 = vcombine.low %v4445, %v4452
    %v4543 = vunpack.c.l.s4 1983009808
    %v4544 = vunpack.c.0.s8 %v4543
    %v4545 = vlaneseq
    %v4546 = vshrl.u32 %v4545, 7
    %v4547 = vsub.s32 %v4544, %v4546
    %v4548 = vrot.slane %v4541, %v4547
    %v4549 = vcombine.low %v4469, %v4470
    %v4551 = vunpack.c.l.s4 1983009808
    %v4552 = vunpack.c.0.s8 %v4551
    %v4553 = vlaneseq
    %v4554 = vshrl.u32 %v4553, 7
    %v4555 = vsub.s32 %v4552, %v4554
    %v4556 = vrot.slane %v4549, %v4555
    %v4557 = vcombine.low %v4461, %v4468
    %v4559 = vunpack.c.l.s4 1983009808
    %v4560 = vunpack.c.0.s8 %v4559
    %v4561 = vlaneseq
    %v4562 = vshrl.u32 %v4561, 7
    %v4563 = vsub.s32 %v4560, %v4562
    %v4564 = vrot.slane %v4557, %v4563
    %v4565 = vcombine.low %v4471, %v4472
    %v4567 = vunpack.c.l.s4 1983009808
    %v4568 = vunpack.c.0.s8 %v4567
    %v4569 = vlaneseq
    %v4570 = vshrl.u32 %v4569, 7
    %v4571 = vsub.s32 %v4568, %v4570
    %v4572 = vrot.slane %v4565, %v4571
    %v4573 = vcombine.low %v4548, %v4556
    %v4574 = vcombine.high %v4548, %v4556
    %v4576 = vunpack.c.l.s4 1934713408
    %v4577 = vunpack.c.0.s8 %v4576
    %v4578 = vlaneseq
    %v4579 = vshrl.u32 %v4578, 7
    %v4580 = vsub.s32 %v4577, %v4579
    %v4581 = vrot.slane %v4573, %v4580
    %v4583 = vunpack.c.l.s4 1934713408
    %v4584 = vunpack.c.0.s8 %v4583
    %v4585 = vlaneseq
    %v4586 = vshrl.u32 %v4585, 7
    %v4587 = vsub.s32 %v4584, %v4586
    %v4588 = vrot.slane %v4574, %v4587
    %v4589 = vcombine.low %v4564, %v4572
    %v4590 = vcombine.high %v4564, %v4572
    %v4592 = vunpack.c.l.s4 1934713408
    %v4593 = vunpack.c.0.s8 %v4592
    %v4594 = vlaneseq
    %v4595 = vshrl.u32 %v4594, 7
    %v4596 = vsub.s32 %v4593, %v4595
    %v4597 = vrot.slane %v4589, %v4596
    %v4599 = vunpack.c.l.s4 1934713408
    %v4600 = vunpack.c.0.s8 %v4599
    %v4601 = vlaneseq
    %v4602 = vshrl.u32 %v4601, 7
    %v4603 = vsub.s32 %v4600, %v4602
    %v4604 = vrot.slane %v4590, %v4603
    %v4605 = vcombine.low %v4581, %v4597
    %v4606 = vcombine.high %v4581, %v4597
    %v4607 = vcombine.low %v4588, %v4604
    %v4608 = vcombine.high %v4588, %v4604
    %4611 = vrot.lane.b32.xlu0 %v4019, 96
    %v4612 = vpop.permute.xlu0 %4611
    %4613 = vrot.lane.b32.xlu0 %v4022, 96
    %v4614 = vpop.permute.xlu0 %4613
    %4617 = vrot.lane.b32.xlu0 %v4019, 64
    %v4618 = vpop.permute.xlu0 %4617
    %4619 = vrot.lane.b32.xlu0 %v4022, 64
    %v4620 = vpop.permute.xlu0 %4619
    %4623 = vrot.lane.b32.xlu0 %v4019, 32
    %v4624 = vpop.permute.xlu0 %4623
    %4625 = vrot.lane.b32.xlu0 %v4022, 32
    %v4626 = vpop.permute.xlu0 %4625
    %v4629 = vcombine.low %v4019, %v4618
    %v4630 = vcombine.high %v4019, %v4618
    %v4632 = vunpack.c.l.s4 1983009808
    %v4633 = vunpack.c.0.s8 %v4632
    %v4634 = vlaneseq
    %v4635 = vshrl.u32 %v4634, 7
    %v4636 = vsub.s32 %v4633, %v4635
    %v4637 = vrot.slane %v4629, %v4636
    %v4639 = vunpack.c.l.s4 1983009808
    %v4640 = vunpack.c.0.s8 %v4639
    %v4641 = vlaneseq
    %v4642 = vshrl.u32 %v4641, 7
    %v4643 = vsub.s32 %v4640, %v4642
    %v4644 = vrot.slane %v4630, %v4643
    %v4645 = vcombine.low %v4612, %v4624
    %v4646 = vcombine.high %v4612, %v4624
    %v4648 = vunpack.c.l.s4 1983009808
    %v4649 = vunpack.c.0.s8 %v4648
    %v4650 = vlaneseq
    %v4651 = vshrl.u32 %v4650, 7
    %v4652 = vsub.s32 %v4649, %v4651
    %v4653 = vrot.slane %v4645, %v4652
    %v4655 = vunpack.c.l.s4 1983009808
    %v4656 = vunpack.c.0.s8 %v4655
    %v4657 = vlaneseq
    %v4658 = vshrl.u32 %v4657, 7
    %v4659 = vsub.s32 %v4656, %v4658
    %v4660 = vrot.slane %v4646, %v4659
    %v4661 = vcombine.low %v4637, %v4653
    %v4662 = vcombine.high %v4637, %v4653
    %v4664 = vunpack.c.l.s4 1934713408
    %v4665 = vunpack.c.0.s8 %v4664
    %v4666 = vlaneseq
    %v4667 = vshrl.u32 %v4666, 7
    %v4668 = vsub.s32 %v4665, %v4667
    %v4669 = vrot.slane %v4661, %v4668
    %v4671 = vunpack.c.l.s4 1934713408
    %v4672 = vunpack.c.0.s8 %v4671
    %v4673 = vlaneseq
    %v4674 = vshrl.u32 %v4673, 7
    %v4675 = vsub.s32 %v4672, %v4674
    %v4676 = vrot.slane %v4662, %v4675
    %v4677 = vcombine.low %v4644, %v4660
    %v4678 = vcombine.high %v4644, %v4660
    %v4680 = vunpack.c.l.s4 1934713408
    %v4681 = vunpack.c.0.s8 %v4680
    %v4682 = vlaneseq
    %v4683 = vshrl.u32 %v4682, 7
    %v4684 = vsub.s32 %v4681, %v4683
    %v4685 = vrot.slane %v4677, %v4684
    %v4687 = vunpack.c.l.s4 1934713408
    %v4688 = vunpack.c.0.s8 %v4687
    %v4689 = vlaneseq
    %v4690 = vshrl.u32 %v4689, 7
    %v4691 = vsub.s32 %v4688, %v4690
    %v4692 = vrot.slane %v4678, %v4691
    %v4693 = vcombine.high %v4669, 0.0
    %v4694 = vcombine.high %v4676, 0.0
    %v4695 = vcombine.high %v4685, 0.0
    %v4696 = vcombine.high %v4692, 0.0
    %v4697 = vcombine.low %v4022, %v4620
    %v4698 = vcombine.high %v4022, %v4620
    %v4700 = vunpack.c.l.s4 1983009808
    %v4701 = vunpack.c.0.s8 %v4700
    %v4702 = vlaneseq
    %v4703 = vshrl.u32 %v4702, 7
    %v4704 = vsub.s32 %v4701, %v4703
    %v4705 = vrot.slane %v4697, %v4704
    %v4707 = vunpack.c.l.s4 1983009808
    %v4708 = vunpack.c.0.s8 %v4707
    %v4709 = vlaneseq
    %v4710 = vshrl.u32 %v4709, 7
    %v4711 = vsub.s32 %v4708, %v4710
    %v4712 = vrot.slane %v4698, %v4711
    %v4713 = vcombine.low %v4614, %v4626
    %v4714 = vcombine.high %v4614, %v4626
    %v4716 = vunpack.c.l.s4 1983009808
    %v4717 = vunpack.c.0.s8 %v4716
    %v4718 = vlaneseq
    %v4719 = vshrl.u32 %v4718, 7
    %v4720 = vsub.s32 %v4717, %v4719
    %v4721 = vrot.slane %v4713, %v4720
    %v4723 = vunpack.c.l.s4 1983009808
    %v4724 = vunpack.c.0.s8 %v4723
    %v4725 = vlaneseq
    %v4726 = vshrl.u32 %v4725, 7
    %v4727 = vsub.s32 %v4724, %v4726
    %v4728 = vrot.slane %v4714, %v4727
    %v4729 = vcombine.low %v4705, %v4721
    %v4730 = vcombine.high %v4705, %v4721
    %v4732 = vunpack.c.l.s4 1934713408
    %v4733 = vunpack.c.0.s8 %v4732
    %v4734 = vlaneseq
    %v4735 = vshrl.u32 %v4734, 7
    %v4736 = vsub.s32 %v4733, %v4735
    %v4737 = vrot.slane %v4729, %v4736
    %v4739 = vunpack.c.l.s4 1934713408
    %v4740 = vunpack.c.0.s8 %v4739
    %v4741 = vlaneseq
    %v4742 = vshrl.u32 %v4741, 7
    %v4743 = vsub.s32 %v4740, %v4742
    %v4744 = vrot.slane %v4730, %v4743
    %v4745 = vcombine.low %v4712, %v4728
    %v4746 = vcombine.high %v4712, %v4728
    %v4748 = vunpack.c.l.s4 1934713408
    %v4749 = vunpack.c.0.s8 %v4748
    %v4750 = vlaneseq
    %v4751 = vshrl.u32 %v4750, 7
    %v4752 = vsub.s32 %v4749, %v4751
    %v4753 = vrot.slane %v4745, %v4752
    %v4755 = vunpack.c.l.s4 1934713408
    %v4756 = vunpack.c.0.s8 %v4755
    %v4757 = vlaneseq
    %v4758 = vshrl.u32 %v4757, 7
    %v4759 = vsub.s32 %v4756, %v4758
    %v4760 = vrot.slane %v4746, %v4759
    %v4761 = vcombine.high %v4737, 0.0
    %v4762 = vcombine.high %v4744, 0.0
    %v4763 = vcombine.high %v4753, 0.0
    %v4764 = vcombine.high %v4760, 0.0
    %v4765 = vcombine.low %v4669, %v4676
    %v4767 = vunpack.c.l.s4 1983009808
    %v4768 = vunpack.c.0.s8 %v4767
    %v4769 = vlaneseq
    %v4770 = vshrl.u32 %v4769, 7
    %v4771 = vsub.s32 %v4768, %v4770
    %v4772 = vrot.slane %v4765, %v4771
    %v4773 = vcombine.low %v4693, %v4694
    %v4775 = vunpack.c.l.s4 1983009808
    %v4776 = vunpack.c.0.s8 %v4775
    %v4777 = vlaneseq
    %v4778 = vshrl.u32 %v4777, 7
    %v4779 = vsub.s32 %v4776, %v4778
    %v4780 = vrot.slane %v4773, %v4779
    %v4781 = vcombine.low %v4685, %v4692
    %v4783 = vunpack.c.l.s4 1983009808
    %v4784 = vunpack.c.0.s8 %v4783
    %v4785 = vlaneseq
    %v4786 = vshrl.u32 %v4785, 7
    %v4787 = vsub.s32 %v4784, %v4786
    %v4788 = vrot.slane %v4781, %v4787
    %v4789 = vcombine.low %v4695, %v4696
    %v4791 = vunpack.c.l.s4 1983009808
    %v4792 = vunpack.c.0.s8 %v4791
    %v4793 = vlaneseq
    %v4794 = vshrl.u32 %v4793, 7
    %v4795 = vsub.s32 %v4792, %v4794
    %v4796 = vrot.slane %v4789, %v4795
    %v4797 = vcombine.low %v4772, %v4780
    %v4798 = vcombine.high %v4772, %v4780
    %v4800 = vunpack.c.l.s4 1934713408
    %v4801 = vunpack.c.0.s8 %v4800
    %v4802 = vlaneseq
    %v4803 = vshrl.u32 %v4802, 7
    %v4804 = vsub.s32 %v4801, %v4803
    %v4805 = vrot.slane %v4797, %v4804
    %v4807 = vunpack.c.l.s4 1934713408
    %v4808 = vunpack.c.0.s8 %v4807
    %v4809 = vlaneseq
    %v4810 = vshrl.u32 %v4809, 7
    %v4811 = vsub.s32 %v4808, %v4810
    %v4812 = vrot.slane %v4798, %v4811
    %v4813 = vcombine.low %v4788, %v4796
    %v4814 = vcombine.high %v4788, %v4796
    %v4816 = vunpack.c.l.s4 1934713408
    %v4817 = vunpack.c.0.s8 %v4816
    %v4818 = vlaneseq
    %v4819 = vshrl.u32 %v4818, 7
    %v4820 = vsub.s32 %v4817, %v4819
    %v4821 = vrot.slane %v4813, %v4820
    %v4823 = vunpack.c.l.s4 1934713408
    %v4824 = vunpack.c.0.s8 %v4823
    %v4825 = vlaneseq
    %v4826 = vshrl.u32 %v4825, 7
    %v4827 = vsub.s32 %v4824, %v4826
    %v4828 = vrot.slane %v4814, %v4827
    %v4829 = vcombine.low %v4805, %v4821
    %v4830 = vcombine.high %v4805, %v4821
    %v4831 = vcombine.low %v4812, %v4828
    %v4832 = vcombine.high %v4812, %v4828
    %v4833 = vcombine.low %v4737, %v4744
    %v4835 = vunpack.c.l.s4 1983009808
    %v4836 = vunpack.c.0.s8 %v4835
    %v4837 = vlaneseq
    %v4838 = vshrl.u32 %v4837, 7
    %v4839 = vsub.s32 %v4836, %v4838
    %v4840 = vrot.slane %v4833, %v4839
    %v4841 = vcombine.low %v4761, %v4762
    %v4843 = vunpack.c.l.s4 1983009808
    %v4844 = vunpack.c.0.s8 %v4843
    %v4845 = vlaneseq
    %v4846 = vshrl.u32 %v4845, 7
    %v4847 = vsub.s32 %v4844, %v4846
    %v4848 = vrot.slane %v4841, %v4847
    %v4849 = vcombine.low %v4753, %v4760
    %v4851 = vunpack.c.l.s4 1983009808
    %v4852 = vunpack.c.0.s8 %v4851
    %v4853 = vlaneseq
    %v4854 = vshrl.u32 %v4853, 7
    %v4855 = vsub.s32 %v4852, %v4854
    %v4856 = vrot.slane %v4849, %v4855
    %v4857 = vcombine.low %v4763, %v4764
    %v4859 = vunpack.c.l.s4 1983009808
    %v4860 = vunpack.c.0.s8 %v4859
    %v4861 = vlaneseq
    %v4862 = vshrl.u32 %v4861, 7
    %v4863 = vsub.s32 %v4860, %v4862
    %v4864 = vrot.slane %v4857, %v4863
    %v4865 = vcombine.low %v4840, %v4848
    %v4866 = vcombine.high %v4840, %v4848
    %v4868 = vunpack.c.l.s4 1934713408
    %v4869 = vunpack.c.0.s8 %v4868
    %v4870 = vlaneseq
    %v4871 = vshrl.u32 %v4870, 7
    %v4872 = vsub.s32 %v4869, %v4871
    %v4873 = vrot.slane %v4865, %v4872
    %v4875 = vunpack.c.l.s4 1934713408
    %v4876 = vunpack.c.0.s8 %v4875
    %v4877 = vlaneseq
    %v4878 = vshrl.u32 %v4877, 7
    %v4879 = vsub.s32 %v4876, %v4878
    %v4880 = vrot.slane %v4866, %v4879
    %v4881 = vcombine.low %v4856, %v4864
    %v4882 = vcombine.high %v4856, %v4864
    %v4884 = vunpack.c.l.s4 1934713408
    %v4885 = vunpack.c.0.s8 %v4884
    %v4886 = vlaneseq
    %v4887 = vshrl.u32 %v4886, 7
    %v4888 = vsub.s32 %v4885, %v4887
    %v4889 = vrot.slane %v4881, %v4888
    %v4891 = vunpack.c.l.s4 1934713408
    %v4892 = vunpack.c.0.s8 %v4891
    %v4893 = vlaneseq
    %v4894 = vshrl.u32 %v4893, 7
    %v4895 = vsub.s32 %v4892, %v4894
    %v4896 = vrot.slane %v4882, %v4895
    %v4897 = vcombine.low %v4873, %v4889
    %v4898 = vcombine.high %v4873, %v4889
    %v4899 = vcombine.low %v4880, %v4896
    %v4900 = vcombine.high %v4880, %v4896
    %v4902 = vsel %vm1287, %v4245, 0
    %v4905 = vsel %vm1287, %v4537, 0
    %4907 = vmatprep.subr.mxu0 0.0
    %4908 = vmatpush1.xpose.msra.mxu0 %v4905
    %4909 = vmatprep.subr.mxu0 0.0
    %4910 = vmatpush1.xpose.msra.mxu0 0.0
    %4911 = vmatprep.subr.mxu0 0.0
    %4912 = vmatpush1.xpose.msra.mxu0 0.0
    %4913 = vmatprep.subr.mxu0 0.0
    %4914 = vmatpush1.xpose.msra.mxu0 0.0
    %4915 = vmatprep.subr.mxu0 0.0
    %4916 = vmatpush1.xpose.msra.mxu0 0.0
    %4917 = vmatprep.subr.mxu0 0.0
    %4918 = vmatpush1.xpose.msra.mxu0 0.0
    %4919 = vmatprep.subr.mxu0 0.0
    %4920 = vmatpush1.xpose.msra.mxu0 0.0
    %4921 = vmatprep.subr.mxu0 0.0
    %4922 = vmatpush1.xpose.msra.mxu0 0.0
    %4923 = vmatprep.subr.mxu0 0.0
    %4924 = vmatpush1.xpose.msra.mxu0 0.0
    %4925 = vmatprep.subr.mxu0 0.0
    %4926 = vmatpush1.xpose.msra.mxu0 0.0
    %4927 = vmatprep.subr.mxu0 0.0
    %4928 = vmatpush1.xpose.msra.mxu0 0.0
    %4929 = vmatprep.subr.mxu0 0.0
    %4930 = vmatpush1.xpose.msra.mxu0 0.0
    %4931 = vmatprep.subr.mxu0 0.0
    %4932 = vmatpush1.xpose.msra.mxu0 0.0
    %4933 = vmatprep.subr.mxu0 0.0
    %4934 = vmatpush1.xpose.msra.mxu0 0.0
    %4935 = vmatprep.subr.mxu0 0.0
    %4936 = vmatpush1.xpose.msra.mxu0 0.0
    %4937 = vmatprep.subr.mxu0 0.0
    %4938 = vmatpush1.xpose.msra.mxu0 0.0
    %4939 = vmatprep.subr.mxu0 0.0
    %4940 = vmatpush1.xpose.msra.mxu0 0.0
    %4941 = vmatprep.subr.mxu0 0.0
    %4942 = vmatpush1.xpose.msra.mxu0 0.0
    %4943 = vmatprep.subr.mxu0 0.0
    %4944 = vmatpush1.xpose.msra.mxu0 0.0
    %4945 = vmatprep.subr.mxu0 0.0
    %4946 = vmatpush1.xpose.msra.mxu0 0.0
    %4947 = vmatprep.subr.mxu0 0.0
    %4948 = vmatpush1.xpose.msra.mxu0 0.0
    %4949 = vmatprep.subr.mxu0 0.0
    %4950 = vmatpush1.xpose.msra.mxu0 0.0
    %4951 = vmatprep.subr.mxu0 0.0
    %4952 = vmatpush1.xpose.msra.mxu0 0.0
    %4953 = vmatprep.subr.mxu0 0.0
    %4954 = vmatpush1.xpose.msra.mxu0 0.0
    %4955 = vmatprep.subr.mxu0 0.0
    %4956 = vmatpush1.xpose.msra.mxu0 0.0
    %4957 = vmatprep.subr.mxu0 0.0
    %4958 = vmatpush1.xpose.msra.mxu0 0.0
    %4959 = vmatprep.subr.mxu0 0.0
    %4960 = vmatpush1.xpose.msra.mxu0 0.0
    %4961 = vmatprep.subr.mxu0 0.0
    %4962 = vmatpush1.xpose.msra.mxu0 0.0
    %4963 = vmatprep.subr.mxu0 0.0
    %4964 = vmatpush1.xpose.msra.mxu0 0.0
    %4965 = vmatprep.subr.mxu0 0.0
    %4966 = vmatpush1.xpose.msra.mxu0 0.0
    %4967 = vmatprep.subr.mxu0 0.0
    %4968 = vmatpush1.xpose.msra.mxu0 0.0
    %4969 = vmatprep.subr.mxu0 0.0
    %4970 = vmatpush1.xpose.msra.mxu0 0.0
    %4971 = vmatprep.mubr.f32.mxu0 0.0
    %4972 = vmatmul.mubr.f32.gmra.mrb[0].mxu0 %v4902
    %v4973 = vpop.f32.mrb[0].mxu0
    %v4974 = vadd.f32 0.0, %v4973
    %v4975 = vpop.f32.mrb[0].mxu0
    %4976 = vdwg.mxu0
    %v4978 = vsel %vm1287, %v4246, 0
    %v4981 = vsel %vm1287, %v4538, 0
    %4983 = vmatprep.subr.mxu0 0.0
    %4984 = vmatpush1.xpose.msra.mxu0 %v4981
    %4985 = vmatprep.subr.mxu0 0.0
    %4986 = vmatpush1.xpose.msra.mxu0 0.0
    %4987 = vmatprep.subr.mxu0 0.0
    %4988 = vmatpush1.xpose.msra.mxu0 0.0
    %4989 = vmatprep.subr.mxu0 0.0
    %4990 = vmatpush1.xpose.msra.mxu0 0.0
    %4991 = vmatprep.subr.mxu0 0.0
    %4992 = vmatpush1.xpose.msra.mxu0 0.0
    %4993 = vmatprep.subr.mxu0 0.0
    %4994 = vmatpush1.xpose.msra.mxu0 0.0
    %4995 = vmatprep.subr.mxu0 0.0
    %4996 = vmatpush1.xpose.msra.mxu0 0.0
    %4997 = vmatprep.subr.mxu0 0.0
    %4998 = vmatpush1.xpose.msra.mxu0 0.0
    %4999 = vmatprep.subr.mxu0 0.0
    %5000 = vmatpush1.xpose.msra.mxu0 0.0
    %5001 = vmatprep.subr.mxu0 0.0
    %5002 = vmatpush1.xpose.msra.mxu0 0.0
    %5003 = vmatprep.subr.mxu0 0.0
    %5004 = vmatpush1.xpose.msra.mxu0 0.0
    %5005 = vmatprep.subr.mxu0 0.0
    %5006 = vmatpush1.xpose.msra.mxu0 0.0
    %5007 = vmatprep.subr.mxu0 0.0
    %5008 = vmatpush1.xpose.msra.mxu0 0.0
    %5009 = vmatprep.subr.mxu0 0.0
    %5010 = vmatpush1.xpose.msra.mxu0 0.0
    %5011 = vmatprep.subr.mxu0 0.0
    %5012 = vmatpush1.xpose.msra.mxu0 0.0
    %5013 = vmatprep.subr.mxu0 0.0
    %5014 = vmatpush1.xpose.msra.mxu0 0.0
    %5015 = vmatprep.subr.mxu0 0.0
    %5016 = vmatpush1.xpose.msra.mxu0 0.0
    %5017 = vmatprep.subr.mxu0 0.0
    %5018 = vmatpush1.xpose.msra.mxu0 0.0
    %5019 = vmatprep.subr.mxu0 0.0
    %5020 = vmatpush1.xpose.msra.mxu0 0.0
    %5021 = vmatprep.subr.mxu0 0.0
    %5022 = vmatpush1.xpose.msra.mxu0 0.0
    %5023 = vmatprep.subr.mxu0 0.0
    %5024 = vmatpush1.xpose.msra.mxu0 0.0
    %5025 = vmatprep.subr.mxu0 0.0
    %5026 = vmatpush1.xpose.msra.mxu0 0.0
    %5027 = vmatprep.subr.mxu0 0.0
    %5028 = vmatpush1.xpose.msra.mxu0 0.0
    %5029 = vmatprep.subr.mxu0 0.0
    %5030 = vmatpush1.xpose.msra.mxu0 0.0
    %5031 = vmatprep.subr.mxu0 0.0
    %5032 = vmatpush1.xpose.msra.mxu0 0.0
    %5033 = vmatprep.subr.mxu0 0.0
    %5034 = vmatpush1.xpose.msra.mxu0 0.0
    %5035 = vmatprep.subr.mxu0 0.0
    %5036 = vmatpush1.xpose.msra.mxu0 0.0
    %5037 = vmatprep.subr.mxu0 0.0
    %5038 = vmatpush1.xpose.msra.mxu0 0.0
    %5039 = vmatprep.subr.mxu0 0.0
    %5040 = vmatpush1.xpose.msra.mxu0 0.0
    %5041 = vmatprep.subr.mxu0 0.0
    %5042 = vmatpush1.xpose.msra.mxu0 0.0
    %5043 = vmatprep.subr.mxu0 0.0
    %5044 = vmatpush1.xpose.msra.mxu0 0.0
    %5045 = vmatprep.subr.mxu0 0.0
    %5046 = vmatpush1.xpose.msra.mxu0 0.0
    %5047 = vmatprep.mubr.f32.mxu0 0.0
    %5048 = vmatmul.mubr.f32.gmra.mrb[0].mxu0 %v4978
    %v5049 = vpop.f32.mrb[0].mxu0
    %v5050 = vadd.f32 0.0, %v5049
    %v5051 = vpop.f32.mrb[0].mxu0
    %5052 = vdwg.mxu0
    %v5054 = vsel %vm1287, %v4247, 0
    %v5057 = vsel %vm1287, %v4539, 0
    %5059 = vmatprep.subr.mxu0 0.0
    %5060 = vmatpush1.xpose.msra.mxu0 %v5057
    %5061 = vmatprep.subr.mxu0 0.0
    %5062 = vmatpush1.xpose.msra.mxu0 0.0
    %5063 = vmatprep.subr.mxu0 0.0
    %5064 = vmatpush1.xpose.msra.mxu0 0.0
    %5065 = vmatprep.subr.mxu0 0.0
    %5066 = vmatpush1.xpose.msra.mxu0 0.0
    %5067 = vmatprep.subr.mxu0 0.0
    %5068 = vmatpush1.xpose.msra.mxu0 0.0
    %5069 = vmatprep.subr.mxu0 0.0
    %5070 = vmatpush1.xpose.msra.mxu0 0.0
    %5071 = vmatprep.subr.mxu0 0.0
    %5072 = vmatpush1.xpose.msra.mxu0 0.0
    %5073 = vmatprep.subr.mxu0 0.0
    %5074 = vmatpush1.xpose.msra.mxu0 0.0
    %5075 = vmatprep.subr.mxu0 0.0
    %5076 = vmatpush1.xpose.msra.mxu0 0.0
    %5077 = vmatprep.subr.mxu0 0.0
    %5078 = vmatpush1.xpose.msra.mxu0 0.0
    %5079 = vmatprep.subr.mxu0 0.0
    %5080 = vmatpush1.xpose.msra.mxu0 0.0
    %5081 = vmatprep.subr.mxu0 0.0
    %5082 = vmatpush1.xpose.msra.mxu0 0.0
    %5083 = vmatprep.subr.mxu0 0.0
    %5084 = vmatpush1.xpose.msra.mxu0 0.0
    %5085 = vmatprep.subr.mxu0 0.0
    %5086 = vmatpush1.xpose.msra.mxu0 0.0
    %5087 = vmatprep.subr.mxu0 0.0
    %5088 = vmatpush1.xpose.msra.mxu0 0.0
    %5089 = vmatprep.subr.mxu0 0.0
    %5090 = vmatpush1.xpose.msra.mxu0 0.0
    %5091 = vmatprep.subr.mxu0 0.0
    %5092 = vmatpush1.xpose.msra.mxu0 0.0
    %5093 = vmatprep.subr.mxu0 0.0
    %5094 = vmatpush1.xpose.msra.mxu0 0.0
    %5095 = vmatprep.subr.mxu0 0.0
    %5096 = vmatpush1.xpose.msra.mxu0 0.0
    %5097 = vmatprep.subr.mxu0 0.0
    %5098 = vmatpush1.xpose.msra.mxu0 0.0
    %5099 = vmatprep.subr.mxu0 0.0
    %5100 = vmatpush1.xpose.msra.mxu0 0.0
    %5101 = vmatprep.subr.mxu0 0.0
    %5102 = vmatpush1.xpose.msra.mxu0 0.0
    %5103 = vmatprep.subr.mxu0 0.0
    %5104 = vmatpush1.xpose.msra.mxu0 0.0
    %5105 = vmatprep.subr.mxu0 0.0
    %5106 = vmatpush1.xpose.msra.mxu0 0.0
    %5107 = vmatprep.subr.mxu0 0.0
    %5108 = vmatpush1.xpose.msra.mxu0 0.0
    %5109 = vmatprep.subr.mxu0 0.0
    %5110 = vmatpush1.xpose.msra.mxu0 0.0
    %5111 = vmatprep.subr.mxu0 0.0
    %5112 = vmatpush1.xpose.msra.mxu0 0.0
    %5113 = vmatprep.subr.mxu0 0.0
    %5114 = vmatpush1.xpose.msra.mxu0 0.0
    %5115 = vmatprep.subr.mxu0 0.0
    %5116 = vmatpush1.xpose.msra.mxu0 0.0
    %5117 = vmatprep.subr.mxu0 0.0
    %5118 = vmatpush1.xpose.msra.mxu0 0.0
    %5119 = vmatprep.subr.mxu0 0.0
    %5120 = vmatpush1.xpose.msra.mxu0 0.0
    %5121 = vmatprep.subr.mxu0 0.0
    %5122 = vmatpush1.xpose.msra.mxu0 0.0
    %5123 = vmatprep.mubr.f32.mxu0 0.0
    %5124 = vmatmul.mubr.f32.gmra.mrb[0].mxu0 %v5054
    %v5125 = vpop.f32.mrb[0].mxu0
    %v5126 = vadd.f32 0.0, %v5125
    %v5127 = vpop.f32.mrb[0].mxu0
    %5128 = vdwg.mxu0
    %v5130 = vsel %vm1287, %v4248, 0
    %v5133 = vsel %vm1287, %v4540, 0
    %5135 = vmatprep.subr.mxu0 0.0
    %5136 = vmatpush1.xpose.msra.mxu0 %v5133
    %5137 = vmatprep.subr.mxu0 0.0
    %5138 = vmatpush1.xpose.msra.mxu0 0.0
    %5139 = vmatprep.subr.mxu0 0.0
    %5140 = vmatpush1.xpose.msra.mxu0 0.0
    %5141 = vmatprep.subr.mxu0 0.0
    %5142 = vmatpush1.xpose.msra.mxu0 0.0
    %5143 = vmatprep.subr.mxu0 0.0
    %5144 = vmatpush1.xpose.msra.mxu0 0.0
    %5145 = vmatprep.subr.mxu0 0.0
    %5146 = vmatpush1.xpose.msra.mxu0 0.0
    %5147 = vmatprep.subr.mxu0 0.0
    %5148 = vmatpush1.xpose.msra.mxu0 0.0
    %5149 = vmatprep.subr.mxu0 0.0
    %5150 = vmatpush1.xpose.msra.mxu0 0.0
    %5151 = vmatprep.subr.mxu0 0.0
    %5152 = vmatpush1.xpose.msra.mxu0 0.0
    %5153 = vmatprep.subr.mxu0 0.0
    %5154 = vmatpush1.xpose.msra.mxu0 0.0
    %5155 = vmatprep.subr.mxu0 0.0
    %5156 = vmatpush1.xpose.msra.mxu0 0.0
    %5157 = vmatprep.subr.mxu0 0.0
    %5158 = vmatpush1.xpose.msra.mxu0 0.0
    %5159 = vmatprep.subr.mxu0 0.0
    %5160 = vmatpush1.xpose.msra.mxu0 0.0
    %5161 = vmatprep.subr.mxu0 0.0
    %5162 = vmatpush1.xpose.msra.mxu0 0.0
    %5163 = vmatprep.subr.mxu0 0.0
    %5164 = vmatpush1.xpose.msra.mxu0 0.0
    %5165 = vmatprep.subr.mxu0 0.0
    %5166 = vmatpush1.xpose.msra.mxu0 0.0
    %5167 = vmatprep.subr.mxu0 0.0
    %5168 = vmatpush1.xpose.msra.mxu0 0.0
    %5169 = vmatprep.subr.mxu0 0.0
    %5170 = vmatpush1.xpose.msra.mxu0 0.0
    %5171 = vmatprep.subr.mxu0 0.0
    %5172 = vmatpush1.xpose.msra.mxu0 0.0
    %5173 = vmatprep.subr.mxu0 0.0
    %5174 = vmatpush1.xpose.msra.mxu0 0.0
    %5175 = vmatprep.subr.mxu0 0.0
    %5176 = vmatpush1.xpose.msra.mxu0 0.0
    %5177 = vmatprep.subr.mxu0 0.0
    %5178 = vmatpush1.xpose.msra.mxu0 0.0
    %5179 = vmatprep.subr.mxu0 0.0
    %5180 = vmatpush1.xpose.msra.mxu0 0.0
    %5181 = vmatprep.subr.mxu0 0.0
    %5182 = vmatpush1.xpose.msra.mxu0 0.0
    %5183 = vmatprep.subr.mxu0 0.0
    %5184 = vmatpush1.xpose.msra.mxu0 0.0
    %5185 = vmatprep.subr.mxu0 0.0
    %5186 = vmatpush1.xpose.msra.mxu0 0.0
    %5187 = vmatprep.subr.mxu0 0.0
    %5188 = vmatpush1.xpose.msra.mxu0 0.0
    %5189 = vmatprep.subr.mxu0 0.0
    %5190 = vmatpush1.xpose.msra.mxu0 0.0
    %5191 = vmatprep.subr.mxu0 0.0
    %5192 = vmatpush1.xpose.msra.mxu0 0.0
    %5193 = vmatprep.subr.mxu0 0.0
    %5194 = vmatpush1.xpose.msra.mxu0 0.0
    %5195 = vmatprep.subr.mxu0 0.0
    %5196 = vmatpush1.xpose.msra.mxu0 0.0
    %5197 = vmatprep.subr.mxu0 0.0
    %5198 = vmatpush1.xpose.msra.mxu0 0.0
    %5199 = vmatprep.mubr.f32.mxu0 0.0
    %5200 = vmatmul.mubr.f32.gmra.mrb[0].mxu0 %v5130
    %v5201 = vpop.f32.mrb[0].mxu0
    %v5202 = vadd.f32 0.0, %v5201
    %v5203 = vpop.f32.mrb[0].mxu0
    %5204 = vdwg.mxu0
    %v5206 = vsel %vm1287, %v4313, 0
    %v5209 = vsel %vm1287, %v4605, 0
    %5211 = vmatprep.subr.mxu0 0.0
    %5212 = vmatpush1.xpose.msra.mxu0 %v5209
    %5213 = vmatprep.subr.mxu0 0.0
    %5214 = vmatpush1.xpose.msra.mxu0 0.0
    %5215 = vmatprep.subr.mxu0 0.0
    %5216 = vmatpush1.xpose.msra.mxu0 0.0
    %5217 = vmatprep.subr.mxu0 0.0
    %5218 = vmatpush1.xpose.msra.mxu0 0.0
    %5219 = vmatprep.subr.mxu0 0.0
    %5220 = vmatpush1.xpose.msra.mxu0 0.0
    %5221 = vmatprep.subr.mxu0 0.0
    %5222 = vmatpush1.xpose.msra.mxu0 0.0
    %5223 = vmatprep.subr.mxu0 0.0
    %5224 = vmatpush1.xpose.msra.mxu0 0.0
    %5225 = vmatprep.subr.mxu0 0.0
    %5226 = vmatpush1.xpose.msra.mxu0 0.0
    %5227 = vmatprep.subr.mxu0 0.0
    %5228 = vmatpush1.xpose.msra.mxu0 0.0
    %5229 = vmatprep.subr.mxu0 0.0
    %5230 = vmatpush1.xpose.msra.mxu0 0.0
    %5231 = vmatprep.subr.mxu0 0.0
    %5232 = vmatpush1.xpose.msra.mxu0 0.0
    %5233 = vmatprep.subr.mxu0 0.0
    %5234 = vmatpush1.xpose.msra.mxu0 0.0
    %5235 = vmatprep.subr.mxu0 0.0
    %5236 = vmatpush1.xpose.msra.mxu0 0.0
    %5237 = vmatprep.subr.mxu0 0.0
    %5238 = vmatpush1.xpose.msra.mxu0 0.0
    %5239 = vmatprep.subr.mxu0 0.0
    %5240 = vmatpush1.xpose.msra.mxu0 0.0
    %5241 = vmatprep.subr.mxu0 0.0
    %5242 = vmatpush1.xpose.msra.mxu0 0.0
    %5243 = vmatprep.subr.mxu0 0.0
    %5244 = vmatpush1.xpose.msra.mxu0 0.0
    %5245 = vmatprep.subr.mxu0 0.0
    %5246 = vmatpush1.xpose.msra.mxu0 0.0
    %5247 = vmatprep.subr.mxu0 0.0
    %5248 = vmatpush1.xpose.msra.mxu0 0.0
    %5249 = vmatprep.subr.mxu0 0.0
    %5250 = vmatpush1.xpose.msra.mxu0 0.0
    %5251 = vmatprep.subr.mxu0 0.0
    %5252 = vmatpush1.xpose.msra.mxu0 0.0
    %5253 = vmatprep.subr.mxu0 0.0
    %5254 = vmatpush1.xpose.msra.mxu0 0.0
    %5255 = vmatprep.subr.mxu0 0.0
    %5256 = vmatpush1.xpose.msra.mxu0 0.0
    %5257 = vmatprep.subr.mxu0 0.0
    %5258 = vmatpush1.xpose.msra.mxu0 0.0
    %5259 = vmatprep.subr.mxu0 0.0
    %5260 = vmatpush1.xpose.msra.mxu0 0.0
    %5261 = vmatprep.subr.mxu0 0.0
    %5262 = vmatpush1.xpose.msra.mxu0 0.0
    %5263 = vmatprep.subr.mxu0 0.0
    %5264 = vmatpush1.xpose.msra.mxu0 0.0
    %5265 = vmatprep.subr.mxu0 0.0
    %5266 = vmatpush1.xpose.msra.mxu0 0.0
    %5267 = vmatprep.subr.mxu0 0.0
    %5268 = vmatpush1.xpose.msra.mxu0 0.0
    %5269 = vmatprep.subr.mxu0 0.0
    %5270 = vmatpush1.xpose.msra.mxu0 0.0
    %5271 = vmatprep.subr.mxu0 0.0
    %5272 = vmatpush1.xpose.msra.mxu0 0.0
    %5273 = vmatprep.subr.mxu0 0.0
    %5274 = vmatpush1.xpose.msra.mxu0 0.0
    %5275 = vmatprep.mubr.f32.mxu0 0.0
    %5276 = vmatmul.mubr.f32.gmra.mrb[0].mxu0 %v5206
    %v5277 = vpop.f32.mrb[0].mxu0
    %v5278 = vadd.f32 0.0, %v5277
    %v5279 = vpop.f32.mrb[0].mxu0
    %5280 = vdwg.mxu0
    %v5282 = vsel %vm1287, %v4314, 0
    %v5285 = vsel %vm1287, %v4606, 0
    %5287 = vmatprep.subr.mxu0 0.0
    %5288 = vmatpush1.xpose.msra.mxu0 %v5285
    %5289 = vmatprep.subr.mxu0 0.0
    %5290 = vmatpush1.xpose.msra.mxu0 0.0
    %5291 = vmatprep.subr.mxu0 0.0
    %5292 = vmatpush1.xpose.msra.mxu0 0.0
    %5293 = vmatprep.subr.mxu0 0.0
    %5294 = vmatpush1.xpose.msra.mxu0 0.0
    %5295 = vmatprep.subr.mxu0 0.0
    %5296 = vmatpush1.xpose.msra.mxu0 0.0
    %5297 = vmatprep.subr.mxu0 0.0
    %5298 = vmatpush1.xpose.msra.mxu0 0.0
    %5299 = vmatprep.subr.mxu0 0.0
    %5300 = vmatpush1.xpose.msra.mxu0 0.0
    %5301 = vmatprep.subr.mxu0 0.0
    %5302 = vmatpush1.xpose.msra.mxu0 0.0
    %5303 = vmatprep.subr.mxu0 0.0
    %5304 = vmatpush1.xpose.msra.mxu0 0.0
    %5305 = vmatprep.subr.mxu0 0.0
    %5306 = vmatpush1.xpose.msra.mxu0 0.0
    %5307 = vmatprep.subr.mxu0 0.0
    %5308 = vmatpush1.xpose.msra.mxu0 0.0
    %5309 = vmatprep.subr.mxu0 0.0
    %5310 = vmatpush1.xpose.msra.mxu0 0.0
    %5311 = vmatprep.subr.mxu0 0.0
    %5312 = vmatpush1.xpose.msra.mxu0 0.0
    %5313 = vmatprep.subr.mxu0 0.0
    %5314 = vmatpush1.xpose.msra.mxu0 0.0
    %5315 = vmatprep.subr.mxu0 0.0
    %5316 = vmatpush1.xpose.msra.mxu0 0.0
    %5317 = vmatprep.subr.mxu0 0.0
    %5318 = vmatpush1.xpose.msra.mxu0 0.0
    %5319 = vmatprep.subr.mxu0 0.0
    %5320 = vmatpush1.xpose.msra.mxu0 0.0
    %5321 = vmatprep.subr.mxu0 0.0
    %5322 = vmatpush1.xpose.msra.mxu0 0.0
    %5323 = vmatprep.subr.mxu0 0.0
    %5324 = vmatpush1.xpose.msra.mxu0 0.0
    %5325 = vmatprep.subr.mxu0 0.0
    %5326 = vmatpush1.xpose.msra.mxu0 0.0
    %5327 = vmatprep.subr.mxu0 0.0
    %5328 = vmatpush1.xpose.msra.mxu0 0.0
    %5329 = vmatprep.subr.mxu0 0.0
    %5330 = vmatpush1.xpose.msra.mxu0 0.0
    %5331 = vmatprep.subr.mxu0 0.0
    %5332 = vmatpush1.xpose.msra.mxu0 0.0
    %5333 = vmatprep.subr.mxu0 0.0
    %5334 = vmatpush1.xpose.msra.mxu0 0.0
    %5335 = vmatprep.subr.mxu0 0.0
    %5336 = vmatpush1.xpose.msra.mxu0 0.0
    %5337 = vmatprep.subr.mxu0 0.0
    %5338 = vmatpush1.xpose.msra.mxu0 0.0
    %5339 = vmatprep.subr.mxu0 0.0
    %5340 = vmatpush1.xpose.msra.mxu0 0.0
    %5341 = vmatprep.subr.mxu0 0.0
    %5342 = vmatpush1.xpose.msra.mxu0 0.0
    %5343 = vmatprep.subr.mxu0 0.0
    %5344 = vmatpush1.xpose.msra.mxu0 0.0
    %5345 = vmatprep.subr.mxu0 0.0
    %5346 = vmatpush1.xpose.msra.mxu0 0.0
    %5347 = vmatprep.subr.mxu0 0.0
    %5348 = vmatpush1.xpose.msra.mxu0 0.0
    %5349 = vmatprep.subr.mxu0 0.0
    %5350 = vmatpush1.xpose.msra.mxu0 0.0
    %5351 = vmatprep.mubr.f32.mxu0 0.0
    %5352 = vmatmul.mubr.f32.gmra.mrb[0].mxu0 %v5282
    %v5353 = vpop.f32.mrb[0].mxu0
    %v5354 = vadd.f32 0.0, %v5353
    %v5355 = vpop.f32.mrb[0].mxu0
    %5356 = vdwg.mxu0
    %v5358 = vsel %vm1287, %v4315, 0
    %v5361 = vsel %vm1287, %v4607, 0
    %5363 = vmatprep.subr.mxu0 0.0
    %5364 = vmatpush1.xpose.msra.mxu0 %v5361
    %5365 = vmatprep.subr.mxu0 0.0
    %5366 = vmatpush1.xpose.msra.mxu0 0.0
    %5367 = vmatprep.subr.mxu0 0.0
    %5368 = vmatpush1.xpose.msra.mxu0 0.0
    %5369 = vmatprep.subr.mxu0 0.0
    %5370 = vmatpush1.xpose.msra.mxu0 0.0
    %5371 = vmatprep.subr.mxu0 0.0
    %5372 = vmatpush1.xpose.msra.mxu0 0.0
    %5373 = vmatprep.subr.mxu0 0.0
    %5374 = vmatpush1.xpose.msra.mxu0 0.0
    %5375 = vmatprep.subr.mxu0 0.0
    %5376 = vmatpush1.xpose.msra.mxu0 0.0
    %5377 = vmatprep.subr.mxu0 0.0
    %5378 = vmatpush1.xpose.msra.mxu0 0.0
    %5379 = vmatprep.subr.mxu0 0.0
    %5380 = vmatpush1.xpose.msra.mxu0 0.0
    %5381 = vmatprep.subr.mxu0 0.0
    %5382 = vmatpush1.xpose.msra.mxu0 0.0
    %5383 = vmatprep.subr.mxu0 0.0
    %5384 = vmatpush1.xpose.msra.mxu0 0.0
    %5385 = vmatprep.subr.mxu0 0.0
    %5386 = vmatpush1.xpose.msra.mxu0 0.0
    %5387 = vmatprep.subr.mxu0 0.0
    %5388 = vmatpush1.xpose.msra.mxu0 0.0
    %5389 = vmatprep.subr.mxu0 0.0
    %5390 = vmatpush1.xpose.msra.mxu0 0.0
    %5391 = vmatprep.subr.mxu0 0.0
    %5392 = vmatpush1.xpose.msra.mxu0 0.0
    %5393 = vmatprep.subr.mxu0 0.0
    %5394 = vmatpush1.xpose.msra.mxu0 0.0
    %5395 = vmatprep.subr.mxu0 0.0
    %5396 = vmatpush1.xpose.msra.mxu0 0.0
    %5397 = vmatprep.subr.mxu0 0.0
    %5398 = vmatpush1.xpose.msra.mxu0 0.0
    %5399 = vmatprep.subr.mxu0 0.0
    %5400 = vmatpush1.xpose.msra.mxu0 0.0
    %5401 = vmatprep.subr.mxu0 0.0
    %5402 = vmatpush1.xpose.msra.mxu0 0.0
    %5403 = vmatprep.subr.mxu0 0.0
    %5404 = vmatpush1.xpose.msra.mxu0 0.0
    %5405 = vmatprep.subr.mxu0 0.0
    %5406 = vmatpush1.xpose.msra.mxu0 0.0
    %5407 = vmatprep.subr.mxu0 0.0
    %5408 = vmatpush1.xpose.msra.mxu0 0.0
    %5409 = vmatprep.subr.mxu0 0.0
    %5410 = vmatpush1.xpose.msra.mxu0 0.0
    %5411 = vmatprep.subr.mxu0 0.0
    %5412 = vmatpush1.xpose.msra.mxu0 0.0
    %5413 = vmatprep.subr.mxu0 0.0
    %5414 = vmatpush1.xpose.msra.mxu0 0.0
    %5415 = vmatprep.subr.mxu0 0.0
    %5416 = vmatpush1.xpose.msra.mxu0 0.0
    %5417 = vmatprep.subr.mxu0 0.0
    %5418 = vmatpush1.xpose.msra.mxu0 0.0
    %5419 = vmatprep.subr.mxu0 0.0
    %5420 = vmatpush1.xpose.msra.mxu0 0.0
    %5421 = vmatprep.subr.mxu0 0.0
    %5422 = vmatpush1.xpose.msra.mxu0 0.0
    %5423 = vmatprep.subr.mxu0 0.0
    %5424 = vmatpush1.xpose.msra.mxu0 0.0
    %5425 = vmatprep.subr.mxu0 0.0
    %5426 = vmatpush1.xpose.msra.mxu0 0.0
    %5427 = vmatprep.mubr.f32.mxu0 0.0
    %5428 = vmatmul.mubr.f32.gmra.mrb[0].mxu0 %v5358
    %v5429 = vpop.f32.mrb[0].mxu0
    %v5430 = vadd.f32 0.0, %v5429
    %v5431 = vpop.f32.mrb[0].mxu0
    %5432 = vdwg.mxu0
    %v5434 = vsel %vm1287, %v4316, 0
    %v5437 = vsel %vm1287, %v4608, 0
    %5439 = vmatprep.subr.mxu0 0.0
    %5440 = vmatpush1.xpose.msra.mxu0 %v5437
    %5441 = vmatprep.subr.mxu0 0.0
    %5442 = vmatpush1.xpose.msra.mxu0 0.0
    %5443 = vmatprep.subr.mxu0 0.0
    %5444 = vmatpush1.xpose.msra.mxu0 0.0
    %5445 = vmatprep.subr.mxu0 0.0
    %5446 = vmatpush1.xpose.msra.mxu0 0.0
    %5447 = vmatprep.subr.mxu0 0.0
    %5448 = vmatpush1.xpose.msra.mxu0 0.0
    %5449 = vmatprep.subr.mxu0 0.0
    %5450 = vmatpush1.xpose.msra.mxu0 0.0
    %5451 = vmatprep.subr.mxu0 0.0
    %5452 = vmatpush1.xpose.msra.mxu0 0.0
    %5453 = vmatprep.subr.mxu0 0.0
    %5454 = vmatpush1.xpose.msra.mxu0 0.0
    %5455 = vmatprep.subr.mxu0 0.0
    %5456 = vmatpush1.xpose.msra.mxu0 0.0
    %5457 = vmatprep.subr.mxu0 0.0
    %5458 = vmatpush1.xpose.msra.mxu0 0.0
    %5459 = vmatprep.subr.mxu0 0.0
    %5460 = vmatpush1.xpose.msra.mxu0 0.0
    %5461 = vmatprep.subr.mxu0 0.0
    %5462 = vmatpush1.xpose.msra.mxu0 0.0
    %5463 = vmatprep.subr.mxu0 0.0
    %5464 = vmatpush1.xpose.msra.mxu0 0.0
    %5465 = vmatprep.subr.mxu0 0.0
    %5466 = vmatpush1.xpose.msra.mxu0 0.0
    %5467 = vmatprep.subr.mxu0 0.0
    %5468 = vmatpush1.xpose.msra.mxu0 0.0
    %5469 = vmatprep.subr.mxu0 0.0
    %5470 = vmatpush1.xpose.msra.mxu0 0.0
    %5471 = vmatprep.subr.mxu0 0.0
    %5472 = vmatpush1.xpose.msra.mxu0 0.0
    %5473 = vmatprep.subr.mxu0 0.0
    %5474 = vmatpush1.xpose.msra.mxu0 0.0
    %5475 = vmatprep.subr.mxu0 0.0
    %5476 = vmatpush1.xpose.msra.mxu0 0.0
    %5477 = vmatprep.subr.mxu0 0.0
    %5478 = vmatpush1.xpose.msra.mxu0 0.0
    %5479 = vmatprep.subr.mxu0 0.0
    %5480 = vmatpush1.xpose.msra.mxu0 0.0
    %5481 = vmatprep.subr.mxu0 0.0
    %5482 = vmatpush1.xpose.msra.mxu0 0.0
    %5483 = vmatprep.subr.mxu0 0.0
    %5484 = vmatpush1.xpose.msra.mxu0 0.0
    %5485 = vmatprep.subr.mxu0 0.0
    %5486 = vmatpush1.xpose.msra.mxu0 0.0
    %5487 = vmatprep.subr.mxu0 0.0
    %5488 = vmatpush1.xpose.msra.mxu0 0.0
    %5489 = vmatprep.subr.mxu0 0.0
    %5490 = vmatpush1.xpose.msra.mxu0 0.0
    %5491 = vmatprep.subr.mxu0 0.0
    %5492 = vmatpush1.xpose.msra.mxu0 0.0
    %5493 = vmatprep.subr.mxu0 0.0
    %5494 = vmatpush1.xpose.msra.mxu0 0.0
    %5495 = vmatprep.subr.mxu0 0.0
    %5496 = vmatpush1.xpose.msra.mxu0 0.0
    %5497 = vmatprep.subr.mxu0 0.0
    %5498 = vmatpush1.xpose.msra.mxu0 0.0
    %5499 = vmatprep.subr.mxu0 0.0
    %5500 = vmatpush1.xpose.msra.mxu0 0.0
    %5501 = vmatprep.subr.mxu0 0.0
    %5502 = vmatpush1.xpose.msra.mxu0 0.0
    %5503 = vmatprep.mubr.f32.mxu0 0.0
    %5504 = vmatmul.mubr.f32.gmra.mrb[0].mxu0 %v5434
    %v5505 = vpop.f32.mrb[0].mxu0
    %v5506 = vadd.f32 0.0, %v5505
    %v5507 = vpop.f32.mrb[0].mxu0
    %5508 = vdwg.mxu0
    %v5509 = vsel %vm1896, %v4974, -inf
    %5510 = vmax.xlane.f32.xlu0 %v5509
    %v5511 = vpop.xlane.xlu0 %5510
    %v5512 = vsel %vm1896, %v5050, -inf
    %5513 = vmax.xlane.f32.xlu0 %v5512
    %v5514 = vpop.xlane.xlu0 %5513
    %v5515 = vsel %vm1896, %v5126, -inf
    %5516 = vmax.xlane.f32.xlu0 %v5515
    %v5517 = vpop.xlane.xlu0 %5516
    %v5518 = vsel %vm1896, %v5202, -inf
    %5519 = vmax.xlane.f32.xlu0 %v5518
    %v5520 = vpop.xlane.xlu0 %5519
    %v5521 = vsel %vm1896, %v5278, -inf
    %5522 = vmax.xlane.f32.xlu0 %v5521
    %v5523 = vpop.xlane.xlu0 %5522
    %v5524 = vsel %vm1896, %v5354, -inf
    %5525 = vmax.xlane.f32.xlu0 %v5524
    %v5526 = vpop.xlane.xlu0 %5525
    %v5527 = vsel %vm1896, %v5430, -inf
    %5528 = vmax.xlane.f32.xlu0 %v5527
    %v5529 = vpop.xlane.xlu0 %5528
    %v5530 = vsel %vm1896, %v5506, -inf
    %5531 = vmax.xlane.f32.xlu0 %v5530
    %v5532 = vpop.xlane.xlu0 %5531
    %v5533 = vsub.f32 %v4974, %v5511
    %v5534 = vsub.f32 %v5050, %v5514
    %v5535 = vsub.f32 %v5126, %v5517
    %v5536 = vsub.f32 %v5202, %v5520
    %v5537 = vsub.f32 %v5278, %v5523
    %v5538 = vsub.f32 %v5354, %v5526
    %v5539 = vsub.f32 %v5430, %v5529
    %v5540 = vsub.f32 %v5506, %v5532
    %v5541 = vmul.f32 %v5533, 1.442695
    %v5542 = vpow.pop %v5541
    %v5543 = vmul.f32 %v5534, 1.442695
    %v5544 = vpow.pop %v5543
    %v5545 = vmul.f32 %v5535, 1.442695
    %v5546 = vpow.pop %v5545
    %v5547 = vmul.f32 %v5536, 1.442695
    %v5548 = vpow.pop %v5547
    %v5549 = vmul.f32 %v5537, 1.442695
    %v5550 = vpow.pop %v5549
    %v5551 = vmul.f32 %v5538, 1.442695
    %v5552 = vpow.pop %v5551
    %v5553 = vmul.f32 %v5539, 1.442695
    %v5554 = vpow.pop %v5553
    %v5555 = vmul.f32 %v5540, 1.442695
    %v5556 = vpow.pop %v5555
    %v5557 = vsel %vm1896, %v5542, 0.0
    %5558 = vadd.xlane.f32.xlu0 %v5557
    %v5559 = vpop.xlane.xlu0 %5558
    %v5560 = vsel %vm1896, %v5544, 0.0
    %5561 = vadd.xlane.f32.xlu0 %v5560
    %v5562 = vpop.xlane.xlu0 %5561
    %v5563 = vsel %vm1896, %v5546, 0.0
    %5564 = vadd.xlane.f32.xlu0 %v5563
    %v5565 = vpop.xlane.xlu0 %5564
    %v5566 = vsel %vm1896, %v5548, 0.0
    %5567 = vadd.xlane.f32.xlu0 %v5566
    %v5568 = vpop.xlane.xlu0 %5567
    %v5569 = vsel %vm1896, %v5550, 0.0
    %5570 = vadd.xlane.f32.xlu0 %v5569
    %v5571 = vpop.xlane.xlu0 %5570
    %v5572 = vsel %vm1896, %v5552, 0.0
    %5573 = vadd.xlane.f32.xlu0 %v5572
    %v5574 = vpop.xlane.xlu0 %5573
    %v5575 = vsel %vm1896, %v5554, 0.0
    %5576 = vadd.xlane.f32.xlu0 %v5575
    %v5577 = vpop.xlane.xlu0 %5576
    %v5578 = vsel %vm1896, %v5556, 0.0
    %5579 = vadd.xlane.f32.xlu0 %v5578
    %v5580 = vpop.xlane.xlu0 %5579
    %v5581 = vrcp.pop %v5559
    %v5582 = vrcp.pop %v5562
    %v5583 = vrcp.pop %v5565
    %v5584 = vrcp.pop %v5568
    %v5585 = vrcp.pop %v5571
    %v5586 = vrcp.pop %v5574
    %v5587 = vrcp.pop %v5577
    %v5588 = vrcp.pop %v5580
    %v5589 = vmul.f32 %v5542, %v5581
    %v5590 = vmul.f32 %v5544, %v5582
    %v5591 = vmul.f32 %v5546, %v5583
    %v5592 = vmul.f32 %v5548, %v5584
    %v5593 = vmul.f32 %v5550, %v5585
    %v5594 = vmul.f32 %v5552, %v5586
    %v5595 = vmul.f32 %v5554, %v5587
    %v5596 = vmul.f32 %v5556, %v5588
    %v5598 = vsel %vm1896, %v5589, 0
    %5600 = vmatprep.subr.mxu0 0.0
    %5601 = vmatpush1.msra.mxu0 %v4829
    %5602 = vmatprep.subr.mxu0 0.0
    %5603 = vmatpush1.msra.mxu0 0.0
    %5604 = vmatprep.subr.mxu0 0.0
    %5605 = vmatpush1.msra.mxu0 0.0
    %5606 = vmatprep.subr.mxu0 0.0
    %5607 = vmatpush1.msra.mxu0 0.0
    %5608 = vmatprep.subr.mxu0 0.0
    %5609 = vmatpush1.msra.mxu0 0.0
    %5610 = vmatprep.subr.mxu0 0.0
    %5611 = vmatpush1.msra.mxu0 0.0
    %5612 = vmatprep.subr.mxu0 0.0
    %5613 = vmatpush1.msra.mxu0 0.0
    %5614 = vmatprep.subr.mxu0 0.0
    %5615 = vmatpush1.msra.mxu0 0.0
    %5616 = vmatprep.subr.mxu0 0.0
    %5617 = vmatpush1.msra.mxu0 0.0
    %5618 = vmatprep.subr.mxu0 0.0
    %5619 = vmatpush1.msra.mxu0 0.0
    %5620 = vmatprep.subr.mxu0 0.0
    %5621 = vmatpush1.msra.mxu0 0.0
    %5622 = vmatprep.subr.mxu0 0.0
    %5623 = vmatpush1.msra.mxu0 0.0
    %5624 = vmatprep.subr.mxu0 0.0
    %5625 = vmatpush1.msra.mxu0 0.0
    %5626 = vmatprep.subr.mxu0 0.0
    %5627 = vmatpush1.msra.mxu0 0.0
    %5628 = vmatprep.subr.mxu0 0.0
    %5629 = vmatpush1.msra.mxu0 0.0
    %5630 = vmatprep.subr.mxu0 0.0
    %5631 = vmatpush1.msra.mxu0 0.0
    %5632 = vmatprep.subr.mxu0 0.0
    %5633 = vmatpush1.msra.mxu0 0.0
    %5634 = vmatprep.subr.mxu0 0.0
    %5635 = vmatpush1.msra.mxu0 0.0
    %5636 = vmatprep.subr.mxu0 0.0
    %5637 = vmatpush1.msra.mxu0 0.0
    %5638 = vmatprep.subr.mxu0 0.0
    %5639 = vmatpush1.msra.mxu0 0.0
    %5640 = vmatprep.subr.mxu0 0.0
    %5641 = vmatpush1.msra.mxu0 0.0
    %5642 = vmatprep.subr.mxu0 0.0
    %5643 = vmatpush1.msra.mxu0 0.0
    %5644 = vmatprep.subr.mxu0 0.0
    %5645 = vmatpush1.msra.mxu0 0.0
    %5646 = vmatprep.subr.mxu0 0.0
    %5647 = vmatpush1.msra.mxu0 0.0
    %5648 = vmatprep.subr.mxu0 0.0
    %5649 = vmatpush1.msra.mxu0 0.0
    %5650 = vmatprep.subr.mxu0 0.0
    %5651 = vmatpush1.msra.mxu0 0.0
    %5652 = vmatprep.subr.mxu0 0.0
    %5653 = vmatpush1.msra.mxu0 0.0
    %5654 = vmatprep.subr.mxu0 0.0
    %5655 = vmatpush1.msra.mxu0 0.0
    %5656 = vmatprep.subr.mxu0 0.0
    %5657 = vmatpush1.msra.mxu0 0.0
    %5658 = vmatprep.subr.mxu0 0.0
    %5659 = vmatpush1.msra.mxu0 0.0
    %5660 = vmatprep.subr.mxu0 0.0
    %5661 = vmatpush1.msra.mxu0 0.0
    %5662 = vmatprep.subr.mxu0 0.0
    %5663 = vmatpush1.msra.mxu0 0.0
    %5664 = vmatprep.mubr.f32.mxu0 0.0
    %5665 = vmatmul.mubr.f32.gmra.mrb[0].mxu0 %v5598
    %v5666 = vpop.f32.mrb[0].mxu0
    %v5667 = vadd.f32 0.0, %v5666
    %v5668 = vpop.f32.mrb[0].mxu0
    %5669 = vdwg.mxu0
    %v5671 = vsel %vm1896, %v5590, 0
    %5673 = vmatprep.subr.mxu0 0.0
    %5674 = vmatpush1.msra.mxu0 %v4830
    %5675 = vmatprep.subr.mxu0 0.0
    %5676 = vmatpush1.msra.mxu0 0.0
    %5677 = vmatprep.subr.mxu0 0.0
    %5678 = vmatpush1.msra.mxu0 0.0
    %5679 = vmatprep.subr.mxu0 0.0
    %5680 = vmatpush1.msra.mxu0 0.0
    %5681 = vmatprep.subr.mxu0 0.0
    %5682 = vmatpush1.msra.mxu0 0.0
    %5683 = vmatprep.subr.mxu0 0.0
    %5684 = vmatpush1.msra.mxu0 0.0
    %5685 = vmatprep.subr.mxu0 0.0
    %5686 = vmatpush1.msra.mxu0 0.0
    %5687 = vmatprep.subr.mxu0 0.0
    %5688 = vmatpush1.msra.mxu0 0.0
    %5689 = vmatprep.subr.mxu0 0.0
    %5690 = vmatpush1.msra.mxu0 0.0
    %5691 = vmatprep.subr.mxu0 0.0
    %5692 = vmatpush1.msra.mxu0 0.0
    %5693 = vmatprep.subr.mxu0 0.0
    %5694 = vmatpush1.msra.mxu0 0.0
    %5695 = vmatprep.subr.mxu0 0.0
    %5696 = vmatpush1.msra.mxu0 0.0
    %5697 = vmatprep.subr.mxu0 0.0
    %5698 = vmatpush1.msra.mxu0 0.0
    %5699 = vmatprep.subr.mxu0 0.0
    %5700 = vmatpush1.msra.mxu0 0.0
    %5701 = vmatprep.subr.mxu0 0.0
    %5702 = vmatpush1.msra.mxu0 0.0
    %5703 = vmatprep.subr.mxu0 0.0
    %5704 = vmatpush1.msra.mxu0 0.0
    %5705 = vmatprep.subr.mxu0 0.0
    %5706 = vmatpush1.msra.mxu0 0.0
    %5707 = vmatprep.subr.mxu0 0.0
    %5708 = vmatpush1.msra.mxu0 0.0
    %5709 = vmatprep.subr.mxu0 0.0
    %5710 = vmatpush1.msra.mxu0 0.0
    %5711 = vmatprep.subr.mxu0 0.0
    %5712 = vmatpush1.msra.mxu0 0.0
    %5713 = vmatprep.subr.mxu0 0.0
    %5714 = vmatpush1.msra.mxu0 0.0
    %5715 = vmatprep.subr.mxu0 0.0
    %5716 = vmatpush1.msra.mxu0 0.0
    %5717 = vmatprep.subr.mxu0 0.0
    %5718 = vmatpush1.msra.mxu0 0.0
    %5719 = vmatprep.subr.mxu0 0.0
    %5720 = vmatpush1.msra.mxu0 0.0
    %5721 = vmatprep.subr.mxu0 0.0
    %5722 = vmatpush1.msra.mxu0 0.0
    %5723 = vmatprep.subr.mxu0 0.0
    %5724 = vmatpush1.msra.mxu0 0.0
    %5725 = vmatprep.subr.mxu0 0.0
    %5726 = vmatpush1.msra.mxu0 0.0
    %5727 = vmatprep.subr.mxu0 0.0
    %5728 = vmatpush1.msra.mxu0 0.0
    %5729 = vmatprep.subr.mxu0 0.0
    %5730 = vmatpush1.msra.mxu0 0.0
    %5731 = vmatprep.subr.mxu0 0.0
    %5732 = vmatpush1.msra.mxu0 0.0
    %5733 = vmatprep.subr.mxu0 0.0
    %5734 = vmatpush1.msra.mxu0 0.0
    %5735 = vmatprep.subr.mxu0 0.0
    %5736 = vmatpush1.msra.mxu0 0.0
    %5737 = vmatprep.mubr.f32.mxu0 0.0
    %5738 = vmatmul.mubr.f32.gmra.mrb[0].mxu0 %v5671
    %v5739 = vpop.f32.mrb[0].mxu0
    %v5740 = vadd.f32 0.0, %v5739
    %v5741 = vpop.f32.mrb[0].mxu0
    %5742 = vdwg.mxu0
    %v5744 = vsel %vm1896, %v5591, 0
    %5746 = vmatprep.subr.mxu0 0.0
    %5747 = vmatpush1.msra.mxu0 %v4831
    %5748 = vmatprep.subr.mxu0 0.0
    %5749 = vmatpush1.msra.mxu0 0.0
    %5750 = vmatprep.subr.mxu0 0.0
    %5751 = vmatpush1.msra.mxu0 0.0
    %5752 = vmatprep.subr.mxu0 0.0
    %5753 = vmatpush1.msra.mxu0 0.0
    %5754 = vmatprep.subr.mxu0 0.0
    %5755 = vmatpush1.msra.mxu0 0.0
    %5756 = vmatprep.subr.mxu0 0.0
    %5757 = vmatpush1.msra.mxu0 0.0
    %5758 = vmatprep.subr.mxu0 0.0
    %5759 = vmatpush1.msra.mxu0 0.0
    %5760 = vmatprep.subr.mxu0 0.0
    %5761 = vmatpush1.msra.mxu0 0.0
    %5762 = vmatprep.subr.mxu0 0.0
    %5763 = vmatpush1.msra.mxu0 0.0
    %5764 = vmatprep.subr.mxu0 0.0
    %5765 = vmatpush1.msra.mxu0 0.0
    %5766 = vmatprep.subr.mxu0 0.0
    %5767 = vmatpush1.msra.mxu0 0.0
    %5768 = vmatprep.subr.mxu0 0.0
    %5769 = vmatpush1.msra.mxu0 0.0
    %5770 = vmatprep.subr.mxu0 0.0
    %5771 = vmatpush1.msra.mxu0 0.0
    %5772 = vmatprep.subr.mxu0 0.0
    %5773 = vmatpush1.msra.mxu0 0.0
    %5774 = vmatprep.subr.mxu0 0.0
    %5775 = vmatpush1.msra.mxu0 0.0
    %5776 = vmatprep.subr.mxu0 0.0
    %5777 = vmatpush1.msra.mxu0 0.0
    %5778 = vmatprep.subr.mxu0 0.0
    %5779 = vmatpush1.msra.mxu0 0.0
    %5780 = vmatprep.subr.mxu0 0.0
    %5781 = vmatpush1.msra.mxu0 0.0
    %5782 = vmatprep.subr.mxu0 0.0
    %5783 = vmatpush1.msra.mxu0 0.0
    %5784 = vmatprep.subr.mxu0 0.0
    %5785 = vmatpush1.msra.mxu0 0.0
    %5786 = vmatprep.subr.mxu0 0.0
    %5787 = vmatpush1.msra.mxu0 0.0
    %5788 = vmatprep.subr.mxu0 0.0
    %5789 = vmatpush1.msra.mxu0 0.0
    %5790 = vmatprep.subr.mxu0 0.0
    %5791 = vmatpush1.msra.mxu0 0.0
    %5792 = vmatprep.subr.mxu0 0.0
    %5793 = vmatpush1.msra.mxu0 0.0
    %5794 = vmatprep.subr.mxu0 0.0
    %5795 = vmatpush1.msra.mxu0 0.0
    %5796 = vmatprep.subr.mxu0 0.0
    %5797 = vmatpush1.msra.mxu0 0.0
    %5798 = vmatprep.subr.mxu0 0.0
    %5799 = vmatpush1.msra.mxu0 0.0
    %5800 = vmatprep.subr.mxu0 0.0
    %5801 = vmatpush1.msra.mxu0 0.0
    %5802 = vmatprep.subr.mxu0 0.0
    %5803 = vmatpush1.msra.mxu0 0.0
    %5804 = vmatprep.subr.mxu0 0.0
    %5805 = vmatpush1.msra.mxu0 0.0
    %5806 = vmatprep.subr.mxu0 0.0
    %5807 = vmatpush1.msra.mxu0 0.0
    %5808 = vmatprep.subr.mxu0 0.0
    %5809 = vmatpush1.msra.mxu0 0.0
    %5810 = vmatprep.mubr.f32.mxu0 0.0
    %5811 = vmatmul.mubr.f32.gmra.mrb[0].mxu0 %v5744
    %v5812 = vpop.f32.mrb[0].mxu0
    %v5813 = vadd.f32 0.0, %v5812
    %v5814 = vpop.f32.mrb[0].mxu0
    %5815 = vdwg.mxu0
    %v5817 = vsel %vm1896, %v5592, 0
    %5819 = vmatprep.subr.mxu0 0.0
    %5820 = vmatpush1.msra.mxu0 %v4832
    %5821 = vmatprep.subr.mxu0 0.0
    %5822 = vmatpush1.msra.mxu0 0.0
    %5823 = vmatprep.subr.mxu0 0.0
    %5824 = vmatpush1.msra.mxu0 0.0
    %5825 = vmatprep.subr.mxu0 0.0
    %5826 = vmatpush1.msra.mxu0 0.0
    %5827 = vmatprep.subr.mxu0 0.0
    %5828 = vmatpush1.msra.mxu0 0.0
    %5829 = vmatprep.subr.mxu0 0.0
    %5830 = vmatpush1.msra.mxu0 0.0
    %5831 = vmatprep.subr.mxu0 0.0
    %5832 = vmatpush1.msra.mxu0 0.0
    %5833 = vmatprep.subr.mxu0 0.0
    %5834 = vmatpush1.msra.mxu0 0.0
    %5835 = vmatprep.subr.mxu0 0.0
    %5836 = vmatpush1.msra.mxu0 0.0
    %5837 = vmatprep.subr.mxu0 0.0
    %5838 = vmatpush1.msra.mxu0 0.0
    %5839 = vmatprep.subr.mxu0 0.0
    %5840 = vmatpush1.msra.mxu0 0.0
    %5841 = vmatprep.subr.mxu0 0.0
    %5842 = vmatpush1.msra.mxu0 0.0
    %5843 = vmatprep.subr.mxu0 0.0
    %5844 = vmatpush1.msra.mxu0 0.0
    %5845 = vmatprep.subr.mxu0 0.0
    %5846 = vmatpush1.msra.mxu0 0.0
    %5847 = vmatprep.subr.mxu0 0.0
    %5848 = vmatpush1.msra.mxu0 0.0
    %5849 = vmatprep.subr.mxu0 0.0
    %5850 = vmatpush1.msra.mxu0 0.0
    %5851 = vmatprep.subr.mxu0 0.0
    %5852 = vmatpush1.msra.mxu0 0.0
    %5853 = vmatprep.subr.mxu0 0.0
    %5854 = vmatpush1.msra.mxu0 0.0
    %5855 = vmatprep.subr.mxu0 0.0
    %5856 = vmatpush1.msra.mxu0 0.0
    %5857 = vmatprep.subr.mxu0 0.0
    %5858 = vmatpush1.msra.mxu0 0.0
    %5859 = vmatprep.subr.mxu0 0.0
    %5860 = vmatpush1.msra.mxu0 0.0
    %5861 = vmatprep.subr.mxu0 0.0
    %5862 = vmatpush1.msra.mxu0 0.0
    %5863 = vmatprep.subr.mxu0 0.0
    %5864 = vmatpush1.msra.mxu0 0.0
    %5865 = vmatprep.subr.mxu0 0.0
    %5866 = vmatpush1.msra.mxu0 0.0
    %5867 = vmatprep.subr.mxu0 0.0
    %5868 = vmatpush1.msra.mxu0 0.0
    %5869 = vmatprep.subr.mxu0 0.0
    %5870 = vmatpush1.msra.mxu0 0.0
    %5871 = vmatprep.subr.mxu0 0.0
    %5872 = vmatpush1.msra.mxu0 0.0
    %5873 = vmatprep.subr.mxu0 0.0
    %5874 = vmatpush1.msra.mxu0 0.0
    %5875 = vmatprep.subr.mxu0 0.0
    %5876 = vmatpush1.msra.mxu0 0.0
    %5877 = vmatprep.subr.mxu0 0.0
    %5878 = vmatpush1.msra.mxu0 0.0
    %5879 = vmatprep.subr.mxu0 0.0
    %5880 = vmatpush1.msra.mxu0 0.0
    %5881 = vmatprep.subr.mxu0 0.0
    %5882 = vmatpush1.msra.mxu0 0.0
    %5883 = vmatprep.mubr.f32.mxu0 0.0
    %5884 = vmatmul.mubr.f32.gmra.mrb[0].mxu0 %v5817
    %v5885 = vpop.f32.mrb[0].mxu0
    %v5886 = vadd.f32 0.0, %v5885
    %v5887 = vpop.f32.mrb[0].mxu0
    %5888 = vdwg.mxu0
    %v5890 = vsel %vm1896, %v5593, 0
    %5892 = vmatprep.subr.mxu0 0.0
    %5893 = vmatpush1.msra.mxu0 %v4897
    %5894 = vmatprep.subr.mxu0 0.0
    %5895 = vmatpush1.msra.mxu0 0.0
    %5896 = vmatprep.subr.mxu0 0.0
    %5897 = vmatpush1.msra.mxu0 0.0
    %5898 = vmatprep.subr.mxu0 0.0
    %5899 = vmatpush1.msra.mxu0 0.0
    %5900 = vmatprep.subr.mxu0 0.0
    %5901 = vmatpush1.msra.mxu0 0.0
    %5902 = vmatprep.subr.mxu0 0.0
    %5903 = vmatpush1.msra.mxu0 0.0
    %5904 = vmatprep.subr.mxu0 0.0
    %5905 = vmatpush1.msra.mxu0 0.0
    %5906 = vmatprep.subr.mxu0 0.0
    %5907 = vmatpush1.msra.mxu0 0.0
    %5908 = vmatprep.subr.mxu0 0.0
    %5909 = vmatpush1.msra.mxu0 0.0
    %5910 = vmatprep.subr.mxu0 0.0
    %5911 = vmatpush1.msra.mxu0 0.0
    %5912 = vmatprep.subr.mxu0 0.0
    %5913 = vmatpush1.msra.mxu0 0.0
    %5914 = vmatprep.subr.mxu0 0.0
    %5915 = vmatpush1.msra.mxu0 0.0
    %5916 = vmatprep.subr.mxu0 0.0
    %5917 = vmatpush1.msra.mxu0 0.0
    %5918 = vmatprep.subr.mxu0 0.0
    %5919 = vmatpush1.msra.mxu0 0.0
    %5920 = vmatprep.subr.mxu0 0.0
    %5921 = vmatpush1.msra.mxu0 0.0
    %5922 = vmatprep.subr.mxu0 0.0
    %5923 = vmatpush1.msra.mxu0 0.0
    %5924 = vmatprep.subr.mxu0 0.0
    %5925 = vmatpush1.msra.mxu0 0.0
    %5926 = vmatprep.subr.mxu0 0.0
    %5927 = vmatpush1.msra.mxu0 0.0
    %5928 = vmatprep.subr.mxu0 0.0
    %5929 = vmatpush1.msra.mxu0 0.0
    %5930 = vmatprep.subr.mxu0 0.0
    %5931 = vmatpush1.msra.mxu0 0.0
    %5932 = vmatprep.subr.mxu0 0.0
    %5933 = vmatpush1.msra.mxu0 0.0
    %5934 = vmatprep.subr.mxu0 0.0
    %5935 = vmatpush1.msra.mxu0 0.0
    %5936 = vmatprep.subr.mxu0 0.0
    %5937 = vmatpush1.msra.mxu0 0.0
    %5938 = vmatprep.subr.mxu0 0.0
    %5939 = vmatpush1.msra.mxu0 0.0
    %5940 = vmatprep.subr.mxu0 0.0
    %5941 = vmatpush1.msra.mxu0 0.0
    %5942 = vmatprep.subr.mxu0 0.0
    %5943 = vmatpush1.msra.mxu0 0.0
    %5944 = vmatprep.subr.mxu0 0.0
    %5945 = vmatpush1.msra.mxu0 0.0
    %5946 = vmatprep.subr.mxu0 0.0
    %5947 = vmatpush1.msra.mxu0 0.0
    %5948 = vmatprep.subr.mxu0 0.0
    %5949 = vmatpush1.msra.mxu0 0.0
    %5950 = vmatprep.subr.mxu0 0.0
    %5951 = vmatpush1.msra.mxu0 0.0
    %5952 = vmatprep.subr.mxu0 0.0
    %5953 = vmatpush1.msra.mxu0 0.0
    %5954 = vmatprep.subr.mxu0 0.0
    %5955 = vmatpush1.msra.mxu0 0.0
    %5956 = vmatprep.mubr.f32.mxu0 0.0
    %5957 = vmatmul.mubr.f32.gmra.mrb[0].mxu0 %v5890
    %v5958 = vpop.f32.mrb[0].mxu0
    %v5959 = vadd.f32 0.0, %v5958
    %v5960 = vpop.f32.mrb[0].mxu0
    %5961 = vdwg.mxu0
    %v5963 = vsel %vm1896, %v5594, 0
    %5965 = vmatprep.subr.mxu0 0.0
    %5966 = vmatpush1.msra.mxu0 %v4898
    %5967 = vmatprep.subr.mxu0 0.0
    %5968 = vmatpush1.msra.mxu0 0.0
    %5969 = vmatprep.subr.mxu0 0.0
    %5970 = vmatpush1.msra.mxu0 0.0
    %5971 = vmatprep.subr.mxu0 0.0
    %5972 = vmatpush1.msra.mxu0 0.0
    %5973 = vmatprep.subr.mxu0 0.0
    %5974 = vmatpush1.msra.mxu0 0.0
    %5975 = vmatprep.subr.mxu0 0.0
    %5976 = vmatpush1.msra.mxu0 0.0
    %5977 = vmatprep.subr.mxu0 0.0
    %5978 = vmatpush1.msra.mxu0 0.0
    %5979 = vmatprep.subr.mxu0 0.0
    %5980 = vmatpush1.msra.mxu0 0.0
    %5981 = vmatprep.subr.mxu0 0.0
    %5982 = vmatpush1.msra.mxu0 0.0
    %5983 = vmatprep.subr.mxu0 0.0
    %5984 = vmatpush1.msra.mxu0 0.0
    %5985 = vmatprep.subr.mxu0 0.0
    %5986 = vmatpush1.msra.mxu0 0.0
    %5987 = vmatprep.subr.mxu0 0.0
    %5988 = vmatpush1.msra.mxu0 0.0
    %5989 = vmatprep.subr.mxu0 0.0
    %5990 = vmatpush1.msra.mxu0 0.0
    %5991 = vmatprep.subr.mxu0 0.0
    %5992 = vmatpush1.msra.mxu0 0.0
    %5993 = vmatprep.subr.mxu0 0.0
    %5994 = vmatpush1.msra.mxu0 0.0
    %5995 = vmatprep.subr.mxu0 0.0
    %5996 = vmatpush1.msra.mxu0 0.0
    %5997 = vmatprep.subr.mxu0 0.0
    %5998 = vmatpush1.msra.mxu0 0.0
    %5999 = vmatprep.subr.mxu0 0.0
    %6000 = vmatpush1.msra.mxu0 0.0
    %6001 = vmatprep.subr.mxu0 0.0
    %6002 = vmatpush1.msra.mxu0 0.0
    %6003 = vmatprep.subr.mxu0 0.0
    %6004 = vmatpush1.msra.mxu0 0.0
    %6005 = vmatprep.subr.mxu0 0.0
    %6006 = vmatpush1.msra.mxu0 0.0
    %6007 = vmatprep.subr.mxu0 0.0
    %6008 = vmatpush1.msra.mxu0 0.0
    %6009 = vmatprep.subr.mxu0 0.0
    %6010 = vmatpush1.msra.mxu0 0.0
    %6011 = vmatprep.subr.mxu0 0.0
    %6012 = vmatpush1.msra.mxu0 0.0
    %6013 = vmatprep.subr.mxu0 0.0
    %6014 = vmatpush1.msra.mxu0 0.0
    %6015 = vmatprep.subr.mxu0 0.0
    %6016 = vmatpush1.msra.mxu0 0.0
    %6017 = vmatprep.subr.mxu0 0.0
    %6018 = vmatpush1.msra.mxu0 0.0
    %6019 = vmatprep.subr.mxu0 0.0
    %6020 = vmatpush1.msra.mxu0 0.0
    %6021 = vmatprep.subr.mxu0 0.0
    %6022 = vmatpush1.msra.mxu0 0.0
    %6023 = vmatprep.subr.mxu0 0.0
    %6024 = vmatpush1.msra.mxu0 0.0
    %6025 = vmatprep.subr.mxu0 0.0
    %6026 = vmatpush1.msra.mxu0 0.0
    %6027 = vmatprep.subr.mxu0 0.0
    %6028 = vmatpush1.msra.mxu0 0.0
    %6029 = vmatprep.mubr.f32.mxu0 0.0
    %6030 = vmatmul.mubr.f32.gmra.mrb[0].mxu0 %v5963
    %v6031 = vpop.f32.mrb[0].mxu0
    %v6032 = vadd.f32 0.0, %v6031
    %v6033 = vpop.f32.mrb[0].mxu0
    %6034 = vdwg.mxu0
    %v6036 = vsel %vm1896, %v5595, 0
    %6038 = vmatprep.subr.mxu0 0.0
    %6039 = vmatpush1.msra.mxu0 %v4899
    %6040 = vmatprep.subr.mxu0 0.0
    %6041 = vmatpush1.msra.mxu0 0.0
    %6042 = vmatprep.subr.mxu0 0.0
    %6043 = vmatpush1.msra.mxu0 0.0
    %6044 = vmatprep.subr.mxu0 0.0
    %6045 = vmatpush1.msra.mxu0 0.0
    %6046 = vmatprep.subr.mxu0 0.0
    %6047 = vmatpush1.msra.mxu0 0.0
    %6048 = vmatprep.subr.mxu0 0.0
    %6049 = vmatpush1.msra.mxu0 0.0
    %6050 = vmatprep.subr.mxu0 0.0
    %6051 = vmatpush1.msra.mxu0 0.0
    %6052 = vmatprep.subr.mxu0 0.0
    %6053 = vmatpush1.msra.mxu0 0.0
    %6054 = vmatprep.subr.mxu0 0.0
    %6055 = vmatpush1.msra.mxu0 0.0
    %6056 = vmatprep.subr.mxu0 0.0
    %6057 = vmatpush1.msra.mxu0 0.0
    %6058 = vmatprep.subr.mxu0 0.0
    %6059 = vmatpush1.msra.mxu0 0.0
    %6060 = vmatprep.subr.mxu0 0.0
    %6061 = vmatpush1.msra.mxu0 0.0
    %6062 = vmatprep.subr.mxu0 0.0
    %6063 = vmatpush1.msra.mxu0 0.0
    %6064 = vmatprep.subr.mxu0 0.0
    %6065 = vmatpush1.msra.mxu0 0.0
    %6066 = vmatprep.subr.mxu0 0.0
    %6067 = vmatpush1.msra.mxu0 0.0
    %6068 = vmatprep.subr.mxu0 0.0
    %6069 = vmatpush1.msra.mxu0 0.0
    %6070 = vmatprep.subr.mxu0 0.0
    %6071 = vmatpush1.msra.mxu0 0.0
    %6072 = vmatprep.subr.mxu0 0.0
    %6073 = vmatpush1.msra.mxu0 0.0
    %6074 = vmatprep.subr.mxu0 0.0
    %6075 = vmatpush1.msra.mxu0 0.0
    %6076 = vmatprep.subr.mxu0 0.0
    %6077 = vmatpush1.msra.mxu0 0.0
    %6078 = vmatprep.subr.mxu0 0.0
    %6079 = vmatpush1.msra.mxu0 0.0
    %6080 = vmatprep.subr.mxu0 0.0
    %6081 = vmatpush1.msra.mxu0 0.0
    %6082 = vmatprep.subr.mxu0 0.0
    %6083 = vmatpush1.msra.mxu0 0.0
    %6084 = vmatprep.subr.mxu0 0.0
    %6085 = vmatpush1.msra.mxu0 0.0
    %6086 = vmatprep.subr.mxu0 0.0
    %6087 = vmatpush1.msra.mxu0 0.0
    %6088 = vmatprep.subr.mxu0 0.0
    %6089 = vmatpush1.msra.mxu0 0.0
    %6090 = vmatprep.subr.mxu0 0.0
    %6091 = vmatpush1.msra.mxu0 0.0
    %6092 = vmatprep.subr.mxu0 0.0
    %6093 = vmatpush1.msra.mxu0 0.0
    %6094 = vmatprep.subr.mxu0 0.0
    %6095 = vmatpush1.msra.mxu0 0.0
    %6096 = vmatprep.subr.mxu0 0.0
    %6097 = vmatpush1.msra.mxu0 0.0
    %6098 = vmatprep.subr.mxu0 0.0
    %6099 = vmatpush1.msra.mxu0 0.0
    %6100 = vmatprep.subr.mxu0 0.0
    %6101 = vmatpush1.msra.mxu0 0.0
    %6102 = vmatprep.mubr.f32.mxu0 0.0
    %6103 = vmatmul.mubr.f32.gmra.mrb[0].mxu0 %v6036
    %v6104 = vpop.f32.mrb[0].mxu0
    %v6105 = vadd.f32 0.0, %v6104
    %v6106 = vpop.f32.mrb[0].mxu0
    %6107 = vdwg.mxu0
    %v6109 = vsel %vm1896, %v5596, 0
    %6111 = vmatprep.subr.mxu0 0.0
    %6112 = vmatpush1.msra.mxu0 %v4900
    %6113 = vmatprep.subr.mxu0 0.0
    %6114 = vmatpush1.msra.mxu0 0.0
    %6115 = vmatprep.subr.mxu0 0.0
    %6116 = vmatpush1.msra.mxu0 0.0
    %6117 = vmatprep.subr.mxu0 0.0
    %6118 = vmatpush1.msra.mxu0 0.0
    %6119 = vmatprep.subr.mxu0 0.0
    %6120 = vmatpush1.msra.mxu0 0.0
    %6121 = vmatprep.subr.mxu0 0.0
    %6122 = vmatpush1.msra.mxu0 0.0
    %6123 = vmatprep.subr.mxu0 0.0
    %6124 = vmatpush1.msra.mxu0 0.0
    %6125 = vmatprep.subr.mxu0 0.0
    %6126 = vmatpush1.msra.mxu0 0.0
    %6127 = vmatprep.subr.mxu0 0.0
    %6128 = vmatpush1.msra.mxu0 0.0
    %6129 = vmatprep.subr.mxu0 0.0
    %6130 = vmatpush1.msra.mxu0 0.0
    %6131 = vmatprep.subr.mxu0 0.0
    %6132 = vmatpush1.msra.mxu0 0.0
    %6133 = vmatprep.subr.mxu0 0.0
    %6134 = vmatpush1.msra.mxu0 0.0
    %6135 = vmatprep.subr.mxu0 0.0
    %6136 = vmatpush1.msra.mxu0 0.0
    %6137 = vmatprep.subr.mxu0 0.0
    %6138 = vmatpush1.msra.mxu0 0.0
    %6139 = vmatprep.subr.mxu0 0.0
    %6140 = vmatpush1.msra.mxu0 0.0
    %6141 = vmatprep.subr.mxu0 0.0
    %6142 = vmatpush1.msra.mxu0 0.0
    %6143 = vmatprep.subr.mxu0 0.0
    %6144 = vmatpush1.msra.mxu0 0.0
    %6145 = vmatprep.subr.mxu0 0.0
    %6146 = vmatpush1.msra.mxu0 0.0
    %6147 = vmatprep.subr.mxu0 0.0
    %6148 = vmatpush1.msra.mxu0 0.0
    %6149 = vmatprep.subr.mxu0 0.0
    %6150 = vmatpush1.msra.mxu0 0.0
    %6151 = vmatprep.subr.mxu0 0.0
    %6152 = vmatpush1.msra.mxu0 0.0
    %6153 = vmatprep.subr.mxu0 0.0
    %6154 = vmatpush1.msra.mxu0 0.0
    %6155 = vmatprep.subr.mxu0 0.0
    %6156 = vmatpush1.msra.mxu0 0.0
    %6157 = vmatprep.subr.mxu0 0.0
    %6158 = vmatpush1.msra.mxu0 0.0
    %6159 = vmatprep.subr.mxu0 0.0
    %6160 = vmatpush1.msra.mxu0 0.0
    %6161 = vmatprep.subr.mxu0 0.0
    %6162 = vmatpush1.msra.mxu0 0.0
    %6163 = vmatprep.subr.mxu0 0.0
    %6164 = vmatpush1.msra.mxu0 0.0
    %6165 = vmatprep.subr.mxu0 0.0
    %6166 = vmatpush1.msra.mxu0 0.0
    %6167 = vmatprep.subr.mxu0 0.0
    %6168 = vmatpush1.msra.mxu0 0.0
    %6169 = vmatprep.subr.mxu0 0.0
    %6170 = vmatpush1.msra.mxu0 0.0
    %6171 = vmatprep.subr.mxu0 0.0
    %6172 = vmatpush1.msra.mxu0 0.0
    %6173 = vmatprep.subr.mxu0 0.0
    %6174 = vmatpush1.msra.mxu0 0.0
    %6175 = vmatprep.mubr.f32.mxu0 0.0
    %6176 = vmatmul.mubr.f32.gmra.mrb[0].mxu0 %v6109
    %v6177 = vpop.f32.mrb[0].mxu0
    %v6178 = vadd.f32 0.0, %v6177
    %v6179 = vpop.f32.mrb[0].mxu0
    %6180 = vdwg.mxu0
    %v6181 = vcombine.low %v5667, %v5813
    %v6182 = vcombine.high %v5667, %v5813
    %v6184 = vunpack.c.l.s4 1983009808
    %v6185 = vunpack.c.0.s8 %v6184
    %v6186 = vlaneseq
    %v6187 = vshrl.u32 %v6186, 7
    %v6188 = vsub.s32 %v6185, %v6187
    %v6189 = vrot.slane %v6181, %v6188
    %v6191 = vunpack.c.l.s4 1983009808
    %v6192 = vunpack.c.0.s8 %v6191
    %v6193 = vlaneseq
    %v6194 = vshrl.u32 %v6193, 7
    %v6195 = vsub.s32 %v6192, %v6194
    %v6196 = vrot.slane %v6182, %v6195
    %v6197 = vcombine.low %v5740, %v5886
    %v6198 = vcombine.high %v5740, %v5886
    %v6200 = vunpack.c.l.s4 1983009808
    %v6201 = vunpack.c.0.s8 %v6200
    %v6202 = vlaneseq
    %v6203 = vshrl.u32 %v6202, 7
    %v6204 = vsub.s32 %v6201, %v6203
    %v6205 = vrot.slane %v6197, %v6204
    %v6207 = vunpack.c.l.s4 1983009808
    %v6208 = vunpack.c.0.s8 %v6207
    %v6209 = vlaneseq
    %v6210 = vshrl.u32 %v6209, 7
    %v6211 = vsub.s32 %v6208, %v6210
    %v6212 = vrot.slane %v6198, %v6211
    %v6213 = vcombine.low %v6189, %v6205
    %v6214 = vcombine.high %v6189, %v6205
    %v6216 = vunpack.c.l.s4 1934713408
    %v6217 = vunpack.c.0.s8 %v6216
    %v6218 = vlaneseq
    %v6219 = vshrl.u32 %v6218, 7
    %v6220 = vsub.s32 %v6217, %v6219
    %v6221 = vrot.slane %v6213, %v6220
    %v6223 = vunpack.c.l.s4 1934713408
    %v6224 = vunpack.c.0.s8 %v6223
    %v6225 = vlaneseq
    %v6226 = vshrl.u32 %v6225, 7
    %v6227 = vsub.s32 %v6224, %v6226
    %v6228 = vrot.slane %v6214, %v6227
    %v6229 = vcombine.low %v6196, %v6212
    %v6230 = vcombine.high %v6196, %v6212
    %v6232 = vunpack.c.l.s4 1934713408
    %v6233 = vunpack.c.0.s8 %v6232
    %v6234 = vlaneseq
    %v6235 = vshrl.u32 %v6234, 7
    %v6236 = vsub.s32 %v6233, %v6235
    %v6237 = vrot.slane %v6229, %v6236
    %v6239 = vunpack.c.l.s4 1934713408
    %v6240 = vunpack.c.0.s8 %v6239
    %v6241 = vlaneseq
    %v6242 = vshrl.u32 %v6241, 7
    %v6243 = vsub.s32 %v6240, %v6242
    %v6244 = vrot.slane %v6230, %v6243
    %v6245 = vcombine.high %v6221, 0.0
    %v6246 = vcombine.high %v6228, 0.0
    %v6247 = vcombine.high %v6237, 0.0
    %v6248 = vcombine.high %v6244, 0.0
    %v6249 = vcombine.low %v5959, %v6105
    %v6250 = vcombine.high %v5959, %v6105
    %v6252 = vunpack.c.l.s4 1983009808
    %v6253 = vunpack.c.0.s8 %v6252
    %v6254 = vlaneseq
    %v6255 = vshrl.u32 %v6254, 7
    %v6256 = vsub.s32 %v6253, %v6255
    %v6257 = vrot.slane %v6249, %v6256
    %v6259 = vunpack.c.l.s4 1983009808
    %v6260 = vunpack.c.0.s8 %v6259
    %v6261 = vlaneseq
    %v6262 = vshrl.u32 %v6261, 7
    %v6263 = vsub.s32 %v6260, %v6262
    %v6264 = vrot.slane %v6250, %v6263
    %v6265 = vcombine.low %v6032, %v6178
    %v6266 = vcombine.high %v6032, %v6178
    %v6268 = vunpack.c.l.s4 1983009808
    %v6269 = vunpack.c.0.s8 %v6268
    %v6270 = vlaneseq
    %v6271 = vshrl.u32 %v6270, 7
    %v6272 = vsub.s32 %v6269, %v6271
    %v6273 = vrot.slane %v6265, %v6272
    %v6275 = vunpack.c.l.s4 1983009808
    %v6276 = vunpack.c.0.s8 %v6275
    %v6277 = vlaneseq
    %v6278 = vshrl.u32 %v6277, 7
    %v6279 = vsub.s32 %v6276, %v6278
    %v6280 = vrot.slane %v6266, %v6279
    %v6281 = vcombine.low %v6257, %v6273
    %v6282 = vcombine.high %v6257, %v6273
    %v6284 = vunpack.c.l.s4 1934713408
    %v6285 = vunpack.c.0.s8 %v6284
    %v6286 = vlaneseq
    %v6287 = vshrl.u32 %v6286, 7
    %v6288 = vsub.s32 %v6285, %v6287
    %v6289 = vrot.slane %v6281, %v6288
    %v6291 = vunpack.c.l.s4 1934713408
    %v6292 = vunpack.c.0.s8 %v6291
    %v6293 = vlaneseq
    %v6294 = vshrl.u32 %v6293, 7
    %v6295 = vsub.s32 %v6292, %v6294
    %v6296 = vrot.slane %v6282, %v6295
    %v6297 = vcombine.low %v6264, %v6280
    %v6298 = vcombine.high %v6264, %v6280
    %v6300 = vunpack.c.l.s4 1934713408
    %v6301 = vunpack.c.0.s8 %v6300
    %v6302 = vlaneseq
    %v6303 = vshrl.u32 %v6302, 7
    %v6304 = vsub.s32 %v6301, %v6303
    %v6305 = vrot.slane %v6297, %v6304
    %v6307 = vunpack.c.l.s4 1934713408
    %v6308 = vunpack.c.0.s8 %v6307
    %v6309 = vlaneseq
    %v6310 = vshrl.u32 %v6309, 7
    %v6311 = vsub.s32 %v6308, %v6310
    %v6312 = vrot.slane %v6298, %v6311
    %v6313 = vcombine.high %v6289, 0.0
    %v6314 = vcombine.high %v6296, 0.0
    %v6315 = vcombine.high %v6305, 0.0
    %v6316 = vcombine.high %v6312, 0.0
    %v6317 = vcombine.low %v6221, %v6228
    %v6319 = vunpack.c.l.s4 1983009808
    %v6320 = vunpack.c.0.s8 %v6319
    %v6321 = vlaneseq
    %v6322 = vshrl.u32 %v6321, 7
    %v6323 = vsub.s32 %v6320, %v6322
    %v6324 = vrot.slane %v6317, %v6323
    %v6325 = vcombine.low %v6245, %v6246
    %v6327 = vunpack.c.l.s4 1983009808
    %v6328 = vunpack.c.0.s8 %v6327
    %v6329 = vlaneseq
    %v6330 = vshrl.u32 %v6329, 7
    %v6331 = vsub.s32 %v6328, %v6330
    %v6332 = vrot.slane %v6325, %v6331
    %v6333 = vcombine.low %v6237, %v6244
    %v6335 = vunpack.c.l.s4 1983009808
    %v6336 = vunpack.c.0.s8 %v6335
    %v6337 = vlaneseq
    %v6338 = vshrl.u32 %v6337, 7
    %v6339 = vsub.s32 %v6336, %v6338
    %v6340 = vrot.slane %v6333, %v6339
    %v6341 = vcombine.low %v6247, %v6248
    %v6343 = vunpack.c.l.s4 1983009808
    %v6344 = vunpack.c.0.s8 %v6343
    %v6345 = vlaneseq
    %v6346 = vshrl.u32 %v6345, 7
    %v6347 = vsub.s32 %v6344, %v6346
    %v6348 = vrot.slane %v6341, %v6347
    %v6349 = vcombine.low %v6324, %v6332
    %v6350 = vcombine.high %v6324, %v6332
    %v6352 = vunpack.c.l.s4 1934713408
    %v6353 = vunpack.c.0.s8 %v6352
    %v6354 = vlaneseq
    %v6355 = vshrl.u32 %v6354, 7
    %v6356 = vsub.s32 %v6353, %v6355
    %v6357 = vrot.slane %v6349, %v6356
    %v6359 = vunpack.c.l.s4 1934713408
    %v6360 = vunpack.c.0.s8 %v6359
    %v6361 = vlaneseq
    %v6362 = vshrl.u32 %v6361, 7
    %v6363 = vsub.s32 %v6360, %v6362
    %v6364 = vrot.slane %v6350, %v6363
    %v6365 = vcombine.low %v6340, %v6348
    %v6366 = vcombine.high %v6340, %v6348
    %v6368 = vunpack.c.l.s4 1934713408
    %v6369 = vunpack.c.0.s8 %v6368
    %v6370 = vlaneseq
    %v6371 = vshrl.u32 %v6370, 7
    %v6372 = vsub.s32 %v6369, %v6371
    %v6373 = vrot.slane %v6365, %v6372
    %v6375 = vunpack.c.l.s4 1934713408
    %v6376 = vunpack.c.0.s8 %v6375
    %v6377 = vlaneseq
    %v6378 = vshrl.u32 %v6377, 7
    %v6379 = vsub.s32 %v6376, %v6378
    %v6380 = vrot.slane %v6366, %v6379
    %v6381 = vcombine.low %v6357, %v6373
    %v6382 = vcombine.high %v6357, %v6373
    %v6383 = vcombine.low %v6364, %v6380
    %v6384 = vcombine.high %v6364, %v6380
    %v6385 = vcombine.low %v6289, %v6296
    %v6387 = vunpack.c.l.s4 1983009808
    %v6388 = vunpack.c.0.s8 %v6387
    %v6389 = vlaneseq
    %v6390 = vshrl.u32 %v6389, 7
    %v6391 = vsub.s32 %v6388, %v6390
    %v6392 = vrot.slane %v6385, %v6391
    %v6393 = vcombine.low %v6313, %v6314
    %v6395 = vunpack.c.l.s4 1983009808
    %v6396 = vunpack.c.0.s8 %v6395
    %v6397 = vlaneseq
    %v6398 = vshrl.u32 %v6397, 7
    %v6399 = vsub.s32 %v6396, %v6398
    %v6400 = vrot.slane %v6393, %v6399
    %v6401 = vcombine.low %v6305, %v6312
    %v6403 = vunpack.c.l.s4 1983009808
    %v6404 = vunpack.c.0.s8 %v6403
    %v6405 = vlaneseq
    %v6406 = vshrl.u32 %v6405, 7
    %v6407 = vsub.s32 %v6404, %v6406
    %v6408 = vrot.slane %v6401, %v6407
    %v6409 = vcombine.low %v6315, %v6316
    %v6411 = vunpack.c.l.s4 1983009808
    %v6412 = vunpack.c.0.s8 %v6411
    %v6413 = vlaneseq
    %v6414 = vshrl.u32 %v6413, 7
    %v6415 = vsub.s32 %v6412, %v6414
    %v6416 = vrot.slane %v6409, %v6415
    %v6417 = vcombine.low %v6392, %v6400
    %v6418 = vcombine.high %v6392, %v6400
    %v6420 = vunpack.c.l.s4 1934713408
    %v6421 = vunpack.c.0.s8 %v6420
    %v6422 = vlaneseq
    %v6423 = vshrl.u32 %v6422, 7
    %v6424 = vsub.s32 %v6421, %v6423
    %v6425 = vrot.slane %v6417, %v6424
    %v6427 = vunpack.c.l.s4 1934713408
    %v6428 = vunpack.c.0.s8 %v6427
    %v6429 = vlaneseq
    %v6430 = vshrl.u32 %v6429, 7
    %v6431 = vsub.s32 %v6428, %v6430
    %v6432 = vrot.slane %v6418, %v6431
    %v6433 = vcombine.low %v6408, %v6416
    %v6434 = vcombine.high %v6408, %v6416
    %v6436 = vunpack.c.l.s4 1934713408
    %v6437 = vunpack.c.0.s8 %v6436
    %v6438 = vlaneseq
    %v6439 = vshrl.u32 %v6438, 7
    %v6440 = vsub.s32 %v6437, %v6439
    %v6441 = vrot.slane %v6433, %v6440
    %v6443 = vunpack.c.l.s4 1934713408
    %v6444 = vunpack.c.0.s8 %v6443
    %v6445 = vlaneseq
    %v6446 = vshrl.u32 %v6445, 7
    %v6447 = vsub.s32 %v6444, %v6446
    %v6448 = vrot.slane %v6434, %v6447
    %v6449 = vcombine.low %v6425, %v6441
    %v6450 = vcombine.high %v6425, %v6441
    %v6451 = vcombine.low %v6432, %v6448
    %v6452 = vcombine.high %v6432, %v6448
    %6455 = vrot.lane.b32.xlu0 %v6382, 32
    %v6456 = vpop.permute.xlu0 %6455
    %6457 = vrot.lane.b32.xlu0 %v6450, 32
    %v6458 = vpop.permute.xlu0 %6457
    %6463 = vrot.lane.b32.xlu0 %v6383, 64
    %v6464 = vpop.permute.xlu0 %6463
    %6465 = vrot.lane.b32.xlu0 %v6451, 64
    %v6466 = vpop.permute.xlu0 %6465
    %6471 = vrot.lane.b32.xlu0 %v6384, 96
    %v6472 = vpop.permute.xlu0 %6471
    %6473 = vrot.lane.b32.xlu0 %v6452, 96
    %v6474 = vpop.permute.xlu0 %6473
    %v6477 = vsel %vm1287, %v6381, %v6456
    %v6478 = vsel %vm1287, %v6449, %v6458
    %v6479 = vsel %vm2867, %v6477, %v6464
    %v6480 = vsel %vm2867, %v6478, %v6466
    %v6481 = vsel %vm2870, %v6479, %v6472
    %v6482 = vsel %vm2870, %v6480, %v6474
    %v6483 = vpack.c.bf16 %v6482, %v6481
    %s6484 = scalar_lea.vmem [#allocation5], 64
    %v6485 = vld [vmem:[%s6484] sm:$0xf]
    %v6486 = vld [vmem:[%s6484 + $0x4] sm:$0xf]
    %v6487 = vld [vmem:[%s6484 + $0x8] sm:$0xf]
    %v6488 = vld [vmem:[%s6484 + $0xc] sm:$0xf]
    %v6489 = vld [vmem:[%s6484 + $0x10] sm:$0xf]
    %v6490 = vld [vmem:[%s6484 + $0x14] sm:$0xf]
    %v6491 = vld [vmem:[%s6484 + $0x18] sm:$0xf]
    %v6492 = vld [vmem:[%s6484 + $0x1c] sm:$0xf]
    %v6493 = vld [vmem:[%s6484 + $0x20] sm:$0xf]
    %v6494 = vld [vmem:[%s6484 + $0x24] sm:$0xf]
    %v6495 = vld [vmem:[%s6484 + $0x28] sm:$0xf]
    %v6496 = vld [vmem:[%s6484 + $0x2c] sm:$0xf]
    %v6497 = vld [vmem:[%s6484 + $0x30] sm:$0xf]
    %v6498 = vld [vmem:[%s6484 + $0x34] sm:$0xf]
    %v6499 = vld [vmem:[%s6484 + $0x38] sm:$0xf]
    %v6500 = vld [vmem:[%s6484 + $0x3c] sm:$0xf]
    %s6501 = scalar_lea.vmem %s4, 1
    %v6502 = vld [vmem:[%s6501] sm:$0x1]
    %v6504 = vlaneseq
    %v6505 = vshrl.u32 %v6504, 7
    %v6506 = vsub.s32 0, %v6505
    %v6507 = vrot.slane %v6502, %v6506
    %v6525 = vunpack.c.l.b16 %v6485
    %v6526 = vunpack.c.l.b16 %v6486
    %v6527 = vunpack.c.l.b16 %v6487
    %v6528 = vunpack.c.l.b16 %v6488
    %v6529 = vunpack.c.l.b16 %v6489
    %v6530 = vunpack.c.l.b16 %v6490
    %v6531 = vunpack.c.l.b16 %v6491
    %v6532 = vunpack.c.l.b16 %v6492
    %v6533 = vunpack.c.l.b16 %v6493
    %v6534 = vunpack.c.l.b16 %v6494
    %v6535 = vunpack.c.l.b16 %v6495
    %v6536 = vunpack.c.l.b16 %v6496
    %v6537 = vunpack.c.l.b16 %v6497
    %v6538 = vunpack.c.l.b16 %v6498
    %v6539 = vunpack.c.l.b16 %v6499
    %v6540 = vunpack.c.l.b16 %v6500
    %v6541 = vpack.c.b16 %v6526, %v6525
    %v6542 = vpack.c.b16 %v6528, %v6527
    %v6543 = vpack.c.b16 %v6530, %v6529
    %v6544 = vpack.c.b16 %v6532, %v6531
    %v6545 = vpack.c.b16 %v6534, %v6533
    %v6546 = vpack.c.b16 %v6536, %v6535
    %v6547 = vpack.c.b16 %v6538, %v6537
    %v6548 = vpack.c.b16 %v6540, %v6539
    %6557 = vmatprep.subr.bf16.mxu0 0
    %6558 = vmatpush1.bf16.msra.mxu0 %v6541
    %6559 = vmatprep.subr.bf16.mxu0 0
    %6560 = vmatpush1.bf16.msra.mxu0 %v6542
    %6561 = vmatprep.subr.bf16.mxu0 0
    %6562 = vmatpush1.bf16.msra.mxu0 %v6543
    %6563 = vmatprep.subr.bf16.mxu0 0
    %6564 = vmatpush1.bf16.msra.mxu0 %v6544
    %6565 = vmatprep.subr.bf16.mxu0 0
    %6566 = vmatpush1.bf16.msra.mxu0 %v6545
    %6567 = vmatprep.subr.bf16.mxu0 0
    %6568 = vmatpush1.bf16.msra.mxu0 %v6546
    %6569 = vmatprep.subr.bf16.mxu0 0
    %6570 = vmatpush1.bf16.msra.mxu0 %v6547
    %6571 = vmatprep.subr.bf16.mxu0 0
    %6572 = vmatpush1.bf16.msra.mxu0 %v6548
    %6573 = vmatprep.subr.bf16.mxu0 0
    %6574 = vmatpush1.bf16.msra.mxu0 0
    %6575 = vmatprep.subr.bf16.mxu0 0
    %6576 = vmatpush1.bf16.msra.mxu0 0
    %6577 = vmatprep.subr.bf16.mxu0 0
    %6578 = vmatpush1.bf16.msra.mxu0 0
    %6579 = vmatprep.subr.bf16.mxu0 0
    %6580 = vmatpush1.bf16.msra.mxu0 0
    %6581 = vmatprep.subr.bf16.mxu0 0
    %6582 = vmatpush1.bf16.msra.mxu0 0
    %6583 = vmatprep.subr.bf16.mxu0 0
    %6584 = vmatpush1.bf16.msra.mxu0 0
    %6585 = vmatprep.subr.bf16.mxu0 0
    %6586 = vmatpush1.bf16.msra.mxu0 0
    %6587 = vmatprep.subr.bf16.mxu0 0
    %6588 = vmatpush1.bf16.msra.mxu0 0
    %6589 = vmatprep.mubr.bf16.mxu0 0
    %6590 = vmatmul.mubr.bf16.gmra.mrb[0].mxu0 %v6483
    %v6591 = vpop.f32.mrb[0].mxu0
    %v6592 = vadd.f32 %v6507, %v6591
    %v6593 = vpop.f32.mrb[0].mxu0
    %v6594 = vpop.f32.mrb[0].mxu0
    %v6595 = vadd.f32 %v6507, %v6594
    %v6596 = vpop.f32.mrb[0].mxu0
    %6597 = vdwg.mxu0
    %v6598 = vadd.f32 %v3759, %v6592
    %v6599 = vadd.f32 %v3760, %v6595
    %s6600 = scalar_lea.vmem %s5, 1
    %v6601 = vld [vmem:[%s6600] sm:$0x1]
    %s6602 = scalar_lea.vmem %s6, 1
    %v6603 = vld [vmem:[%s6602] sm:$0x1]
    %6604 = vadd.xlane.f32.xlu0 %v6598
    %v6605 = vpop.xlane.xlu0 %6604
    %6606 = vadd.xlane.f32.xlu0 %v6599
    %v6607 = vpop.xlane.xlu0 %6606
    %v6608 = vmul.f32 %v6605, %v2994
    %v6609 = vmul.f32 %v6607, %v2994
    %v6610 = vsub.f32 %v6598, %v6608
    %v6611 = vsub.f32 %v6599, %v6609
    %v6612 = vmul.f32 %v6610, %v6610
    %v6613 = vmul.f32 %v6611, %v6611
    %6614 = vadd.xlane.f32.xlu0 %v6612
    %v6615 = vpop.xlane.xlu0 %6614
    %6616 = vadd.xlane.f32.xlu0 %v6613
    %v6617 = vpop.xlane.xlu0 %6616
    %v6618 = vmul.f32 %v6615, %v2994
    %v6619 = vmul.f32 %v6617, %v2994
    %v6620 = vadd.f32 %v6618, 1e-05
    %v6621 = vadd.f32 %v6619, 1e-05
    %v6622 = vrsqrt.pop %v6620
    %v6623 = vrsqrt.pop %v6621
    %v6624 = vmul.f32 %v6610, %v6622
    %v6625 = vmul.f32 %v6611, %v6623
    %v6627 = vlaneseq
    %v6628 = vshrl.u32 %v6627, 7
    %v6629 = vsub.s32 0, %v6628
    %v6630 = vrot.slane %v6601, %v6629
    %v6632 = vmul.f32 %v6624, %v6630
    %v6633 = vmul.f32 %v6625, %v6630
    %v6635 = vlaneseq
    %v6636 = vshrl.u32 %v6635, 7
    %v6637 = vsub.s32 0, %v6636
    %v6638 = vrot.slane %v6603, %v6637
    %v6640 = vadd.f32 %v6632, %v6638
    %v6641 = vadd.f32 %v6633, %v6638
    %v6642 = vpack.c.bf16 %v6641, %v6640
    %s6643 = scalar_lea.vmem [#allocation7], 256
    %v6644 = vld [vmem:[%s6643] sm:$0xff]
    %v6645 = vld [vmem:[%s6643 + $0x8] sm:$0xff]
    %v6646 = vld [vmem:[%s6643 + $0x10] sm:$0xff]
    %v6647 = vld [vmem:[%s6643 + $0x18] sm:$0xff]
    %v6648 = vld [vmem:[%s6643 + $0x20] sm:$0xff]
    %v6649 = vld [vmem:[%s6643 + $0x28] sm:$0xff]
    %v6650 = vld [vmem:[%s6643 + $0x30] sm:$0xff]
    %v6651 = vld [vmem:[%s6643 + $0x38] sm:$0xff]
    %v6652 = vld [vmem:[%s6643 + $0x40] sm:$0xff]
    %v6653 = vld [vmem:[%s6643 + $0x48] sm:$0xff]
    %v6654 = vld [vmem:[%s6643 + $0x50] sm:$0xff]
    %v6655 = vld [vmem:[%s6643 + $0x58] sm:$0xff]
    %v6656 = vld [vmem:[%s6643 + $0x60] sm:$0xff]
    %v6657 = vld [vmem:[%s6643 + $0x68] sm:$0xff]
    %v6658 = vld [vmem:[%s6643 + $0x70] sm:$0xff]
    %v6659 = vld [vmem:[%s6643 + $0x78] sm:$0xff]
    %v6660 = vld [vmem:[%s6643 + $0x80] sm:$0xff]
    %v6661 = vld [vmem:[%s6643 + $0x88] sm:$0xff]
    %v6662 = vld [vmem:[%s6643 + $0x90] sm:$0xff]
    %v6663 = vld [vmem:[%s6643 + $0x98] sm:$0xff]
    %v6664 = vld [vmem:[%s6643 + $0xa0] sm:$0xff]
    %v6665 = vld [vmem:[%s6643 + $0xa8] sm:$0xff]
    %v6666 = vld [vmem:[%s6643 + $0xb0] sm:$0xff]
    %v6667 = vld [vmem:[%s6643 + $0xb8] sm:$0xff]
    %v6668 = vld [vmem:[%s6643 + $0xc0] sm:$0xff]
    %v6669 = vld [vmem:[%s6643 + $0xc8] sm:$0xff]
    %v6670 = vld [vmem:[%s6643 + $0xd0] sm:$0xff]
    %v6671 = vld [vmem:[%s6643 + $0xd8] sm:$0xff]
    %v6672 = vld [vmem:[%s6643 + $0xe0] sm:$0xff]
    %v6673 = vld [vmem:[%s6643 + $0xe8] sm:$0xff]
    %v6674 = vld [vmem:[%s6643 + $0xf0] sm:$0xff]
    %v6675 = vld [vmem:[%s6643 + $0xf8] sm:$0xff]
    %s6676 = scalar_lea.vmem %s8, 4
    %v6677 = vld [vmem:[%s6676] sm:$0xf]
    %v6679 = vlaneseq
    %v6680 = vshrl.u32 %v6679, 7
    %v6681 = vsub.s32 0, %v6680
    %v6682 = vrot.slane %v6677, %v6681
    %v6683 = vlaneseq
    %v6684 = vshrl.u32 %v6683, 7
    %v6685 = vsub.s32 1, %v6684
    %v6686 = vrot.slane %v6677, %v6685
    %v6687 = vlaneseq
    %v6688 = vshrl.u32 %v6687, 7
    %v6689 = vsub.s32 2, %v6688
    %v6690 = vrot.slane %v6677, %v6689
    %v6691 = vlaneseq
    %v6692 = vshrl.u32 %v6691, 7
    %v6693 = vsub.s32 3, %v6692
    %v6694 = vrot.slane %v6677, %v6693
    %v6731 = vunpack.c.l.b16 %v6644
    %v6732 = vunpack.c.h.b16 %v6644
    %v6733 = vunpack.c.l.b16 %v6645
    %v6734 = vunpack.c.h.b16 %v6645
    %v6735 = vunpack.c.l.b16 %v6646
    %v6736 = vunpack.c.h.b16 %v6646
    %v6737 = vunpack.c.l.b16 %v6647
    %v6738 = vunpack.c.h.b16 %v6647
    %v6739 = vunpack.c.l.b16 %v6648
    %v6740 = vunpack.c.h.b16 %v6648
    %v6741 = vunpack.c.l.b16 %v6649
    %v6742 = vunpack.c.h.b16 %v6649
    %v6743 = vunpack.c.l.b16 %v6650
    %v6744 = vunpack.c.h.b16 %v6650
    %v6745 = vunpack.c.l.b16 %v6651
    %v6746 = vunpack.c.h.b16 %v6651
    %v6747 = vunpack.c.l.b16 %v6652
    %v6748 = vunpack.c.h.b16 %v6652
    %v6749 = vunpack.c.l.b16 %v6653
    %v6750 = vunpack.c.h.b16 %v6653
    %v6751 = vunpack.c.l.b16 %v6654
    %v6752 = vunpack.c.h.b16 %v6654
    %v6753 = vunpack.c.l.b16 %v6655
    %v6754 = vunpack.c.h.b16 %v6655
    %v6755 = vunpack.c.l.b16 %v6656
    %v6756 = vunpack.c.h.b16 %v6656
    %v6757 = vunpack.c.l.b16 %v6657
    %v6758 = vunpack.c.h.b16 %v6657
    %v6759 = vunpack.c.l.b16 %v6658
    %v6760 = vunpack.c.h.b16 %v6658
    %v6761 = vunpack.c.l.b16 %v6659
    %v6762 = vunpack.c.h.b16 %v6659
    %v6763 = vunpack.c.l.b16 %v6660
    %v6764 = vunpack.c.h.b16 %v6660
    %v6765 = vunpack.c.l.b16 %v6661
    %v6766 = vunpack.c.h.b16 %v6661
    %v6767 = vunpack.c.l.b16 %v6662
    %v6768 = vunpack.c.h.b16 %v6662
    %v6769 = vunpack.c.l.b16 %v6663
    %v6770 = vunpack.c.h.b16 %v6663
    %v6771 = vunpack.c.l.b16 %v6664
    %v6772 = vunpack.c.h.b16 %v6664
    %v6773 = vunpack.c.l.b16 %v6665
    %v6774 = vunpack.c.h.b16 %v6665
    %v6775 = vunpack.c.l.b16 %v6666
    %v6776 = vunpack.c.h.b16 %v6666
    %v6777 = vunpack.c.l.b16 %v6667
    %v6778 = vunpack.c.h.b16 %v6667
    %v6779 = vunpack.c.l.b16 %v6668
    %v6780 = vunpack.c.h.b16 %v6668
    %v6781 = vunpack.c.l.b16 %v6669
    %v6782 = vunpack.c.h.b16 %v6669
    %v6783 = vunpack.c.l.b16 %v6670
    %v6784 = vunpack.c.h.b16 %v6670
    %v6785 = vunpack.c.l.b16 %v6671
    %v6786 = vunpack.c.h.b16 %v6671
    %v6787 = vunpack.c.l.b16 %v6672
    %v6788 = vunpack.c.h.b16 %v6672
    %v6789 = vunpack.c.l.b16 %v6673
    %v6790 = vunpack.c.h.b16 %v6673
    %v6791 = vunpack.c.l.b16 %v6674
    %v6792 = vunpack.c.h.b16 %v6674
    %v6793 = vunpack.c.l.b16 %v6675
    %v6794 = vunpack.c.h.b16 %v6675
    %v6795 = vpack.c.b16 %v6735, %v6731
    %v6796 = vpack.c.b16 %v6736, %v6732
    %v6797 = vpack.c.b16 %v6737, %v6733
    %v6798 = vpack.c.b16 %v6738, %v6734
    %v6799 = vpack.c.b16 %v6743, %v6739
    %v6800 = vpack.c.b16 %v6744, %v6740
    %v6801 = vpack.c.b16 %v6745, %v6741
    %v6802 = vpack.c.b16 %v6746, %v6742
    %v6803 = vpack.c.b16 %v6751, %v6747
    %v6804 = vpack.c.b16 %v6752, %v6748
    %v6805 = vpack.c.b16 %v6753, %v6749
    %v6806 = vpack.c.b16 %v6754, %v6750
    %v6807 = vpack.c.b16 %v6759, %v6755
    %v6808 = vpack.c.b16 %v6760, %v6756
    %v6809 = vpack.c.b16 %v6761, %v6757
    %v6810 = vpack.c.b16 %v6762, %v6758
    %v6811 = vpack.c.b16 %v6767, %v6763
    %v6812 = vpack.c.b16 %v6768, %v6764
    %v6813 = vpack.c.b16 %v6769, %v6765
    %v6814 = vpack.c.b16 %v6770, %v6766
    %v6815 = vpack.c.b16 %v6775, %v6771
    %v6816 = vpack.c.b16 %v6776, %v6772
    %v6817 = vpack.c.b16 %v6777, %v6773
    %v6818 = vpack.c.b16 %v6778, %v6774
    %v6819 = vpack.c.b16 %v6783, %v6779
    %v6820 = vpack.c.b16 %v6784, %v6780
    %v6821 = vpack.c.b16 %v6785, %v6781
    %v6822 = vpack.c.b16 %v6786, %v6782
    %v6823 = vpack.c.b16 %v6791, %v6787
    %v6824 = vpack.c.b16 %v6792, %v6788
    %v6825 = vpack.c.b16 %v6793, %v6789
    %v6826 = vpack.c.b16 %v6794, %v6790
    %6859 = vmatprep.subr.bf16.mxu0 %v6796
    %6860 = vmatpush1.bf16.msra.mxu0 %v6795
    %6861 = vmatprep.subr.bf16.mxu0 %v6800
    %6862 = vmatpush1.bf16.msra.mxu0 %v6799
    %6863 = vmatprep.subr.bf16.mxu0 %v6804
    %6864 = vmatpush1.bf16.msra.mxu0 %v6803
    %6865 = vmatprep.subr.bf16.mxu0 %v6808
    %6866 = vmatpush1.bf16.msra.mxu0 %v6807
    %6867 = vmatprep.subr.bf16.mxu0 %v6812
    %6868 = vmatpush1.bf16.msra.mxu0 %v6811
    %6869 = vmatprep.subr.bf16.mxu0 %v6816
    %6870 = vmatpush1.bf16.msra.mxu0 %v6815
    %6871 = vmatprep.subr.bf16.mxu0 %v6820
    %6872 = vmatpush1.bf16.msra.mxu0 %v6819
    %6873 = vmatprep.subr.bf16.mxu0 %v6824
    %6874 = vmatpush1.bf16.msra.mxu0 %v6823
    %6875 = vmatprep.subr.bf16.mxu0 0
    %6876 = vmatpush1.bf16.msra.mxu0 0
    %6877 = vmatprep.subr.bf16.mxu0 0
    %6878 = vmatpush1.bf16.msra.mxu0 0
    %6879 = vmatprep.subr.bf16.mxu0 0
    %6880 = vmatpush1.bf16.msra.mxu0 0
    %6881 = vmatprep.subr.bf16.mxu0 0
    %6882 = vmatpush1.bf16.msra.mxu0 0
    %6883 = vmatprep.subr.bf16.mxu0 0
    %6884 = vmatpush1.bf16.msra.mxu0 0
    %6885 = vmatprep.subr.bf16.mxu0 0
    %6886 = vmatpush1.bf16.msra.mxu0 0
    %6887 = vmatprep.subr.bf16.mxu0 0
    %6888 = vmatpush1.bf16.msra.mxu0 0
    %6889 = vmatprep.subr.bf16.mxu0 0
    %6890 = vmatpush1.bf16.msra.mxu0 0
    %6891 = vmatprep.mubr.bf16.mxu0 0
    %6892 = vmatmul.mubr.bf16.gmra.mrb[0].mxu0 %v6642
    %v6893 = vpop.f32.mrb[0].mxu0
    %v6894 = vadd.f32 %v6682, %v6893
    %v6895 = vpop.f32.mrb[0].mxu0
    %v6896 = vadd.f32 %v6686, %v6895
    %v6897 = vpop.f32.mrb[0].mxu0
    %v6898 = vadd.f32 %v6682, %v6897
    %v6899 = vpop.f32.mrb[0].mxu0
    %v6900 = vadd.f32 %v6686, %v6899
    %6901 = vdwg.mxu0
    %6902 = vmatprep.subr.bf16.mxu0 %v6798
    %6903 = vmatpush1.bf16.msra.mxu0 %v6797
    %6904 = vmatprep.subr.bf16.mxu0 %v6802
    %6905 = vmatpush1.bf16.msra.mxu0 %v6801
    %6906 = vmatprep.subr.bf16.mxu0 %v6806
    %6907 = vmatpush1.bf16.msra.mxu0 %v6805
    %6908 = vmatprep.subr.bf16.mxu0 %v6810
    %6909 = vmatpush1.bf16.msra.mxu0 %v6809
    %6910 = vmatprep.subr.bf16.mxu0 %v6814
    %6911 = vmatpush1.bf16.msra.mxu0 %v6813
    %6912 = vmatprep.subr.bf16.mxu0 %v6818
    %6913 = vmatpush1.bf16.msra.mxu0 %v6817
    %6914 = vmatprep.subr.bf16.mxu0 %v6822
    %6915 = vmatpush1.bf16.msra.mxu0 %v6821
    %6916 = vmatprep.subr.bf16.mxu0 %v6826
    %6917 = vmatpush1.bf16.msra.mxu0 %v6825
    %6918 = vmatprep.subr.bf16.mxu0 0
    %6919 = vmatpush1.bf16.msra.mxu0 0
    %6920 = vmatprep.subr.bf16.mxu0 0
    %6921 = vmatpush1.bf16.msra.mxu0 0
    %6922 = vmatprep.subr.bf16.mxu0 0
    %6923 = vmatpush1.bf16.msra.mxu0 0
    %6924 = vmatprep.subr.bf16.mxu0 0
    %6925 = vmatpush1.bf16.msra.mxu0 0
    %6926 = vmatprep.subr.bf16.mxu0 0
    %6927 = vmatpush1.bf16.msra.mxu0 0
    %6928 = vmatprep.subr.bf16.mxu0 0
    %6929 = vmatpush1.bf16.msra.mxu0 0
    %6930 = vmatprep.subr.bf16.mxu0 0
    %6931 = vmatpush1.bf16.msra.mxu0 0
    %6932 = vmatprep.subr.bf16.mxu0 0
    %6933 = vmatpush1.bf16.msra.mxu0 0
    %6934 = vmatprep.mubr.bf16.mxu0 0
    %6935 = vmatmul.mubr.bf16.gmra.mrb[0].mxu0 %v6642
    %v6936 = vpop.f32.mrb[0].mxu0
    %v6937 = vadd.f32 %v6690, %v6936
    %v6938 = vpop.f32.mrb[0].mxu0
    %v6939 = vadd.f32 %v6694, %v6938
    %v6940 = vpop.f32.mrb[0].mxu0
    %v6941 = vadd.f32 %v6690, %v6940
    %v6942 = vpop.f32.mrb[0].mxu0
    %v6943 = vadd.f32 %v6694, %v6942
    %6944 = vdwg.mxu0
    %v6945 = vmul.f32 %v6894, 0.5
    %v6946 = vmul.f32 %v6896, 0.5
    %v6947 = vmul.f32 %v6937, 0.5
    %v6948 = vmul.f32 %v6939, 0.5
    %v6949 = vmul.f32 %v6898, 0.5
    %v6950 = vmul.f32 %v6900, 0.5
    %v6951 = vmul.f32 %v6941, 0.5
    %v6952 = vmul.f32 %v6943, 0.5
    %v6953 = vmul.f32 %v6894, 0.70710677
    %v6954 = vmul.f32 %v6896, 0.70710677
    %v6955 = vmul.f32 %v6937, 0.70710677
    %v6956 = vmul.f32 %v6939, 0.70710677
    %v6957 = vmul.f32 %v6898, 0.70710677
    %v6958 = vmul.f32 %v6900, 0.70710677
    %v6959 = vmul.f32 %v6941, 0.70710677
    %v6960 = vmul.f32 %v6943, 0.70710677
    %v6961 = verf.f32.pop %v6953
    %v6962 = verf.f32.pop %v6954
    %v6963 = verf.f32.pop %v6955
    %v6964 = verf.f32.pop %v6956
    %v6965 = verf.f32.pop %v6957
    %v6966 = verf.f32.pop %v6958
    %v6967 = verf.f32.pop %v6959
    %v6968 = verf.f32.pop %v6960
    %v6969 = vadd.f32 %v6961, 1.0
    %v6970 = vadd.f32 %v6962, 1.0
    %v6971 = vadd.f32 %v6963, 1.0
    %v6972 = vadd.f32 %v6964, 1.0
    %v6973 = vadd.f32 %v6965, 1.0
    %v6974 = vadd.f32 %v6966, 1.0
    %v6975 = vadd.f32 %v6967, 1.0
    %v6976 = vadd.f32 %v6968, 1.0
    %v6977 = vmul.f32 %v6945, %v6969
    %v6978 = vmul.f32 %v6946, %v6970
    %v6979 = vmul.f32 %v6947, %v6971
    %v6980 = vmul.f32 %v6948, %v6972
    %v6981 = vmul.f32 %v6949, %v6973
    %v6982 = vmul.f32 %v6950, %v6974
    %v6983 = vmul.f32 %v6951, %v6975
    %v6984 = vmul.f32 %v6952, %v6976
    %v6985 = vpack.c.bf16 %v6981, %v6977
    %v6986 = vpack.c.bf16 %v6982, %v6978
    %v6987 = vpack.c.bf16 %v6983, %v6979
    %v6988 = vpack.c.bf16 %v6984, %v6980
    %s6989 = scalar_lea.vmem [#allocation8], 256
    %v6990 = vld [vmem:[%s6989] sm:$0xf]
    %v6991 = vld [vmem:[%s6989 + $0x4] sm:$0xf]
    %v6992 = vld [vmem:[%s6989 + $0x8] sm:$0xf]
    %v6993 = vld [vmem:[%s6989 + $0xc] sm:$0xf]
    %v6994 = vld [vmem:[%s6989 + $0x10] sm:$0xf]
    %v6995 = vld [vmem:[%s6989 + $0x14] sm:$0xf]
    %v6996 = vld [vmem:[%s6989 + $0x18] sm:$0xf]
    %v6997 = vld [vmem:[%s6989 + $0x1c] sm:$0xf]
    %v6998 = vld [vmem:[%s6989 + $0x20] sm:$0xf]
    %v6999 = vld [vmem:[%s6989 + $0x24] sm:$0xf]
    %v7000 = vld [vmem:[%s6989 + $0x28] sm:$0xf]
    %v7001 = vld [vmem:[%s6989 + $0x2c] sm:$0xf]
    %v7002 = vld [vmem:[%s6989 + $0x30] sm:$0xf]
    %v7003 = vld [vmem:[%s6989 + $0x34] sm:$0xf]
    %v7004 = vld [vmem:[%s6989 + $0x38] sm:$0xf]
    %v7005 = vld [vmem:[%s6989 + $0x3c] sm:$0xf]
    %v7006 = vld [vmem:[%s6989 + $0x40] sm:$0xf]
    %v7007 = vld [vmem:[%s6989 + $0x44] sm:$0xf]
    %v7008 = vld [vmem:[%s6989 + $0x48] sm:$0xf]
    %v7009 = vld [vmem:[%s6989 + $0x4c] sm:$0xf]
    %v7010 = vld [vmem:[%s6989 + $0x50] sm:$0xf]
    %v7011 = vld [vmem:[%s6989 + $0x54] sm:$0xf]
    %v7012 = vld [vmem:[%s6989 + $0x58] sm:$0xf]
    %v7013 = vld [vmem:[%s6989 + $0x5c] sm:$0xf]
    %v7014 = vld [vmem:[%s6989 + $0x60] sm:$0xf]
    %v7015 = vld [vmem:[%s6989 + $0x64] sm:$0xf]
    %v7016 = vld [vmem:[%s6989 + $0x68] sm:$0xf]
    %v7017 = vld [vmem:[%s6989 + $0x6c] sm:$0xf]
    %v7018 = vld [vmem:[%s6989 + $0x70] sm:$0xf]
    %v7019 = vld [vmem:[%s6989 + $0x74] sm:$0xf]
    %v7020 = vld [vmem:[%s6989 + $0x78] sm:$0xf]
    %v7021 = vld [vmem:[%s6989 + $0x7c] sm:$0xf]
    %v7022 = vld [vmem:[%s6989 + $0x80] sm:$0xf]
    %v7023 = vld [vmem:[%s6989 + $0x84] sm:$0xf]
    %v7024 = vld [vmem:[%s6989 + $0x88] sm:$0xf]
    %v7025 = vld [vmem:[%s6989 + $0x8c] sm:$0xf]
    %v7026 = vld [vmem:[%s6989 + $0x90] sm:$0xf]
    %v7027 = vld [vmem:[%s6989 + $0x94] sm:$0xf]
    %v7028 = vld [vmem:[%s6989 + $0x98] sm:$0xf]
    %v7029 = vld [vmem:[%s6989 + $0x9c] sm:$0xf]
    %v7030 = vld [vmem:[%s6989 + $0xa0] sm:$0xf]
    %v7031 = vld [vmem:[%s6989 + $0xa4] sm:$0xf]
    %v7032 = vld [vmem:[%s6989 + $0xa8] sm:$0xf]
    %v7033 = vld [vmem:[%s6989 + $0xac] sm:$0xf]
    %v7034 = vld [vmem:[%s6989 + $0xb0] sm:$0xf]
    %v7035 = vld [vmem:[%s6989 + $0xb4] sm:$0xf]
    %v7036 = vld [vmem:[%s6989 + $0xb8] sm:$0xf]
    %v7037 = vld [vmem:[%s6989 + $0xbc] sm:$0xf]
    %v7038 = vld [vmem:[%s6989 + $0xc0] sm:$0xf]
    %v7039 = vld [vmem:[%s6989 + $0xc4] sm:$0xf]
    %v7040 = vld [vmem:[%s6989 + $0xc8] sm:$0xf]
    %v7041 = vld [vmem:[%s6989 + $0xcc] sm:$0xf]
    %v7042 = vld [vmem:[%s6989 + $0xd0] sm:$0xf]
    %v7043 = vld [vmem:[%s6989 + $0xd4] sm:$0xf]
    %v7044 = vld [vmem:[%s6989 + $0xd8] sm:$0xf]
    %v7045 = vld [vmem:[%s6989 + $0xdc] sm:$0xf]
    %v7046 = vld [vmem:[%s6989 + $0xe0] sm:$0xf]
    %v7047 = vld [vmem:[%s6989 + $0xe4] sm:$0xf]
    %v7048 = vld [vmem:[%s6989 + $0xe8] sm:$0xf]
    %v7049 = vld [vmem:[%s6989 + $0xec] sm:$0xf]
    %v7050 = vld [vmem:[%s6989 + $0xf0] sm:$0xf]
    %v7051 = vld [vmem:[%s6989 + $0xf4] sm:$0xf]
    %v7052 = vld [vmem:[%s6989 + $0xf8] sm:$0xf]
    %v7053 = vld [vmem:[%s6989 + $0xfc] sm:$0xf]
    %s7054 = scalar_lea.vmem [#allocation10], 1
    %v7055 = vld [vmem:[%s7054] sm:$0x1]
    %v7057 = vlaneseq
    %v7058 = vshrl.u32 %v7057, 7
    %v7059 = vsub.s32 0, %v7058
    %v7060 = vrot.slane %v7055, %v7059
    %v7126 = vunpack.c.l.b16 %v6990
    %v7127 = vunpack.c.l.b16 %v6991
    %v7128 = vunpack.c.l.b16 %v6992
    %v7129 = vunpack.c.l.b16 %v6993
    %v7130 = vunpack.c.l.b16 %v6994
    %v7131 = vunpack.c.l.b16 %v6995
    %v7132 = vunpack.c.l.b16 %v6996
    %v7133 = vunpack.c.l.b16 %v6997
    %v7134 = vunpack.c.l.b16 %v6998
    %v7135 = vunpack.c.l.b16 %v6999
    %v7136 = vunpack.c.l.b16 %v7000
    %v7137 = vunpack.c.l.b16 %v7001
    %v7138 = vunpack.c.l.b16 %v7002
    %v7139 = vunpack.c.l.b16 %v7003
    %v7140 = vunpack.c.l.b16 %v7004
    %v7141 = vunpack.c.l.b16 %v7005
    %v7142 = vunpack.c.l.b16 %v7006
    %v7143 = vunpack.c.l.b16 %v7007
    %v7144 = vunpack.c.l.b16 %v7008
    %v7145 = vunpack.c.l.b16 %v7009
    %v7146 = vunpack.c.l.b16 %v7010
    %v7147 = vunpack.c.l.b16 %v7011
    %v7148 = vunpack.c.l.b16 %v7012
    %v7149 = vunpack.c.l.b16 %v7013
    %v7150 = vunpack.c.l.b16 %v7014
    %v7151 = vunpack.c.l.b16 %v7015
    %v7152 = vunpack.c.l.b16 %v7016
    %v7153 = vunpack.c.l.b16 %v7017
    %v7154 = vunpack.c.l.b16 %v7018
    %v7155 = vunpack.c.l.b16 %v7019
    %v7156 = vunpack.c.l.b16 %v7020
    %v7157 = vunpack.c.l.b16 %v7021
    %v7158 = vunpack.c.l.b16 %v7022
    %v7159 = vunpack.c.l.b16 %v7023
    %v7160 = vunpack.c.l.b16 %v7024
    %v7161 = vunpack.c.l.b16 %v7025
    %v7162 = vunpack.c.l.b16 %v7026
    %v7163 = vunpack.c.l.b16 %v7027
    %v7164 = vunpack.c.l.b16 %v7028
    %v7165 = vunpack.c.l.b16 %v7029
    %v7166 = vunpack.c.l.b16 %v7030
    %v7167 = vunpack.c.l.b16 %v7031
    %v7168 = vunpack.c.l.b16 %v7032
    %v7169 = vunpack.c.l.b16 %v7033
    %v7170 = vunpack.c.l.b16 %v7034
    %v7171 = vunpack.c.l.b16 %v7035
    %v7172 = vunpack.c.l.b16 %v7036
    %v7173 = vunpack.c.l.b16 %v7037
    %v7174 = vunpack.c.l.b16 %v7038
    %v7175 = vunpack.c.l.b16 %v7039
    %v7176 = vunpack.c.l.b16 %v7040
    %v7177 = vunpack.c.l.b16 %v7041
    %v7178 = vunpack.c.l.b16 %v7042
    %v7179 = vunpack.c.l.b16 %v7043
    %v7180 = vunpack.c.l.b16 %v7044
    %v7181 = vunpack.c.l.b16 %v7045
    %v7182 = vunpack.c.l.b16 %v7046
    %v7183 = vunpack.c.l.b16 %v7047
    %v7184 = vunpack.c.l.b16 %v7048
    %v7185 = vunpack.c.l.b16 %v7049
    %v7186 = vunpack.c.l.b16 %v7050
    %v7187 = vunpack.c.l.b16 %v7051
    %v7188 = vunpack.c.l.b16 %v7052
    %v7189 = vunpack.c.l.b16 %v7053
    %v7190 = vpack.c.b16 %v7127, %v7126
    %v7191 = vpack.c.b16 %v7129, %v7128
    %v7192 = vpack.c.b16 %v7131, %v7130
    %v7193 = vpack.c.b16 %v7133, %v7132
    %v7194 = vpack.c.b16 %v7135, %v7134
    %v7195 = vpack.c.b16 %v7137, %v7136
    %v7196 = vpack.c.b16 %v7139, %v7138
    %v7197 = vpack.c.b16 %v7141, %v7140
    %v7198 = vpack.c.b16 %v7143, %v7142
    %v7199 = vpack.c.b16 %v7145, %v7144
    %v7200 = vpack.c.b16 %v7147, %v7146
    %v7201 = vpack.c.b16 %v7149, %v7148
    %v7202 = vpack.c.b16 %v7151, %v7150
    %v7203 = vpack.c.b16 %v7153, %v7152
    %v7204 = vpack.c.b16 %v7155, %v7154
    %v7205 = vpack.c.b16 %v7157, %v7156
    %v7206 = vpack.c.b16 %v7159, %v7158
    %v7207 = vpack.c.b16 %v7161, %v7160
    %v7208 = vpack.c.b16 %v7163, %v7162
    %v7209 = vpack.c.b16 %v7165, %v7164
    %v7210 = vpack.c.b16 %v7167, %v7166
    %v7211 = vpack.c.b16 %v7169, %v7168
    %v7212 = vpack.c.b16 %v7171, %v7170
    %v7213 = vpack.c.b16 %v7173, %v7172
    %v7214 = vpack.c.b16 %v7175, %v7174
    %v7215 = vpack.c.b16 %v7177, %v7176
    %v7216 = vpack.c.b16 %v7179, %v7178
    %v7217 = vpack.c.b16 %v7181, %v7180
    %v7218 = vpack.c.b16 %v7183, %v7182
    %v7219 = vpack.c.b16 %v7185, %v7184
    %v7220 = vpack.c.b16 %v7187, %v7186
    %v7221 = vpack.c.b16 %v7189, %v7188
    %7254 = vmatprep.subr.bf16.mxu0 0
    %7255 = vmatpush1.bf16.msra.mxu0 %v7190
    %7256 = vmatprep.subr.bf16.mxu0 0
    %7257 = vmatpush1.bf16.msra.mxu0 %v7191
    %7258 = vmatprep.subr.bf16.mxu0 0
    %7259 = vmatpush1.bf16.msra.mxu0 %v7192
    %7260 = vmatprep.subr.bf16.mxu0 0
    %7261 = vmatpush1.bf16.msra.mxu0 %v7193
    %7262 = vmatprep.subr.bf16.mxu0 0
    %7263 = vmatpush1.bf16.msra.mxu0 %v7194
    %7264 = vmatprep.subr.bf16.mxu0 0
    %7265 = vmatpush1.bf16.msra.mxu0 %v7195
    %7266 = vmatprep.subr.bf16.mxu0 0
    %7267 = vmatpush1.bf16.msra.mxu0 %v7196
    %7268 = vmatprep.subr.bf16.mxu0 0
    %7269 = vmatpush1.bf16.msra.mxu0 %v7197
    %7270 = vmatprep.subr.bf16.mxu0 0
    %7271 = vmatpush1.bf16.msra.mxu0 %v7198
    %7272 = vmatprep.subr.bf16.mxu0 0
    %7273 = vmatpush1.bf16.msra.mxu0 %v7199
    %7274 = vmatprep.subr.bf16.mxu0 0
    %7275 = vmatpush1.bf16.msra.mxu0 %v7200
    %7276 = vmatprep.subr.bf16.mxu0 0
    %7277 = vmatpush1.bf16.msra.mxu0 %v7201
    %7278 = vmatprep.subr.bf16.mxu0 0
    %7279 = vmatpush1.bf16.msra.mxu0 %v7202
    %7280 = vmatprep.subr.bf16.mxu0 0
    %7281 = vmatpush1.bf16.msra.mxu0 %v7203
    %7282 = vmatprep.subr.bf16.mxu0 0
    %7283 = vmatpush1.bf16.msra.mxu0 %v7204
    %7284 = vmatprep.subr.bf16.mxu0 0
    %7285 = vmatpush1.bf16.msra.mxu0 %v7205
    %7286 = vmatprep.mubr.bf16.mxu0 %v6986
    %7287 = vmatmul.mubr.bf16.gmra.mrb[0].mxu0 %v6985
    %v7288 = vpop.f32.mrb[0].mxu0
    %v7289 = vadd.f32 %v7060, %v7288
    %v7290 = vpop.f32.mrb[0].mxu0
    %v7291 = vpop.f32.mrb[0].mxu0
    %v7292 = vadd.f32 %v7060, %v7291
    %v7293 = vpop.f32.mrb[0].mxu0
    %7294 = vdwg.mxu0
    %7295 = vmatprep.subr.bf16.mxu0 0
    %7296 = vmatpush1.bf16.msra.mxu0 %v7206
    %7297 = vmatprep.subr.bf16.mxu0 0
    %7298 = vmatpush1.bf16.msra.mxu0 %v7207
    %7299 = vmatprep.subr.bf16.mxu0 0
    %7300 = vmatpush1.bf16.msra.mxu0 %v7208
    %7301 = vmatprep.subr.bf16.mxu0 0
    %7302 = vmatpush1.bf16.msra.mxu0 %v7209
    %7303 = vmatprep.subr.bf16.mxu0 0
    %7304 = vmatpush1.bf16.msra.mxu0 %v7210
    %7305 = vmatprep.subr.bf16.mxu0 0
    %7306 = vmatpush1.bf16.msra.mxu0 %v7211
    %7307 = vmatprep.subr.bf16.mxu0 0
    %7308 = vmatpush1.bf16.msra.mxu0 %v7212
    %7309 = vmatprep.subr.bf16.mxu0 0
    %7310 = vmatpush1.bf16.msra.mxu0 %v7213
    %7311 = vmatprep.subr.bf16.mxu0 0
    %7312 = vmatpush1.bf16.msra.mxu0 %v7214
    %7313 = vmatprep.subr.bf16.mxu0 0
    %7314 = vmatpush1.bf16.msra.mxu0 %v7215
    %7315 = vmatprep.subr.bf16.mxu0 0
    %7316 = vmatpush1.bf16.msra.mxu0 %v7216
    %7317 = vmatprep.subr.bf16.mxu0 0
    %7318 = vmatpush1.bf16.msra.mxu0 %v7217
    %7319 = vmatprep.subr.bf16.mxu0 0
    %7320 = vmatpush1.bf16.msra.mxu0 %v7218
    %7321 = vmatprep.subr.bf16.mxu0 0
    %7322 = vmatpush1.bf16.msra.mxu0 %v7219
    %7323 = vmatprep.subr.bf16.mxu0 0
    %7324 = vmatpush1.bf16.msra.mxu0 %v7220
    %7325 = vmatprep.subr.bf16.mxu0 0
    %7326 = vmatpush1.bf16.msra.mxu0 %v7221
    %7327 = vmatprep.mubr.bf16.mxu0 %v6988
    %7328 = vmatmul.mubr.bf16.gmra.mrb[0].mxu0 %v6987
    %v7329 = vpop.f32.mrb[0].mxu0
    %v7330 = vadd.f32 %v7289, %v7329
    %v7331 = vpop.f32.mrb[0].mxu0
    %v7332 = vpop.f32.mrb[0].mxu0
    %v7333 = vadd.f32 %v7292, %v7332
    %v7334 = vpop.f32.mrb[0].mxu0
    %7335 = vdwg.mxu0
    %v7336 = vadd.f32 %v6640, %v7330
    %v7337 = vadd.f32 %v6641, %v7333
    %s7338 = scalar_lea.vmem [#allocation11], 1
    %v7339 = vld [vmem:[%s7338] sm:$0x1]
    %s7340 = scalar_lea.vmem [#allocation13], 1
    %v7341 = vld [vmem:[%s7340] sm:$0x1]
    %7342 = vadd.xlane.f32.xlu0 %v7336
    %v7343 = vpop.xlane.xlu0 %7342
    %7344 = vadd.xlane.f32.xlu0 %v7337
    %v7345 = vpop.xlane.xlu0 %7344
    %v7346 = vmul.f32 %v7343, %v2994
    %v7347 = vmul.f32 %v7345, %v2994
    %v7348 = vsub.f32 %v7336, %v7346
    %v7349 = vsub.f32 %v7337, %v7347
    %v7350 = vmul.f32 %v7348, %v7348
    %v7351 = vmul.f32 %v7349, %v7349
    %7352 = vadd.xlane.f32.xlu0 %v7350
    %v7353 = vpop.xlane.xlu0 %7352
    %7354 = vadd.xlane.f32.xlu0 %v7351
    %v7355 = vpop.xlane.xlu0 %7354
    %v7356 = vmul.f32 %v7353, %v2994
    %v7357 = vmul.f32 %v7355, %v2994
    %v7358 = vadd.f32 %v7356, 1e-05
    %v7359 = vadd.f32 %v7357, 1e-05
    %v7360 = vrsqrt.pop %v7358
    %v7361 = vrsqrt.pop %v7359
    %v7362 = vmul.f32 %v7348, %v7360
    %v7363 = vmul.f32 %v7349, %v7361
    %v7365 = vlaneseq
    %v7366 = vshrl.u32 %v7365, 7
    %v7367 = vsub.s32 0, %v7366
    %v7368 = vrot.slane %v7339, %v7367
    %v7370 = vmul.f32 %v7362, %v7368
    %v7371 = vmul.f32 %v7363, %v7368
    %v7373 = vlaneseq
    %v7374 = vshrl.u32 %v7373, 7
    %v7375 = vsub.s32 0, %v7374
    %v7376 = vrot.slane %v7341, %v7375
    %v7378 = vadd.f32 %v7370, %v7376
    %v7379 = vadd.f32 %v7371, %v7376
    %v7380 = vadd.f32 %v7378, %v7379
    %v7381 = vrcp.pop 2.0
    %v7382 = vmul.f32 %v7380, %v7381
    %v7383 = vpack.c.bf16 %v7382, %v7382
    %v7384 = vld [vmem:[%s13] sm:$0xf]
    %v7385 = vld [vmem:[%s13 + $0x4] sm:$0xf]
    %v7386 = vld [vmem:[%s13 + $0x8] sm:$0xf]
    %v7387 = vld [vmem:[%s13 + $0xc] sm:$0xf]
    %v7388 = vld [vmem:[%s13 + $0x10] sm:$0xf]
    %v7389 = vld [vmem:[%s13 + $0x14] sm:$0xf]
    %v7390 = vld [vmem:[%s13 + $0x18] sm:$0xf]
    %v7391 = vld [vmem:[%s13 + $0x1c] sm:$0xf]
    %v7392 = vld [vmem:[%s13 + $0x20] sm:$0xf]
    %v7393 = vld [vmem:[%s13 + $0x24] sm:$0xf]
    %v7394 = vld [vmem:[%s13 + $0x28] sm:$0xf]
    %v7395 = vld [vmem:[%s13 + $0x2c] sm:$0xf]
    %v7396 = vld [vmem:[%s13 + $0x30] sm:$0xf]
    %v7397 = vld [vmem:[%s13 + $0x34] sm:$0xf]
    %v7398 = vld [vmem:[%s13 + $0x38] sm:$0xf]
    %v7399 = vld [vmem:[%s13 + $0x3c] sm:$0xf]
    %v7400 = vld [vmem:[%s14] sm:$0x1]
    %v7402 = vlaneseq
    %v7403 = vshrl.u32 %v7402, 7
    %v7404 = vsub.s32 0, %v7403
    %v7405 = vrot.slane %v7400, %v7404
    %v7423 = vunpack.c.l.b16 %v7384
    %v7424 = vunpack.c.l.b16 %v7385
    %v7425 = vunpack.c.l.b16 %v7386
    %v7426 = vunpack.c.l.b16 %v7387
    %v7427 = vunpack.c.l.b16 %v7388
    %v7428 = vunpack.c.l.b16 %v7389
    %v7429 = vunpack.c.l.b16 %v7390
    %v7430 = vunpack.c.l.b16 %v7391
    %v7431 = vunpack.c.l.b16 %v7392
    %v7432 = vunpack.c.l.b16 %v7393
    %v7433 = vunpack.c.l.b16 %v7394
    %v7434 = vunpack.c.l.b16 %v7395
    %v7435 = vunpack.c.l.b16 %v7396
    %v7436 = vunpack.c.l.b16 %v7397
    %v7437 = vunpack.c.l.b16 %v7398
    %v7438 = vunpack.c.l.b16 %v7399
    %v7439 = vpack.c.b16 %v7424, %v7423
    %v7440 = vpack.c.b16 %v7426, %v7425
    %v7441 = vpack.c.b16 %v7428, %v7427
    %v7442 = vpack.c.b16 %v7430, %v7429
    %v7443 = vpack.c.b16 %v7432, %v7431
    %v7444 = vpack.c.b16 %v7434, %v7433
    %v7445 = vpack.c.b16 %v7436, %v7435
    %v7446 = vpack.c.b16 %v7438, %v7437
    %7455 = vmatprep.subr.bf16.mxu0 0
    %7456 = vmatpush1.bf16.msra.mxu0 %v7439
    %7457 = vmatprep.subr.bf16.mxu0 0
    %7458 = vmatpush1.bf16.msra.mxu0 %v7440
    %7459 = vmatprep.subr.bf16.mxu0 0
    %7460 = vmatpush1.bf16.msra.mxu0 %v7441
    %7461 = vmatprep.subr.bf16.mxu0 0
    %7462 = vmatpush1.bf16.msra.mxu0 %v7442
    %7463 = vmatprep.subr.bf16.mxu0 0
    %7464 = vmatpush1.bf16.msra.mxu0 %v7443
    %7465 = vmatprep.subr.bf16.mxu0 0
    %7466 = vmatpush1.bf16.msra.mxu0 %v7444
    %7467 = vmatprep.subr.bf16.mxu0 0
    %7468 = vmatpush1.bf16.msra.mxu0 %v7445
    %7469 = vmatprep.subr.bf16.mxu0 0
    %7470 = vmatpush1.bf16.msra.mxu0 %v7446
    %7471 = vmatprep.subr.bf16.mxu0 0
    %7472 = vmatpush1.bf16.msra.mxu0 0
    %7473 = vmatprep.subr.bf16.mxu0 0
    %7474 = vmatpush1.bf16.msra.mxu0 0
    %7475 = vmatprep.subr.bf16.mxu0 0
    %7476 = vmatpush1.bf16.msra.mxu0 0
    %7477 = vmatprep.subr.bf16.mxu0 0
    %7478 = vmatpush1.bf16.msra.mxu0 0
    %7479 = vmatprep.subr.bf16.mxu0 0
    %7480 = vmatpush1.bf16.msra.mxu0 0
    %7481 = vmatprep.subr.bf16.mxu0 0
    %7482 = vmatpush1.bf16.msra.mxu0 0
    %7483 = vmatprep.subr.bf16.mxu0 0
    %7484 = vmatpush1.bf16.msra.mxu0 0
    %7485 = vmatprep.subr.bf16.mxu0 0
    %7486 = vmatpush1.bf16.msra.mxu0 0
    %7487 = vmatprep.mubr.bf16.mxu0 0
    %7488 = vmatmul.mubr.bf16.gmra.mrb[0].mxu0 %v7383
    %v7489 = vpop.f32.mrb[0].mxu0
    %v7490 = vadd.f32 %v7405, %v7489
    %v7491 = vpop.f32.mrb[0].mxu0
    %v7492 = vpop.f32.mrb[0].mxu0
    %v7493 = vpop.f32.mrb[0].mxu0
    %7494 = vdwg.mxu0
    %7495 = vst [vmem:[#allocation14] sm:$0xff] %v7490
    // Predicated region
    $region90: #{mini_transformer.1} parent=1 // pred_check
      _
    $region91: #{mini_transformer.1} parent=1 // pred_check_branch
      %7497 = sbr.rel (0) target = $region93
    $region92: #{mini_transformer.1} parent=1 // pred_region
      %s7499 = ssub.s32 128, 128
      %7500 = vsyncadd [#allocation4], %s7499
      %s7502 = sshll.u32 [#allocation14], 4
      %s7503 = int_to_ptr.vmem [resolvable:$true] %s7502
      %7505 = dma.vmem_to_hbm [thread:$0]  %s7503, 128, %s15, [#allocation4]
    $region93: #{mini_transformer.1} parent=1 // pred_fallthru
      _
    // Predicated region
    $region94: #{mini_transformer.1} parent=1 // pred_check
      _
    $region95: #{mini_transformer.1} parent=1 // pred_check_branch
      %7507 = sbr.rel (0) target = $region97
    $region96: #{mini_transformer.1} parent=1 // pred_region
      %7508 = dma.done [#allocation4], 128
    $region97: #{mini_transformer.1} parent=1 // pred_fallthru
      _
    %7509 = vsyncpa [#allocation3], 1
    %7510 = vsyncpa [#allocation6], 1
    %7511 = vsyncpa [#allocation9], 1
    %7512 = vsyncpa [#allocation12], 1
    %7513 = vsyncpa [#allocation4], 1

</llo_original>
